<compile_context>
chip_gen: v5e
topology: v5e:2x2
jax: 0.10.0
libtpu: 0.0.40
codegen_flags: <defaults>
</compile_context>

<pallas_src>
import numpy as np

import jax
import jax.numpy as jnp
from jax.experimental import pallas as pl
from jax.experimental.pallas import tpu as pltpu


# ----------------------------------------------------------------------------
# Host-side constants: fold avgpool(3x3, stride 1) and the 9 conv_2 taps into
# nine (9, 49) spatial matrices so that conv_2(avgpool(x1)) = sum_t A_t@x1@W2[t]
# Returned stacked as (9*9, 49) with row index r = t*9 + o.
# ----------------------------------------------------------------------------
def _pool_tap_matrices(H, W):
    Hp, Wp = H - 2, W - 2          # after avgpool: 5x5
    Ho, Wo = Hp - 2, Wp - 2        # after conv_2:  3x3
    pool = np.zeros((Hp * Wp, H * W), np.float32)
    for i in range(Hp):
        for j in range(Wp):
            for di in range(3):
                for dj in range(3):
                    pool[i * Wp + j, (i + di) * W + (j + dj)] = 1.0 / 9.0
    taps = np.zeros((9, Ho * Wo, H * W), np.float32)
    for di in range(3):
        for dj in range(3):
            sel = np.zeros((Ho * Wo, Hp * Wp), np.float32)
            for i in range(Ho):
                for j in range(Wo):
                    sel[i * Wo + j, (i + di) * Wp + (j + dj)] = 1.0
            taps[di * 3 + dj] = sel @ pool
    return taps.reshape(9 * Ho * Wo, H * W)        # (81, 49), row = t*9 + o


# ----------------------------------------------------------------------------
# Fused kernel
# ----------------------------------------------------------------------------
def _fsod_kernel(xq_ref, fc1q_ref, fc1sb_ref, fc2_ref, fc2b_ref,
                 cor_ref, scor_ref, c1q_ref, sup1_ref,
                 taps_ref, w2_ref, w3_ref, heads_ref, clsb_ref, o_ref):
    f32, bf16 = jnp.float32, jnp.bfloat16
    tn, SP, C = xq_ref.shape                       # SP = 56 (49 real + 7 zero rows)
    C4 = w3_ref.shape[0]
    inv_s = 1.0 / 49.0                             # real spatial extent is 7x7

    xq = xq_ref[...]                               # (tn, 56, C) bf16
    xq2 = xq.reshape(tn * SP, C)                   # rows = (proposal, position)

    # ---------------- global relation branch ----------------
    qfc = jnp.sum(xq.astype(f32), axis=1) * inv_s                       # (tn, C)
    h = jnp.dot(qfc.astype(bf16), fc1q_ref[...],
                preferred_element_type=f32) + fc1sb_ref[...]            # + hoisted support half
    h = jnp.maximum(h, 0.0)
    h = jnp.dot(h.astype(bf16), fc2_ref[...],
                preferred_element_type=f32) + fc2b_ref[...]
    h = jnp.maximum(h, 0.0)                                             # (tn, C)

    # ---------------- local correlation branch ----------------
    qcor = jnp.dot(xq2, cor_ref[...], preferred_element_type=f32).reshape(tn, SP, C)
    xcor = jnp.maximum(jnp.sum(qcor * scor_ref[...][None, :, :], axis=1), 0.0)   # (tn, C)

    # ---------------- patch relation branch ----------------
    x1 = jnp.dot(xq2, c1q_ref[...], preferred_element_type=f32).reshape(tn, SP, C4)
    x1 = jnp.maximum(x1 + sup1_ref[...][None, :, :], 0.0)               # (tn, 56, C4)

    # folded avgpool + conv_2 taps for ALL proposals / taps / output positions
    # in one batched matmul: (tn x (81,56)@(56,C4))
    p = jnp.einsum('nrs,nsc->nrc', taps_ref[...], x1.astype(bf16),
                   preferred_element_type=f32)                          # (tn, 81, C4), r=(t,o)

    w2 = w2_ref[...]                                                    # (9, C4, C4) bf16
    acc = jnp.zeros((tn * 9, C4), f32)
    for t in range(9):                                                  # static 9-step conv_2
        pt = p[:, t * 9:(t + 1) * 9, :].reshape(tn * 9, C4)             # rows = (proposal, out-pos)
        acc = acc + jnp.dot(pt.astype(bf16), w2[t], preferred_element_type=f32)
    x2 = jnp.maximum(acc, 0.0)                                          # (tn*9, C4)
    x4 = jnp.maximum(jnp.dot(x2.astype(bf16), w3_ref[...],
                             preferred_element_type=f32), 0.0)          # (tn*9, C)
    pr = jnp.mean(x4.reshape(tn, 9, C), axis=1)                         # final 3x3 avgpool (tn,C)

    # ---------------- fused classifier heads + softmax ----------------
    feat = jnp.concatenate([pr, xcor, h], axis=1)                       # (tn, 3C)
    logits = jnp.dot(feat, heads_ref[...], preferred_element_type=f32) + clsb_ref[...]
    m = jnp.max(logits, axis=1, keepdims=True)
    e = jnp.exp(logits - m)
    o_ref[...] = (e / jnp.sum(e, axis=1, keepdims=True)).astype(o_ref.dtype)


# ----------------------------------------------------------------------------
# Parameters (deterministic synthetic init mirroring _init_weights: N(0, 0.01)
# weights, zero biases).  Layouts are matmul friendly: Linears / 1x1 convs are
# (in, out); conv_2 is (tap, in, out); fc_1 / conv_1 are pre-split into their
# query / support halves.  Large weights are stored in bf16.
# Real PyTorch weights ((out,in,kh,kw) / (out,in)) would need transposing.
# ----------------------------------------------------------------------------
def init_params(key, dim_in):
    c, c4 = dim_in, dim_in // 4
    ks = jax.random.split(key, 11)
    n = lambda k, s: (0.01 * jax.random.normal(k, s, jnp.float32))
    bf = lambda x: x.astype(jnp.bfloat16)
    z = lambda s: jnp.zeros(s, jnp.float32)
    # TODO(synk): bbox_pred_pr exists in __init__ but is unused in forward; omitted.
    return {
        # global relation (fc_1 split into query / support halves)
        "fc1q_w": bf(n(ks[0], (c, c))), "fc1s_w": bf(n(ks[1], (c, c))),
        "fc1_b": z((1, c)),
        "fc2_w": bf(n(ks[2], (c, c))), "fc2_b": z((1, c)),
        "cls_fc_w": n(ks[3], (c, 2)),
        # local correlation
        "cor_w": bf(n(ks[4], (c, c))),
        "cls_cor_w": n(ks[5], (c, 2)),
        # patch relation (conv_1 split into query / support halves)
        "conv1q_w": bf(n(ks[6], (c, c4))), "conv1s_w": bf(n(ks[7], (c, c4))),
        "conv2_w": bf(n(ks[8], (9, c4, c4))),
        "conv3_w": bf(n(ks[9], (c4, c))),
        "cls_pr_w": n(ks[10], (c, 2)),
        # the three classifier biases are summed once (all zero at init)
        "cls_b": z((1, 2)),
    }


# ----------------------------------------------------------------------------
# Wrapper
# ----------------------------------------------------------------------------
def fsod_forward(x_query, x_support, params, *, block_n=8, vmem_limit_mb=64):
    """x_query:(N,C,7,7), x_support:(M,C,7,7) NCHW -> softmaxed scores (N,2).

    block_n: proposals per grid step (multiple of 8).  Suggested: 32-64 on
    v5e/v6e (with vmem_limit_mb ~96), 8-16 on v7x (keep vmem_limit_mb <= 56 and
    N >= 2*block_n so the two TensorCores both get work).
    """
    N, C, H, W = x_query.shape
    assert (H, W) == (7, 7), "FSODLayer's pool/conv chain requires 7x7 RoI features"
    assert C % 4 == 0
    S, SP = H * W, 56                     # spatial 49 padded to 56 (8-aligned)
    C4 = C // 4
    f32, bf16 = jnp.float32, jnp.bfloat16

    tn = int(block_n)
    assert tn % 8 == 0, "block_n must be a multiple of 8 (TPU sublane tile)"
    N_pad = ((N + tn - 1) // tn) * tn     # pad proposals; extras sliced off below
    grid = (N_pad // tn,)

    # ---- query stream: NCHW -> (N_pad, 56, C) bf16 (only per-step HBM traffic) ----
    xq = jnp.transpose(x_query, (0, 2, 3, 1)).reshape(N, S, C).astype(f32)
    xq = jnp.pad(xq, ((0, N_pad - N), (0, SP - S), (0, 0))).astype(bf16)

    # ---- support prototype + hoisted support-side activations (computed once) ----
    sup = jnp.mean(x_support.astype(f32), axis=0)                    # (C,7,7)
    sup = jnp.transpose(sup, (1, 2, 0)).reshape(S, C)
    sup = jnp.pad(sup, ((0, SP - S), (0, 0)))                        # (56,C), pad rows zero
    scor = sup @ params["cor_w"].astype(f32)                         # support @ conv_cor
    sup1 = sup @ params["conv1s_w"].astype(f32)                      # support @ conv_1 (support half)
    sfc = jnp.sum(sup, axis=0, keepdims=True) / float(S)             # avgpool_fc(support)
    fc1sb = sfc @ params["fc1s_w"].astype(f32) + params["fc1_b"]     # fc_1 support half + bias

    # ---- constants: folded avgpool(3x3,s1)+conv_2 taps, stacked (81,56), bf16 ----
    taps = np.pad(_pool_tap_matrices(H, W), ((0, 0), (0, SP - S)))
    taps_b = jnp.broadcast_to(jnp.asarray(taps, bf16), (tn, 81, SP))

    # ---- fused classifier heads: [pr | xcor | h] @ (3C, 2) ----
    heads_w = jnp.concatenate([params["cls_pr_w"], params["cls_cor_w"],
                               params["cls_fc_w"]], axis=0)          # (3C, 2) f32

    def const_spec(shape):
        # whole-array, grid-invariant block; single-buffered so large weights are
        # resident only once in VMEM (required at dim_in=2048 on v7x's 64 MiB).
        return pl.BlockSpec(shape, lambda i: (0,) * len(shape),
                            pipeline_mode=pl.Buffered(1))

    out = pl.pallas_call(
        _fsod_kernel,
        out_shape=jax.ShapeDtypeStruct((N_pad, 2), jnp.float32),
        grid=grid,
        in_specs=[
            pl.BlockSpec((tn, SP, C), lambda i: (i, 0, 0)),          # query block (streams)
            const_spec((C, C)),          # fc_1 query half
            const_spec((1, C)),          # fc_1 support half + bias (hoisted)
            const_spec((C, C)),          # fc_2
            const_spec((1, C)),          # fc_2 bias
            const_spec((C, C)),          # conv_cor (query side)
            const_spec((SP, C)),         # support correlation map (hoisted)
            const_spec((C, C4)),         # conv_1 query half
            const_spec((SP, C4)),        # support patch features (hoisted)
            const_spec((tn, 81, SP)),    # folded pool+conv_2 taps
            const_spec((9, C4, C4)),     # conv_2
            const_spec((C4, C)),         # conv_3
            const_spec((3 * C, 2)),      # fused classifier heads
            const_spec((1, 2)),          # summed classifier bias
        ],
        out_specs=pl.BlockSpec((tn, 2), lambda i: (i, 0)),
        compiler_params=pltpu.CompilerParams(
            dimension_semantics=("parallel",),
            vmem_limit_bytes=(vmem_limit_mb * 1024 * 1024
                              if vmem_limit_mb else None)),
    )(xq, params["fc1q_w"], fc1sb, params["fc2_w"], params["fc2_b"],
      params["cor_w"], scor, params["conv1q_w"], sup1,
      taps_b, params["conv2_w"], params["conv3_w"], heads_w, params["cls_b"])
    return out[:N]


# ----------------------------------------------------------------------------
# Pure-JAX reference (f32, direct pool/conv semantics) for a sanity check.
# ----------------------------------------------------------------------------
def reference_forward(x_query, x_support, params):
    f32 = jnp.float32
    N, C, H, W = x_query.shape
    S = H * W
    C4 = C // 4
    q = jnp.transpose(x_query, (0, 2, 3, 1)).astype(f32)             # (N,7,7,C)
    sup = jnp.mean(x_support.astype(f32), axis=0)
    sup = jnp.transpose(sup, (1, 2, 0))                              # (7,7,C)

    g = lambda k: params[k].astype(f32)

    # global relation
    qfc = jnp.mean(q.reshape(N, S, C), axis=1)
    sfc = jnp.mean(sup.reshape(S, C), axis=0, keepdims=True)
    h = jax.nn.relu(qfc @ g("fc1q_w") + sfc @ g("fc1s_w") + params["fc1_b"])
    h = jax.nn.relu(h @ g("fc2_w") + params["fc2_b"])
    cls_fc = h @ params["cls_fc_w"]

    # local correlation
    qcor = q.reshape(N, S, C) @ g("cor_w")
    scor = sup.reshape(S, C) @ g("cor_w")
    xcor = jax.nn.relu(jnp.sum(qcor * scor[None], axis=1))
    cls_cor = xcor @ params["cls_cor_w"]

    # patch relation
    x1 = jax.nn.relu(q.reshape(N, S, C) @ g("conv1q_w")
                     + (sup.reshape(S, C) @ g("conv1s_w"))[None])
    x1 = x1.reshape(N, H, W, C4)
    Hp, Wp = H - 2, W - 2
    xp = sum(x1[:, di:di + Hp, dj:dj + Wp, :]
             for di in range(3) for dj in range(3)) / 9.0            # avgpool 3x3
    Ho, Wo = Hp - 2, Wp - 2
    c2 = g("conv2_w")
    x2 = sum(xp[:, di:di + Ho, dj:dj + Wo, :] @ c2[di * 3 + dj]
             for di in range(3) for dj in range(3))                  # conv_2 valid
    x2 = jax.nn.relu(x2)
    x3 = jax.nn.relu(x2 @ g("conv3_w"))                              # (N,3,3,C)
    pr = jnp.mean(x3.reshape(N, Ho * Wo, C), axis=1)
    cls_pr = pr @ params["cls_pr_w"]

    logits = cls_pr + cls_cor + cls_fc + params["cls_b"]
    return jax.nn.softmax(logits, axis=1)


# ----------------------------------------------------------------------------
# Demo
# ----------------------------------------------------------------------------
if __name__ == "__main__":
    key = jax.random.PRNGKey(0)
    k_q, k_s, k_p = jax.random.split(key, 3)

    DIM_IN = 256        # small stand-in for the real 2048 (must be divisible by 4)
    N_QUERY = 20        # deliberately not a multiple of block_n -> exercises padding
    N_SUPPORT = 3
    H = W = 7           # fixed by the module (avgpool_fc(7) + pool/conv chain -> 1x1)

    x_query = jax.random.normal(k_q, (N_QUERY, DIM_IN, H, W), jnp.float32)
    x_support = jax.random.normal(k_s, (N_SUPPORT, DIM_IN, H, W), jnp.float32)
    params = init_params(k_p, DIM_IN)

    out = jax.block_until_ready(fsod_forward(x_query, x_support, params, block_n=8))
    ref = jax.block_until_ready(reference_forward(x_query, x_support, params))

    assert out.shape == (N_QUERY, 2)
    assert bool(jnp.all(jnp.isfinite(out)))
    # rows of an eval-mode softmax must sum to 1
    assert bool(jnp.allclose(jnp.sum(out, axis=1), 1.0, atol=1e-5))
    # bf16-fed MXU vs f32 reference: small tolerance
    assert bool(jnp.allclose(out, ref, atol=5e-3)), (out, ref)
    print("KERNEL_OK")
</pallas_src>

<mosaic_0001>
module attributes {stable_mosaic.version = 11 : i64} {
  func.func @_fsod_kernel(%arg0: i32, %arg1: memref<8x56x256xbf16, #tpu.memory_space<vmem>>, %arg2: memref<256x256xbf16, #tpu.memory_space<vmem>>, %arg3: memref<1x256xf32, #tpu.memory_space<vmem>>, %arg4: memref<256x256xbf16, #tpu.memory_space<vmem>>, %arg5: memref<1x256xf32, #tpu.memory_space<vmem>>, %arg6: memref<256x256xbf16, #tpu.memory_space<vmem>>, %arg7: memref<56x256xf32, #tpu.memory_space<vmem>>, %arg8: memref<256x64xbf16, #tpu.memory_space<vmem>>, %arg9: memref<56x64xf32, #tpu.memory_space<vmem>>, %arg10: memref<8x81x56xbf16, #tpu.memory_space<vmem>>, %arg11: memref<9x64x64xbf16, #tpu.memory_space<vmem>>, %arg12: memref<64x256xbf16, #tpu.memory_space<vmem>>, %arg13: memref<768x2xf32, #tpu.memory_space<vmem>>, %arg14: memref<1x2xf32, #tpu.memory_space<vmem>>, %arg15: memref<8x2xf32, #tpu.memory_space<vmem>>) attributes {dimension_semantics = [#tpu.dimension_semantics<parallel>], iteration_bounds = array<i64: 3>, scalar_prefetch = 0 : i64, scratch_operands = 0 : i64, tpu.core_type = #tpu.core_type<tc>, window_params = [{transform_indices = @transform_0, window_bounds = array<i64: 8, 56, 256>}, {pipeline_mode = #tpu.pipeline_mode<synchronous>, transform_indices = @transform_1, window_bounds = array<i64: 256, 256>}, {pipeline_mode = #tpu.pipeline_mode<synchronous>, transform_indices = @transform_2, window_bounds = array<i64: 1, 256>}, {pipeline_mode = #tpu.pipeline_mode<synchronous>, transform_indices = @transform_3, window_bounds = array<i64: 256, 256>}, {pipeline_mode = #tpu.pipeline_mode<synchronous>, transform_indices = @transform_4, window_bounds = array<i64: 1, 256>}, {pipeline_mode = #tpu.pipeline_mode<synchronous>, transform_indices = @transform_5, window_bounds = array<i64: 256, 256>}, {pipeline_mode = #tpu.pipeline_mode<synchronous>, transform_indices = @transform_6, window_bounds = array<i64: 56, 256>}, {pipeline_mode = #tpu.pipeline_mode<synchronous>, transform_indices = @transform_7, window_bounds = array<i64: 256, 64>}, {pipeline_mode = #tpu.pipeline_mode<synchronous>, transform_indices = @transform_8, window_bounds = array<i64: 56, 64>}, {pipeline_mode = #tpu.pipeline_mode<synchronous>, transform_indices = @transform_9, window_bounds = array<i64: 8, 81, 56>}, {pipeline_mode = #tpu.pipeline_mode<synchronous>, transform_indices = @transform_10, window_bounds = array<i64: 9, 64, 64>}, {pipeline_mode = #tpu.pipeline_mode<synchronous>, transform_indices = @transform_11, window_bounds = array<i64: 64, 256>}, {pipeline_mode = #tpu.pipeline_mode<synchronous>, transform_indices = @transform_12, window_bounds = array<i64: 768, 2>}, {pipeline_mode = #tpu.pipeline_mode<synchronous>, transform_indices = @transform_13, window_bounds = array<i64: 1, 2>}, {transform_indices = @transform_14, window_bounds = array<i64: 8, 2>}]} {
    %c0 = arith.constant 0 : index
    %c0_0 = arith.constant 0 : index
    %c0_1 = arith.constant 0 : index
    %0 = vector.load %arg1[%c0, %c0_0, %c0_1] : memref<8x56x256xbf16, #tpu.memory_space<vmem>>, vector<8x56x256xbf16>
    %1 = vector.shape_cast %0 : vector<8x56x256xbf16> to vector<448x256xbf16>
    %2 = arith.extf %0 : vector<8x56x256xbf16> to vector<8x56x256xf32>
    %cst = arith.constant dense<0.000000e+00> : vector<8x256xf32>
    %3 = vector.multi_reduction <add>, %2, %cst [1] : vector<8x56x256xf32> to vector<8x256xf32>
    %cst_2 = arith.constant 0.0204081628 : f32
    %4 = vector.broadcast %cst_2 : f32 to vector<8x256xf32>
    %5 = arith.mulf %3, %4 : vector<8x256xf32>
    %6 = arith.truncf %5 : vector<8x256xf32> to vector<8x256xbf16>
    %c0_3 = arith.constant 0 : index
    %c0_4 = arith.constant 0 : index
    %7 = vector.load %arg2[%c0_3, %c0_4] : memref<256x256xbf16, #tpu.memory_space<vmem>>, vector<256x256xbf16>
    %cst_5 = arith.constant dense<0.000000e+00> : vector<8x256xf32>
    %8 = tpu.matmul %6, %7, %cst_5 {dimension_numbers = #tpu.dot_dimension_numbers<[1], [0], [0], [1], [0, 0, 1, 1], [], []>} : vector<8x256xbf16>, vector<256x256xbf16>, vector<8x256xf32> -> vector<8x256xf32>
    %c0_6 = arith.constant 0 : index
    %c0_7 = arith.constant 0 : index
    %9 = vector.load %arg3[%c0_6, %c0_7] : memref<1x256xf32, #tpu.memory_space<vmem>>, vector<1x256xf32>
    %10 = vector.broadcast %9 : vector<1x256xf32> to vector<8x256xf32>
    %11 = arith.addf %8, %10 : vector<8x256xf32>
    %cst_8 = arith.constant 0.000000e+00 : f32
    %12 = vector.broadcast %cst_8 : f32 to vector<8x256xf32>
    %13 = arith.maximumf %11, %12 : vector<8x256xf32>
    %14 = arith.truncf %13 : vector<8x256xf32> to vector<8x256xbf16>
    %c0_9 = arith.constant 0 : index
    %c0_10 = arith.constant 0 : index
    %15 = vector.load %arg4[%c0_9, %c0_10] : memref<256x256xbf16, #tpu.memory_space<vmem>>, vector<256x256xbf16>
    %cst_11 = arith.constant dense<0.000000e+00> : vector<8x256xf32>
    %16 = tpu.matmul %14, %15, %cst_11 {dimension_numbers = #tpu.dot_dimension_numbers<[1], [0], [0], [1], [0, 0, 1, 1], [], []>} : vector<8x256xbf16>, vector<256x256xbf16>, vector<8x256xf32> -> vector<8x256xf32>
    %c0_12 = arith.constant 0 : index
    %c0_13 = arith.constant 0 : index
    %17 = vector.load %arg5[%c0_12, %c0_13] : memref<1x256xf32, #tpu.memory_space<vmem>>, vector<1x256xf32>
    %18 = vector.broadcast %17 : vector<1x256xf32> to vector<8x256xf32>
    %19 = arith.addf %16, %18 : vector<8x256xf32>
    %cst_14 = arith.constant 0.000000e+00 : f32
    %20 = vector.broadcast %cst_14 : f32 to vector<8x256xf32>
    %21 = arith.maximumf %19, %20 : vector<8x256xf32>
    %c0_15 = arith.constant 0 : index
    %c0_16 = arith.constant 0 : index
    %22 = vector.load %arg6[%c0_15, %c0_16] : memref<256x256xbf16, #tpu.memory_space<vmem>>, vector<256x256xbf16>
    %cst_17 = arith.constant dense<0.000000e+00> : vector<448x256xf32>
    %23 = tpu.matmul %1, %22, %cst_17 {dimension_numbers = #tpu.dot_dimension_numbers<[1], [0], [0], [1], [0, 0, 1, 1], [], []>} : vector<448x256xbf16>, vector<256x256xbf16>, vector<448x256xf32> -> vector<448x256xf32>
    %24 = vector.shape_cast %23 : vector<448x256xf32> to vector<8x56x256xf32>
    %c0_18 = arith.constant 0 : index
    %c0_19 = arith.constant 0 : index
    %25 = vector.load %arg7[%c0_18, %c0_19] : memref<56x256xf32, #tpu.memory_space<vmem>>, vector<56x256xf32>
    %26 = vector.shape_cast %25 : vector<56x256xf32> to vector<1x56x256xf32>
    %27 = vector.broadcast %26 : vector<1x56x256xf32> to vector<8x56x256xf32>
    %28 = arith.mulf %24, %27 : vector<8x56x256xf32>
    %cst_20 = arith.constant dense<0.000000e+00> : vector<8x256xf32>
    %29 = vector.multi_reduction <add>, %28, %cst_20 [1] : vector<8x56x256xf32> to vector<8x256xf32>
    %cst_21 = arith.constant 0.000000e+00 : f32
    %30 = vector.broadcast %cst_21 : f32 to vector<8x256xf32>
    %31 = arith.maximumf %29, %30 : vector<8x256xf32>
    %c0_22 = arith.constant 0 : index
    %c0_23 = arith.constant 0 : index
    %32 = vector.load %arg8[%c0_22, %c0_23] : memref<256x64xbf16, #tpu.memory_space<vmem>>, vector<256x64xbf16>
    %cst_24 = arith.constant dense<0.000000e+00> : vector<448x64xf32>
    %33 = tpu.matmul %1, %32, %cst_24 {dimension_numbers = #tpu.dot_dimension_numbers<[1], [0], [0], [1], [0, 0, 1, 1], [], []>} : vector<448x256xbf16>, vector<256x64xbf16>, vector<448x64xf32> -> vector<448x64xf32>
    %34 = vector.shape_cast %33 : vector<448x64xf32> to vector<8x56x64xf32>
    %c0_25 = arith.constant 0 : index
    %c0_26 = arith.constant 0 : index
    %35 = vector.load %arg9[%c0_25, %c0_26] : memref<56x64xf32, #tpu.memory_space<vmem>>, vector<56x64xf32>
    %36 = vector.shape_cast %35 : vector<56x64xf32> to vector<1x56x64xf32>
    %37 = vector.broadcast %36 : vector<1x56x64xf32> to vector<8x56x64xf32>
    %38 = arith.addf %34, %37 : vector<8x56x64xf32>
    %cst_27 = arith.constant 0.000000e+00 : f32
    %39 = vector.broadcast %cst_27 : f32 to vector<8x56x64xf32>
    %40 = arith.maximumf %38, %39 : vector<8x56x64xf32>
    %c0_28 = arith.constant 0 : index
    %c0_29 = arith.constant 0 : index
    %c0_30 = arith.constant 0 : index
    %41 = vector.load %arg10[%c0_28, %c0_29, %c0_30] : memref<8x81x56xbf16, #tpu.memory_space<vmem>>, vector<8x81x56xbf16>
    %42 = arith.truncf %40 : vector<8x56x64xf32> to vector<8x56x64xbf16>
    "tpu.trace_start"() <{level = 10 : i32, message = "nrs,nsc->nrc"}> : () -> ()
    %cst_31 = arith.constant dense<0.000000e+00> : vector<8x81x64xf32>
    %43 = tpu.matmul %41, %42, %cst_31 {dimension_numbers = #tpu.dot_dimension_numbers<[2], [1], [1], [2], [0, 0, 0, 1, 1, 2], [0], [0]>} : vector<8x81x56xbf16>, vector<8x56x64xbf16>, vector<8x81x64xf32> -> vector<8x81x64xf32>
    "tpu.trace_stop"() : () -> ()
    %c0_32 = arith.constant 0 : index
    %c0_33 = arith.constant 0 : index
    %c0_34 = arith.constant 0 : index
    %44 = vector.load %arg11[%c0_32, %c0_33, %c0_34] : memref<9x64x64xbf16, #tpu.memory_space<vmem>>, vector<9x64x64xbf16>
    %cst_35 = arith.constant 0.000000e+00 : f32
    %45 = vector.broadcast %cst_35 : f32 to vector<72x64xf32>
    %46 = vector.extract_strided_slice %43 {offsets = [0, 0, 0], sizes = [8, 9, 64], strides = [1, 1, 1]} : vector<8x81x64xf32> to vector<8x9x64xf32>
    %47 = vector.shape_cast %46 : vector<8x9x64xf32> to vector<72x64xf32>
    %48 = arith.truncf %47 : vector<72x64xf32> to vector<72x64xbf16>
    %49 = vector.extract_strided_slice %44 {offsets = [0, 0, 0], sizes = [1, 64, 64], strides = [1, 1, 1]} : vector<9x64x64xbf16> to vector<1x64x64xbf16>
    %50 = vector.shape_cast %49 : vector<1x64x64xbf16> to vector<64x64xbf16>
    %cst_36 = arith.constant dense<0.000000e+00> : vector<72x64xf32>
    %51 = tpu.matmul %48, %50, %cst_36 {dimension_numbers = #tpu.dot_dimension_numbers<[1], [0], [0], [1], [0, 0, 1, 1], [], []>} : vector<72x64xbf16>, vector<64x64xbf16>, vector<72x64xf32> -> vector<72x64xf32>
    %52 = arith.addf %45, %51 : vector<72x64xf32>
    %53 = vector.extract_strided_slice %43 {offsets = [0, 9, 0], sizes = [8, 9, 64], strides = [1, 1, 1]} : vector<8x81x64xf32> to vector<8x9x64xf32>
    %54 = vector.shape_cast %53 : vector<8x9x64xf32> to vector<72x64xf32>
    %55 = arith.truncf %54 : vector<72x64xf32> to vector<72x64xbf16>
    %56 = vector.extract_strided_slice %44 {offsets = [1, 0, 0], sizes = [1, 64, 64], strides = [1, 1, 1]} : vector<9x64x64xbf16> to vector<1x64x64xbf16>
    %57 = vector.shape_cast %56 : vector<1x64x64xbf16> to vector<64x64xbf16>
    %cst_37 = arith.constant dense<0.000000e+00> : vector<72x64xf32>
    %58 = tpu.matmul %55, %57, %cst_37 {dimension_numbers = #tpu.dot_dimension_numbers<[1], [0], [0], [1], [0, 0, 1, 1], [], []>} : vector<72x64xbf16>, vector<64x64xbf16>, vector<72x64xf32> -> vector<72x64xf32>
    %59 = arith.addf %52, %58 : vector<72x64xf32>
    %60 = vector.extract_strided_slice %43 {offsets = [0, 18, 0], sizes = [8, 9, 64], strides = [1, 1, 1]} : vector<8x81x64xf32> to vector<8x9x64xf32>
    %61 = vector.shape_cast %60 : vector<8x9x64xf32> to vector<72x64xf32>
    %62 = arith.truncf %61 : vector<72x64xf32> to vector<72x64xbf16>
    %63 = vector.extract_strided_slice %44 {offsets = [2, 0, 0], sizes = [1, 64, 64], strides = [1, 1, 1]} : vector<9x64x64xbf16> to vector<1x64x64xbf16>
    %64 = vector.shape_cast %63 : vector<1x64x64xbf16> to vector<64x64xbf16>
    %cst_38 = arith.constant dense<0.000000e+00> : vector<72x64xf32>
    %65 = tpu.matmul %62, %64, %cst_38 {dimension_numbers = #tpu.dot_dimension_numbers<[1], [0], [0], [1], [0, 0, 1, 1], [], []>} : vector<72x64xbf16>, vector<64x64xbf16>, vector<72x64xf32> -> vector<72x64xf32>
    %66 = arith.addf %59, %65 : vector<72x64xf32>
    %67 = vector.extract_strided_slice %43 {offsets = [0, 27, 0], sizes = [8, 9, 64], strides = [1, 1, 1]} : vector<8x81x64xf32> to vector<8x9x64xf32>
    %68 = vector.shape_cast %67 : vector<8x9x64xf32> to vector<72x64xf32>
    %69 = arith.truncf %68 : vector<72x64xf32> to vector<72x64xbf16>
    %70 = vector.extract_strided_slice %44 {offsets = [3, 0, 0], sizes = [1, 64, 64], strides = [1, 1, 1]} : vector<9x64x64xbf16> to vector<1x64x64xbf16>
    %71 = vector.shape_cast %70 : vector<1x64x64xbf16> to vector<64x64xbf16>
    %cst_39 = arith.constant dense<0.000000e+00> : vector<72x64xf32>
    %72 = tpu.matmul %69, %71, %cst_39 {dimension_numbers = #tpu.dot_dimension_numbers<[1], [0], [0], [1], [0, 0, 1, 1], [], []>} : vector<72x64xbf16>, vector<64x64xbf16>, vector<72x64xf32> -> vector<72x64xf32>
    %73 = arith.addf %66, %72 : vector<72x64xf32>
    %74 = vector.extract_strided_slice %43 {offsets = [0, 36, 0], sizes = [8, 9, 64], strides = [1, 1, 1]} : vector<8x81x64xf32> to vector<8x9x64xf32>
    %75 = vector.shape_cast %74 : vector<8x9x64xf32> to vector<72x64xf32>
    %76 = arith.truncf %75 : vector<72x64xf32> to vector<72x64xbf16>
    %77 = vector.extract_strided_slice %44 {offsets = [4, 0, 0], sizes = [1, 64, 64], strides = [1, 1, 1]} : vector<9x64x64xbf16> to vector<1x64x64xbf16>
    %78 = vector.shape_cast %77 : vector<1x64x64xbf16> to vector<64x64xbf16>
    %cst_40 = arith.constant dense<0.000000e+00> : vector<72x64xf32>
    %79 = tpu.matmul %76, %78, %cst_40 {dimension_numbers = #tpu.dot_dimension_numbers<[1], [0], [0], [1], [0, 0, 1, 1], [], []>} : vector<72x64xbf16>, vector<64x64xbf16>, vector<72x64xf32> -> vector<72x64xf32>
    %80 = arith.addf %73, %79 : vector<72x64xf32>
    %81 = vector.extract_strided_slice %43 {offsets = [0, 45, 0], sizes = [8, 9, 64], strides = [1, 1, 1]} : vector<8x81x64xf32> to vector<8x9x64xf32>
    %82 = vector.shape_cast %81 : vector<8x9x64xf32> to vector<72x64xf32>
    %83 = arith.truncf %82 : vector<72x64xf32> to vector<72x64xbf16>
    %84 = vector.extract_strided_slice %44 {offsets = [5, 0, 0], sizes = [1, 64, 64], strides = [1, 1, 1]} : vector<9x64x64xbf16> to vector<1x64x64xbf16>
    %85 = vector.shape_cast %84 : vector<1x64x64xbf16> to vector<64x64xbf16>
    %cst_41 = arith.constant dense<0.000000e+00> : vector<72x64xf32>
    %86 = tpu.matmul %83, %85, %cst_41 {dimension_numbers = #tpu.dot_dimension_numbers<[1], [0], [0], [1], [0, 0, 1, 1], [], []>} : vector<72x64xbf16>, vector<64x64xbf16>, vector<72x64xf32> -> vector<72x64xf32>
    %87 = arith.addf %80, %86 : vector<72x64xf32>
    %88 = vector.extract_strided_slice %43 {offsets = [0, 54, 0], sizes = [8, 9, 64], strides = [1, 1, 1]} : vector<8x81x64xf32> to vector<8x9x64xf32>
    %89 = vector.shape_cast %88 : vector<8x9x64xf32> to vector<72x64xf32>
    %90 = arith.truncf %89 : vector<72x64xf32> to vector<72x64xbf16>
    %91 = vector.extract_strided_slice %44 {offsets = [6, 0, 0], sizes = [1, 64, 64], strides = [1, 1, 1]} : vector<9x64x64xbf16> to vector<1x64x64xbf16>
    %92 = vector.shape_cast %91 : vector<1x64x64xbf16> to vector<64x64xbf16>
    %cst_42 = arith.constant dense<0.000000e+00> : vector<72x64xf32>
    %93 = tpu.matmul %90, %92, %cst_42 {dimension_numbers = #tpu.dot_dimension_numbers<[1], [0], [0], [1], [0, 0, 1, 1], [], []>} : vector<72x64xbf16>, vector<64x64xbf16>, vector<72x64xf32> -> vector<72x64xf32>
    %94 = arith.addf %87, %93 : vector<72x64xf32>
    %95 = vector.extract_strided_slice %43 {offsets = [0, 63, 0], sizes = [8, 9, 64], strides = [1, 1, 1]} : vector<8x81x64xf32> to vector<8x9x64xf32>
    %96 = vector.shape_cast %95 : vector<8x9x64xf32> to vector<72x64xf32>
    %97 = arith.truncf %96 : vector<72x64xf32> to vector<72x64xbf16>
    %98 = vector.extract_strided_slice %44 {offsets = [7, 0, 0], sizes = [1, 64, 64], strides = [1, 1, 1]} : vector<9x64x64xbf16> to vector<1x64x64xbf16>
    %99 = vector.shape_cast %98 : vector<1x64x64xbf16> to vector<64x64xbf16>
    %cst_43 = arith.constant dense<0.000000e+00> : vector<72x64xf32>
    %100 = tpu.matmul %97, %99, %cst_43 {dimension_numbers = #tpu.dot_dimension_numbers<[1], [0], [0], [1], [0, 0, 1, 1], [], []>} : vector<72x64xbf16>, vector<64x64xbf16>, vector<72x64xf32> -> vector<72x64xf32>
    %101 = arith.addf %94, %100 : vector<72x64xf32>
    %102 = vector.extract_strided_slice %43 {offsets = [0, 72, 0], sizes = [8, 9, 64], strides = [1, 1, 1]} : vector<8x81x64xf32> to vector<8x9x64xf32>
    %103 = vector.shape_cast %102 : vector<8x9x64xf32> to vector<72x64xf32>
    %104 = arith.truncf %103 : vector<72x64xf32> to vector<72x64xbf16>
    %105 = vector.extract_strided_slice %44 {offsets = [8, 0, 0], sizes = [1, 64, 64], strides = [1, 1, 1]} : vector<9x64x64xbf16> to vector<1x64x64xbf16>
    %106 = vector.shape_cast %105 : vector<1x64x64xbf16> to vector<64x64xbf16>
    %cst_44 = arith.constant dense<0.000000e+00> : vector<72x64xf32>
    %107 = tpu.matmul %104, %106, %cst_44 {dimension_numbers = #tpu.dot_dimension_numbers<[1], [0], [0], [1], [0, 0, 1, 1], [], []>} : vector<72x64xbf16>, vector<64x64xbf16>, vector<72x64xf32> -> vector<72x64xf32>
    %108 = arith.addf %101, %107 : vector<72x64xf32>
    %cst_45 = arith.constant 0.000000e+00 : f32
    %109 = vector.broadcast %cst_45 : f32 to vector<72x64xf32>
    %110 = arith.maximumf %108, %109 : vector<72x64xf32>
    %111 = arith.truncf %110 : vector<72x64xf32> to vector<72x64xbf16>
    %c0_46 = arith.constant 0 : index
    %c0_47 = arith.constant 0 : index
    %112 = vector.load %arg12[%c0_46, %c0_47] : memref<64x256xbf16, #tpu.memory_space<vmem>>, vector<64x256xbf16>
    %cst_48 = arith.constant dense<0.000000e+00> : vector<72x256xf32>
    %113 = tpu.matmul %111, %112, %cst_48 {dimension_numbers = #tpu.dot_dimension_numbers<[1], [0], [0], [1], [0, 0, 1, 1], [], []>} : vector<72x64xbf16>, vector<64x256xbf16>, vector<72x256xf32> -> vector<72x256xf32>
    %cst_49 = arith.constant 0.000000e+00 : f32
    %114 = vector.broadcast %cst_49 : f32 to vector<72x256xf32>
    %115 = arith.maximumf %113, %114 : vector<72x256xf32>
    %116 = vector.shape_cast %115 : vector<72x256xf32> to vector<8x9x256xf32>
    %cst_50 = arith.constant dense<0.000000e+00> : vector<8x256xf32>
    %117 = vector.multi_reduction <add>, %116, %cst_50 [1] : vector<8x9x256xf32> to vector<8x256xf32>
    %cst_51 = arith.constant 9.000000e+00 : f32
    %118 = vector.broadcast %cst_51 : f32 to vector<8x256xf32>
    %119 = arith.divf %117, %118 : vector<8x256xf32>
    %120 = tpu.concatenate %119, %31, %21 in 1 : vector<8x256xf32>, vector<8x256xf32>, vector<8x256xf32> -> vector<8x768xf32>
    %c0_52 = arith.constant 0 : index
    %c0_53 = arith.constant 0 : index
    %121 = vector.load %arg13[%c0_52, %c0_53] : memref<768x2xf32, #tpu.memory_space<vmem>>, vector<768x2xf32>
    %cst_54 = arith.constant dense<0.000000e+00> : vector<8x2xf32>
    %122 = tpu.matmul %120, %121, %cst_54 {dimension_numbers = #tpu.dot_dimension_numbers<[1], [0], [0], [1], [0, 0, 1, 1], [], []>} : vector<8x768xf32>, vector<768x2xf32>, vector<8x2xf32> -> vector<8x2xf32>
    %c0_55 = arith.constant 0 : index
    %c0_56 = arith.constant 0 : index
    %123 = vector.load %arg14[%c0_55, %c0_56] : memref<1x2xf32, #tpu.memory_space<vmem>>, vector<1x2xf32>
    %124 = vector.broadcast %123 : vector<1x2xf32> to vector<8x2xf32>
    %125 = arith.addf %122, %124 : vector<8x2xf32>
    %cst_57 = arith.constant dense<0xFF800000> : vector<8xf32>
    %126 = vector.multi_reduction <maximumf>, %125, %cst_57 [1] : vector<8x2xf32> to vector<8xf32>
    %127 = vector.shape_cast %126 : vector<8xf32> to vector<8x1xf32>
    %128 = vector.broadcast %127 : vector<8x1xf32> to vector<8x2xf32>
    %129 = arith.subf %125, %128 : vector<8x2xf32>
    %130 = math.exp %129 : vector<8x2xf32>
    %cst_58 = arith.constant dense<0.000000e+00> : vector<8xf32>
    %131 = vector.multi_reduction <add>, %130, %cst_58 [1] : vector<8x2xf32> to vector<8xf32>
    %132 = vector.shape_cast %131 : vector<8xf32> to vector<8x1xf32>
    %133 = vector.broadcast %132 : vector<8x1xf32> to vector<8x2xf32>
    %134 = arith.divf %130, %133 : vector<8x2xf32>
    %c0_59 = arith.constant 0 : index
    %c0_60 = arith.constant 0 : index
    %135 = vector.load %arg15[%c0_59, %c0_60] : memref<8x2xf32, #tpu.memory_space<vmem>>, vector<8x2xf32>
    tpu.vector_store %arg15[%c0_59, %c0_60], %134 {strides = array<i32>} : memref<8x2xf32, #tpu.memory_space<vmem>>, vector<8x2xf32>,
    return
  }
  func.func @transform_0(%arg0: i32) -> (i32, i32, i32) {
    %c0_i32 = arith.constant 0 : i32
    %c0_i32_0 = arith.constant 0 : i32
    %c0_i32_1 = arith.constant 0 : i32
    return %arg0, %c0_i32, %c0_i32_0 : i32, i32, i32
  }
  func.func @transform_1(%arg0: i32) -> (i32, i32) {
    %c0_i32 = arith.constant 0 : i32
    %c0_i32_0 = arith.constant 0 : i32
    %c0_i32_1 = arith.constant 0 : i32
    return %c0_i32, %c0_i32_0 : i32, i32
  }
  func.func @transform_2(%arg0: i32) -> (i32, i32) {
    %c0_i32 = arith.constant 0 : i32
    %c0_i32_0 = arith.constant 0 : i32
    %c0_i32_1 = arith.constant 0 : i32
    return %c0_i32, %c0_i32_0 : i32, i32
  }
  func.func @transform_3(%arg0: i32) -> (i32, i32) {
    %c0_i32 = arith.constant 0 : i32
    %c0_i32_0 = arith.constant 0 : i32
    %c0_i32_1 = arith.constant 0 : i32
    return %c0_i32, %c0_i32_0 : i32, i32
  }
  func.func @transform_4(%arg0: i32) -> (i32, i32) {
    %c0_i32 = arith.constant 0 : i32
    %c0_i32_0 = arith.constant 0 : i32
    %c0_i32_1 = arith.constant 0 : i32
    return %c0_i32, %c0_i32_0 : i32, i32
  }
  func.func @transform_5(%arg0: i32) -> (i32, i32) {
    %c0_i32 = arith.constant 0 : i32
    %c0_i32_0 = arith.constant 0 : i32
    %c0_i32_1 = arith.constant 0 : i32
    return %c0_i32, %c0_i32_0 : i32, i32
  }
  func.func @transform_6(%arg0: i32) -> (i32, i32) {
    %c0_i32 = arith.constant 0 : i32
    %c0_i32_0 = arith.constant 0 : i32
    %c0_i32_1 = arith.constant 0 : i32
    return %c0_i32, %c0_i32_0 : i32, i32
  }
  func.func @transform_7(%arg0: i32) -> (i32, i32) {
    %c0_i32 = arith.constant 0 : i32
    %c0_i32_0 = arith.constant 0 : i32
    %c0_i32_1 = arith.constant 0 : i32
    return %c0_i32, %c0_i32_0 : i32, i32
  }
  func.func @transform_8(%arg0: i32) -> (i32, i32) {
    %c0_i32 = arith.constant 0 : i32
    %c0_i32_0 = arith.constant 0 : i32
    %c0_i32_1 = arith.constant 0 : i32
    return %c0_i32, %c0_i32_0 : i32, i32
  }
  func.func @transform_9(%arg0: i32) -> (i32, i32, i32) {
    %c0_i32 = arith.constant 0 : i32
    %c0_i32_0 = arith.constant 0 : i32
    %c0_i32_1 = arith.constant 0 : i32
    %c0_i32_2 = arith.constant 0 : i32
    return %c0_i32, %c0_i32_0, %c0_i32_1 : i32, i32, i32
  }
  func.func @transform_10(%arg0: i32) -> (i32, i32, i32) {
    %c0_i32 = arith.constant 0 : i32
    %c0_i32_0 = arith.constant 0 : i32
    %c0_i32_1 = arith.constant 0 : i32
    %c0_i32_2 = arith.constant 0 : i32
    return %c0_i32, %c0_i32_0, %c0_i32_1 : i32, i32, i32
  }
  func.func @transform_11(%arg0: i32) -> (i32, i32) {
    %c0_i32 = arith.constant 0 : i32
    %c0_i32_0 = arith.constant 0 : i32
    %c0_i32_1 = arith.constant 0 : i32
    return %c0_i32, %c0_i32_0 : i32, i32
  }
  func.func @transform_12(%arg0: i32) -> (i32, i32) {
    %c0_i32 = arith.constant 0 : i32
    %c0_i32_0 = arith.constant 0 : i32
    %c0_i32_1 = arith.constant 0 : i32
    return %c0_i32, %c0_i32_0 : i32, i32
  }
  func.func @transform_13(%arg0: i32) -> (i32, i32) {
    %c0_i32 = arith.constant 0 : i32
    %c0_i32_0 = arith.constant 0 : i32
    %c0_i32_1 = arith.constant 0 : i32
    return %c0_i32, %c0_i32_0 : i32, i32
  }
  func.func @transform_14(%arg0: i32) -> (i32, i32) {
    %c0_i32 = arith.constant 0 : i32
    %c0_i32_0 = arith.constant 0 : i32
    return %arg0, %c0_i32 : i32, i32
  }
}

</mosaic_0001>

<llo_original>
// kernel: tpu_custom_call.1
$region0: #{tpu_custom_call.1}
  #allocation0 [shape = 'u32[]', space=smem, size = 0x4, offset = 0x4, fixed_abs, tag = 'smem constant byte address 0x4 - core index']
  #allocation1 [shape = 'u32[72,128]{1,0:T(1,128)}', space=vmem, size = 0x9000, scoped, tag = 'internal scratch']
  %s0 = inlined_call_operand.vmem [shape: bf16[24,56,256], index: 0, kind: input, shape index: {}]
  %s1 = inlined_call_operand.hbm [shape: bf16[256,256], index: 1, kind: input, shape index: {}]
  %s2 = inlined_call_operand.vmem [shape: f32[1,256], index: 2, kind: input, shape index: {}]
  %s3 = inlined_call_operand.hbm [shape: bf16[256,256], index: 3, kind: input, shape index: {}]
  %s4 = inlined_call_operand.vmem [shape: f32[1,256], index: 4, kind: input, shape index: {}]
  %s5 = inlined_call_operand.hbm [shape: bf16[256,256], index: 5, kind: input, shape index: {}]
  %s6 = inlined_call_operand.vmem [shape: f32[56,256], index: 6, kind: input, shape index: {}]
  %s7 = inlined_call_operand.vmem [shape: bf16[256,64], index: 7, kind: input, shape index: {}]
  %s8 = inlined_call_operand.hbm [shape: f32[56,64], index: 8, kind: input, shape index: {}]
  %s9 = inlined_call_operand.vmem [shape: bf16[8,81,56], index: 9, kind: input, shape index: {}]
  %s10 = inlined_call_operand.hbm [shape: bf16[9,64,64], index: 10, kind: input, shape index: {}]
  %s11 = inlined_call_operand.vmem [shape: bf16[64,256], index: 11, kind: input, shape index: {}]
  %s12 = inlined_call_operand.vmem [shape: f32[768,2], index: 12, kind: input, shape index: {}]
  %s13 = inlined_call_operand.vmem [shape: f32[1,2], index: 13, kind: input, shape index: {}]
  %s14 = inlined_call_operand.vmem [shape: f32[24,2], index: 14, kind: output, shape index: {}]
  %s15 = sld [smem:[#allocation0]]
  $region109: #{tpu_custom_call.1} parent=0
    _
  %s17 = ssub.s32 1, %s15
  %s18 = scalar_select 0, %s17, %s15
  $region1: #{tpu_custom_call.1} parent=0
    #allocation2 [shape = 'u8[131072]{0}', space=vmem, size = 0x20000, scoped, tag = 'input window, operand 1, single buffered']
    #allocation3 [shape = 's32[2]{0}', space=sflag, size = 0x8, scoped, tag = 'scoped memory for tpu_custom_call.1']
    #allocation4 [shape = 'u8[131072]{0}', space=vmem, size = 0x20000, scoped, tag = 'input window, operand 3, single buffered']
    #allocation5 [shape = 's32[1]{0}', space=sflag, size = 0x4, scoped, tag = 'scoped memory for tpu_custom_call.1']
    #allocation6 [shape = 'u8[131072]{0}', space=vmem, size = 0x20000, scoped, tag = 'input window, operand 5, single buffered']
    #allocation7 [shape = 'u8[28672]{0}', space=vmem, size = 0x7000, scoped, tag = 'input window, operand 8, single buffered']
    #allocation8 [shape = 's32[1]{0}', space=sflag, size = 0x4, scoped, tag = 'scoped memory for tpu_custom_call.1']
    #allocation9 [shape = 'u8[147456]{0}', space=vmem, size = 0x24000, scoped, tag = 'input window, operand 10, single buffered']
    %19 = vsyncpa [#allocation3], 0
    %20 = vsyncpa [#allocation5], 0
    %21 = vsyncpa [#allocation8], 0
    loop: start=0, step=1, limit=5
    $region2: #{tpu_custom_call.1} parent=1 // loop_pre_header
      _
    $region3: #{tpu_custom_call.1} parent=1 // loop_header
      %s23 = sphi 0, %s27
      %p24 = scmp.ge.s32.totalorder %s23, 5
      %s33 = sphi 0, %s35
      %s36 = sphi 0, %s33
      %s37 = sphi 0, %s36
      %s53 = sphi 0, %s37
      %s57 = sphi 0, %s57
      %s59 = sphi 0, %s57
      %s60 = sphi 0, %s59
      %s74 = sphi 0, %s60
      %s78 = sphi 0, %s78
      %s80 = sphi 0, %s78
      %s81 = sphi 0, %s80
      %s95 = sphi 0, %s81
      %s99 = sphi 0, %s99
      %s101 = sphi 0, %s99
      %s102 = sphi 0, %s101
      %s116 = sphi 0, %s102
      %s120 = sphi 0, %s120
      %s122 = sphi 0, %s120
      %s123 = sphi 0, %s122
      %s137 = sphi 0, %s123
      %s141 = sphi 0, %s141
      %s143 = sphi 0, %s141
      %s144 = sphi 0, %s143
      %s158 = sphi 0, %s144
      %s162 = sphi 0, %s162
      %s164 = sphi 0, %s162
      %s165 = sphi 0, %s164
      %s179 = sphi 0, %s165
      %s183 = sphi 0, %s183
      %s185 = sphi 0, %s183
      %s186 = sphi 0, %s185
      %s200 = sphi 0, %s186
      %s204 = sphi 0, %s204
      %s206 = sphi 0, %s204
      %s207 = sphi 0, %s206
      %s221 = sphi 0, %s207
      %s225 = sphi 0, %s225
      %s227 = sphi 0, %s225
      %s228 = sphi 0, %s227
      %s242 = sphi 0, %s228
      %s246 = sphi 0, %s246
      %s248 = sphi 0, %s246
      %s249 = sphi 0, %s248
      %s263 = sphi 0, %s249
      %s267 = sphi 0, %s267
      %s269 = sphi 0, %s267
      %s270 = sphi 0, %s269
      %s284 = sphi 0, %s270
      %s288 = sphi 0, %s288
      %s290 = sphi 0, %s288
      %s291 = sphi 0, %s290
      %s305 = sphi 0, %s291
      %s309 = sphi 0, %s309
      %s311 = sphi 0, %s309
      %s312 = sphi 0, %s311
      %s326 = sphi 0, %s312
      %s332 = sphi 0, %s334
      %s335 = sphi 0, %s332
      %s336 = sphi 0, %s335
      %s352 = sphi 0, %s336
    $region4: #{tpu_custom_call.1} parent=1 // loop_header_branch
      %26 = sbr.rel (%p24) target = $region8
    $region5: #{tpu_custom_call.1} parent=1 // loop_body
      %s28 = ssub.s32 %s23, 1
      %s29 = ssub.s32 %s23, 2
      %s30 = sadd.s32 %s23, 1
      %s31 = ssub.s32 %s23, %s30
      %p32 = scmp.eq.s32.totalorder %s31, 0
      %s34 = sadd.s32 %s33, 1
      %s35 = scalar_select %p32, %s33, %s34
      %p38 = pneg %p32
      %p39 = scmp.eq.s32.totalorder %s23, 2
      %p40 = por %p38, %p39
      %p41 = scmp.ne.s32.totalorder %s33, %s36
      %p42 = scmp.eq.s32.totalorder %s23, 0
      %p43 = por %p41, %p42
      %p44 = scmp.ne.s32.totalorder %s33, %s36
      %p45 = scmp.eq.s32.totalorder %s28, 2
      %p46 = por %p44, %p45
      %p47 = scmp.ne.s32.totalorder %s36, %s37
      %p48 = scmp.eq.s32.totalorder %s28, 0
      %p49 = por %p47, %p48
      %p50 = scmp.ne.s32.totalorder %s36, %s37
      %p51 = scmp.eq.s32.totalorder %s29, 2
      %p52 = por %p50, %p51
      %p54 = scmp.ne.s32.totalorder %s37, %s53
      %p55 = scmp.eq.s32.totalorder %s29, 0
      %p56 = por %p54, %p55
      %s58 = sadd.s32 %s57, 1
      %p61 = scmp.eq.s32.totalorder %s23, 2
      %p62 = scmp.ne.s32.totalorder %s57, %s59
      %p63 = scmp.eq.s32.totalorder %s23, 0
      %p64 = por %p62, %p63
      %p65 = scmp.ne.s32.totalorder %s57, %s59
      %p66 = scmp.eq.s32.totalorder %s28, 2
      %p67 = por %p65, %p66
      %p68 = scmp.ne.s32.totalorder %s59, %s60
      %p69 = scmp.eq.s32.totalorder %s28, 0
      %p70 = por %p68, %p69
      %p71 = scmp.ne.s32.totalorder %s59, %s60
      %p72 = scmp.eq.s32.totalorder %s29, 2
      %p73 = por %p71, %p72
      %p75 = scmp.ne.s32.totalorder %s60, %s74
      %p76 = scmp.eq.s32.totalorder %s29, 0
      %p77 = por %p75, %p76
      %s79 = sadd.s32 %s78, 1
      %p82 = scmp.eq.s32.totalorder %s23, 2
      %p83 = scmp.ne.s32.totalorder %s78, %s80
      %p84 = scmp.eq.s32.totalorder %s23, 0
      %p85 = por %p83, %p84
      %p86 = scmp.ne.s32.totalorder %s78, %s80
      %p87 = scmp.eq.s32.totalorder %s28, 2
      %p88 = por %p86, %p87
      %p89 = scmp.ne.s32.totalorder %s80, %s81
      %p90 = scmp.eq.s32.totalorder %s28, 0
      %p91 = por %p89, %p90
      %p92 = scmp.ne.s32.totalorder %s80, %s81
      %p93 = scmp.eq.s32.totalorder %s29, 2
      %p94 = por %p92, %p93
      %p96 = scmp.ne.s32.totalorder %s81, %s95
      %p97 = scmp.eq.s32.totalorder %s29, 0
      %p98 = por %p96, %p97
      %s100 = sadd.s32 %s99, 1
      %p103 = scmp.eq.s32.totalorder %s23, 2
      %p104 = scmp.ne.s32.totalorder %s99, %s101
      %p105 = scmp.eq.s32.totalorder %s23, 0
      %p106 = por %p104, %p105
      %p107 = scmp.ne.s32.totalorder %s99, %s101
      %p108 = scmp.eq.s32.totalorder %s28, 2
      %p109 = por %p107, %p108
      %p110 = scmp.ne.s32.totalorder %s101, %s102
      %p111 = scmp.eq.s32.totalorder %s28, 0
      %p112 = por %p110, %p111
      %p113 = scmp.ne.s32.totalorder %s101, %s102
      %p114 = scmp.eq.s32.totalorder %s29, 2
      %p115 = por %p113, %p114
      %p117 = scmp.ne.s32.totalorder %s102, %s116
      %p118 = scmp.eq.s32.totalorder %s29, 0
      %p119 = por %p117, %p118
      %s121 = sadd.s32 %s120, 1
      %p124 = scmp.eq.s32.totalorder %s23, 2
      %p125 = scmp.ne.s32.totalorder %s120, %s122
      %p126 = scmp.eq.s32.totalorder %s23, 0
      %p127 = por %p125, %p126
      %p128 = scmp.ne.s32.totalorder %s120, %s122
      %p129 = scmp.eq.s32.totalorder %s28, 2
      %p130 = por %p128, %p129
      %p131 = scmp.ne.s32.totalorder %s122, %s123
      %p132 = scmp.eq.s32.totalorder %s28, 0
      %p133 = por %p131, %p132
      %p134 = scmp.ne.s32.totalorder %s122, %s123
      %p135 = scmp.eq.s32.totalorder %s29, 2
      %p136 = por %p134, %p135
      %p138 = scmp.ne.s32.totalorder %s123, %s137
      %p139 = scmp.eq.s32.totalorder %s29, 0
      %p140 = por %p138, %p139
      %s142 = sadd.s32 %s141, 1
      %p145 = scmp.eq.s32.totalorder %s23, 2
      %p146 = scmp.ne.s32.totalorder %s141, %s143
      %p147 = scmp.eq.s32.totalorder %s23, 0
      %p148 = por %p146, %p147
      %p149 = scmp.ne.s32.totalorder %s141, %s143
      %p150 = scmp.eq.s32.totalorder %s28, 2
      %p151 = por %p149, %p150
      %p152 = scmp.ne.s32.totalorder %s143, %s144
      %p153 = scmp.eq.s32.totalorder %s28, 0
      %p154 = por %p152, %p153
      %p155 = scmp.ne.s32.totalorder %s143, %s144
      %p156 = scmp.eq.s32.totalorder %s29, 2
      %p157 = por %p155, %p156
      %p159 = scmp.ne.s32.totalorder %s144, %s158
      %p160 = scmp.eq.s32.totalorder %s29, 0
      %p161 = por %p159, %p160
      %s163 = sadd.s32 %s162, 1
      %p166 = scmp.eq.s32.totalorder %s23, 2
      %p167 = scmp.ne.s32.totalorder %s162, %s164
      %p168 = scmp.eq.s32.totalorder %s23, 0
      %p169 = por %p167, %p168
      %p170 = scmp.ne.s32.totalorder %s162, %s164
      %p171 = scmp.eq.s32.totalorder %s28, 2
      %p172 = por %p170, %p171
      %p173 = scmp.ne.s32.totalorder %s164, %s165
      %p174 = scmp.eq.s32.totalorder %s28, 0
      %p175 = por %p173, %p174
      %p176 = scmp.ne.s32.totalorder %s164, %s165
      %p177 = scmp.eq.s32.totalorder %s29, 2
      %p178 = por %p176, %p177
      %p180 = scmp.ne.s32.totalorder %s165, %s179
      %p181 = scmp.eq.s32.totalorder %s29, 0
      %p182 = por %p180, %p181
      %s184 = sadd.s32 %s183, 1
      %p187 = scmp.eq.s32.totalorder %s23, 2
      %p188 = scmp.ne.s32.totalorder %s183, %s185
      %p189 = scmp.eq.s32.totalorder %s23, 0
      %p190 = por %p188, %p189
      %p191 = scmp.ne.s32.totalorder %s183, %s185
      %p192 = scmp.eq.s32.totalorder %s28, 2
      %p193 = por %p191, %p192
      %p194 = scmp.ne.s32.totalorder %s185, %s186
      %p195 = scmp.eq.s32.totalorder %s28, 0
      %p196 = por %p194, %p195
      %p197 = scmp.ne.s32.totalorder %s185, %s186
      %p198 = scmp.eq.s32.totalorder %s29, 2
      %p199 = por %p197, %p198
      %p201 = scmp.ne.s32.totalorder %s186, %s200
      %p202 = scmp.eq.s32.totalorder %s29, 0
      %p203 = por %p201, %p202
      %s205 = sadd.s32 %s204, 1
      %p208 = scmp.eq.s32.totalorder %s23, 2
      %p209 = scmp.ne.s32.totalorder %s204, %s206
      %p210 = scmp.eq.s32.totalorder %s23, 0
      %p211 = por %p209, %p210
      %p212 = scmp.ne.s32.totalorder %s204, %s206
      %p213 = scmp.eq.s32.totalorder %s28, 2
      %p214 = por %p212, %p213
      %p215 = scmp.ne.s32.totalorder %s206, %s207
      %p216 = scmp.eq.s32.totalorder %s28, 0
      %p217 = por %p215, %p216
      %p218 = scmp.ne.s32.totalorder %s206, %s207
      %p219 = scmp.eq.s32.totalorder %s29, 2
      %p220 = por %p218, %p219
      %p222 = scmp.ne.s32.totalorder %s207, %s221
      %p223 = scmp.eq.s32.totalorder %s29, 0
      %p224 = por %p222, %p223
      %s226 = sadd.s32 %s225, 1
      %p229 = scmp.eq.s32.totalorder %s23, 2
      %p230 = scmp.ne.s32.totalorder %s225, %s227
      %p231 = scmp.eq.s32.totalorder %s23, 0
      %p232 = por %p230, %p231
      %p233 = scmp.ne.s32.totalorder %s225, %s227
      %p234 = scmp.eq.s32.totalorder %s28, 2
      %p235 = por %p233, %p234
      %p236 = scmp.ne.s32.totalorder %s227, %s228
      %p237 = scmp.eq.s32.totalorder %s28, 0
      %p238 = por %p236, %p237
      %p239 = scmp.ne.s32.totalorder %s227, %s228
      %p240 = scmp.eq.s32.totalorder %s29, 2
      %p241 = por %p239, %p240
      %p243 = scmp.ne.s32.totalorder %s228, %s242
      %p244 = scmp.eq.s32.totalorder %s29, 0
      %p245 = por %p243, %p244
      %s247 = sadd.s32 %s246, 1
      %p250 = scmp.eq.s32.totalorder %s23, 2
      %p251 = scmp.ne.s32.totalorder %s246, %s248
      %p252 = scmp.eq.s32.totalorder %s23, 0
      %p253 = por %p251, %p252
      %p254 = scmp.ne.s32.totalorder %s246, %s248
      %p255 = scmp.eq.s32.totalorder %s28, 2
      %p256 = por %p254, %p255
      %p257 = scmp.ne.s32.totalorder %s248, %s249
      %p258 = scmp.eq.s32.totalorder %s28, 0
      %p259 = por %p257, %p258
      %p260 = scmp.ne.s32.totalorder %s248, %s249
      %p261 = scmp.eq.s32.totalorder %s29, 2
      %p262 = por %p260, %p261
      %p264 = scmp.ne.s32.totalorder %s249, %s263
      %p265 = scmp.eq.s32.totalorder %s29, 0
      %p266 = por %p264, %p265
      %s268 = sadd.s32 %s267, 1
      %p271 = scmp.eq.s32.totalorder %s23, 2
      %p272 = scmp.ne.s32.totalorder %s267, %s269
      %p273 = scmp.eq.s32.totalorder %s23, 0
      %p274 = por %p272, %p273
      %p275 = scmp.ne.s32.totalorder %s267, %s269
      %p276 = scmp.eq.s32.totalorder %s28, 2
      %p277 = por %p275, %p276
      %p278 = scmp.ne.s32.totalorder %s269, %s270
      %p279 = scmp.eq.s32.totalorder %s28, 0
      %p280 = por %p278, %p279
      %p281 = scmp.ne.s32.totalorder %s269, %s270
      %p282 = scmp.eq.s32.totalorder %s29, 2
      %p283 = por %p281, %p282
      %p285 = scmp.ne.s32.totalorder %s270, %s284
      %p286 = scmp.eq.s32.totalorder %s29, 0
      %p287 = por %p285, %p286
      %s289 = sadd.s32 %s288, 1
      %p292 = scmp.eq.s32.totalorder %s23, 2
      %p293 = scmp.ne.s32.totalorder %s288, %s290
      %p294 = scmp.eq.s32.totalorder %s23, 0
      %p295 = por %p293, %p294
      %p296 = scmp.ne.s32.totalorder %s288, %s290
      %p297 = scmp.eq.s32.totalorder %s28, 2
      %p298 = por %p296, %p297
      %p299 = scmp.ne.s32.totalorder %s290, %s291
      %p300 = scmp.eq.s32.totalorder %s28, 0
      %p301 = por %p299, %p300
      %p302 = scmp.ne.s32.totalorder %s290, %s291
      %p303 = scmp.eq.s32.totalorder %s29, 2
      %p304 = por %p302, %p303
      %p306 = scmp.ne.s32.totalorder %s291, %s305
      %p307 = scmp.eq.s32.totalorder %s29, 0
      %p308 = por %p306, %p307
      %s310 = sadd.s32 %s309, 1
      %p313 = scmp.eq.s32.totalorder %s23, 2
      %p314 = scmp.ne.s32.totalorder %s309, %s311
      %p315 = scmp.eq.s32.totalorder %s23, 0
      %p316 = por %p314, %p315
      %p317 = scmp.ne.s32.totalorder %s309, %s311
      %p318 = scmp.eq.s32.totalorder %s28, 2
      %p319 = por %p317, %p318
      %p320 = scmp.ne.s32.totalorder %s311, %s312
      %p321 = scmp.eq.s32.totalorder %s28, 0
      %p322 = por %p320, %p321
      %p323 = scmp.ne.s32.totalorder %s311, %s312
      %p324 = scmp.eq.s32.totalorder %s29, 2
      %p325 = por %p323, %p324
      %p327 = scmp.ne.s32.totalorder %s312, %s326
      %p328 = scmp.eq.s32.totalorder %s29, 0
      %p329 = por %p327, %p328
      %s330 = ssub.s32 %s23, %s30
      %p331 = scmp.eq.s32.totalorder %s330, 0
      %s333 = sadd.s32 %s332, 1
      %s334 = scalar_select %p331, %s332, %s333
      %p337 = pneg %p331
      %p338 = scmp.eq.s32.totalorder %s23, 2
      %p339 = por %p337, %p338
      %p340 = scmp.ne.s32.totalorder %s332, %s335
      %p341 = scmp.eq.s32.totalorder %s23, 0
      %p342 = por %p340, %p341
      %p343 = scmp.ne.s32.totalorder %s332, %s335
      %p344 = scmp.eq.s32.totalorder %s28, 2
      %p345 = por %p343, %p344
      %p346 = scmp.ne.s32.totalorder %s335, %s336
      %p347 = scmp.eq.s32.totalorder %s28, 0
      %p348 = por %p346, %p347
      %p349 = scmp.ne.s32.totalorder %s335, %s336
      %p350 = scmp.eq.s32.totalorder %s29, 2
      %p351 = por %p349, %p350
      %p353 = scmp.ne.s32.totalorder %s336, %s352
      %p354 = scmp.eq.s32.totalorder %s29, 0
      %p355 = por %p353, %p354
      %p356 = scmp.le.s32.totalorder 1, %s23
      %p357 = scmp.lt.s32.totalorder %s23, 4
      %p358 = pnand %p356, %p357
      %p359 = pneg %p358
      // Predicated region
      $region9: #{tpu_custom_call.1} parent=5 // pred_check
        _
      $region10: #{tpu_custom_call.1} parent=5 // pred_check_branch
        %361 = sbr.rel (%p358) target = $region12
      $region11: #{tpu_custom_call.1} parent=5 // pred_region
        %s362 = ssub.s32 %s23, 1
        // Predicated region
        $region13: #{tpu_custom_call.1} parent=11 // pred_check
          %p363 = pneg %p70
        $region14: #{tpu_custom_call.1} parent=11 // pred_check_branch
          %365 = sbr.rel (%p363) target = $region16
        $region15: #{tpu_custom_call.1} parent=11 // pred_region
          %367 = vsyncadd [#allocation3], 0
          %s368 = sshll.u32 %s1, 4
          %s369 = int_to_ptr.hbm [resolvable:$true] %s368
          %s370 = sshll.u32 [#allocation2], 4
          %s371 = int_to_ptr.vmem [resolvable:$true] %s370
          %376 = dma.hbm_to_vmem [thread:$0]  %s369, 4096, %s371, [#allocation3], 128, 128, 8
        $region16: #{tpu_custom_call.1} parent=11 // pred_fallthru
          _
        // Predicated region
        $region17: #{tpu_custom_call.1} parent=11 // pred_check
          %p377 = pneg %p91
        $region18: #{tpu_custom_call.1} parent=11 // pred_check_branch
          %379 = sbr.rel (%p377) target = $region20
        $region19: #{tpu_custom_call.1} parent=11 // pred_region
          _
        $region20: #{tpu_custom_call.1} parent=11 // pred_fallthru
          _
        // Predicated region
        $region21: #{tpu_custom_call.1} parent=11 // pred_check
          %p380 = pneg %p112
        $region22: #{tpu_custom_call.1} parent=11 // pred_check_branch
          %382 = sbr.rel (%p380) target = $region24
        $region23: #{tpu_custom_call.1} parent=11 // pred_region
          %384 = vsyncadd [#allocation5], 0
          %s385 = sshll.u32 %s3, 4
          %s386 = int_to_ptr.hbm [resolvable:$true] %s385
          %s387 = sshll.u32 [#allocation4], 4
          %s388 = int_to_ptr.vmem [resolvable:$true] %s387
          %393 = dma.hbm_to_vmem [thread:$0]  %s386, 4096, %s388, [#allocation5], 128, 128, 8
        $region24: #{tpu_custom_call.1} parent=11 // pred_fallthru
          _
        // Predicated region
        $region25: #{tpu_custom_call.1} parent=11 // pred_check
          %p394 = pneg %p133
        $region26: #{tpu_custom_call.1} parent=11 // pred_check_branch
          %396 = sbr.rel (%p394) target = $region28
        $region27: #{tpu_custom_call.1} parent=11 // pred_region
          _
        $region28: #{tpu_custom_call.1} parent=11 // pred_fallthru
          _
        // Predicated region
        $region29: #{tpu_custom_call.1} parent=11 // pred_check
          %p397 = pneg %p154
        $region30: #{tpu_custom_call.1} parent=11 // pred_check_branch
          %399 = sbr.rel (%p397) target = $region32
        $region31: #{tpu_custom_call.1} parent=11 // pred_region
          %401 = vsyncadd [#allocation5], 0
          %s402 = sshll.u32 %s5, 4
          %s403 = int_to_ptr.hbm [resolvable:$true] %s402
          %s404 = sshll.u32 [#allocation6], 4
          %s405 = int_to_ptr.vmem [resolvable:$true] %s404
          %410 = dma.hbm_to_vmem [thread:$0]  %s403, 4096, %s405, [#allocation5], 128, 128, 8
        $region32: #{tpu_custom_call.1} parent=11 // pred_fallthru
          _
        // Predicated region
        $region33: #{tpu_custom_call.1} parent=11 // pred_check
          %p411 = pneg %p175
        $region34: #{tpu_custom_call.1} parent=11 // pred_check_branch
          %413 = sbr.rel (%p411) target = $region36
        $region35: #{tpu_custom_call.1} parent=11 // pred_region
          _
        $region36: #{tpu_custom_call.1} parent=11 // pred_fallthru
          _
        // Predicated region
        $region37: #{tpu_custom_call.1} parent=11 // pred_check
          %p414 = pneg %p196
        $region38: #{tpu_custom_call.1} parent=11 // pred_check_branch
          %416 = sbr.rel (%p414) target = $region40
        $region39: #{tpu_custom_call.1} parent=11 // pred_region
          _
        $region40: #{tpu_custom_call.1} parent=11 // pred_fallthru
          _
        // Predicated region
        $region41: #{tpu_custom_call.1} parent=11 // pred_check
          %p417 = pneg %p217
        $region42: #{tpu_custom_call.1} parent=11 // pred_check_branch
          %419 = sbr.rel (%p417) target = $region44
        $region43: #{tpu_custom_call.1} parent=11 // pred_region
          %421 = vsyncadd [#allocation8], 0
          %s422 = sshll.u32 %s8, 4
          %s423 = int_to_ptr.hbm [resolvable:$true] %s422
          %s424 = sshll.u32 [#allocation7], 4
          %s425 = int_to_ptr.vmem [resolvable:$true] %s424
          %430 = dma.hbm_to_vmem [thread:$0]  %s423, 896, %s425, [#allocation8], 128, 128, 8
        $region44: #{tpu_custom_call.1} parent=11 // pred_fallthru
          _
        // Predicated region
        $region45: #{tpu_custom_call.1} parent=11 // pred_check
          %p431 = pneg %p238
        $region46: #{tpu_custom_call.1} parent=11 // pred_check_branch
          %433 = sbr.rel (%p431) target = $region48
        $region47: #{tpu_custom_call.1} parent=11 // pred_region
          _
        $region48: #{tpu_custom_call.1} parent=11 // pred_fallthru
          _
        // Predicated region
        $region49: #{tpu_custom_call.1} parent=11 // pred_check
          %p434 = pneg %p259
        $region50: #{tpu_custom_call.1} parent=11 // pred_check_branch
          %436 = sbr.rel (%p434) target = $region52
        $region51: #{tpu_custom_call.1} parent=11 // pred_region
          %438 = vsyncadd [#allocation8], 0
          %s439 = sshll.u32 %s10, 4
          %s440 = int_to_ptr.hbm [resolvable:$true] %s439
          %s441 = sshll.u32 [#allocation9], 4
          %s442 = int_to_ptr.vmem [resolvable:$true] %s441
          %447 = dma.hbm_to_vmem [thread:$0]  %s440, 4608, %s442, [#allocation8], 64, 64, 4
        $region52: #{tpu_custom_call.1} parent=11 // pred_fallthru
          _
        // Predicated region
        $region53: #{tpu_custom_call.1} parent=11 // pred_check
          %p448 = pneg %p280
        $region54: #{tpu_custom_call.1} parent=11 // pred_check_branch
          %450 = sbr.rel (%p448) target = $region56
        $region55: #{tpu_custom_call.1} parent=11 // pred_region
          _
        $region56: #{tpu_custom_call.1} parent=11 // pred_fallthru
          _
        // Predicated region
        $region57: #{tpu_custom_call.1} parent=11 // pred_check
          %p451 = pneg %p301
        $region58: #{tpu_custom_call.1} parent=11 // pred_check_branch
          %453 = sbr.rel (%p451) target = $region60
        $region59: #{tpu_custom_call.1} parent=11 // pred_region
          _
        $region60: #{tpu_custom_call.1} parent=11 // pred_fallthru
          _
        // Predicated region
        $region61: #{tpu_custom_call.1} parent=11 // pred_check
          %p454 = pneg %p322
        $region62: #{tpu_custom_call.1} parent=11 // pred_check_branch
          %456 = sbr.rel (%p454) target = $region64
        $region63: #{tpu_custom_call.1} parent=11 // pred_region
          _
        $region64: #{tpu_custom_call.1} parent=11 // pred_fallthru
          _
      $region12: #{tpu_custom_call.1} parent=5 // pred_fallthru
        _
      %p457 = scmp.lt.s32.totalorder %s23, 3
      // Predicated region
      $region65: #{tpu_custom_call.1} parent=5 // pred_check
        %p458 = pneg %p457
      $region66: #{tpu_custom_call.1} parent=5 // pred_check_branch
        %460 = sbr.rel (%p458) target = $region68
      $region67: #{tpu_custom_call.1} parent=5 // pred_region
        // Predicated region
        $region69: #{tpu_custom_call.1} parent=67 // pred_check
          %p461 = pneg %p43
        $region70: #{tpu_custom_call.1} parent=67 // pred_check_branch
          %463 = sbr.rel (%p461) target = $region72
        $region71: #{tpu_custom_call.1} parent=67 // pred_region
          %s464 = smul.u32 8, %s23
          %p465 = scmp.lt.s32.totalorder %s464, 23
          %s466 = scalar_select %p465, %s464, 23
          %s467 = smul.addr %s466, 14
          %s468 = smul.addr %s467, 4
          %s469 = scalar_lea.vmem %s0, %s468
          %s470 = smul.u32 8, %s23
        $region72: #{tpu_custom_call.1} parent=67 // pred_fallthru
          _
      $region68: #{tpu_custom_call.1} parent=5 // pred_fallthru
        _
      %p471 = scmp.le.s32.totalorder 1, %s23
      %p472 = scmp.lt.s32.totalorder %s23, 4
      %p473 = pnand %p471, %p472
      %p474 = pneg %p473
      // Predicated region
      $region73: #{tpu_custom_call.1} parent=5 // pred_check
        _
      $region74: #{tpu_custom_call.1} parent=5 // pred_check_branch
        %476 = sbr.rel (%p473) target = $region76
      $region75: #{tpu_custom_call.1} parent=5 // pred_region
        %s477 = ssub.s32 %s23, 1
        // Predicated region
        $region77: #{tpu_custom_call.1} parent=75 // pred_check
          %p478 = pneg %p70
        $region78: #{tpu_custom_call.1} parent=75 // pred_check_branch
          %480 = sbr.rel (%p478) target = $region80
        $region79: #{tpu_custom_call.1} parent=75 // pred_region
          %482 = dma.done [#allocation3], 4096
        $region80: #{tpu_custom_call.1} parent=75 // pred_fallthru
          _
        // Predicated region
        $region81: #{tpu_custom_call.1} parent=75 // pred_check
          %p483 = pneg %p112
        $region82: #{tpu_custom_call.1} parent=75 // pred_check_branch
          %485 = sbr.rel (%p483) target = $region84
        $region83: #{tpu_custom_call.1} parent=75 // pred_region
          %487 = dma.done [#allocation5], 4096
        $region84: #{tpu_custom_call.1} parent=75 // pred_fallthru
          _
        // Predicated region
        $region85: #{tpu_custom_call.1} parent=75 // pred_check
          %p488 = pneg %p154
        $region86: #{tpu_custom_call.1} parent=75 // pred_check_branch
          %490 = sbr.rel (%p488) target = $region88
        $region87: #{tpu_custom_call.1} parent=75 // pred_region
          %492 = dma.done [#allocation5], 4096
        $region88: #{tpu_custom_call.1} parent=75 // pred_fallthru
          _
        // Predicated region
        $region89: #{tpu_custom_call.1} parent=75 // pred_check
          %p493 = pneg %p217
        $region90: #{tpu_custom_call.1} parent=75 // pred_check_branch
          %495 = sbr.rel (%p493) target = $region92
        $region91: #{tpu_custom_call.1} parent=75 // pred_region
          %497 = dma.done [#allocation8], 896
        $region92: #{tpu_custom_call.1} parent=75 // pred_fallthru
          _
        // Predicated region
        $region93: #{tpu_custom_call.1} parent=75 // pred_check
          %p498 = pneg %p259
        $region94: #{tpu_custom_call.1} parent=75 // pred_check_branch
          %500 = sbr.rel (%p498) target = $region96
        $region95: #{tpu_custom_call.1} parent=75 // pred_region
          %502 = dma.done [#allocation8], 4608
        $region96: #{tpu_custom_call.1} parent=75 // pred_fallthru
          _
        %s503 = smul.u32 8, %s28
        %p504 = scmp.lt.s32.totalorder %s503, 23
        %s505 = scalar_select %p504, %s503, 23
        %s506 = smul.addr %s505, 14
        %s507 = smul.addr %s506, 4
        %s508 = scalar_lea.vmem %s0, %s507
        %p509 = pneg %p49
        %p510 = pneg %p46
        %p511 = pneg %p70
        %p512 = pneg %p67
        %p513 = pneg %p91
        %p514 = pneg %p88
        %p515 = pneg %p112
        %p516 = pneg %p109
        %p517 = pneg %p133
        %p518 = pneg %p130
        %p519 = pneg %p154
        %p520 = pneg %p151
        %p521 = pneg %p175
        %p522 = pneg %p172
        %p523 = pneg %p196
        %p524 = pneg %p193
        %p525 = pneg %p217
        %p526 = pneg %p214
        %p527 = pneg %p238
        %p528 = pneg %p235
        %p529 = pneg %p259
        %p530 = pneg %p256
        %p531 = pneg %p280
        %p532 = pneg %p277
        %p533 = pneg %p301
        %p534 = pneg %p298
        %p535 = pneg %p322
        %p536 = pneg %p319
        %p537 = pneg %p348
        %p538 = pneg %p345
        %p539 = scmp.lt.s32.totalorder %s28, 2
        %s540 = scalar_select %p539, %s28, 2
        %s541 = smul.addr %s540, 8
        %s542 = scalar_lea.vmem %s14, %s541
        %s543 = smul.u32 8, %s28
        %p544 = scmp.lt.s32.totalorder %s543, 23
        %s545 = scalar_select %p544, %s543, 23
        %s546 = smul.addr %s545, 14
        %s547 = smul.addr %s546, 4
        %s548 = scalar_lea.vmem %s0, %s547
        %s549 = smul.u32 8, %s28
        %p550 = scmp.lt.s32.totalorder %s28, 2
        %s551 = scalar_select %p550, %s28, 2
        %s552 = smul.addr %s551, 8
        %s553 = scalar_lea.vmem %s14, %s552
        %v555 = vld [vmem:[%s548] sm:$0xff]
        %v556 = vld [vmem:[%s548 + $0x8] sm:$0xff]
        %v557 = vld [vmem:[%s548 + $0x10] sm:$0xff]
        %v558 = vld [vmem:[%s548 + $0x18] sm:$0xff]
        %v559 = vld [vmem:[%s548 + $0x20] sm:$0xff]
        %v560 = vld [vmem:[%s548 + $0x28] sm:$0xff]
        %v561 = vld [vmem:[%s548 + $0x30] sm:$0xff]
        %v562 = vld [vmem:[%s548 + $0x38] sm:$0xff]
        %v563 = vld [vmem:[%s548 + $0x40] sm:$0xff]
        %v564 = vld [vmem:[%s548 + $0x48] sm:$0xff]
        %v565 = vld [vmem:[%s548 + $0x50] sm:$0xff]
        %v566 = vld [vmem:[%s548 + $0x58] sm:$0xff]
        %v567 = vld [vmem:[%s548 + $0x60] sm:$0xff]
        %v568 = vld [vmem:[%s548 + $0x68] sm:$0xff]
        %v569 = vld [vmem:[%s548 + $0x70] sm:$0xff]
        %v570 = vld [vmem:[%s548 + $0x78] sm:$0xff]
        %v571 = vld [vmem:[%s548 + $0x80] sm:$0xff]
        %v572 = vld [vmem:[%s548 + $0x88] sm:$0xff]
        %v573 = vld [vmem:[%s548 + $0x90] sm:$0xff]
        %v574 = vld [vmem:[%s548 + $0x98] sm:$0xff]
        %v575 = vld [vmem:[%s548 + $0xa0] sm:$0xff]
        %v576 = vld [vmem:[%s548 + $0xa8] sm:$0xff]
        %v577 = vld [vmem:[%s548 + $0xb0] sm:$0xff]
        %v578 = vld [vmem:[%s548 + $0xb8] sm:$0xff]
        %v579 = vld [vmem:[%s548 + $0xc0] sm:$0xff]
        %v580 = vld [vmem:[%s548 + $0xc8] sm:$0xff]
        %v581 = vld [vmem:[%s548 + $0xd0] sm:$0xff]
        %v582 = vld [vmem:[%s548 + $0xd8] sm:$0xff]
        %v583 = vld [vmem:[%s548 + $0xe0] sm:$0xff]
        %v584 = vld [vmem:[%s548 + $0xe8] sm:$0xff]
        %v585 = vld [vmem:[%s548 + $0xf0] sm:$0xff]
        %v586 = vld [vmem:[%s548 + $0xf8] sm:$0xff]
        %v587 = vld [vmem:[%s548 + $0x100] sm:$0xff]
        %v588 = vld [vmem:[%s548 + $0x108] sm:$0xff]
        %v589 = vld [vmem:[%s548 + $0x110] sm:$0xff]
        %v590 = vld [vmem:[%s548 + $0x118] sm:$0xff]
        %v591 = vld [vmem:[%s548 + $0x120] sm:$0xff]
        %v592 = vld [vmem:[%s548 + $0x128] sm:$0xff]
        %v593 = vld [vmem:[%s548 + $0x130] sm:$0xff]
        %v594 = vld [vmem:[%s548 + $0x138] sm:$0xff]
        %v595 = vld [vmem:[%s548 + $0x140] sm:$0xff]
        %v596 = vld [vmem:[%s548 + $0x148] sm:$0xff]
        %v597 = vld [vmem:[%s548 + $0x150] sm:$0xff]
        %v598 = vld [vmem:[%s548 + $0x158] sm:$0xff]
        %v599 = vld [vmem:[%s548 + $0x160] sm:$0xff]
        %v600 = vld [vmem:[%s548 + $0x168] sm:$0xff]
        %v601 = vld [vmem:[%s548 + $0x170] sm:$0xff]
        %v602 = vld [vmem:[%s548 + $0x178] sm:$0xff]
        %v603 = vld [vmem:[%s548 + $0x180] sm:$0xff]
        %v604 = vld [vmem:[%s548 + $0x188] sm:$0xff]
        %v605 = vld [vmem:[%s548 + $0x190] sm:$0xff]
        %v606 = vld [vmem:[%s548 + $0x198] sm:$0xff]
        %v607 = vld [vmem:[%s548 + $0x1a0] sm:$0xff]
        %v608 = vld [vmem:[%s548 + $0x1a8] sm:$0xff]
        %v609 = vld [vmem:[%s548 + $0x1b0] sm:$0xff]
        %v610 = vld [vmem:[%s548 + $0x1b8] sm:$0xff]
        %v611 = vunpack.c.l.bf16 %v555
        %v612 = vunpack.c.h.bf16 %v555
        %v613 = vunpack.c.l.bf16 %v556
        %v614 = vunpack.c.h.bf16 %v556
        %v615 = vunpack.c.l.bf16 %v557
        %v616 = vunpack.c.h.bf16 %v557
        %v617 = vunpack.c.l.bf16 %v558
        %v618 = vunpack.c.h.bf16 %v558
        %v619 = vunpack.c.l.bf16 %v559
        %v620 = vunpack.c.h.bf16 %v559
        %v621 = vunpack.c.l.bf16 %v560
        %v622 = vunpack.c.h.bf16 %v560
        %v623 = vunpack.c.l.bf16 %v561
        %v624 = vunpack.c.h.bf16 %v561
        %v625 = vunpack.c.l.bf16 %v562
        %v626 = vunpack.c.h.bf16 %v562
        %v627 = vunpack.c.l.bf16 %v563
        %v628 = vunpack.c.h.bf16 %v563
        %v629 = vunpack.c.l.bf16 %v564
        %v630 = vunpack.c.h.bf16 %v564
        %v631 = vunpack.c.l.bf16 %v565
        %v632 = vunpack.c.h.bf16 %v565
        %v633 = vunpack.c.l.bf16 %v566
        %v634 = vunpack.c.h.bf16 %v566
        %v635 = vunpack.c.l.bf16 %v567
        %v636 = vunpack.c.h.bf16 %v567
        %v637 = vunpack.c.l.bf16 %v568
        %v638 = vunpack.c.h.bf16 %v568
        %v639 = vunpack.c.l.bf16 %v569
        %v640 = vunpack.c.h.bf16 %v569
        %v641 = vunpack.c.l.bf16 %v570
        %v642 = vunpack.c.h.bf16 %v570
        %v643 = vunpack.c.l.bf16 %v571
        %v644 = vunpack.c.h.bf16 %v571
        %v645 = vunpack.c.l.bf16 %v572
        %v646 = vunpack.c.h.bf16 %v572
        %v647 = vunpack.c.l.bf16 %v573
        %v648 = vunpack.c.h.bf16 %v573
        %v649 = vunpack.c.l.bf16 %v574
        %v650 = vunpack.c.h.bf16 %v574
        %v651 = vunpack.c.l.bf16 %v575
        %v652 = vunpack.c.h.bf16 %v575
        %v653 = vunpack.c.l.bf16 %v576
        %v654 = vunpack.c.h.bf16 %v576
        %v655 = vunpack.c.l.bf16 %v577
        %v656 = vunpack.c.h.bf16 %v577
        %v657 = vunpack.c.l.bf16 %v578
        %v658 = vunpack.c.h.bf16 %v578
        %v659 = vunpack.c.l.bf16 %v579
        %v660 = vunpack.c.h.bf16 %v579
        %v661 = vunpack.c.l.bf16 %v580
        %v662 = vunpack.c.h.bf16 %v580
        %v663 = vunpack.c.l.bf16 %v581
        %v664 = vunpack.c.h.bf16 %v581
        %v665 = vunpack.c.l.bf16 %v582
        %v666 = vunpack.c.h.bf16 %v582
        %v667 = vunpack.c.l.bf16 %v583
        %v668 = vunpack.c.h.bf16 %v583
        %v669 = vunpack.c.l.bf16 %v584
        %v670 = vunpack.c.h.bf16 %v584
        %v671 = vunpack.c.l.bf16 %v585
        %v672 = vunpack.c.h.bf16 %v585
        %v673 = vunpack.c.l.bf16 %v586
        %v674 = vunpack.c.h.bf16 %v586
        %v675 = vunpack.c.l.bf16 %v587
        %v676 = vunpack.c.h.bf16 %v587
        %v677 = vunpack.c.l.bf16 %v588
        %v678 = vunpack.c.h.bf16 %v588
        %v679 = vunpack.c.l.bf16 %v589
        %v680 = vunpack.c.h.bf16 %v589
        %v681 = vunpack.c.l.bf16 %v590
        %v682 = vunpack.c.h.bf16 %v590
        %v683 = vunpack.c.l.bf16 %v591
        %v684 = vunpack.c.h.bf16 %v591
        %v685 = vunpack.c.l.bf16 %v592
        %v686 = vunpack.c.h.bf16 %v592
        %v687 = vunpack.c.l.bf16 %v593
        %v688 = vunpack.c.h.bf16 %v593
        %v689 = vunpack.c.l.bf16 %v594
        %v690 = vunpack.c.h.bf16 %v594
        %v691 = vunpack.c.l.bf16 %v595
        %v692 = vunpack.c.h.bf16 %v595
        %v693 = vunpack.c.l.bf16 %v596
        %v694 = vunpack.c.h.bf16 %v596
        %v695 = vunpack.c.l.bf16 %v597
        %v696 = vunpack.c.h.bf16 %v597
        %v697 = vunpack.c.l.bf16 %v598
        %v698 = vunpack.c.h.bf16 %v598
        %v699 = vunpack.c.l.bf16 %v599
        %v700 = vunpack.c.h.bf16 %v599
        %v701 = vunpack.c.l.bf16 %v600
        %v702 = vunpack.c.h.bf16 %v600
        %v703 = vunpack.c.l.bf16 %v601
        %v704 = vunpack.c.h.bf16 %v601
        %v705 = vunpack.c.l.bf16 %v602
        %v706 = vunpack.c.h.bf16 %v602
        %v707 = vunpack.c.l.bf16 %v603
        %v708 = vunpack.c.h.bf16 %v603
        %v709 = vunpack.c.l.bf16 %v604
        %v710 = vunpack.c.h.bf16 %v604
        %v711 = vunpack.c.l.bf16 %v605
        %v712 = vunpack.c.h.bf16 %v605
        %v713 = vunpack.c.l.bf16 %v606
        %v714 = vunpack.c.h.bf16 %v606
        %v715 = vunpack.c.l.bf16 %v607
        %v716 = vunpack.c.h.bf16 %v607
        %v717 = vunpack.c.l.bf16 %v608
        %v718 = vunpack.c.h.bf16 %v608
        %v719 = vunpack.c.l.bf16 %v609
        %v720 = vunpack.c.h.bf16 %v609
        %v721 = vunpack.c.l.bf16 %v610
        %v722 = vunpack.c.h.bf16 %v610
        %v723 = vadd.f32 %v611, %v613
        %v724 = vadd.f32 %v723, %v615
        %v725 = vadd.f32 %v724, %v617
        %v726 = vadd.f32 %v725, %v619
        %v727 = vadd.f32 %v726, %v621
        %v728 = vadd.f32 %v727, %v623
        %v729 = vrot.slane %v728, 4
        %v730 = vadd.f32 %v728, %v729
        %v731 = vrot.slane %v730, 2
        %v732 = vadd.f32 %v730, %v731
        %v733 = vrot.slane %v732, 1
        %v734 = vadd.f32 %v732, %v733
        %v735 = vadd.f32 %v612, %v614
        %v736 = vadd.f32 %v735, %v616
        %v737 = vadd.f32 %v736, %v618
        %v738 = vadd.f32 %v737, %v620
        %v739 = vadd.f32 %v738, %v622
        %v740 = vadd.f32 %v739, %v624
        %v741 = vrot.slane %v740, 4
        %v742 = vadd.f32 %v740, %v741
        %v743 = vrot.slane %v742, 2
        %v744 = vadd.f32 %v742, %v743
        %v745 = vrot.slane %v744, 1
        %v746 = vadd.f32 %v744, %v745
        %v747 = vadd.f32 %v625, %v627
        %v748 = vadd.f32 %v747, %v629
        %v749 = vadd.f32 %v748, %v631
        %v750 = vadd.f32 %v749, %v633
        %v751 = vadd.f32 %v750, %v635
        %v752 = vadd.f32 %v751, %v637
        %v753 = vrot.slane %v752, 4
        %v754 = vadd.f32 %v752, %v753
        %v755 = vrot.slane %v754, 2
        %v756 = vadd.f32 %v754, %v755
        %v757 = vrot.slane %v756, 1
        %v758 = vadd.f32 %v756, %v757
        %v759 = vadd.f32 %v626, %v628
        %v760 = vadd.f32 %v759, %v630
        %v761 = vadd.f32 %v760, %v632
        %v762 = vadd.f32 %v761, %v634
        %v763 = vadd.f32 %v762, %v636
        %v764 = vadd.f32 %v763, %v638
        %v765 = vrot.slane %v764, 4
        %v766 = vadd.f32 %v764, %v765
        %v767 = vrot.slane %v766, 2
        %v768 = vadd.f32 %v766, %v767
        %v769 = vrot.slane %v768, 1
        %v770 = vadd.f32 %v768, %v769
        %v771 = vadd.f32 %v639, %v641
        %v772 = vadd.f32 %v771, %v643
        %v773 = vadd.f32 %v772, %v645
        %v774 = vadd.f32 %v773, %v647
        %v775 = vadd.f32 %v774, %v649
        %v776 = vadd.f32 %v775, %v651
        %v777 = vrot.slane %v776, 4
        %v778 = vadd.f32 %v776, %v777
        %v779 = vrot.slane %v778, 2
        %v780 = vadd.f32 %v778, %v779
        %v781 = vrot.slane %v780, 1
        %v782 = vadd.f32 %v780, %v781
        %v783 = vadd.f32 %v640, %v642
        %v784 = vadd.f32 %v783, %v644
        %v785 = vadd.f32 %v784, %v646
        %v786 = vadd.f32 %v785, %v648
        %v787 = vadd.f32 %v786, %v650
        %v788 = vadd.f32 %v787, %v652
        %v789 = vrot.slane %v788, 4
        %v790 = vadd.f32 %v788, %v789
        %v791 = vrot.slane %v790, 2
        %v792 = vadd.f32 %v790, %v791
        %v793 = vrot.slane %v792, 1
        %v794 = vadd.f32 %v792, %v793
        %v795 = vadd.f32 %v653, %v655
        %v796 = vadd.f32 %v795, %v657
        %v797 = vadd.f32 %v796, %v659
        %v798 = vadd.f32 %v797, %v661
        %v799 = vadd.f32 %v798, %v663
        %v800 = vadd.f32 %v799, %v665
        %v801 = vrot.slane %v800, 4
        %v802 = vadd.f32 %v800, %v801
        %v803 = vrot.slane %v802, 2
        %v804 = vadd.f32 %v802, %v803
        %v805 = vrot.slane %v804, 1
        %v806 = vadd.f32 %v804, %v805
        %v807 = vadd.f32 %v654, %v656
        %v808 = vadd.f32 %v807, %v658
        %v809 = vadd.f32 %v808, %v660
        %v810 = vadd.f32 %v809, %v662
        %v811 = vadd.f32 %v810, %v664
        %v812 = vadd.f32 %v811, %v666
        %v813 = vrot.slane %v812, 4
        %v814 = vadd.f32 %v812, %v813
        %v815 = vrot.slane %v814, 2
        %v816 = vadd.f32 %v814, %v815
        %v817 = vrot.slane %v816, 1
        %v818 = vadd.f32 %v816, %v817
        %v819 = vadd.f32 %v667, %v669
        %v820 = vadd.f32 %v819, %v671
        %v821 = vadd.f32 %v820, %v673
        %v822 = vadd.f32 %v821, %v675
        %v823 = vadd.f32 %v822, %v677
        %v824 = vadd.f32 %v823, %v679
        %v825 = vrot.slane %v824, 4
        %v826 = vadd.f32 %v824, %v825
        %v827 = vrot.slane %v826, 2
        %v828 = vadd.f32 %v826, %v827
        %v829 = vrot.slane %v828, 1
        %v830 = vadd.f32 %v828, %v829
        %v831 = vadd.f32 %v668, %v670
        %v832 = vadd.f32 %v831, %v672
        %v833 = vadd.f32 %v832, %v674
        %v834 = vadd.f32 %v833, %v676
        %v835 = vadd.f32 %v834, %v678
        %v836 = vadd.f32 %v835, %v680
        %v837 = vrot.slane %v836, 4
        %v838 = vadd.f32 %v836, %v837
        %v839 = vrot.slane %v838, 2
        %v840 = vadd.f32 %v838, %v839
        %v841 = vrot.slane %v840, 1
        %v842 = vadd.f32 %v840, %v841
        %v843 = vadd.f32 %v681, %v683
        %v844 = vadd.f32 %v843, %v685
        %v845 = vadd.f32 %v844, %v687
        %v846 = vadd.f32 %v845, %v689
        %v847 = vadd.f32 %v846, %v691
        %v848 = vadd.f32 %v847, %v693
        %v849 = vrot.slane %v848, 4
        %v850 = vadd.f32 %v848, %v849
        %v851 = vrot.slane %v850, 2
        %v852 = vadd.f32 %v850, %v851
        %v853 = vrot.slane %v852, 1
        %v854 = vadd.f32 %v852, %v853
        %v855 = vadd.f32 %v682, %v684
        %v856 = vadd.f32 %v855, %v686
        %v857 = vadd.f32 %v856, %v688
        %v858 = vadd.f32 %v857, %v690
        %v859 = vadd.f32 %v858, %v692
        %v860 = vadd.f32 %v859, %v694
        %v861 = vrot.slane %v860, 4
        %v862 = vadd.f32 %v860, %v861
        %v863 = vrot.slane %v862, 2
        %v864 = vadd.f32 %v862, %v863
        %v865 = vrot.slane %v864, 1
        %v866 = vadd.f32 %v864, %v865
        %v867 = vadd.f32 %v695, %v697
        %v868 = vadd.f32 %v867, %v699
        %v869 = vadd.f32 %v868, %v701
        %v870 = vadd.f32 %v869, %v703
        %v871 = vadd.f32 %v870, %v705
        %v872 = vadd.f32 %v871, %v707
        %v873 = vrot.slane %v872, 4
        %v874 = vadd.f32 %v872, %v873
        %v875 = vrot.slane %v874, 2
        %v876 = vadd.f32 %v874, %v875
        %v877 = vrot.slane %v876, 1
        %v878 = vadd.f32 %v876, %v877
        %v879 = vadd.f32 %v696, %v698
        %v880 = vadd.f32 %v879, %v700
        %v881 = vadd.f32 %v880, %v702
        %v882 = vadd.f32 %v881, %v704
        %v883 = vadd.f32 %v882, %v706
        %v884 = vadd.f32 %v883, %v708
        %v885 = vrot.slane %v884, 4
        %v886 = vadd.f32 %v884, %v885
        %v887 = vrot.slane %v886, 2
        %v888 = vadd.f32 %v886, %v887
        %v889 = vrot.slane %v888, 1
        %v890 = vadd.f32 %v888, %v889
        %v891 = vadd.f32 %v709, %v711
        %v892 = vadd.f32 %v891, %v713
        %v893 = vadd.f32 %v892, %v715
        %v894 = vadd.f32 %v893, %v717
        %v895 = vadd.f32 %v894, %v719
        %v896 = vadd.f32 %v895, %v721
        %v897 = vrot.slane %v896, 4
        %v898 = vadd.f32 %v896, %v897
        %v899 = vrot.slane %v898, 2
        %v900 = vadd.f32 %v898, %v899
        %v901 = vrot.slane %v900, 1
        %v902 = vadd.f32 %v900, %v901
        %v903 = vadd.f32 %v710, %v712
        %v904 = vadd.f32 %v903, %v714
        %v905 = vadd.f32 %v904, %v716
        %v906 = vadd.f32 %v905, %v718
        %v907 = vadd.f32 %v906, %v720
        %v908 = vadd.f32 %v907, %v722
        %v909 = vrot.slane %v908, 4
        %v910 = vadd.f32 %v908, %v909
        %v911 = vrot.slane %v910, 2
        %v912 = vadd.f32 %v910, %v911
        %v913 = vrot.slane %v912, 1
        %v914 = vadd.f32 %v912, %v913
        %v915 = vmul.f32 %v734, 0.020408163
        %v916 = vmul.f32 %v746, 0.020408163
        %v917 = vmul.f32 %v758, 0.020408163
        %v918 = vmul.f32 %v770, 0.020408163
        %v919 = vmul.f32 %v782, 0.020408163
        %v920 = vmul.f32 %v794, 0.020408163
        %v921 = vmul.f32 %v806, 0.020408163
        %v922 = vmul.f32 %v818, 0.020408163
        %v923 = vmul.f32 %v830, 0.020408163
        %v924 = vmul.f32 %v842, 0.020408163
        %v925 = vmul.f32 %v854, 0.020408163
        %v926 = vmul.f32 %v866, 0.020408163
        %v927 = vmul.f32 %v878, 0.020408163
        %v928 = vmul.f32 %v890, 0.020408163
        %v929 = vmul.f32 %v902, 0.020408163
        %v930 = vmul.f32 %v914, 0.020408163
        %v931 = vpack.c.bf16 %v915, %v915
        %v932 = vpack.c.bf16 %v916, %v916
        %v933 = vpack.c.bf16 %v917, %v917
        %v934 = vpack.c.bf16 %v918, %v918
        %v935 = vpack.c.bf16 %v919, %v919
        %v936 = vpack.c.bf16 %v920, %v920
        %v937 = vpack.c.bf16 %v921, %v921
        %v938 = vpack.c.bf16 %v922, %v922
        %v939 = vpack.c.bf16 %v923, %v923
        %v940 = vpack.c.bf16 %v924, %v924
        %v941 = vpack.c.bf16 %v925, %v925
        %v942 = vpack.c.bf16 %v926, %v926
        %v943 = vpack.c.bf16 %v927, %v927
        %v944 = vpack.c.bf16 %v928, %v928
        %v945 = vpack.c.bf16 %v929, %v929
        %v946 = vpack.c.bf16 %v930, %v930
        %v947 = vld [vmem:[#allocation2] sm:$0xff]
        %v948 = vld [vmem:[#allocation2 + $0x8] sm:$0xff]
        %v949 = vld [vmem:[#allocation2 + $0x10] sm:$0xff]
        %v950 = vld [vmem:[#allocation2 + $0x18] sm:$0xff]
        %v951 = vld [vmem:[#allocation2 + $0x20] sm:$0xff]
        %v952 = vld [vmem:[#allocation2 + $0x28] sm:$0xff]
        %v953 = vld [vmem:[#allocation2 + $0x30] sm:$0xff]
        %v954 = vld [vmem:[#allocation2 + $0x38] sm:$0xff]
        %v955 = vld [vmem:[#allocation2 + $0x40] sm:$0xff]
        %v956 = vld [vmem:[#allocation2 + $0x48] sm:$0xff]
        %v957 = vld [vmem:[#allocation2 + $0x50] sm:$0xff]
        %v958 = vld [vmem:[#allocation2 + $0x58] sm:$0xff]
        %v959 = vld [vmem:[#allocation2 + $0x60] sm:$0xff]
        %v960 = vld [vmem:[#allocation2 + $0x68] sm:$0xff]
        %v961 = vld [vmem:[#allocation2 + $0x70] sm:$0xff]
        %v962 = vld [vmem:[#allocation2 + $0x78] sm:$0xff]
        %v963 = vld [vmem:[#allocation2 + $0x80] sm:$0xff]
        %v964 = vld [vmem:[#allocation2 + $0x88] sm:$0xff]
        %v965 = vld [vmem:[#allocation2 + $0x90] sm:$0xff]
        %v966 = vld [vmem:[#allocation2 + $0x98] sm:$0xff]
        %v967 = vld [vmem:[#allocation2 + $0xa0] sm:$0xff]
        %v968 = vld [vmem:[#allocation2 + $0xa8] sm:$0xff]
        %v969 = vld [vmem:[#allocation2 + $0xb0] sm:$0xff]
        %v970 = vld [vmem:[#allocation2 + $0xb8] sm:$0xff]
        %v971 = vld [vmem:[#allocation2 + $0xc0] sm:$0xff]
        %v972 = vld [vmem:[#allocation2 + $0xc8] sm:$0xff]
        %v973 = vld [vmem:[#allocation2 + $0xd0] sm:$0xff]
        %v974 = vld [vmem:[#allocation2 + $0xd8] sm:$0xff]
        %v975 = vld [vmem:[#allocation2 + $0xe0] sm:$0xff]
        %v976 = vld [vmem:[#allocation2 + $0xe8] sm:$0xff]
        %v977 = vld [vmem:[#allocation2 + $0xf0] sm:$0xff]
        %v978 = vld [vmem:[#allocation2 + $0xf8] sm:$0xff]
        %v979 = vld [vmem:[%s2] sm:$0x3]
        %v981 = vperm.slane %v979, 0
        %v982 = vperm.slane %v979, 1
        %v1001 = vunpack.c.l.b16 %v931
        %v1002 = vunpack.c.l.b16 %v932
        %v1003 = vunpack.c.l.b16 %v933
        %v1004 = vunpack.c.l.b16 %v934
        %v1005 = vunpack.c.l.b16 %v935
        %v1006 = vunpack.c.l.b16 %v936
        %v1007 = vunpack.c.l.b16 %v937
        %v1008 = vunpack.c.l.b16 %v938
        %v1009 = vunpack.c.l.b16 %v939
        %v1010 = vunpack.c.l.b16 %v940
        %v1011 = vunpack.c.l.b16 %v941
        %v1012 = vunpack.c.l.b16 %v942
        %v1013 = vunpack.c.l.b16 %v943
        %v1014 = vunpack.c.l.b16 %v944
        %v1015 = vunpack.c.l.b16 %v945
        %v1016 = vunpack.c.l.b16 %v946
        %vm1017 = vcmask 1041409
        %v1018 = vsel %vm1017, %v1003, %v1001
        %vm1019 = vcmask 1042434
        %v1020 = vsel %vm1019, %v1005, %v1018
        %vm1021 = vcmask 1043459
        %v1022 = vsel %vm1021, %v1007, %v1020
        %vm1023 = vcmask 1044484
        %v1024 = vsel %vm1023, %v1009, %v1022
        %vm1025 = vcmask 1045509
        %v1026 = vsel %vm1025, %v1011, %v1024
        %vm1027 = vcmask 1046534
        %v1028 = vsel %vm1027, %v1013, %v1026
        %vm1029 = vcmask 1047559
        %v1030 = vsel %vm1029, %v1015, %v1028
        %v1031 = vsel %vm1017, %v1004, %v1002
        %v1032 = vsel %vm1019, %v1006, %v1031
        %v1033 = vsel %vm1021, %v1008, %v1032
        %v1034 = vsel %vm1023, %v1010, %v1033
        %v1035 = vsel %vm1025, %v1012, %v1034
        %v1036 = vsel %vm1027, %v1014, %v1035
        %v1037 = vsel %vm1029, %v1016, %v1036
        %v1038 = vpack.c.b16 %v1030, %v1030
        %v1039 = vpack.c.b16 %v1037, %v1037
        %v1074 = vunpack.c.l.b16 %v947
        %v1075 = vunpack.c.h.b16 %v947
        %v1076 = vunpack.c.l.b16 %v948
        %v1077 = vunpack.c.h.b16 %v948
        %v1078 = vunpack.c.l.b16 %v949
        %v1079 = vunpack.c.h.b16 %v949
        %v1080 = vunpack.c.l.b16 %v950
        %v1081 = vunpack.c.h.b16 %v950
        %v1082 = vunpack.c.l.b16 %v951
        %v1083 = vunpack.c.h.b16 %v951
        %v1084 = vunpack.c.l.b16 %v952
        %v1085 = vunpack.c.h.b16 %v952
        %v1086 = vunpack.c.l.b16 %v953
        %v1087 = vunpack.c.h.b16 %v953
        %v1088 = vunpack.c.l.b16 %v954
        %v1089 = vunpack.c.h.b16 %v954
        %v1090 = vunpack.c.l.b16 %v955
        %v1091 = vunpack.c.h.b16 %v955
        %v1092 = vunpack.c.l.b16 %v956
        %v1093 = vunpack.c.h.b16 %v956
        %v1094 = vunpack.c.l.b16 %v957
        %v1095 = vunpack.c.h.b16 %v957
        %v1096 = vunpack.c.l.b16 %v958
        %v1097 = vunpack.c.h.b16 %v958
        %v1098 = vunpack.c.l.b16 %v959
        %v1099 = vunpack.c.h.b16 %v959
        %v1100 = vunpack.c.l.b16 %v960
        %v1101 = vunpack.c.h.b16 %v960
        %v1102 = vunpack.c.l.b16 %v961
        %v1103 = vunpack.c.h.b16 %v961
        %v1104 = vunpack.c.l.b16 %v962
        %v1105 = vunpack.c.h.b16 %v962
        %v1106 = vunpack.c.l.b16 %v963
        %v1107 = vunpack.c.h.b16 %v963
        %v1108 = vunpack.c.l.b16 %v964
        %v1109 = vunpack.c.h.b16 %v964
        %v1110 = vunpack.c.l.b16 %v965
        %v1111 = vunpack.c.h.b16 %v965
        %v1112 = vunpack.c.l.b16 %v966
        %v1113 = vunpack.c.h.b16 %v966
        %v1114 = vunpack.c.l.b16 %v967
        %v1115 = vunpack.c.h.b16 %v967
        %v1116 = vunpack.c.l.b16 %v968
        %v1117 = vunpack.c.h.b16 %v968
        %v1118 = vunpack.c.l.b16 %v969
        %v1119 = vunpack.c.h.b16 %v969
        %v1120 = vunpack.c.l.b16 %v970
        %v1121 = vunpack.c.h.b16 %v970
        %v1122 = vunpack.c.l.b16 %v971
        %v1123 = vunpack.c.h.b16 %v971
        %v1124 = vunpack.c.l.b16 %v972
        %v1125 = vunpack.c.h.b16 %v972
        %v1126 = vunpack.c.l.b16 %v973
        %v1127 = vunpack.c.h.b16 %v973
        %v1128 = vunpack.c.l.b16 %v974
        %v1129 = vunpack.c.h.b16 %v974
        %v1130 = vunpack.c.l.b16 %v975
        %v1131 = vunpack.c.h.b16 %v975
        %v1132 = vunpack.c.l.b16 %v976
        %v1133 = vunpack.c.h.b16 %v976
        %v1134 = vunpack.c.l.b16 %v977
        %v1135 = vunpack.c.h.b16 %v977
        %v1136 = vunpack.c.l.b16 %v978
        %v1137 = vunpack.c.h.b16 %v978
        %v1138 = vpack.c.b16 %v1076, %v1074
        %v1139 = vpack.c.b16 %v1077, %v1075
        %v1140 = vpack.c.b16 %v1080, %v1078
        %v1141 = vpack.c.b16 %v1081, %v1079
        %v1142 = vpack.c.b16 %v1084, %v1082
        %v1143 = vpack.c.b16 %v1085, %v1083
        %v1144 = vpack.c.b16 %v1088, %v1086
        %v1145 = vpack.c.b16 %v1089, %v1087
        %v1146 = vpack.c.b16 %v1092, %v1090
        %v1147 = vpack.c.b16 %v1093, %v1091
        %v1148 = vpack.c.b16 %v1096, %v1094
        %v1149 = vpack.c.b16 %v1097, %v1095
        %v1150 = vpack.c.b16 %v1100, %v1098
        %v1151 = vpack.c.b16 %v1101, %v1099
        %v1152 = vpack.c.b16 %v1104, %v1102
        %v1153 = vpack.c.b16 %v1105, %v1103
        %v1154 = vpack.c.b16 %v1108, %v1106
        %v1155 = vpack.c.b16 %v1109, %v1107
        %v1156 = vpack.c.b16 %v1112, %v1110
        %v1157 = vpack.c.b16 %v1113, %v1111
        %v1158 = vpack.c.b16 %v1116, %v1114
        %v1159 = vpack.c.b16 %v1117, %v1115
        %v1160 = vpack.c.b16 %v1120, %v1118
        %v1161 = vpack.c.b16 %v1121, %v1119
        %v1162 = vpack.c.b16 %v1124, %v1122
        %v1163 = vpack.c.b16 %v1125, %v1123
        %v1164 = vpack.c.b16 %v1128, %v1126
        %v1165 = vpack.c.b16 %v1129, %v1127
        %v1166 = vpack.c.b16 %v1132, %v1130
        %v1167 = vpack.c.b16 %v1133, %v1131
        %v1168 = vpack.c.b16 %v1136, %v1134
        %v1169 = vpack.c.b16 %v1137, %v1135
        %1202 = vmatpush.bf16.msra.mxu0 %v1152
        %1203 = vmatpush.bf16.msra.mxu0 %v1150
        %1204 = vmatpush.bf16.msra.mxu0 %v1148
        %1205 = vmatpush.bf16.msra.mxu0 %v1146
        %1206 = vmatpush.bf16.msra.mxu0 %v1144
        %1207 = vmatpush.bf16.msra.mxu0 %v1142
        %1208 = vmatpush.bf16.msra.mxu0 %v1140
        %1209 = vmatpush.bf16.msra.mxu0 %v1138
        %1210 = vmatmul.bf16.gmra.mxu0 %v1038
        %v1211 = vpop.f32.mrf.mxu0
        %v1212 = vadd.f32 %v981, %v1211
        %v1213 = vpop.f32.mrf.mxu0
        %1214 = vdwg.mxu0
        %1215 = vmatpush.bf16.msra.mxu0 %v1168
        %1216 = vmatpush.bf16.msra.mxu0 %v1166
        %1217 = vmatpush.bf16.msra.mxu0 %v1164
        %1218 = vmatpush.bf16.msra.mxu0 %v1162
        %1219 = vmatpush.bf16.msra.mxu0 %v1160
        %1220 = vmatpush.bf16.msra.mxu0 %v1158
        %1221 = vmatpush.bf16.msra.mxu0 %v1156
        %1222 = vmatpush.bf16.msra.mxu0 %v1154
        %1223 = vmatmul.bf16.gmra.mxu0 %v1039
        %v1224 = vpop.f32.mrf.mxu0
        %v1225 = vadd.f32 %v1212, %v1224
        %v1226 = vpop.f32.mrf.mxu0
        %1227 = vdwg.mxu0
        %1228 = vmatpush.bf16.msra.mxu0 %v1153
        %1229 = vmatpush.bf16.msra.mxu0 %v1151
        %1230 = vmatpush.bf16.msra.mxu0 %v1149
        %1231 = vmatpush.bf16.msra.mxu0 %v1147
        %1232 = vmatpush.bf16.msra.mxu0 %v1145
        %1233 = vmatpush.bf16.msra.mxu0 %v1143
        %1234 = vmatpush.bf16.msra.mxu0 %v1141
        %1235 = vmatpush.bf16.msra.mxu0 %v1139
        %1236 = vmatmul.bf16.gmra.mxu0 %v1038
        %v1237 = vpop.f32.mrf.mxu0
        %v1238 = vadd.f32 %v982, %v1237
        %v1239 = vpop.f32.mrf.mxu0
        %1240 = vdwg.mxu0
        %1241 = vmatpush.bf16.msra.mxu0 %v1169
        %1242 = vmatpush.bf16.msra.mxu0 %v1167
        %1243 = vmatpush.bf16.msra.mxu0 %v1165
        %1244 = vmatpush.bf16.msra.mxu0 %v1163
        %1245 = vmatpush.bf16.msra.mxu0 %v1161
        %1246 = vmatpush.bf16.msra.mxu0 %v1159
        %1247 = vmatpush.bf16.msra.mxu0 %v1157
        %1248 = vmatpush.bf16.msra.mxu0 %v1155
        %1249 = vmatmul.bf16.gmra.mxu0 %v1039
        %v1250 = vpop.f32.mrf.mxu0
        %v1251 = vadd.f32 %v1238, %v1250
        %v1252 = vpop.f32.mrf.mxu0
        %1253 = vdwg.mxu0
        %v1254 = vmax.f32 %v1225, 0.0
        %v1255 = vmax.f32 %v1251, 0.0
        %v1256 = vpack.c.bf16 %v1254, %v1254
        %v1257 = vpack.c.bf16 %v1255, %v1255
        %v1258 = vld [vmem:[#allocation4] sm:$0xff]
        %v1259 = vld [vmem:[#allocation4 + $0x8] sm:$0xff]
        %v1260 = vld [vmem:[#allocation4 + $0x10] sm:$0xff]
        %v1261 = vld [vmem:[#allocation4 + $0x18] sm:$0xff]
        %v1262 = vld [vmem:[#allocation4 + $0x20] sm:$0xff]
        %v1263 = vld [vmem:[#allocation4 + $0x28] sm:$0xff]
        %v1264 = vld [vmem:[#allocation4 + $0x30] sm:$0xff]
        %v1265 = vld [vmem:[#allocation4 + $0x38] sm:$0xff]
        %v1266 = vld [vmem:[#allocation4 + $0x40] sm:$0xff]
        %v1267 = vld [vmem:[#allocation4 + $0x48] sm:$0xff]
        %v1268 = vld [vmem:[#allocation4 + $0x50] sm:$0xff]
        %v1269 = vld [vmem:[#allocation4 + $0x58] sm:$0xff]
        %v1270 = vld [vmem:[#allocation4 + $0x60] sm:$0xff]
        %v1271 = vld [vmem:[#allocation4 + $0x68] sm:$0xff]
        %v1272 = vld [vmem:[#allocation4 + $0x70] sm:$0xff]
        %v1273 = vld [vmem:[#allocation4 + $0x78] sm:$0xff]
        %v1274 = vld [vmem:[#allocation4 + $0x80] sm:$0xff]
        %v1275 = vld [vmem:[#allocation4 + $0x88] sm:$0xff]
        %v1276 = vld [vmem:[#allocation4 + $0x90] sm:$0xff]
        %v1277 = vld [vmem:[#allocation4 + $0x98] sm:$0xff]
        %v1278 = vld [vmem:[#allocation4 + $0xa0] sm:$0xff]
        %v1279 = vld [vmem:[#allocation4 + $0xa8] sm:$0xff]
        %v1280 = vld [vmem:[#allocation4 + $0xb0] sm:$0xff]
        %v1281 = vld [vmem:[#allocation4 + $0xb8] sm:$0xff]
        %v1282 = vld [vmem:[#allocation4 + $0xc0] sm:$0xff]
        %v1283 = vld [vmem:[#allocation4 + $0xc8] sm:$0xff]
        %v1284 = vld [vmem:[#allocation4 + $0xd0] sm:$0xff]
        %v1285 = vld [vmem:[#allocation4 + $0xd8] sm:$0xff]
        %v1286 = vld [vmem:[#allocation4 + $0xe0] sm:$0xff]
        %v1287 = vld [vmem:[#allocation4 + $0xe8] sm:$0xff]
        %v1288 = vld [vmem:[#allocation4 + $0xf0] sm:$0xff]
        %v1289 = vld [vmem:[#allocation4 + $0xf8] sm:$0xff]
        %v1290 = vld [vmem:[%s4] sm:$0x3]
        %v1292 = vperm.slane %v1290, 0
        %v1293 = vperm.slane %v1290, 1
        %v1328 = vunpack.c.l.b16 %v1258
        %v1329 = vunpack.c.h.b16 %v1258
        %v1330 = vunpack.c.l.b16 %v1259
        %v1331 = vunpack.c.h.b16 %v1259
        %v1332 = vunpack.c.l.b16 %v1260
        %v1333 = vunpack.c.h.b16 %v1260
        %v1334 = vunpack.c.l.b16 %v1261
        %v1335 = vunpack.c.h.b16 %v1261
        %v1336 = vunpack.c.l.b16 %v1262
        %v1337 = vunpack.c.h.b16 %v1262
        %v1338 = vunpack.c.l.b16 %v1263
        %v1339 = vunpack.c.h.b16 %v1263
        %v1340 = vunpack.c.l.b16 %v1264
        %v1341 = vunpack.c.h.b16 %v1264
        %v1342 = vunpack.c.l.b16 %v1265
        %v1343 = vunpack.c.h.b16 %v1265
        %v1344 = vunpack.c.l.b16 %v1266
        %v1345 = vunpack.c.h.b16 %v1266
        %v1346 = vunpack.c.l.b16 %v1267
        %v1347 = vunpack.c.h.b16 %v1267
        %v1348 = vunpack.c.l.b16 %v1268
        %v1349 = vunpack.c.h.b16 %v1268
        %v1350 = vunpack.c.l.b16 %v1269
        %v1351 = vunpack.c.h.b16 %v1269
        %v1352 = vunpack.c.l.b16 %v1270
        %v1353 = vunpack.c.h.b16 %v1270
        %v1354 = vunpack.c.l.b16 %v1271
        %v1355 = vunpack.c.h.b16 %v1271
        %v1356 = vunpack.c.l.b16 %v1272
        %v1357 = vunpack.c.h.b16 %v1272
        %v1358 = vunpack.c.l.b16 %v1273
        %v1359 = vunpack.c.h.b16 %v1273
        %v1360 = vunpack.c.l.b16 %v1274
        %v1361 = vunpack.c.h.b16 %v1274
        %v1362 = vunpack.c.l.b16 %v1275
        %v1363 = vunpack.c.h.b16 %v1275
        %v1364 = vunpack.c.l.b16 %v1276
        %v1365 = vunpack.c.h.b16 %v1276
        %v1366 = vunpack.c.l.b16 %v1277
        %v1367 = vunpack.c.h.b16 %v1277
        %v1368 = vunpack.c.l.b16 %v1278
        %v1369 = vunpack.c.h.b16 %v1278
        %v1370 = vunpack.c.l.b16 %v1279
        %v1371 = vunpack.c.h.b16 %v1279
        %v1372 = vunpack.c.l.b16 %v1280
        %v1373 = vunpack.c.h.b16 %v1280
        %v1374 = vunpack.c.l.b16 %v1281
        %v1375 = vunpack.c.h.b16 %v1281
        %v1376 = vunpack.c.l.b16 %v1282
        %v1377 = vunpack.c.h.b16 %v1282
        %v1378 = vunpack.c.l.b16 %v1283
        %v1379 = vunpack.c.h.b16 %v1283
        %v1380 = vunpack.c.l.b16 %v1284
        %v1381 = vunpack.c.h.b16 %v1284
        %v1382 = vunpack.c.l.b16 %v1285
        %v1383 = vunpack.c.h.b16 %v1285
        %v1384 = vunpack.c.l.b16 %v1286
        %v1385 = vunpack.c.h.b16 %v1286
        %v1386 = vunpack.c.l.b16 %v1287
        %v1387 = vunpack.c.h.b16 %v1287
        %v1388 = vunpack.c.l.b16 %v1288
        %v1389 = vunpack.c.h.b16 %v1288
        %v1390 = vunpack.c.l.b16 %v1289
        %v1391 = vunpack.c.h.b16 %v1289
        %v1392 = vpack.c.b16 %v1330, %v1328
        %v1393 = vpack.c.b16 %v1331, %v1329
        %v1394 = vpack.c.b16 %v1334, %v1332
        %v1395 = vpack.c.b16 %v1335, %v1333
        %v1396 = vpack.c.b16 %v1338, %v1336
        %v1397 = vpack.c.b16 %v1339, %v1337
        %v1398 = vpack.c.b16 %v1342, %v1340
        %v1399 = vpack.c.b16 %v1343, %v1341
        %v1400 = vpack.c.b16 %v1346, %v1344
        %v1401 = vpack.c.b16 %v1347, %v1345
        %v1402 = vpack.c.b16 %v1350, %v1348
        %v1403 = vpack.c.b16 %v1351, %v1349
        %v1404 = vpack.c.b16 %v1354, %v1352
        %v1405 = vpack.c.b16 %v1355, %v1353
        %v1406 = vpack.c.b16 %v1358, %v1356
        %v1407 = vpack.c.b16 %v1359, %v1357
        %v1408 = vpack.c.b16 %v1362, %v1360
        %v1409 = vpack.c.b16 %v1363, %v1361
        %v1410 = vpack.c.b16 %v1366, %v1364
        %v1411 = vpack.c.b16 %v1367, %v1365
        %v1412 = vpack.c.b16 %v1370, %v1368
        %v1413 = vpack.c.b16 %v1371, %v1369
        %v1414 = vpack.c.b16 %v1374, %v1372
        %v1415 = vpack.c.b16 %v1375, %v1373
        %v1416 = vpack.c.b16 %v1378, %v1376
        %v1417 = vpack.c.b16 %v1379, %v1377
        %v1418 = vpack.c.b16 %v1382, %v1380
        %v1419 = vpack.c.b16 %v1383, %v1381
        %v1420 = vpack.c.b16 %v1386, %v1384
        %v1421 = vpack.c.b16 %v1387, %v1385
        %v1422 = vpack.c.b16 %v1390, %v1388
        %v1423 = vpack.c.b16 %v1391, %v1389
        %1456 = vmatpush.bf16.msra.mxu0 %v1406
        %1457 = vmatpush.bf16.msra.mxu0 %v1404
        %1458 = vmatpush.bf16.msra.mxu0 %v1402
        %1459 = vmatpush.bf16.msra.mxu0 %v1400
        %1460 = vmatpush.bf16.msra.mxu0 %v1398
        %1461 = vmatpush.bf16.msra.mxu0 %v1396
        %1462 = vmatpush.bf16.msra.mxu0 %v1394
        %1463 = vmatpush.bf16.msra.mxu0 %v1392
        %1464 = vmatmul.bf16.gmra.mxu0 %v1256
        %v1465 = vpop.f32.mrf.mxu0
        %v1466 = vadd.f32 %v1292, %v1465
        %v1467 = vpop.f32.mrf.mxu0
        %1468 = vdwg.mxu0
        %1469 = vmatpush.bf16.msra.mxu0 %v1422
        %1470 = vmatpush.bf16.msra.mxu0 %v1420
        %1471 = vmatpush.bf16.msra.mxu0 %v1418
        %1472 = vmatpush.bf16.msra.mxu0 %v1416
        %1473 = vmatpush.bf16.msra.mxu0 %v1414
        %1474 = vmatpush.bf16.msra.mxu0 %v1412
        %1475 = vmatpush.bf16.msra.mxu0 %v1410
        %1476 = vmatpush.bf16.msra.mxu0 %v1408
        %1477 = vmatmul.bf16.gmra.mxu0 %v1257
        %v1478 = vpop.f32.mrf.mxu0
        %v1479 = vadd.f32 %v1466, %v1478
        %v1480 = vpop.f32.mrf.mxu0
        %1481 = vdwg.mxu0
        %1482 = vmatpush.bf16.msra.mxu0 %v1407
        %1483 = vmatpush.bf16.msra.mxu0 %v1405
        %1484 = vmatpush.bf16.msra.mxu0 %v1403
        %1485 = vmatpush.bf16.msra.mxu0 %v1401
        %1486 = vmatpush.bf16.msra.mxu0 %v1399
        %1487 = vmatpush.bf16.msra.mxu0 %v1397
        %1488 = vmatpush.bf16.msra.mxu0 %v1395
        %1489 = vmatpush.bf16.msra.mxu0 %v1393
        %1490 = vmatmul.bf16.gmra.mxu0 %v1256
        %v1491 = vpop.f32.mrf.mxu0
        %v1492 = vadd.f32 %v1293, %v1491
        %v1493 = vpop.f32.mrf.mxu0
        %1494 = vdwg.mxu0
        %1495 = vmatpush.bf16.msra.mxu0 %v1423
        %1496 = vmatpush.bf16.msra.mxu0 %v1421
        %1497 = vmatpush.bf16.msra.mxu0 %v1419
        %1498 = vmatpush.bf16.msra.mxu0 %v1417
        %1499 = vmatpush.bf16.msra.mxu0 %v1415
        %1500 = vmatpush.bf16.msra.mxu0 %v1413
        %1501 = vmatpush.bf16.msra.mxu0 %v1411
        %1502 = vmatpush.bf16.msra.mxu0 %v1409
        %1503 = vmatmul.bf16.gmra.mxu0 %v1257
        %v1504 = vpop.f32.mrf.mxu0
        %v1505 = vadd.f32 %v1492, %v1504
        %v1506 = vpop.f32.mrf.mxu0
        %1507 = vdwg.mxu0
        %v1508 = vmax.f32 %v1479, 0.0
        %v1509 = vmax.f32 %v1505, 0.0
        %v1510 = vld [vmem:[#allocation6] sm:$0xff]
        %v1511 = vld [vmem:[#allocation6 + $0x8] sm:$0xff]
        %v1512 = vld [vmem:[#allocation6 + $0x10] sm:$0xff]
        %v1513 = vld [vmem:[#allocation6 + $0x18] sm:$0xff]
        %v1514 = vld [vmem:[#allocation6 + $0x20] sm:$0xff]
        %v1515 = vld [vmem:[#allocation6 + $0x28] sm:$0xff]
        %v1516 = vld [vmem:[#allocation6 + $0x30] sm:$0xff]
        %v1517 = vld [vmem:[#allocation6 + $0x38] sm:$0xff]
        %v1518 = vld [vmem:[#allocation6 + $0x40] sm:$0xff]
        %v1519 = vld [vmem:[#allocation6 + $0x48] sm:$0xff]
        %v1520 = vld [vmem:[#allocation6 + $0x50] sm:$0xff]
        %v1521 = vld [vmem:[#allocation6 + $0x58] sm:$0xff]
        %v1522 = vld [vmem:[#allocation6 + $0x60] sm:$0xff]
        %v1523 = vld [vmem:[#allocation6 + $0x68] sm:$0xff]
        %v1524 = vld [vmem:[#allocation6 + $0x70] sm:$0xff]
        %v1525 = vld [vmem:[#allocation6 + $0x78] sm:$0xff]
        %v1526 = vld [vmem:[#allocation6 + $0x80] sm:$0xff]
        %v1527 = vld [vmem:[#allocation6 + $0x88] sm:$0xff]
        %v1528 = vld [vmem:[#allocation6 + $0x90] sm:$0xff]
        %v1529 = vld [vmem:[#allocation6 + $0x98] sm:$0xff]
        %v1530 = vld [vmem:[#allocation6 + $0xa0] sm:$0xff]
        %v1531 = vld [vmem:[#allocation6 + $0xa8] sm:$0xff]
        %v1532 = vld [vmem:[#allocation6 + $0xb0] sm:$0xff]
        %v1533 = vld [vmem:[#allocation6 + $0xb8] sm:$0xff]
        %v1534 = vld [vmem:[#allocation6 + $0xc0] sm:$0xff]
        %v1535 = vld [vmem:[#allocation6 + $0xc8] sm:$0xff]
        %v1536 = vld [vmem:[#allocation6 + $0xd0] sm:$0xff]
        %v1537 = vld [vmem:[#allocation6 + $0xd8] sm:$0xff]
        %v1538 = vld [vmem:[#allocation6 + $0xe0] sm:$0xff]
        %v1539 = vld [vmem:[#allocation6 + $0xe8] sm:$0xff]
        %v1540 = vld [vmem:[#allocation6 + $0xf0] sm:$0xff]
        %v1541 = vld [vmem:[#allocation6 + $0xf8] sm:$0xff]
        %v1598 = vunpack.c.l.b16 %v555
        %v1599 = vunpack.c.h.b16 %v555
        %v1600 = vunpack.c.l.b16 %v556
        %v1601 = vunpack.c.h.b16 %v556
        %v1602 = vunpack.c.l.b16 %v557
        %v1603 = vunpack.c.h.b16 %v557
        %v1604 = vunpack.c.l.b16 %v558
        %v1605 = vunpack.c.h.b16 %v558
        %v1606 = vunpack.c.l.b16 %v559
        %v1607 = vunpack.c.h.b16 %v559
        %v1608 = vunpack.c.l.b16 %v560
        %v1609 = vunpack.c.h.b16 %v560
        %v1610 = vunpack.c.l.b16 %v561
        %v1611 = vunpack.c.h.b16 %v561
        %v1612 = vunpack.c.l.b16 %v562
        %v1613 = vunpack.c.h.b16 %v562
        %v1614 = vunpack.c.l.b16 %v563
        %v1615 = vunpack.c.h.b16 %v563
        %v1616 = vunpack.c.l.b16 %v564
        %v1617 = vunpack.c.h.b16 %v564
        %v1618 = vunpack.c.l.b16 %v565
        %v1619 = vunpack.c.h.b16 %v565
        %v1620 = vunpack.c.l.b16 %v566
        %v1621 = vunpack.c.h.b16 %v566
        %v1622 = vunpack.c.l.b16 %v567
        %v1623 = vunpack.c.h.b16 %v567
        %v1624 = vunpack.c.l.b16 %v568
        %v1625 = vunpack.c.h.b16 %v568
        %v1626 = vunpack.c.l.b16 %v569
        %v1627 = vunpack.c.h.b16 %v569
        %v1628 = vunpack.c.l.b16 %v570
        %v1629 = vunpack.c.h.b16 %v570
        %v1630 = vunpack.c.l.b16 %v571
        %v1631 = vunpack.c.h.b16 %v571
        %v1632 = vunpack.c.l.b16 %v572
        %v1633 = vunpack.c.h.b16 %v572
        %v1634 = vunpack.c.l.b16 %v573
        %v1635 = vunpack.c.h.b16 %v573
        %v1636 = vunpack.c.l.b16 %v574
        %v1637 = vunpack.c.h.b16 %v574
        %v1638 = vunpack.c.l.b16 %v575
        %v1639 = vunpack.c.h.b16 %v575
        %v1640 = vunpack.c.l.b16 %v576
        %v1641 = vunpack.c.h.b16 %v576
        %v1642 = vunpack.c.l.b16 %v577
        %v1643 = vunpack.c.h.b16 %v577
        %v1644 = vunpack.c.l.b16 %v578
        %v1645 = vunpack.c.h.b16 %v578
        %v1646 = vunpack.c.l.b16 %v579
        %v1647 = vunpack.c.h.b16 %v579
        %v1648 = vunpack.c.l.b16 %v580
        %v1649 = vunpack.c.h.b16 %v580
        %v1650 = vunpack.c.l.b16 %v581
        %v1651 = vunpack.c.h.b16 %v581
        %v1652 = vunpack.c.l.b16 %v582
        %v1653 = vunpack.c.h.b16 %v582
        %v1654 = vunpack.c.l.b16 %v583
        %v1655 = vunpack.c.h.b16 %v583
        %v1656 = vunpack.c.l.b16 %v584
        %v1657 = vunpack.c.h.b16 %v584
        %v1658 = vunpack.c.l.b16 %v585
        %v1659 = vunpack.c.h.b16 %v585
        %v1660 = vunpack.c.l.b16 %v586
        %v1661 = vunpack.c.h.b16 %v586
        %v1662 = vunpack.c.l.b16 %v587
        %v1663 = vunpack.c.h.b16 %v587
        %v1664 = vunpack.c.l.b16 %v588
        %v1665 = vunpack.c.h.b16 %v588
        %v1666 = vunpack.c.l.b16 %v589
        %v1667 = vunpack.c.h.b16 %v589
        %v1668 = vunpack.c.l.b16 %v590
        %v1669 = vunpack.c.h.b16 %v590
        %v1670 = vunpack.c.l.b16 %v591
        %v1671 = vunpack.c.h.b16 %v591
        %v1672 = vunpack.c.l.b16 %v592
        %v1673 = vunpack.c.h.b16 %v592
        %v1674 = vunpack.c.l.b16 %v593
        %v1675 = vunpack.c.h.b16 %v593
        %v1676 = vunpack.c.l.b16 %v594
        %v1677 = vunpack.c.h.b16 %v594
        %v1678 = vunpack.c.l.b16 %v595
        %v1679 = vunpack.c.h.b16 %v595
        %v1680 = vunpack.c.l.b16 %v596
        %v1681 = vunpack.c.h.b16 %v596
        %v1682 = vunpack.c.l.b16 %v597
        %v1683 = vunpack.c.h.b16 %v597
        %v1684 = vunpack.c.l.b16 %v598
        %v1685 = vunpack.c.h.b16 %v598
        %v1686 = vunpack.c.l.b16 %v599
        %v1687 = vunpack.c.h.b16 %v599
        %v1688 = vunpack.c.l.b16 %v600
        %v1689 = vunpack.c.h.b16 %v600
        %v1690 = vunpack.c.l.b16 %v601
        %v1691 = vunpack.c.h.b16 %v601
        %v1692 = vunpack.c.l.b16 %v602
        %v1693 = vunpack.c.h.b16 %v602
        %v1694 = vunpack.c.l.b16 %v603
        %v1695 = vunpack.c.h.b16 %v603
        %v1696 = vunpack.c.l.b16 %v604
        %v1697 = vunpack.c.h.b16 %v604
        %v1698 = vunpack.c.l.b16 %v605
        %v1699 = vunpack.c.h.b16 %v605
        %v1700 = vunpack.c.l.b16 %v606
        %v1701 = vunpack.c.h.b16 %v606
        %v1702 = vunpack.c.l.b16 %v607
        %v1703 = vunpack.c.h.b16 %v607
        %v1704 = vunpack.c.l.b16 %v608
        %v1705 = vunpack.c.h.b16 %v608
        %v1706 = vunpack.c.l.b16 %v609
        %v1707 = vunpack.c.h.b16 %v609
        %v1708 = vunpack.c.l.b16 %v610
        %v1709 = vunpack.c.h.b16 %v610
        %v1710 = vpack.c.b16 %v1600, %v1598
        %v1711 = vpack.c.b16 %v1601, %v1599
        %v1712 = vpack.c.b16 %v1604, %v1602
        %v1713 = vpack.c.b16 %v1605, %v1603
        %v1714 = vpack.c.b16 %v1608, %v1606
        %v1715 = vpack.c.b16 %v1609, %v1607
        %v1716 = vpack.c.b16 %v1612, %v1610
        %v1717 = vpack.c.b16 %v1613, %v1611
        %v1718 = vpack.c.b16 %v1616, %v1614
        %v1719 = vpack.c.b16 %v1617, %v1615
        %v1720 = vpack.c.b16 %v1620, %v1618
        %v1721 = vpack.c.b16 %v1621, %v1619
        %v1722 = vpack.c.b16 %v1624, %v1622
        %v1723 = vpack.c.b16 %v1625, %v1623
        %v1724 = vpack.c.b16 %v1628, %v1626
        %v1725 = vpack.c.b16 %v1629, %v1627
        %v1726 = vpack.c.b16 %v1632, %v1630
        %v1727 = vpack.c.b16 %v1633, %v1631
        %v1728 = vpack.c.b16 %v1636, %v1634
        %v1729 = vpack.c.b16 %v1637, %v1635
        %v1730 = vpack.c.b16 %v1640, %v1638
        %v1731 = vpack.c.b16 %v1641, %v1639
        %v1732 = vpack.c.b16 %v1644, %v1642
        %v1733 = vpack.c.b16 %v1645, %v1643
        %v1734 = vpack.c.b16 %v1648, %v1646
        %v1735 = vpack.c.b16 %v1649, %v1647
        %v1736 = vpack.c.b16 %v1652, %v1650
        %v1737 = vpack.c.b16 %v1653, %v1651
        %v1738 = vpack.c.b16 %v1656, %v1654
        %v1739 = vpack.c.b16 %v1657, %v1655
        %v1740 = vpack.c.b16 %v1660, %v1658
        %v1741 = vpack.c.b16 %v1661, %v1659
        %v1742 = vpack.c.b16 %v1664, %v1662
        %v1743 = vpack.c.b16 %v1665, %v1663
        %v1744 = vpack.c.b16 %v1668, %v1666
        %v1745 = vpack.c.b16 %v1669, %v1667
        %v1746 = vpack.c.b16 %v1672, %v1670
        %v1747 = vpack.c.b16 %v1673, %v1671
        %v1748 = vpack.c.b16 %v1676, %v1674
        %v1749 = vpack.c.b16 %v1677, %v1675
        %v1750 = vpack.c.b16 %v1680, %v1678
        %v1751 = vpack.c.b16 %v1681, %v1679
        %v1752 = vpack.c.b16 %v1684, %v1682
        %v1753 = vpack.c.b16 %v1685, %v1683
        %v1754 = vpack.c.b16 %v1688, %v1686
        %v1755 = vpack.c.b16 %v1689, %v1687
        %v1756 = vpack.c.b16 %v1692, %v1690
        %v1757 = vpack.c.b16 %v1693, %v1691
        %v1758 = vpack.c.b16 %v1696, %v1694
        %v1759 = vpack.c.b16 %v1697, %v1695
        %v1760 = vpack.c.b16 %v1700, %v1698
        %v1761 = vpack.c.b16 %v1701, %v1699
        %v1762 = vpack.c.b16 %v1704, %v1702
        %v1763 = vpack.c.b16 %v1705, %v1703
        %v1764 = vpack.c.b16 %v1708, %v1706
        %v1765 = vpack.c.b16 %v1709, %v1707
        %v1854 = vunpack.c.l.b16 %v1510
        %v1855 = vunpack.c.h.b16 %v1510
        %v1856 = vunpack.c.l.b16 %v1511
        %v1857 = vunpack.c.h.b16 %v1511
        %v1858 = vunpack.c.l.b16 %v1512
        %v1859 = vunpack.c.h.b16 %v1512
        %v1860 = vunpack.c.l.b16 %v1513
        %v1861 = vunpack.c.h.b16 %v1513
        %v1862 = vunpack.c.l.b16 %v1514
        %v1863 = vunpack.c.h.b16 %v1514
        %v1864 = vunpack.c.l.b16 %v1515
        %v1865 = vunpack.c.h.b16 %v1515
        %v1866 = vunpack.c.l.b16 %v1516
        %v1867 = vunpack.c.h.b16 %v1516
        %v1868 = vunpack.c.l.b16 %v1517
        %v1869 = vunpack.c.h.b16 %v1517
        %v1870 = vunpack.c.l.b16 %v1518
        %v1871 = vunpack.c.h.b16 %v1518
        %v1872 = vunpack.c.l.b16 %v1519
        %v1873 = vunpack.c.h.b16 %v1519
        %v1874 = vunpack.c.l.b16 %v1520
        %v1875 = vunpack.c.h.b16 %v1520
        %v1876 = vunpack.c.l.b16 %v1521
        %v1877 = vunpack.c.h.b16 %v1521
        %v1878 = vunpack.c.l.b16 %v1522
        %v1879 = vunpack.c.h.b16 %v1522
        %v1880 = vunpack.c.l.b16 %v1523
        %v1881 = vunpack.c.h.b16 %v1523
        %v1882 = vunpack.c.l.b16 %v1524
        %v1883 = vunpack.c.h.b16 %v1524
        %v1884 = vunpack.c.l.b16 %v1525
        %v1885 = vunpack.c.h.b16 %v1525
        %v1886 = vunpack.c.l.b16 %v1526
        %v1887 = vunpack.c.h.b16 %v1526
        %v1888 = vunpack.c.l.b16 %v1527
        %v1889 = vunpack.c.h.b16 %v1527
        %v1890 = vunpack.c.l.b16 %v1528
        %v1891 = vunpack.c.h.b16 %v1528
        %v1892 = vunpack.c.l.b16 %v1529
        %v1893 = vunpack.c.h.b16 %v1529
        %v1894 = vunpack.c.l.b16 %v1530
        %v1895 = vunpack.c.h.b16 %v1530
        %v1896 = vunpack.c.l.b16 %v1531
        %v1897 = vunpack.c.h.b16 %v1531
        %v1898 = vunpack.c.l.b16 %v1532
        %v1899 = vunpack.c.h.b16 %v1532
        %v1900 = vunpack.c.l.b16 %v1533
        %v1901 = vunpack.c.h.b16 %v1533
        %v1902 = vunpack.c.l.b16 %v1534
        %v1903 = vunpack.c.h.b16 %v1534
        %v1904 = vunpack.c.l.b16 %v1535
        %v1905 = vunpack.c.h.b16 %v1535
        %v1906 = vunpack.c.l.b16 %v1536
        %v1907 = vunpack.c.h.b16 %v1536
        %v1908 = vunpack.c.l.b16 %v1537
        %v1909 = vunpack.c.h.b16 %v1537
        %v1910 = vunpack.c.l.b16 %v1538
        %v1911 = vunpack.c.h.b16 %v1538
        %v1912 = vunpack.c.l.b16 %v1539
        %v1913 = vunpack.c.h.b16 %v1539
        %v1914 = vunpack.c.l.b16 %v1540
        %v1915 = vunpack.c.h.b16 %v1540
        %v1916 = vunpack.c.l.b16 %v1541
        %v1917 = vunpack.c.h.b16 %v1541
        %v1918 = vpack.c.b16 %v1856, %v1854
        %v1919 = vpack.c.b16 %v1857, %v1855
        %v1920 = vpack.c.b16 %v1860, %v1858
        %v1921 = vpack.c.b16 %v1861, %v1859
        %v1922 = vpack.c.b16 %v1864, %v1862
        %v1923 = vpack.c.b16 %v1865, %v1863
        %v1924 = vpack.c.b16 %v1868, %v1866
        %v1925 = vpack.c.b16 %v1869, %v1867
        %v1926 = vpack.c.b16 %v1872, %v1870
        %v1927 = vpack.c.b16 %v1873, %v1871
        %v1928 = vpack.c.b16 %v1876, %v1874
        %v1929 = vpack.c.b16 %v1877, %v1875
        %v1930 = vpack.c.b16 %v1880, %v1878
        %v1931 = vpack.c.b16 %v1881, %v1879
        %v1932 = vpack.c.b16 %v1884, %v1882
        %v1933 = vpack.c.b16 %v1885, %v1883
        %v1934 = vpack.c.b16 %v1888, %v1886
        %v1935 = vpack.c.b16 %v1889, %v1887
        %v1936 = vpack.c.b16 %v1892, %v1890
        %v1937 = vpack.c.b16 %v1893, %v1891
        %v1938 = vpack.c.b16 %v1896, %v1894
        %v1939 = vpack.c.b16 %v1897, %v1895
        %v1940 = vpack.c.b16 %v1900, %v1898
        %v1941 = vpack.c.b16 %v1901, %v1899
        %v1942 = vpack.c.b16 %v1904, %v1902
        %v1943 = vpack.c.b16 %v1905, %v1903
        %v1944 = vpack.c.b16 %v1908, %v1906
        %v1945 = vpack.c.b16 %v1909, %v1907
        %v1946 = vpack.c.b16 %v1912, %v1910
        %v1947 = vpack.c.b16 %v1913, %v1911
        %v1948 = vpack.c.b16 %v1916, %v1914
        %v1949 = vpack.c.b16 %v1917, %v1915
        %1982 = vmatpush.bf16.msra.mxu0 %v1932
        %1983 = vmatpush.bf16.msra.mxu0 %v1930
        %1984 = vmatpush.bf16.msra.mxu0 %v1928
        %1985 = vmatpush.bf16.msra.mxu0 %v1926
        %1986 = vmatpush.bf16.msra.mxu0 %v1924
        %1987 = vmatpush.bf16.msra.mxu0 %v1922
        %1988 = vmatpush.bf16.msra.mxu0 %v1920
        %1989 = vmatpush.bf16.msra.mxu0 %v1918
        %1990 = vmatmul.bf16.gmra.mxu0 %v1710
        %v1991 = vpop.f32.mrf.mxu0
        %v1992 = vadd.f32 0.0, %v1991
        %v1993 = vpop.f32.mrf.mxu0
        %v1994 = vadd.f32 0.0, %v1993
        %1995 = vmatmul.bf16.gmra.mxu0 %v1712
        %v1996 = vpop.f32.mrf.mxu0
        %v1997 = vadd.f32 0.0, %v1996
        %v1998 = vpop.f32.mrf.mxu0
        %v1999 = vadd.f32 0.0, %v1998
        %2000 = vmatmul.bf16.gmra.mxu0 %v1714
        %v2001 = vpop.f32.mrf.mxu0
        %v2002 = vadd.f32 0.0, %v2001
        %v2003 = vpop.f32.mrf.mxu0
        %v2004 = vadd.f32 0.0, %v2003
        %2005 = vmatmul.bf16.gmra.mxu0 %v1716
        %v2006 = vpop.f32.mrf.mxu0
        %v2007 = vadd.f32 0.0, %v2006
        %v2008 = vpop.f32.mrf.mxu0
        %v2009 = vadd.f32 0.0, %v2008
        %2010 = vmatmul.bf16.gmra.mxu0 %v1718
        %v2011 = vpop.f32.mrf.mxu0
        %v2012 = vadd.f32 0.0, %v2011
        %v2013 = vpop.f32.mrf.mxu0
        %v2014 = vadd.f32 0.0, %v2013
        %2015 = vmatmul.bf16.gmra.mxu0 %v1720
        %v2016 = vpop.f32.mrf.mxu0
        %v2017 = vadd.f32 0.0, %v2016
        %v2018 = vpop.f32.mrf.mxu0
        %v2019 = vadd.f32 0.0, %v2018
        %2020 = vmatmul.bf16.gmra.mxu0 %v1722
        %v2021 = vpop.f32.mrf.mxu0
        %v2022 = vadd.f32 0.0, %v2021
        %v2023 = vpop.f32.mrf.mxu0
        %v2024 = vadd.f32 0.0, %v2023
        %2025 = vmatmul.bf16.gmra.mxu0 %v1724
        %v2026 = vpop.f32.mrf.mxu0
        %v2027 = vadd.f32 0.0, %v2026
        %v2028 = vpop.f32.mrf.mxu0
        %v2029 = vadd.f32 0.0, %v2028
        %2030 = vmatmul.bf16.gmra.mxu0 %v1726
        %v2031 = vpop.f32.mrf.mxu0
        %v2032 = vadd.f32 0.0, %v2031
        %v2033 = vpop.f32.mrf.mxu0
        %v2034 = vadd.f32 0.0, %v2033
        %2035 = vmatmul.bf16.gmra.mxu0 %v1728
        %v2036 = vpop.f32.mrf.mxu0
        %v2037 = vadd.f32 0.0, %v2036
        %v2038 = vpop.f32.mrf.mxu0
        %v2039 = vadd.f32 0.0, %v2038
        %2040 = vmatmul.bf16.gmra.mxu0 %v1730
        %v2041 = vpop.f32.mrf.mxu0
        %v2042 = vadd.f32 0.0, %v2041
        %v2043 = vpop.f32.mrf.mxu0
        %v2044 = vadd.f32 0.0, %v2043
        %2045 = vmatmul.bf16.gmra.mxu0 %v1732
        %v2046 = vpop.f32.mrf.mxu0
        %v2047 = vadd.f32 0.0, %v2046
        %v2048 = vpop.f32.mrf.mxu0
        %v2049 = vadd.f32 0.0, %v2048
        %2050 = vmatmul.bf16.gmra.mxu0 %v1734
        %v2051 = vpop.f32.mrf.mxu0
        %v2052 = vadd.f32 0.0, %v2051
        %v2053 = vpop.f32.mrf.mxu0
        %v2054 = vadd.f32 0.0, %v2053
        %2055 = vmatmul.bf16.gmra.mxu0 %v1736
        %v2056 = vpop.f32.mrf.mxu0
        %v2057 = vadd.f32 0.0, %v2056
        %v2058 = vpop.f32.mrf.mxu0
        %v2059 = vadd.f32 0.0, %v2058
        %2060 = vmatmul.bf16.gmra.mxu0 %v1738
        %v2061 = vpop.f32.mrf.mxu0
        %v2062 = vadd.f32 0.0, %v2061
        %v2063 = vpop.f32.mrf.mxu0
        %v2064 = vadd.f32 0.0, %v2063
        %2065 = vmatmul.bf16.gmra.mxu0 %v1740
        %v2066 = vpop.f32.mrf.mxu0
        %v2067 = vadd.f32 0.0, %v2066
        %v2068 = vpop.f32.mrf.mxu0
        %v2069 = vadd.f32 0.0, %v2068
        %2070 = vmatmul.bf16.gmra.mxu0 %v1742
        %v2071 = vpop.f32.mrf.mxu0
        %v2072 = vadd.f32 0.0, %v2071
        %v2073 = vpop.f32.mrf.mxu0
        %v2074 = vadd.f32 0.0, %v2073
        %2075 = vmatmul.bf16.gmra.mxu0 %v1744
        %v2076 = vpop.f32.mrf.mxu0
        %v2077 = vadd.f32 0.0, %v2076
        %v2078 = vpop.f32.mrf.mxu0
        %v2079 = vadd.f32 0.0, %v2078
        %2080 = vmatmul.bf16.gmra.mxu0 %v1746
        %v2081 = vpop.f32.mrf.mxu0
        %v2082 = vadd.f32 0.0, %v2081
        %v2083 = vpop.f32.mrf.mxu0
        %v2084 = vadd.f32 0.0, %v2083
        %2085 = vmatmul.bf16.gmra.mxu0 %v1748
        %v2086 = vpop.f32.mrf.mxu0
        %v2087 = vadd.f32 0.0, %v2086
        %v2088 = vpop.f32.mrf.mxu0
        %v2089 = vadd.f32 0.0, %v2088
        %2090 = vmatmul.bf16.gmra.mxu0 %v1750
        %v2091 = vpop.f32.mrf.mxu0
        %v2092 = vadd.f32 0.0, %v2091
        %v2093 = vpop.f32.mrf.mxu0
        %v2094 = vadd.f32 0.0, %v2093
        %2095 = vmatmul.bf16.gmra.mxu0 %v1752
        %v2096 = vpop.f32.mrf.mxu0
        %v2097 = vadd.f32 0.0, %v2096
        %v2098 = vpop.f32.mrf.mxu0
        %v2099 = vadd.f32 0.0, %v2098
        %2100 = vmatmul.bf16.gmra.mxu0 %v1754
        %v2101 = vpop.f32.mrf.mxu0
        %v2102 = vadd.f32 0.0, %v2101
        %v2103 = vpop.f32.mrf.mxu0
        %v2104 = vadd.f32 0.0, %v2103
        %2105 = vmatmul.bf16.gmra.mxu0 %v1756
        %v2106 = vpop.f32.mrf.mxu0
        %v2107 = vadd.f32 0.0, %v2106
        %v2108 = vpop.f32.mrf.mxu0
        %v2109 = vadd.f32 0.0, %v2108
        %2110 = vmatmul.bf16.gmra.mxu0 %v1758
        %v2111 = vpop.f32.mrf.mxu0
        %v2112 = vadd.f32 0.0, %v2111
        %v2113 = vpop.f32.mrf.mxu0
        %v2114 = vadd.f32 0.0, %v2113
        %2115 = vmatmul.bf16.gmra.mxu0 %v1760
        %v2116 = vpop.f32.mrf.mxu0
        %v2117 = vadd.f32 0.0, %v2116
        %v2118 = vpop.f32.mrf.mxu0
        %v2119 = vadd.f32 0.0, %v2118
        %2120 = vmatmul.bf16.gmra.mxu0 %v1762
        %v2121 = vpop.f32.mrf.mxu0
        %v2122 = vadd.f32 0.0, %v2121
        %v2123 = vpop.f32.mrf.mxu0
        %v2124 = vadd.f32 0.0, %v2123
        %2125 = vmatmul.bf16.gmra.mxu0 %v1764
        %v2126 = vpop.f32.mrf.mxu0
        %v2127 = vadd.f32 0.0, %v2126
        %v2128 = vpop.f32.mrf.mxu0
        %v2129 = vadd.f32 0.0, %v2128
        %2130 = vdwg.mxu0
        %2131 = vmatpush.bf16.msra.mxu0 %v1948
        %2132 = vmatpush.bf16.msra.mxu0 %v1946
        %2133 = vmatpush.bf16.msra.mxu0 %v1944
        %2134 = vmatpush.bf16.msra.mxu0 %v1942
        %2135 = vmatpush.bf16.msra.mxu0 %v1940
        %2136 = vmatpush.bf16.msra.mxu0 %v1938
        %2137 = vmatpush.bf16.msra.mxu0 %v1936
        %2138 = vmatpush.bf16.msra.mxu0 %v1934
        %2139 = vmatmul.bf16.gmra.mxu0 %v1711
        %v2140 = vpop.f32.mrf.mxu0
        %v2141 = vadd.f32 %v1992, %v2140
        %v2142 = vpop.f32.mrf.mxu0
        %v2143 = vadd.f32 %v1994, %v2142
        %2144 = vmatmul.bf16.gmra.mxu0 %v1713
        %v2145 = vpop.f32.mrf.mxu0
        %v2146 = vadd.f32 %v1997, %v2145
        %v2147 = vpop.f32.mrf.mxu0
        %v2148 = vadd.f32 %v1999, %v2147
        %2149 = vmatmul.bf16.gmra.mxu0 %v1715
        %v2150 = vpop.f32.mrf.mxu0
        %v2151 = vadd.f32 %v2002, %v2150
        %v2152 = vpop.f32.mrf.mxu0
        %v2153 = vadd.f32 %v2004, %v2152
        %2154 = vmatmul.bf16.gmra.mxu0 %v1717
        %v2155 = vpop.f32.mrf.mxu0
        %v2156 = vadd.f32 %v2007, %v2155
        %v2157 = vpop.f32.mrf.mxu0
        %v2158 = vadd.f32 %v2009, %v2157
        %2159 = vmatmul.bf16.gmra.mxu0 %v1719
        %v2160 = vpop.f32.mrf.mxu0
        %v2161 = vadd.f32 %v2012, %v2160
        %v2162 = vpop.f32.mrf.mxu0
        %v2163 = vadd.f32 %v2014, %v2162
        %2164 = vmatmul.bf16.gmra.mxu0 %v1721
        %v2165 = vpop.f32.mrf.mxu0
        %v2166 = vadd.f32 %v2017, %v2165
        %v2167 = vpop.f32.mrf.mxu0
        %v2168 = vadd.f32 %v2019, %v2167
        %2169 = vmatmul.bf16.gmra.mxu0 %v1723
        %v2170 = vpop.f32.mrf.mxu0
        %v2171 = vadd.f32 %v2022, %v2170
        %v2172 = vpop.f32.mrf.mxu0
        %v2173 = vadd.f32 %v2024, %v2172
        %2174 = vmatmul.bf16.gmra.mxu0 %v1725
        %v2175 = vpop.f32.mrf.mxu0
        %v2176 = vadd.f32 %v2027, %v2175
        %v2177 = vpop.f32.mrf.mxu0
        %v2178 = vadd.f32 %v2029, %v2177
        %2179 = vmatmul.bf16.gmra.mxu0 %v1727
        %v2180 = vpop.f32.mrf.mxu0
        %v2181 = vadd.f32 %v2032, %v2180
        %v2182 = vpop.f32.mrf.mxu0
        %v2183 = vadd.f32 %v2034, %v2182
        %2184 = vmatmul.bf16.gmra.mxu0 %v1729
        %v2185 = vpop.f32.mrf.mxu0
        %v2186 = vadd.f32 %v2037, %v2185
        %v2187 = vpop.f32.mrf.mxu0
        %v2188 = vadd.f32 %v2039, %v2187
        %2189 = vmatmul.bf16.gmra.mxu0 %v1731
        %v2190 = vpop.f32.mrf.mxu0
        %v2191 = vadd.f32 %v2042, %v2190
        %v2192 = vpop.f32.mrf.mxu0
        %v2193 = vadd.f32 %v2044, %v2192
        %2194 = vmatmul.bf16.gmra.mxu0 %v1733
        %v2195 = vpop.f32.mrf.mxu0
        %v2196 = vadd.f32 %v2047, %v2195
        %v2197 = vpop.f32.mrf.mxu0
        %v2198 = vadd.f32 %v2049, %v2197
        %2199 = vmatmul.bf16.gmra.mxu0 %v1735
        %v2200 = vpop.f32.mrf.mxu0
        %v2201 = vadd.f32 %v2052, %v2200
        %v2202 = vpop.f32.mrf.mxu0
        %v2203 = vadd.f32 %v2054, %v2202
        %2204 = vmatmul.bf16.gmra.mxu0 %v1737
        %v2205 = vpop.f32.mrf.mxu0
        %v2206 = vadd.f32 %v2057, %v2205
        %v2207 = vpop.f32.mrf.mxu0
        %v2208 = vadd.f32 %v2059, %v2207
        %2209 = vmatmul.bf16.gmra.mxu0 %v1739
        %v2210 = vpop.f32.mrf.mxu0
        %v2211 = vadd.f32 %v2062, %v2210
        %v2212 = vpop.f32.mrf.mxu0
        %v2213 = vadd.f32 %v2064, %v2212
        %2214 = vmatmul.bf16.gmra.mxu0 %v1741
        %v2215 = vpop.f32.mrf.mxu0
        %v2216 = vadd.f32 %v2067, %v2215
        %v2217 = vpop.f32.mrf.mxu0
        %v2218 = vadd.f32 %v2069, %v2217
        %2219 = vmatmul.bf16.gmra.mxu0 %v1743
        %v2220 = vpop.f32.mrf.mxu0
        %v2221 = vadd.f32 %v2072, %v2220
        %v2222 = vpop.f32.mrf.mxu0
        %v2223 = vadd.f32 %v2074, %v2222
        %2224 = vmatmul.bf16.gmra.mxu0 %v1745
        %v2225 = vpop.f32.mrf.mxu0
        %v2226 = vadd.f32 %v2077, %v2225
        %v2227 = vpop.f32.mrf.mxu0
        %v2228 = vadd.f32 %v2079, %v2227
        %2229 = vmatmul.bf16.gmra.mxu0 %v1747
        %v2230 = vpop.f32.mrf.mxu0
        %v2231 = vadd.f32 %v2082, %v2230
        %v2232 = vpop.f32.mrf.mxu0
        %v2233 = vadd.f32 %v2084, %v2232
        %2234 = vmatmul.bf16.gmra.mxu0 %v1749
        %v2235 = vpop.f32.mrf.mxu0
        %v2236 = vadd.f32 %v2087, %v2235
        %v2237 = vpop.f32.mrf.mxu0
        %v2238 = vadd.f32 %v2089, %v2237
        %2239 = vmatmul.bf16.gmra.mxu0 %v1751
        %v2240 = vpop.f32.mrf.mxu0
        %v2241 = vadd.f32 %v2092, %v2240
        %v2242 = vpop.f32.mrf.mxu0
        %v2243 = vadd.f32 %v2094, %v2242
        %2244 = vmatmul.bf16.gmra.mxu0 %v1753
        %v2245 = vpop.f32.mrf.mxu0
        %v2246 = vadd.f32 %v2097, %v2245
        %v2247 = vpop.f32.mrf.mxu0
        %v2248 = vadd.f32 %v2099, %v2247
        %2249 = vmatmul.bf16.gmra.mxu0 %v1755
        %v2250 = vpop.f32.mrf.mxu0
        %v2251 = vadd.f32 %v2102, %v2250
        %v2252 = vpop.f32.mrf.mxu0
        %v2253 = vadd.f32 %v2104, %v2252
        %2254 = vmatmul.bf16.gmra.mxu0 %v1757
        %v2255 = vpop.f32.mrf.mxu0
        %v2256 = vadd.f32 %v2107, %v2255
        %v2257 = vpop.f32.mrf.mxu0
        %v2258 = vadd.f32 %v2109, %v2257
        %2259 = vmatmul.bf16.gmra.mxu0 %v1759
        %v2260 = vpop.f32.mrf.mxu0
        %v2261 = vadd.f32 %v2112, %v2260
        %v2262 = vpop.f32.mrf.mxu0
        %v2263 = vadd.f32 %v2114, %v2262
        %2264 = vmatmul.bf16.gmra.mxu0 %v1761
        %v2265 = vpop.f32.mrf.mxu0
        %v2266 = vadd.f32 %v2117, %v2265
        %v2267 = vpop.f32.mrf.mxu0
        %v2268 = vadd.f32 %v2119, %v2267
        %2269 = vmatmul.bf16.gmra.mxu0 %v1763
        %v2270 = vpop.f32.mrf.mxu0
        %v2271 = vadd.f32 %v2122, %v2270
        %v2272 = vpop.f32.mrf.mxu0
        %v2273 = vadd.f32 %v2124, %v2272
        %2274 = vmatmul.bf16.gmra.mxu0 %v1765
        %v2275 = vpop.f32.mrf.mxu0
        %v2276 = vadd.f32 %v2127, %v2275
        %v2277 = vpop.f32.mrf.mxu0
        %v2278 = vadd.f32 %v2129, %v2277
        %2279 = vdwg.mxu0
        %2280 = vmatpush.bf16.msra.mxu0 %v1933
        %2281 = vmatpush.bf16.msra.mxu0 %v1931
        %2282 = vmatpush.bf16.msra.mxu0 %v1929
        %2283 = vmatpush.bf16.msra.mxu0 %v1927
        %2284 = vmatpush.bf16.msra.mxu0 %v1925
        %2285 = vmatpush.bf16.msra.mxu0 %v1923
        %2286 = vmatpush.bf16.msra.mxu0 %v1921
        %2287 = vmatpush.bf16.msra.mxu0 %v1919
        %2288 = vmatmul.bf16.gmra.mxu0 %v1710
        %v2289 = vpop.f32.mrf.mxu0
        %v2290 = vadd.f32 0.0, %v2289
        %v2291 = vpop.f32.mrf.mxu0
        %v2292 = vadd.f32 0.0, %v2291
        %2293 = vmatmul.bf16.gmra.mxu0 %v1712
        %v2294 = vpop.f32.mrf.mxu0
        %v2295 = vadd.f32 0.0, %v2294
        %v2296 = vpop.f32.mrf.mxu0
        %v2297 = vadd.f32 0.0, %v2296
        %2298 = vmatmul.bf16.gmra.mxu0 %v1714
        %v2299 = vpop.f32.mrf.mxu0
        %v2300 = vadd.f32 0.0, %v2299
        %v2301 = vpop.f32.mrf.mxu0
        %v2302 = vadd.f32 0.0, %v2301
        %2303 = vmatmul.bf16.gmra.mxu0 %v1716
        %v2304 = vpop.f32.mrf.mxu0
        %v2305 = vadd.f32 0.0, %v2304
        %v2306 = vpop.f32.mrf.mxu0
        %v2307 = vadd.f32 0.0, %v2306
        %2308 = vmatmul.bf16.gmra.mxu0 %v1718
        %v2309 = vpop.f32.mrf.mxu0
        %v2310 = vadd.f32 0.0, %v2309
        %v2311 = vpop.f32.mrf.mxu0
        %v2312 = vadd.f32 0.0, %v2311
        %2313 = vmatmul.bf16.gmra.mxu0 %v1720
        %v2314 = vpop.f32.mrf.mxu0
        %v2315 = vadd.f32 0.0, %v2314
        %v2316 = vpop.f32.mrf.mxu0
        %v2317 = vadd.f32 0.0, %v2316
        %2318 = vmatmul.bf16.gmra.mxu0 %v1722
        %v2319 = vpop.f32.mrf.mxu0
        %v2320 = vadd.f32 0.0, %v2319
        %v2321 = vpop.f32.mrf.mxu0
        %v2322 = vadd.f32 0.0, %v2321
        %2323 = vmatmul.bf16.gmra.mxu0 %v1724
        %v2324 = vpop.f32.mrf.mxu0
        %v2325 = vadd.f32 0.0, %v2324
        %v2326 = vpop.f32.mrf.mxu0
        %v2327 = vadd.f32 0.0, %v2326
        %2328 = vmatmul.bf16.gmra.mxu0 %v1726
        %v2329 = vpop.f32.mrf.mxu0
        %v2330 = vadd.f32 0.0, %v2329
        %v2331 = vpop.f32.mrf.mxu0
        %v2332 = vadd.f32 0.0, %v2331
        %2333 = vmatmul.bf16.gmra.mxu0 %v1728
        %v2334 = vpop.f32.mrf.mxu0
        %v2335 = vadd.f32 0.0, %v2334
        %v2336 = vpop.f32.mrf.mxu0
        %v2337 = vadd.f32 0.0, %v2336
        %2338 = vmatmul.bf16.gmra.mxu0 %v1730
        %v2339 = vpop.f32.mrf.mxu0
        %v2340 = vadd.f32 0.0, %v2339
        %v2341 = vpop.f32.mrf.mxu0
        %v2342 = vadd.f32 0.0, %v2341
        %2343 = vmatmul.bf16.gmra.mxu0 %v1732
        %v2344 = vpop.f32.mrf.mxu0
        %v2345 = vadd.f32 0.0, %v2344
        %v2346 = vpop.f32.mrf.mxu0
        %v2347 = vadd.f32 0.0, %v2346
        %2348 = vmatmul.bf16.gmra.mxu0 %v1734
        %v2349 = vpop.f32.mrf.mxu0
        %v2350 = vadd.f32 0.0, %v2349
        %v2351 = vpop.f32.mrf.mxu0
        %v2352 = vadd.f32 0.0, %v2351
        %2353 = vmatmul.bf16.gmra.mxu0 %v1736
        %v2354 = vpop.f32.mrf.mxu0
        %v2355 = vadd.f32 0.0, %v2354
        %v2356 = vpop.f32.mrf.mxu0
        %v2357 = vadd.f32 0.0, %v2356
        %2358 = vmatmul.bf16.gmra.mxu0 %v1738
        %v2359 = vpop.f32.mrf.mxu0
        %v2360 = vadd.f32 0.0, %v2359
        %v2361 = vpop.f32.mrf.mxu0
        %v2362 = vadd.f32 0.0, %v2361
        %2363 = vmatmul.bf16.gmra.mxu0 %v1740
        %v2364 = vpop.f32.mrf.mxu0
        %v2365 = vadd.f32 0.0, %v2364
        %v2366 = vpop.f32.mrf.mxu0
        %v2367 = vadd.f32 0.0, %v2366
        %2368 = vmatmul.bf16.gmra.mxu0 %v1742
        %v2369 = vpop.f32.mrf.mxu0
        %v2370 = vadd.f32 0.0, %v2369
        %v2371 = vpop.f32.mrf.mxu0
        %v2372 = vadd.f32 0.0, %v2371
        %2373 = vmatmul.bf16.gmra.mxu0 %v1744
        %v2374 = vpop.f32.mrf.mxu0
        %v2375 = vadd.f32 0.0, %v2374
        %v2376 = vpop.f32.mrf.mxu0
        %v2377 = vadd.f32 0.0, %v2376
        %2378 = vmatmul.bf16.gmra.mxu0 %v1746
        %v2379 = vpop.f32.mrf.mxu0
        %v2380 = vadd.f32 0.0, %v2379
        %v2381 = vpop.f32.mrf.mxu0
        %v2382 = vadd.f32 0.0, %v2381
        %2383 = vmatmul.bf16.gmra.mxu0 %v1748
        %v2384 = vpop.f32.mrf.mxu0
        %v2385 = vadd.f32 0.0, %v2384
        %v2386 = vpop.f32.mrf.mxu0
        %v2387 = vadd.f32 0.0, %v2386
        %2388 = vmatmul.bf16.gmra.mxu0 %v1750
        %v2389 = vpop.f32.mrf.mxu0
        %v2390 = vadd.f32 0.0, %v2389
        %v2391 = vpop.f32.mrf.mxu0
        %v2392 = vadd.f32 0.0, %v2391
        %2393 = vmatmul.bf16.gmra.mxu0 %v1752
        %v2394 = vpop.f32.mrf.mxu0
        %v2395 = vadd.f32 0.0, %v2394
        %v2396 = vpop.f32.mrf.mxu0
        %v2397 = vadd.f32 0.0, %v2396
        %2398 = vmatmul.bf16.gmra.mxu0 %v1754
        %v2399 = vpop.f32.mrf.mxu0
        %v2400 = vadd.f32 0.0, %v2399
        %v2401 = vpop.f32.mrf.mxu0
        %v2402 = vadd.f32 0.0, %v2401
        %2403 = vmatmul.bf16.gmra.mxu0 %v1756
        %v2404 = vpop.f32.mrf.mxu0
        %v2405 = vadd.f32 0.0, %v2404
        %v2406 = vpop.f32.mrf.mxu0
        %v2407 = vadd.f32 0.0, %v2406
        %2408 = vmatmul.bf16.gmra.mxu0 %v1758
        %v2409 = vpop.f32.mrf.mxu0
        %v2410 = vadd.f32 0.0, %v2409
        %v2411 = vpop.f32.mrf.mxu0
        %v2412 = vadd.f32 0.0, %v2411
        %2413 = vmatmul.bf16.gmra.mxu0 %v1760
        %v2414 = vpop.f32.mrf.mxu0
        %v2415 = vadd.f32 0.0, %v2414
        %v2416 = vpop.f32.mrf.mxu0
        %v2417 = vadd.f32 0.0, %v2416
        %2418 = vmatmul.bf16.gmra.mxu0 %v1762
        %v2419 = vpop.f32.mrf.mxu0
        %v2420 = vadd.f32 0.0, %v2419
        %v2421 = vpop.f32.mrf.mxu0
        %v2422 = vadd.f32 0.0, %v2421
        %2423 = vmatmul.bf16.gmra.mxu0 %v1764
        %v2424 = vpop.f32.mrf.mxu0
        %v2425 = vadd.f32 0.0, %v2424
        %v2426 = vpop.f32.mrf.mxu0
        %v2427 = vadd.f32 0.0, %v2426
        %2428 = vdwg.mxu0
        %2429 = vmatpush.bf16.msra.mxu0 %v1949
        %2430 = vmatpush.bf16.msra.mxu0 %v1947
        %2431 = vmatpush.bf16.msra.mxu0 %v1945
        %2432 = vmatpush.bf16.msra.mxu0 %v1943
        %2433 = vmatpush.bf16.msra.mxu0 %v1941
        %2434 = vmatpush.bf16.msra.mxu0 %v1939
        %2435 = vmatpush.bf16.msra.mxu0 %v1937
        %2436 = vmatpush.bf16.msra.mxu0 %v1935
        %2437 = vmatmul.bf16.gmra.mxu0 %v1711
        %v2438 = vpop.f32.mrf.mxu0
        %v2439 = vadd.f32 %v2290, %v2438
        %v2440 = vpop.f32.mrf.mxu0
        %v2441 = vadd.f32 %v2292, %v2440
        %2442 = vmatmul.bf16.gmra.mxu0 %v1713
        %v2443 = vpop.f32.mrf.mxu0
        %v2444 = vadd.f32 %v2295, %v2443
        %v2445 = vpop.f32.mrf.mxu0
        %v2446 = vadd.f32 %v2297, %v2445
        %2447 = vmatmul.bf16.gmra.mxu0 %v1715
        %v2448 = vpop.f32.mrf.mxu0
        %v2449 = vadd.f32 %v2300, %v2448
        %v2450 = vpop.f32.mrf.mxu0
        %v2451 = vadd.f32 %v2302, %v2450
        %2452 = vmatmul.bf16.gmra.mxu0 %v1717
        %v2453 = vpop.f32.mrf.mxu0
        %v2454 = vadd.f32 %v2305, %v2453
        %v2455 = vpop.f32.mrf.mxu0
        %v2456 = vadd.f32 %v2307, %v2455
        %2457 = vmatmul.bf16.gmra.mxu0 %v1719
        %v2458 = vpop.f32.mrf.mxu0
        %v2459 = vadd.f32 %v2310, %v2458
        %v2460 = vpop.f32.mrf.mxu0
        %v2461 = vadd.f32 %v2312, %v2460
        %2462 = vmatmul.bf16.gmra.mxu0 %v1721
        %v2463 = vpop.f32.mrf.mxu0
        %v2464 = vadd.f32 %v2315, %v2463
        %v2465 = vpop.f32.mrf.mxu0
        %v2466 = vadd.f32 %v2317, %v2465
        %2467 = vmatmul.bf16.gmra.mxu0 %v1723
        %v2468 = vpop.f32.mrf.mxu0
        %v2469 = vadd.f32 %v2320, %v2468
        %v2470 = vpop.f32.mrf.mxu0
        %v2471 = vadd.f32 %v2322, %v2470
        %2472 = vmatmul.bf16.gmra.mxu0 %v1725
        %v2473 = vpop.f32.mrf.mxu0
        %v2474 = vadd.f32 %v2325, %v2473
        %v2475 = vpop.f32.mrf.mxu0
        %v2476 = vadd.f32 %v2327, %v2475
        %2477 = vmatmul.bf16.gmra.mxu0 %v1727
        %v2478 = vpop.f32.mrf.mxu0
        %v2479 = vadd.f32 %v2330, %v2478
        %v2480 = vpop.f32.mrf.mxu0
        %v2481 = vadd.f32 %v2332, %v2480
        %2482 = vmatmul.bf16.gmra.mxu0 %v1729
        %v2483 = vpop.f32.mrf.mxu0
        %v2484 = vadd.f32 %v2335, %v2483
        %v2485 = vpop.f32.mrf.mxu0
        %v2486 = vadd.f32 %v2337, %v2485
        %2487 = vmatmul.bf16.gmra.mxu0 %v1731
        %v2488 = vpop.f32.mrf.mxu0
        %v2489 = vadd.f32 %v2340, %v2488
        %v2490 = vpop.f32.mrf.mxu0
        %v2491 = vadd.f32 %v2342, %v2490
        %2492 = vmatmul.bf16.gmra.mxu0 %v1733
        %v2493 = vpop.f32.mrf.mxu0
        %v2494 = vadd.f32 %v2345, %v2493
        %v2495 = vpop.f32.mrf.mxu0
        %v2496 = vadd.f32 %v2347, %v2495
        %2497 = vmatmul.bf16.gmra.mxu0 %v1735
        %v2498 = vpop.f32.mrf.mxu0
        %v2499 = vadd.f32 %v2350, %v2498
        %v2500 = vpop.f32.mrf.mxu0
        %v2501 = vadd.f32 %v2352, %v2500
        %2502 = vmatmul.bf16.gmra.mxu0 %v1737
        %v2503 = vpop.f32.mrf.mxu0
        %v2504 = vadd.f32 %v2355, %v2503
        %v2505 = vpop.f32.mrf.mxu0
        %v2506 = vadd.f32 %v2357, %v2505
        %2507 = vmatmul.bf16.gmra.mxu0 %v1739
        %v2508 = vpop.f32.mrf.mxu0
        %v2509 = vadd.f32 %v2360, %v2508
        %v2510 = vpop.f32.mrf.mxu0
        %v2511 = vadd.f32 %v2362, %v2510
        %2512 = vmatmul.bf16.gmra.mxu0 %v1741
        %v2513 = vpop.f32.mrf.mxu0
        %v2514 = vadd.f32 %v2365, %v2513
        %v2515 = vpop.f32.mrf.mxu0
        %v2516 = vadd.f32 %v2367, %v2515
        %2517 = vmatmul.bf16.gmra.mxu0 %v1743
        %v2518 = vpop.f32.mrf.mxu0
        %v2519 = vadd.f32 %v2370, %v2518
        %v2520 = vpop.f32.mrf.mxu0
        %v2521 = vadd.f32 %v2372, %v2520
        %2522 = vmatmul.bf16.gmra.mxu0 %v1745
        %v2523 = vpop.f32.mrf.mxu0
        %v2524 = vadd.f32 %v2375, %v2523
        %v2525 = vpop.f32.mrf.mxu0
        %v2526 = vadd.f32 %v2377, %v2525
        %2527 = vmatmul.bf16.gmra.mxu0 %v1747
        %v2528 = vpop.f32.mrf.mxu0
        %v2529 = vadd.f32 %v2380, %v2528
        %v2530 = vpop.f32.mrf.mxu0
        %v2531 = vadd.f32 %v2382, %v2530
        %2532 = vmatmul.bf16.gmra.mxu0 %v1749
        %v2533 = vpop.f32.mrf.mxu0
        %v2534 = vadd.f32 %v2385, %v2533
        %v2535 = vpop.f32.mrf.mxu0
        %v2536 = vadd.f32 %v2387, %v2535
        %2537 = vmatmul.bf16.gmra.mxu0 %v1751
        %v2538 = vpop.f32.mrf.mxu0
        %v2539 = vadd.f32 %v2390, %v2538
        %v2540 = vpop.f32.mrf.mxu0
        %v2541 = vadd.f32 %v2392, %v2540
        %2542 = vmatmul.bf16.gmra.mxu0 %v1753
        %v2543 = vpop.f32.mrf.mxu0
        %v2544 = vadd.f32 %v2395, %v2543
        %v2545 = vpop.f32.mrf.mxu0
        %v2546 = vadd.f32 %v2397, %v2545
        %2547 = vmatmul.bf16.gmra.mxu0 %v1755
        %v2548 = vpop.f32.mrf.mxu0
        %v2549 = vadd.f32 %v2400, %v2548
        %v2550 = vpop.f32.mrf.mxu0
        %v2551 = vadd.f32 %v2402, %v2550
        %2552 = vmatmul.bf16.gmra.mxu0 %v1757
        %v2553 = vpop.f32.mrf.mxu0
        %v2554 = vadd.f32 %v2405, %v2553
        %v2555 = vpop.f32.mrf.mxu0
        %v2556 = vadd.f32 %v2407, %v2555
        %2557 = vmatmul.bf16.gmra.mxu0 %v1759
        %v2558 = vpop.f32.mrf.mxu0
        %v2559 = vadd.f32 %v2410, %v2558
        %v2560 = vpop.f32.mrf.mxu0
        %v2561 = vadd.f32 %v2412, %v2560
        %2562 = vmatmul.bf16.gmra.mxu0 %v1761
        %v2563 = vpop.f32.mrf.mxu0
        %v2564 = vadd.f32 %v2415, %v2563
        %v2565 = vpop.f32.mrf.mxu0
        %v2566 = vadd.f32 %v2417, %v2565
        %2567 = vmatmul.bf16.gmra.mxu0 %v1763
        %v2568 = vpop.f32.mrf.mxu0
        %v2569 = vadd.f32 %v2420, %v2568
        %v2570 = vpop.f32.mrf.mxu0
        %v2571 = vadd.f32 %v2422, %v2570
        %2572 = vmatmul.bf16.gmra.mxu0 %v1765
        %v2573 = vpop.f32.mrf.mxu0
        %v2574 = vadd.f32 %v2425, %v2573
        %v2575 = vpop.f32.mrf.mxu0
        %v2576 = vadd.f32 %v2427, %v2575
        %2577 = vdwg.mxu0
        %v2578 = vld [vmem:[%s6] sm:$0xff]
        %v2579 = vld [vmem:[%s6 + $0x8] sm:$0xff]
        %v2580 = vld [vmem:[%s6 + $0x10] sm:$0xff]
        %v2581 = vld [vmem:[%s6 + $0x18] sm:$0xff]
        %v2582 = vld [vmem:[%s6 + $0x20] sm:$0xff]
        %v2583 = vld [vmem:[%s6 + $0x28] sm:$0xff]
        %v2584 = vld [vmem:[%s6 + $0x30] sm:$0xff]
        %v2585 = vld [vmem:[%s6 + $0x38] sm:$0xff]
        %v2586 = vld [vmem:[%s6 + $0x40] sm:$0xff]
        %v2587 = vld [vmem:[%s6 + $0x48] sm:$0xff]
        %v2588 = vld [vmem:[%s6 + $0x50] sm:$0xff]
        %v2589 = vld [vmem:[%s6 + $0x58] sm:$0xff]
        %v2590 = vld [vmem:[%s6 + $0x60] sm:$0xff]
        %v2591 = vld [vmem:[%s6 + $0x68] sm:$0xff]
        %v2592 = vmul.f32 %v2141, %v2578
        %v2593 = vmul.f32 %v2439, %v2579
        %v2594 = vmul.f32 %v2143, %v2580
        %v2595 = vmul.f32 %v2441, %v2581
        %v2596 = vmul.f32 %v2146, %v2582
        %v2597 = vmul.f32 %v2444, %v2583
        %v2598 = vmul.f32 %v2148, %v2584
        %v2599 = vmul.f32 %v2446, %v2585
        %v2600 = vmul.f32 %v2151, %v2586
        %v2601 = vmul.f32 %v2449, %v2587
        %v2602 = vmul.f32 %v2153, %v2588
        %v2603 = vmul.f32 %v2451, %v2589
        %v2604 = vmul.f32 %v2156, %v2590
        %v2605 = vmul.f32 %v2454, %v2591
        %v2606 = vmul.f32 %v2158, %v2578
        %v2607 = vmul.f32 %v2456, %v2579
        %v2608 = vmul.f32 %v2161, %v2580
        %v2609 = vmul.f32 %v2459, %v2581
        %v2610 = vmul.f32 %v2163, %v2582
        %v2611 = vmul.f32 %v2461, %v2583
        %v2612 = vmul.f32 %v2166, %v2584
        %v2613 = vmul.f32 %v2464, %v2585
        %v2614 = vmul.f32 %v2168, %v2586
        %v2615 = vmul.f32 %v2466, %v2587
        %v2616 = vmul.f32 %v2171, %v2588
        %v2617 = vmul.f32 %v2469, %v2589
        %v2618 = vmul.f32 %v2173, %v2590
        %v2619 = vmul.f32 %v2471, %v2591
        %v2620 = vmul.f32 %v2176, %v2578
        %v2621 = vmul.f32 %v2474, %v2579
        %v2622 = vmul.f32 %v2178, %v2580
        %v2623 = vmul.f32 %v2476, %v2581
        %v2624 = vmul.f32 %v2181, %v2582
        %v2625 = vmul.f32 %v2479, %v2583
        %v2626 = vmul.f32 %v2183, %v2584
        %v2627 = vmul.f32 %v2481, %v2585
        %v2628 = vmul.f32 %v2186, %v2586
        %v2629 = vmul.f32 %v2484, %v2587
        %v2630 = vmul.f32 %v2188, %v2588
        %v2631 = vmul.f32 %v2486, %v2589
        %v2632 = vmul.f32 %v2191, %v2590
        %v2633 = vmul.f32 %v2489, %v2591
        %v2634 = vmul.f32 %v2193, %v2578
        %v2635 = vmul.f32 %v2491, %v2579
        %v2636 = vmul.f32 %v2196, %v2580
        %v2637 = vmul.f32 %v2494, %v2581
        %v2638 = vmul.f32 %v2198, %v2582
        %v2639 = vmul.f32 %v2496, %v2583
        %v2640 = vmul.f32 %v2201, %v2584
        %v2641 = vmul.f32 %v2499, %v2585
        %v2642 = vmul.f32 %v2203, %v2586
        %v2643 = vmul.f32 %v2501, %v2587
        %v2644 = vmul.f32 %v2206, %v2588
        %v2645 = vmul.f32 %v2504, %v2589
        %v2646 = vmul.f32 %v2208, %v2590
        %v2647 = vmul.f32 %v2506, %v2591
        %v2648 = vmul.f32 %v2211, %v2578
        %v2649 = vmul.f32 %v2509, %v2579
        %v2650 = vmul.f32 %v2213, %v2580
        %v2651 = vmul.f32 %v2511, %v2581
        %v2652 = vmul.f32 %v2216, %v2582
        %v2653 = vmul.f32 %v2514, %v2583
        %v2654 = vmul.f32 %v2218, %v2584
        %v2655 = vmul.f32 %v2516, %v2585
        %v2656 = vmul.f32 %v2221, %v2586
        %v2657 = vmul.f32 %v2519, %v2587
        %v2658 = vmul.f32 %v2223, %v2588
        %v2659 = vmul.f32 %v2521, %v2589
        %v2660 = vmul.f32 %v2226, %v2590
        %v2661 = vmul.f32 %v2524, %v2591
        %v2662 = vmul.f32 %v2228, %v2578
        %v2663 = vmul.f32 %v2526, %v2579
        %v2664 = vmul.f32 %v2231, %v2580
        %v2665 = vmul.f32 %v2529, %v2581
        %v2666 = vmul.f32 %v2233, %v2582
        %v2667 = vmul.f32 %v2531, %v2583
        %v2668 = vmul.f32 %v2236, %v2584
        %v2669 = vmul.f32 %v2534, %v2585
        %v2670 = vmul.f32 %v2238, %v2586
        %v2671 = vmul.f32 %v2536, %v2587
        %v2672 = vmul.f32 %v2241, %v2588
        %v2673 = vmul.f32 %v2539, %v2589
        %v2674 = vmul.f32 %v2243, %v2590
        %v2675 = vmul.f32 %v2541, %v2591
        %v2676 = vmul.f32 %v2246, %v2578
        %v2677 = vmul.f32 %v2544, %v2579
        %v2678 = vmul.f32 %v2248, %v2580
        %v2679 = vmul.f32 %v2546, %v2581
        %v2680 = vmul.f32 %v2251, %v2582
        %v2681 = vmul.f32 %v2549, %v2583
        %v2682 = vmul.f32 %v2253, %v2584
        %v2683 = vmul.f32 %v2551, %v2585
        %v2684 = vmul.f32 %v2256, %v2586
        %v2685 = vmul.f32 %v2554, %v2587
        %v2686 = vmul.f32 %v2258, %v2588
        %v2687 = vmul.f32 %v2556, %v2589
        %v2688 = vmul.f32 %v2261, %v2590
        %v2689 = vmul.f32 %v2559, %v2591
        %v2690 = vmul.f32 %v2263, %v2578
        %v2691 = vmul.f32 %v2561, %v2579
        %v2692 = vmul.f32 %v2266, %v2580
        %v2693 = vmul.f32 %v2564, %v2581
        %v2694 = vmul.f32 %v2268, %v2582
        %v2695 = vmul.f32 %v2566, %v2583
        %v2696 = vmul.f32 %v2271, %v2584
        %v2697 = vmul.f32 %v2569, %v2585
        %v2698 = vmul.f32 %v2273, %v2586
        %v2699 = vmul.f32 %v2571, %v2587
        %v2700 = vmul.f32 %v2276, %v2588
        %v2701 = vmul.f32 %v2574, %v2589
        %v2702 = vmul.f32 %v2278, %v2590
        %v2703 = vmul.f32 %v2576, %v2591
        %v2704 = vadd.f32 %v2592, %v2594
        %v2705 = vadd.f32 %v2704, %v2596
        %v2706 = vadd.f32 %v2705, %v2598
        %v2707 = vadd.f32 %v2706, %v2600
        %v2708 = vadd.f32 %v2707, %v2602
        %v2709 = vadd.f32 %v2708, %v2604
        %v2710 = vrot.slane %v2709, 4
        %v2711 = vadd.f32 %v2709, %v2710
        %v2712 = vrot.slane %v2711, 2
        %v2713 = vadd.f32 %v2711, %v2712
        %v2714 = vrot.slane %v2713, 1
        %v2715 = vadd.f32 %v2713, %v2714
        %v2716 = vadd.f32 %v2593, %v2595
        %v2717 = vadd.f32 %v2716, %v2597
        %v2718 = vadd.f32 %v2717, %v2599
        %v2719 = vadd.f32 %v2718, %v2601
        %v2720 = vadd.f32 %v2719, %v2603
        %v2721 = vadd.f32 %v2720, %v2605
        %v2722 = vrot.slane %v2721, 4
        %v2723 = vadd.f32 %v2721, %v2722
        %v2724 = vrot.slane %v2723, 2
        %v2725 = vadd.f32 %v2723, %v2724
        %v2726 = vrot.slane %v2725, 1
        %v2727 = vadd.f32 %v2725, %v2726
        %v2728 = vadd.f32 %v2606, %v2608
        %v2729 = vadd.f32 %v2728, %v2610
        %v2730 = vadd.f32 %v2729, %v2612
        %v2731 = vadd.f32 %v2730, %v2614
        %v2732 = vadd.f32 %v2731, %v2616
        %v2733 = vadd.f32 %v2732, %v2618
        %v2734 = vrot.slane %v2733, 4
        %v2735 = vadd.f32 %v2733, %v2734
        %v2736 = vrot.slane %v2735, 2
        %v2737 = vadd.f32 %v2735, %v2736
        %v2738 = vrot.slane %v2737, 1
        %v2739 = vadd.f32 %v2737, %v2738
        %v2740 = vadd.f32 %v2607, %v2609
        %v2741 = vadd.f32 %v2740, %v2611
        %v2742 = vadd.f32 %v2741, %v2613
        %v2743 = vadd.f32 %v2742, %v2615
        %v2744 = vadd.f32 %v2743, %v2617
        %v2745 = vadd.f32 %v2744, %v2619
        %v2746 = vrot.slane %v2745, 4
        %v2747 = vadd.f32 %v2745, %v2746
        %v2748 = vrot.slane %v2747, 2
        %v2749 = vadd.f32 %v2747, %v2748
        %v2750 = vrot.slane %v2749, 1
        %v2751 = vadd.f32 %v2749, %v2750
        %v2752 = vadd.f32 %v2620, %v2622
        %v2753 = vadd.f32 %v2752, %v2624
        %v2754 = vadd.f32 %v2753, %v2626
        %v2755 = vadd.f32 %v2754, %v2628
        %v2756 = vadd.f32 %v2755, %v2630
        %v2757 = vadd.f32 %v2756, %v2632
        %v2758 = vrot.slane %v2757, 4
        %v2759 = vadd.f32 %v2757, %v2758
        %v2760 = vrot.slane %v2759, 2
        %v2761 = vadd.f32 %v2759, %v2760
        %v2762 = vrot.slane %v2761, 1
        %v2763 = vadd.f32 %v2761, %v2762
        %v2764 = vadd.f32 %v2621, %v2623
        %v2765 = vadd.f32 %v2764, %v2625
        %v2766 = vadd.f32 %v2765, %v2627
        %v2767 = vadd.f32 %v2766, %v2629
        %v2768 = vadd.f32 %v2767, %v2631
        %v2769 = vadd.f32 %v2768, %v2633
        %v2770 = vrot.slane %v2769, 4
        %v2771 = vadd.f32 %v2769, %v2770
        %v2772 = vrot.slane %v2771, 2
        %v2773 = vadd.f32 %v2771, %v2772
        %v2774 = vrot.slane %v2773, 1
        %v2775 = vadd.f32 %v2773, %v2774
        %v2776 = vadd.f32 %v2634, %v2636
        %v2777 = vadd.f32 %v2776, %v2638
        %v2778 = vadd.f32 %v2777, %v2640
        %v2779 = vadd.f32 %v2778, %v2642
        %v2780 = vadd.f32 %v2779, %v2644
        %v2781 = vadd.f32 %v2780, %v2646
        %v2782 = vrot.slane %v2781, 4
        %v2783 = vadd.f32 %v2781, %v2782
        %v2784 = vrot.slane %v2783, 2
        %v2785 = vadd.f32 %v2783, %v2784
        %v2786 = vrot.slane %v2785, 1
        %v2787 = vadd.f32 %v2785, %v2786
        %v2788 = vadd.f32 %v2635, %v2637
        %v2789 = vadd.f32 %v2788, %v2639
        %v2790 = vadd.f32 %v2789, %v2641
        %v2791 = vadd.f32 %v2790, %v2643
        %v2792 = vadd.f32 %v2791, %v2645
        %v2793 = vadd.f32 %v2792, %v2647
        %v2794 = vrot.slane %v2793, 4
        %v2795 = vadd.f32 %v2793, %v2794
        %v2796 = vrot.slane %v2795, 2
        %v2797 = vadd.f32 %v2795, %v2796
        %v2798 = vrot.slane %v2797, 1
        %v2799 = vadd.f32 %v2797, %v2798
        %v2800 = vadd.f32 %v2648, %v2650
        %v2801 = vadd.f32 %v2800, %v2652
        %v2802 = vadd.f32 %v2801, %v2654
        %v2803 = vadd.f32 %v2802, %v2656
        %v2804 = vadd.f32 %v2803, %v2658
        %v2805 = vadd.f32 %v2804, %v2660
        %v2806 = vrot.slane %v2805, 4
        %v2807 = vadd.f32 %v2805, %v2806
        %v2808 = vrot.slane %v2807, 2
        %v2809 = vadd.f32 %v2807, %v2808
        %v2810 = vrot.slane %v2809, 1
        %v2811 = vadd.f32 %v2809, %v2810
        %v2812 = vadd.f32 %v2649, %v2651
        %v2813 = vadd.f32 %v2812, %v2653
        %v2814 = vadd.f32 %v2813, %v2655
        %v2815 = vadd.f32 %v2814, %v2657
        %v2816 = vadd.f32 %v2815, %v2659
        %v2817 = vadd.f32 %v2816, %v2661
        %v2818 = vrot.slane %v2817, 4
        %v2819 = vadd.f32 %v2817, %v2818
        %v2820 = vrot.slane %v2819, 2
        %v2821 = vadd.f32 %v2819, %v2820
        %v2822 = vrot.slane %v2821, 1
        %v2823 = vadd.f32 %v2821, %v2822
        %v2824 = vadd.f32 %v2662, %v2664
        %v2825 = vadd.f32 %v2824, %v2666
        %v2826 = vadd.f32 %v2825, %v2668
        %v2827 = vadd.f32 %v2826, %v2670
        %v2828 = vadd.f32 %v2827, %v2672
        %v2829 = vadd.f32 %v2828, %v2674
        %v2830 = vrot.slane %v2829, 4
        %v2831 = vadd.f32 %v2829, %v2830
        %v2832 = vrot.slane %v2831, 2
        %v2833 = vadd.f32 %v2831, %v2832
        %v2834 = vrot.slane %v2833, 1
        %v2835 = vadd.f32 %v2833, %v2834
        %v2836 = vadd.f32 %v2663, %v2665
        %v2837 = vadd.f32 %v2836, %v2667
        %v2838 = vadd.f32 %v2837, %v2669
        %v2839 = vadd.f32 %v2838, %v2671
        %v2840 = vadd.f32 %v2839, %v2673
        %v2841 = vadd.f32 %v2840, %v2675
        %v2842 = vrot.slane %v2841, 4
        %v2843 = vadd.f32 %v2841, %v2842
        %v2844 = vrot.slane %v2843, 2
        %v2845 = vadd.f32 %v2843, %v2844
        %v2846 = vrot.slane %v2845, 1
        %v2847 = vadd.f32 %v2845, %v2846
        %v2848 = vadd.f32 %v2676, %v2678
        %v2849 = vadd.f32 %v2848, %v2680
        %v2850 = vadd.f32 %v2849, %v2682
        %v2851 = vadd.f32 %v2850, %v2684
        %v2852 = vadd.f32 %v2851, %v2686
        %v2853 = vadd.f32 %v2852, %v2688
        %v2854 = vrot.slane %v2853, 4
        %v2855 = vadd.f32 %v2853, %v2854
        %v2856 = vrot.slane %v2855, 2
        %v2857 = vadd.f32 %v2855, %v2856
        %v2858 = vrot.slane %v2857, 1
        %v2859 = vadd.f32 %v2857, %v2858
        %v2860 = vadd.f32 %v2677, %v2679
        %v2861 = vadd.f32 %v2860, %v2681
        %v2862 = vadd.f32 %v2861, %v2683
        %v2863 = vadd.f32 %v2862, %v2685
        %v2864 = vadd.f32 %v2863, %v2687
        %v2865 = vadd.f32 %v2864, %v2689
        %v2866 = vrot.slane %v2865, 4
        %v2867 = vadd.f32 %v2865, %v2866
        %v2868 = vrot.slane %v2867, 2
        %v2869 = vadd.f32 %v2867, %v2868
        %v2870 = vrot.slane %v2869, 1
        %v2871 = vadd.f32 %v2869, %v2870
        %v2872 = vadd.f32 %v2690, %v2692
        %v2873 = vadd.f32 %v2872, %v2694
        %v2874 = vadd.f32 %v2873, %v2696
        %v2875 = vadd.f32 %v2874, %v2698
        %v2876 = vadd.f32 %v2875, %v2700
        %v2877 = vadd.f32 %v2876, %v2702
        %v2878 = vrot.slane %v2877, 4
        %v2879 = vadd.f32 %v2877, %v2878
        %v2880 = vrot.slane %v2879, 2
        %v2881 = vadd.f32 %v2879, %v2880
        %v2882 = vrot.slane %v2881, 1
        %v2883 = vadd.f32 %v2881, %v2882
        %v2884 = vadd.f32 %v2691, %v2693
        %v2885 = vadd.f32 %v2884, %v2695
        %v2886 = vadd.f32 %v2885, %v2697
        %v2887 = vadd.f32 %v2886, %v2699
        %v2888 = vadd.f32 %v2887, %v2701
        %v2889 = vadd.f32 %v2888, %v2703
        %v2890 = vrot.slane %v2889, 4
        %v2891 = vadd.f32 %v2889, %v2890
        %v2892 = vrot.slane %v2891, 2
        %v2893 = vadd.f32 %v2891, %v2892
        %v2894 = vrot.slane %v2893, 1
        %v2895 = vadd.f32 %v2893, %v2894
        %v2896 = vmax.f32 %v2715, 0.0
        %v2897 = vmax.f32 %v2727, 0.0
        %v2898 = vmax.f32 %v2739, 0.0
        %v2899 = vmax.f32 %v2751, 0.0
        %v2900 = vmax.f32 %v2763, 0.0
        %v2901 = vmax.f32 %v2775, 0.0
        %v2902 = vmax.f32 %v2787, 0.0
        %v2903 = vmax.f32 %v2799, 0.0
        %v2904 = vmax.f32 %v2811, 0.0
        %v2905 = vmax.f32 %v2823, 0.0
        %v2906 = vmax.f32 %v2835, 0.0
        %v2907 = vmax.f32 %v2847, 0.0
        %v2908 = vmax.f32 %v2859, 0.0
        %v2909 = vmax.f32 %v2871, 0.0
        %v2910 = vmax.f32 %v2883, 0.0
        %v2911 = vmax.f32 %v2895, 0.0
        %v2912 = vld [vmem:[%s7] sm:$0xf]
        %v2913 = vld [vmem:[%s7 + $0x4] sm:$0xf]
        %v2914 = vld [vmem:[%s7 + $0x8] sm:$0xf]
        %v2915 = vld [vmem:[%s7 + $0xc] sm:$0xf]
        %v2916 = vld [vmem:[%s7 + $0x10] sm:$0xf]
        %v2917 = vld [vmem:[%s7 + $0x14] sm:$0xf]
        %v2918 = vld [vmem:[%s7 + $0x18] sm:$0xf]
        %v2919 = vld [vmem:[%s7 + $0x1c] sm:$0xf]
        %v2920 = vld [vmem:[%s7 + $0x20] sm:$0xf]
        %v2921 = vld [vmem:[%s7 + $0x24] sm:$0xf]
        %v2922 = vld [vmem:[%s7 + $0x28] sm:$0xf]
        %v2923 = vld [vmem:[%s7 + $0x2c] sm:$0xf]
        %v2924 = vld [vmem:[%s7 + $0x30] sm:$0xf]
        %v2925 = vld [vmem:[%s7 + $0x34] sm:$0xf]
        %v2926 = vld [vmem:[%s7 + $0x38] sm:$0xf]
        %v2927 = vld [vmem:[%s7 + $0x3c] sm:$0xf]
        %v2928 = vld [vmem:[%s7 + $0x40] sm:$0xf]
        %v2929 = vld [vmem:[%s7 + $0x44] sm:$0xf]
        %v2930 = vld [vmem:[%s7 + $0x48] sm:$0xf]
        %v2931 = vld [vmem:[%s7 + $0x4c] sm:$0xf]
        %v2932 = vld [vmem:[%s7 + $0x50] sm:$0xf]
        %v2933 = vld [vmem:[%s7 + $0x54] sm:$0xf]
        %v2934 = vld [vmem:[%s7 + $0x58] sm:$0xf]
        %v2935 = vld [vmem:[%s7 + $0x5c] sm:$0xf]
        %v2936 = vld [vmem:[%s7 + $0x60] sm:$0xf]
        %v2937 = vld [vmem:[%s7 + $0x64] sm:$0xf]
        %v2938 = vld [vmem:[%s7 + $0x68] sm:$0xf]
        %v2939 = vld [vmem:[%s7 + $0x6c] sm:$0xf]
        %v2940 = vld [vmem:[%s7 + $0x70] sm:$0xf]
        %v2941 = vld [vmem:[%s7 + $0x74] sm:$0xf]
        %v2942 = vld [vmem:[%s7 + $0x78] sm:$0xf]
        %v2943 = vld [vmem:[%s7 + $0x7c] sm:$0xf]
        %v2976 = vunpack.c.l.b16 %v2912
        %v2977 = vunpack.c.l.b16 %v2913
        %v2978 = vunpack.c.l.b16 %v2914
        %v2979 = vunpack.c.l.b16 %v2915
        %v2980 = vunpack.c.l.b16 %v2916
        %v2981 = vunpack.c.l.b16 %v2917
        %v2982 = vunpack.c.l.b16 %v2918
        %v2983 = vunpack.c.l.b16 %v2919
        %v2984 = vunpack.c.l.b16 %v2920
        %v2985 = vunpack.c.l.b16 %v2921
        %v2986 = vunpack.c.l.b16 %v2922
        %v2987 = vunpack.c.l.b16 %v2923
        %v2988 = vunpack.c.l.b16 %v2924
        %v2989 = vunpack.c.l.b16 %v2925
        %v2990 = vunpack.c.l.b16 %v2926
        %v2991 = vunpack.c.l.b16 %v2927
        %v2992 = vunpack.c.l.b16 %v2928
        %v2993 = vunpack.c.l.b16 %v2929
        %v2994 = vunpack.c.l.b16 %v2930
        %v2995 = vunpack.c.l.b16 %v2931
        %v2996 = vunpack.c.l.b16 %v2932
        %v2997 = vunpack.c.l.b16 %v2933
        %v2998 = vunpack.c.l.b16 %v2934
        %v2999 = vunpack.c.l.b16 %v2935
        %v3000 = vunpack.c.l.b16 %v2936
        %v3001 = vunpack.c.l.b16 %v2937
        %v3002 = vunpack.c.l.b16 %v2938
        %v3003 = vunpack.c.l.b16 %v2939
        %v3004 = vunpack.c.l.b16 %v2940
        %v3005 = vunpack.c.l.b16 %v2941
        %v3006 = vunpack.c.l.b16 %v2942
        %v3007 = vunpack.c.l.b16 %v2943
        %v3008 = vpack.c.b16 %v2977, %v2976
        %v3009 = vpack.c.b16 %v2979, %v2978
        %v3010 = vpack.c.b16 %v2981, %v2980
        %v3011 = vpack.c.b16 %v2983, %v2982
        %v3012 = vpack.c.b16 %v2985, %v2984
        %v3013 = vpack.c.b16 %v2987, %v2986
        %v3014 = vpack.c.b16 %v2989, %v2988
        %v3015 = vpack.c.b16 %v2991, %v2990
        %v3016 = vpack.c.b16 %v2993, %v2992
        %v3017 = vpack.c.b16 %v2995, %v2994
        %v3018 = vpack.c.b16 %v2997, %v2996
        %v3019 = vpack.c.b16 %v2999, %v2998
        %v3020 = vpack.c.b16 %v3001, %v3000
        %v3021 = vpack.c.b16 %v3003, %v3002
        %v3022 = vpack.c.b16 %v3005, %v3004
        %v3023 = vpack.c.b16 %v3007, %v3006
        %3040 = vmatpush.bf16.msra.mxu0 %v3015
        %3041 = vmatpush.bf16.msra.mxu0 %v3014
        %3042 = vmatpush.bf16.msra.mxu0 %v3013
        %3043 = vmatpush.bf16.msra.mxu0 %v3012
        %3044 = vmatpush.bf16.msra.mxu0 %v3011
        %3045 = vmatpush.bf16.msra.mxu0 %v3010
        %3046 = vmatpush.bf16.msra.mxu0 %v3009
        %3047 = vmatpush.bf16.msra.mxu0 %v3008
        %3048 = vmatmul.bf16.gmra.mxu0 %v1710
        %v3049 = vpop.f32.mrf.mxu0
        %v3050 = vadd.f32 0.0, %v3049
        %v3051 = vpop.f32.mrf.mxu0
        %v3052 = vadd.f32 0.0, %v3051
        %3053 = vmatmul.bf16.gmra.mxu0 %v1712
        %v3054 = vpop.f32.mrf.mxu0
        %v3055 = vadd.f32 0.0, %v3054
        %v3056 = vpop.f32.mrf.mxu0
        %v3057 = vadd.f32 0.0, %v3056
        %3058 = vmatmul.bf16.gmra.mxu0 %v1714
        %v3059 = vpop.f32.mrf.mxu0
        %v3060 = vadd.f32 0.0, %v3059
        %v3061 = vpop.f32.mrf.mxu0
        %v3062 = vadd.f32 0.0, %v3061
        %3063 = vmatmul.bf16.gmra.mxu0 %v1716
        %v3064 = vpop.f32.mrf.mxu0
        %v3065 = vadd.f32 0.0, %v3064
        %v3066 = vpop.f32.mrf.mxu0
        %v3067 = vadd.f32 0.0, %v3066
        %3068 = vmatmul.bf16.gmra.mxu0 %v1718
        %v3069 = vpop.f32.mrf.mxu0
        %v3070 = vadd.f32 0.0, %v3069
        %v3071 = vpop.f32.mrf.mxu0
        %v3072 = vadd.f32 0.0, %v3071
        %3073 = vmatmul.bf16.gmra.mxu0 %v1720
        %v3074 = vpop.f32.mrf.mxu0
        %v3075 = vadd.f32 0.0, %v3074
        %v3076 = vpop.f32.mrf.mxu0
        %v3077 = vadd.f32 0.0, %v3076
        %3078 = vmatmul.bf16.gmra.mxu0 %v1722
        %v3079 = vpop.f32.mrf.mxu0
        %v3080 = vadd.f32 0.0, %v3079
        %v3081 = vpop.f32.mrf.mxu0
        %v3082 = vadd.f32 0.0, %v3081
        %3083 = vmatmul.bf16.gmra.mxu0 %v1724
        %v3084 = vpop.f32.mrf.mxu0
        %v3085 = vadd.f32 0.0, %v3084
        %v3086 = vpop.f32.mrf.mxu0
        %v3087 = vadd.f32 0.0, %v3086
        %3088 = vmatmul.bf16.gmra.mxu0 %v1726
        %v3089 = vpop.f32.mrf.mxu0
        %v3090 = vadd.f32 0.0, %v3089
        %v3091 = vpop.f32.mrf.mxu0
        %v3092 = vadd.f32 0.0, %v3091
        %3093 = vmatmul.bf16.gmra.mxu0 %v1728
        %v3094 = vpop.f32.mrf.mxu0
        %v3095 = vadd.f32 0.0, %v3094
        %v3096 = vpop.f32.mrf.mxu0
        %v3097 = vadd.f32 0.0, %v3096
        %3098 = vmatmul.bf16.gmra.mxu0 %v1730
        %v3099 = vpop.f32.mrf.mxu0
        %v3100 = vadd.f32 0.0, %v3099
        %v3101 = vpop.f32.mrf.mxu0
        %v3102 = vadd.f32 0.0, %v3101
        %3103 = vmatmul.bf16.gmra.mxu0 %v1732
        %v3104 = vpop.f32.mrf.mxu0
        %v3105 = vadd.f32 0.0, %v3104
        %v3106 = vpop.f32.mrf.mxu0
        %v3107 = vadd.f32 0.0, %v3106
        %3108 = vmatmul.bf16.gmra.mxu0 %v1734
        %v3109 = vpop.f32.mrf.mxu0
        %v3110 = vadd.f32 0.0, %v3109
        %v3111 = vpop.f32.mrf.mxu0
        %v3112 = vadd.f32 0.0, %v3111
        %3113 = vmatmul.bf16.gmra.mxu0 %v1736
        %v3114 = vpop.f32.mrf.mxu0
        %v3115 = vadd.f32 0.0, %v3114
        %v3116 = vpop.f32.mrf.mxu0
        %v3117 = vadd.f32 0.0, %v3116
        %3118 = vmatmul.bf16.gmra.mxu0 %v1738
        %v3119 = vpop.f32.mrf.mxu0
        %v3120 = vadd.f32 0.0, %v3119
        %v3121 = vpop.f32.mrf.mxu0
        %v3122 = vadd.f32 0.0, %v3121
        %3123 = vmatmul.bf16.gmra.mxu0 %v1740
        %v3124 = vpop.f32.mrf.mxu0
        %v3125 = vadd.f32 0.0, %v3124
        %v3126 = vpop.f32.mrf.mxu0
        %v3127 = vadd.f32 0.0, %v3126
        %3128 = vmatmul.bf16.gmra.mxu0 %v1742
        %v3129 = vpop.f32.mrf.mxu0
        %v3130 = vadd.f32 0.0, %v3129
        %v3131 = vpop.f32.mrf.mxu0
        %v3132 = vadd.f32 0.0, %v3131
        %3133 = vmatmul.bf16.gmra.mxu0 %v1744
        %v3134 = vpop.f32.mrf.mxu0
        %v3135 = vadd.f32 0.0, %v3134
        %v3136 = vpop.f32.mrf.mxu0
        %v3137 = vadd.f32 0.0, %v3136
        %3138 = vmatmul.bf16.gmra.mxu0 %v1746
        %v3139 = vpop.f32.mrf.mxu0
        %v3140 = vadd.f32 0.0, %v3139
        %v3141 = vpop.f32.mrf.mxu0
        %v3142 = vadd.f32 0.0, %v3141
        %3143 = vmatmul.bf16.gmra.mxu0 %v1748
        %v3144 = vpop.f32.mrf.mxu0
        %v3145 = vadd.f32 0.0, %v3144
        %v3146 = vpop.f32.mrf.mxu0
        %v3147 = vadd.f32 0.0, %v3146
        %3148 = vmatmul.bf16.gmra.mxu0 %v1750
        %v3149 = vpop.f32.mrf.mxu0
        %v3150 = vadd.f32 0.0, %v3149
        %v3151 = vpop.f32.mrf.mxu0
        %v3152 = vadd.f32 0.0, %v3151
        %3153 = vmatmul.bf16.gmra.mxu0 %v1752
        %v3154 = vpop.f32.mrf.mxu0
        %v3155 = vadd.f32 0.0, %v3154
        %v3156 = vpop.f32.mrf.mxu0
        %v3157 = vadd.f32 0.0, %v3156
        %3158 = vmatmul.bf16.gmra.mxu0 %v1754
        %v3159 = vpop.f32.mrf.mxu0
        %v3160 = vadd.f32 0.0, %v3159
        %v3161 = vpop.f32.mrf.mxu0
        %v3162 = vadd.f32 0.0, %v3161
        %3163 = vmatmul.bf16.gmra.mxu0 %v1756
        %v3164 = vpop.f32.mrf.mxu0
        %v3165 = vadd.f32 0.0, %v3164
        %v3166 = vpop.f32.mrf.mxu0
        %v3167 = vadd.f32 0.0, %v3166
        %3168 = vmatmul.bf16.gmra.mxu0 %v1758
        %v3169 = vpop.f32.mrf.mxu0
        %v3170 = vadd.f32 0.0, %v3169
        %v3171 = vpop.f32.mrf.mxu0
        %v3172 = vadd.f32 0.0, %v3171
        %3173 = vmatmul.bf16.gmra.mxu0 %v1760
        %v3174 = vpop.f32.mrf.mxu0
        %v3175 = vadd.f32 0.0, %v3174
        %v3176 = vpop.f32.mrf.mxu0
        %v3177 = vadd.f32 0.0, %v3176
        %3178 = vmatmul.bf16.gmra.mxu0 %v1762
        %v3179 = vpop.f32.mrf.mxu0
        %v3180 = vadd.f32 0.0, %v3179
        %v3181 = vpop.f32.mrf.mxu0
        %v3182 = vadd.f32 0.0, %v3181
        %3183 = vmatmul.bf16.gmra.mxu0 %v1764
        %v3184 = vpop.f32.mrf.mxu0
        %v3185 = vadd.f32 0.0, %v3184
        %v3186 = vpop.f32.mrf.mxu0
        %v3187 = vadd.f32 0.0, %v3186
        %3188 = vdwg.mxu0
        %3189 = vmatpush.bf16.msra.mxu0 %v3023
        %3190 = vmatpush.bf16.msra.mxu0 %v3022
        %3191 = vmatpush.bf16.msra.mxu0 %v3021
        %3192 = vmatpush.bf16.msra.mxu0 %v3020
        %3193 = vmatpush.bf16.msra.mxu0 %v3019
        %3194 = vmatpush.bf16.msra.mxu0 %v3018
        %3195 = vmatpush.bf16.msra.mxu0 %v3017
        %3196 = vmatpush.bf16.msra.mxu0 %v3016
        %3197 = vmatmul.bf16.gmra.mxu0 %v1711
        %v3198 = vpop.f32.mrf.mxu0
        %v3199 = vadd.f32 %v3050, %v3198
        %v3200 = vpop.f32.mrf.mxu0
        %v3201 = vadd.f32 %v3052, %v3200
        %3202 = vmatmul.bf16.gmra.mxu0 %v1713
        %v3203 = vpop.f32.mrf.mxu0
        %v3204 = vadd.f32 %v3055, %v3203
        %v3205 = vpop.f32.mrf.mxu0
        %v3206 = vadd.f32 %v3057, %v3205
        %3207 = vmatmul.bf16.gmra.mxu0 %v1715
        %v3208 = vpop.f32.mrf.mxu0
        %v3209 = vadd.f32 %v3060, %v3208
        %v3210 = vpop.f32.mrf.mxu0
        %v3211 = vadd.f32 %v3062, %v3210
        %3212 = vmatmul.bf16.gmra.mxu0 %v1717
        %v3213 = vpop.f32.mrf.mxu0
        %v3214 = vadd.f32 %v3065, %v3213
        %v3215 = vpop.f32.mrf.mxu0
        %v3216 = vadd.f32 %v3067, %v3215
        %3217 = vmatmul.bf16.gmra.mxu0 %v1719
        %v3218 = vpop.f32.mrf.mxu0
        %v3219 = vadd.f32 %v3070, %v3218
        %v3220 = vpop.f32.mrf.mxu0
        %v3221 = vadd.f32 %v3072, %v3220
        %3222 = vmatmul.bf16.gmra.mxu0 %v1721
        %v3223 = vpop.f32.mrf.mxu0
        %v3224 = vadd.f32 %v3075, %v3223
        %v3225 = vpop.f32.mrf.mxu0
        %v3226 = vadd.f32 %v3077, %v3225
        %3227 = vmatmul.bf16.gmra.mxu0 %v1723
        %v3228 = vpop.f32.mrf.mxu0
        %v3229 = vadd.f32 %v3080, %v3228
        %v3230 = vpop.f32.mrf.mxu0
        %v3231 = vadd.f32 %v3082, %v3230
        %3232 = vmatmul.bf16.gmra.mxu0 %v1725
        %v3233 = vpop.f32.mrf.mxu0
        %v3234 = vadd.f32 %v3085, %v3233
        %v3235 = vpop.f32.mrf.mxu0
        %v3236 = vadd.f32 %v3087, %v3235
        %3237 = vmatmul.bf16.gmra.mxu0 %v1727
        %v3238 = vpop.f32.mrf.mxu0
        %v3239 = vadd.f32 %v3090, %v3238
        %v3240 = vpop.f32.mrf.mxu0
        %v3241 = vadd.f32 %v3092, %v3240
        %3242 = vmatmul.bf16.gmra.mxu0 %v1729
        %v3243 = vpop.f32.mrf.mxu0
        %v3244 = vadd.f32 %v3095, %v3243
        %v3245 = vpop.f32.mrf.mxu0
        %v3246 = vadd.f32 %v3097, %v3245
        %3247 = vmatmul.bf16.gmra.mxu0 %v1731
        %v3248 = vpop.f32.mrf.mxu0
        %v3249 = vadd.f32 %v3100, %v3248
        %v3250 = vpop.f32.mrf.mxu0
        %v3251 = vadd.f32 %v3102, %v3250
        %3252 = vmatmul.bf16.gmra.mxu0 %v1733
        %v3253 = vpop.f32.mrf.mxu0
        %v3254 = vadd.f32 %v3105, %v3253
        %v3255 = vpop.f32.mrf.mxu0
        %v3256 = vadd.f32 %v3107, %v3255
        %3257 = vmatmul.bf16.gmra.mxu0 %v1735
        %v3258 = vpop.f32.mrf.mxu0
        %v3259 = vadd.f32 %v3110, %v3258
        %v3260 = vpop.f32.mrf.mxu0
        %v3261 = vadd.f32 %v3112, %v3260
        %3262 = vmatmul.bf16.gmra.mxu0 %v1737
        %v3263 = vpop.f32.mrf.mxu0
        %v3264 = vadd.f32 %v3115, %v3263
        %v3265 = vpop.f32.mrf.mxu0
        %v3266 = vadd.f32 %v3117, %v3265
        %3267 = vmatmul.bf16.gmra.mxu0 %v1739
        %v3268 = vpop.f32.mrf.mxu0
        %v3269 = vadd.f32 %v3120, %v3268
        %v3270 = vpop.f32.mrf.mxu0
        %v3271 = vadd.f32 %v3122, %v3270
        %3272 = vmatmul.bf16.gmra.mxu0 %v1741
        %v3273 = vpop.f32.mrf.mxu0
        %v3274 = vadd.f32 %v3125, %v3273
        %v3275 = vpop.f32.mrf.mxu0
        %v3276 = vadd.f32 %v3127, %v3275
        %3277 = vmatmul.bf16.gmra.mxu0 %v1743
        %v3278 = vpop.f32.mrf.mxu0
        %v3279 = vadd.f32 %v3130, %v3278
        %v3280 = vpop.f32.mrf.mxu0
        %v3281 = vadd.f32 %v3132, %v3280
        %3282 = vmatmul.bf16.gmra.mxu0 %v1745
        %v3283 = vpop.f32.mrf.mxu0
        %v3284 = vadd.f32 %v3135, %v3283
        %v3285 = vpop.f32.mrf.mxu0
        %v3286 = vadd.f32 %v3137, %v3285
        %3287 = vmatmul.bf16.gmra.mxu0 %v1747
        %v3288 = vpop.f32.mrf.mxu0
        %v3289 = vadd.f32 %v3140, %v3288
        %v3290 = vpop.f32.mrf.mxu0
        %v3291 = vadd.f32 %v3142, %v3290
        %3292 = vmatmul.bf16.gmra.mxu0 %v1749
        %v3293 = vpop.f32.mrf.mxu0
        %v3294 = vadd.f32 %v3145, %v3293
        %v3295 = vpop.f32.mrf.mxu0
        %v3296 = vadd.f32 %v3147, %v3295
        %3297 = vmatmul.bf16.gmra.mxu0 %v1751
        %v3298 = vpop.f32.mrf.mxu0
        %v3299 = vadd.f32 %v3150, %v3298
        %v3300 = vpop.f32.mrf.mxu0
        %v3301 = vadd.f32 %v3152, %v3300
        %3302 = vmatmul.bf16.gmra.mxu0 %v1753
        %v3303 = vpop.f32.mrf.mxu0
        %v3304 = vadd.f32 %v3155, %v3303
        %v3305 = vpop.f32.mrf.mxu0
        %v3306 = vadd.f32 %v3157, %v3305
        %3307 = vmatmul.bf16.gmra.mxu0 %v1755
        %v3308 = vpop.f32.mrf.mxu0
        %v3309 = vadd.f32 %v3160, %v3308
        %v3310 = vpop.f32.mrf.mxu0
        %v3311 = vadd.f32 %v3162, %v3310
        %3312 = vmatmul.bf16.gmra.mxu0 %v1757
        %v3313 = vpop.f32.mrf.mxu0
        %v3314 = vadd.f32 %v3165, %v3313
        %v3315 = vpop.f32.mrf.mxu0
        %v3316 = vadd.f32 %v3167, %v3315
        %3317 = vmatmul.bf16.gmra.mxu0 %v1759
        %v3318 = vpop.f32.mrf.mxu0
        %v3319 = vadd.f32 %v3170, %v3318
        %v3320 = vpop.f32.mrf.mxu0
        %v3321 = vadd.f32 %v3172, %v3320
        %3322 = vmatmul.bf16.gmra.mxu0 %v1761
        %v3323 = vpop.f32.mrf.mxu0
        %v3324 = vadd.f32 %v3175, %v3323
        %v3325 = vpop.f32.mrf.mxu0
        %v3326 = vadd.f32 %v3177, %v3325
        %3327 = vmatmul.bf16.gmra.mxu0 %v1763
        %v3328 = vpop.f32.mrf.mxu0
        %v3329 = vadd.f32 %v3180, %v3328
        %v3330 = vpop.f32.mrf.mxu0
        %v3331 = vadd.f32 %v3182, %v3330
        %3332 = vmatmul.bf16.gmra.mxu0 %v1765
        %v3333 = vpop.f32.mrf.mxu0
        %v3334 = vadd.f32 %v3185, %v3333
        %v3335 = vpop.f32.mrf.mxu0
        %v3336 = vadd.f32 %v3187, %v3335
        %3337 = vdwg.mxu0
        %v3338 = vld [vmem:[#allocation7] sm:$0xff]
        %v3339 = vld [vmem:[#allocation7 + $0x8] sm:$0xff]
        %v3340 = vld [vmem:[#allocation7 + $0x10] sm:$0xff]
        %v3341 = vld [vmem:[#allocation7 + $0x18] sm:$0xff]
        %v3342 = vld [vmem:[#allocation7 + $0x20] sm:$0xff]
        %v3343 = vld [vmem:[#allocation7 + $0x28] sm:$0xff]
        %v3344 = vld [vmem:[#allocation7 + $0x30] sm:$0xff]
        %v3345 = vadd.f32 %v3199, %v3338
        %v3346 = vadd.f32 %v3201, %v3339
        %v3347 = vadd.f32 %v3204, %v3340
        %v3348 = vadd.f32 %v3206, %v3341
        %v3349 = vadd.f32 %v3209, %v3342
        %v3350 = vadd.f32 %v3211, %v3343
        %v3351 = vadd.f32 %v3214, %v3344
        %v3352 = vadd.f32 %v3216, %v3338
        %v3353 = vadd.f32 %v3219, %v3339
        %v3354 = vadd.f32 %v3221, %v3340
        %v3355 = vadd.f32 %v3224, %v3341
        %v3356 = vadd.f32 %v3226, %v3342
        %v3357 = vadd.f32 %v3229, %v3343
        %v3358 = vadd.f32 %v3231, %v3344
        %v3359 = vadd.f32 %v3234, %v3338
        %v3360 = vadd.f32 %v3236, %v3339
        %v3361 = vadd.f32 %v3239, %v3340
        %v3362 = vadd.f32 %v3241, %v3341
        %v3363 = vadd.f32 %v3244, %v3342
        %v3364 = vadd.f32 %v3246, %v3343
        %v3365 = vadd.f32 %v3249, %v3344
        %v3366 = vadd.f32 %v3251, %v3338
        %v3367 = vadd.f32 %v3254, %v3339
        %v3368 = vadd.f32 %v3256, %v3340
        %v3369 = vadd.f32 %v3259, %v3341
        %v3370 = vadd.f32 %v3261, %v3342
        %v3371 = vadd.f32 %v3264, %v3343
        %v3372 = vadd.f32 %v3266, %v3344
        %v3373 = vadd.f32 %v3269, %v3338
        %v3374 = vadd.f32 %v3271, %v3339
        %v3375 = vadd.f32 %v3274, %v3340
        %v3376 = vadd.f32 %v3276, %v3341
        %v3377 = vadd.f32 %v3279, %v3342
        %v3378 = vadd.f32 %v3281, %v3343
        %v3379 = vadd.f32 %v3284, %v3344
        %v3380 = vadd.f32 %v3286, %v3338
        %v3381 = vadd.f32 %v3289, %v3339
        %v3382 = vadd.f32 %v3291, %v3340
        %v3383 = vadd.f32 %v3294, %v3341
        %v3384 = vadd.f32 %v3296, %v3342
        %v3385 = vadd.f32 %v3299, %v3343
        %v3386 = vadd.f32 %v3301, %v3344
        %v3387 = vadd.f32 %v3304, %v3338
        %v3388 = vadd.f32 %v3306, %v3339
        %v3389 = vadd.f32 %v3309, %v3340
        %v3390 = vadd.f32 %v3311, %v3341
        %v3391 = vadd.f32 %v3314, %v3342
        %v3392 = vadd.f32 %v3316, %v3343
        %v3393 = vadd.f32 %v3319, %v3344
        %v3394 = vadd.f32 %v3321, %v3338
        %v3395 = vadd.f32 %v3324, %v3339
        %v3396 = vadd.f32 %v3326, %v3340
        %v3397 = vadd.f32 %v3329, %v3341
        %v3398 = vadd.f32 %v3331, %v3342
        %v3399 = vadd.f32 %v3334, %v3343
        %v3400 = vadd.f32 %v3336, %v3344
        %v3401 = vmax.f32 %v3345, 0.0
        %v3402 = vmax.f32 %v3346, 0.0
        %v3403 = vmax.f32 %v3347, 0.0
        %v3404 = vmax.f32 %v3348, 0.0
        %v3405 = vmax.f32 %v3349, 0.0
        %v3406 = vmax.f32 %v3350, 0.0
        %v3407 = vmax.f32 %v3351, 0.0
        %v3408 = vmax.f32 %v3352, 0.0
        %v3409 = vmax.f32 %v3353, 0.0
        %v3410 = vmax.f32 %v3354, 0.0
        %v3411 = vmax.f32 %v3355, 0.0
        %v3412 = vmax.f32 %v3356, 0.0
        %v3413 = vmax.f32 %v3357, 0.0
        %v3414 = vmax.f32 %v3358, 0.0
        %v3415 = vmax.f32 %v3359, 0.0
        %v3416 = vmax.f32 %v3360, 0.0
        %v3417 = vmax.f32 %v3361, 0.0
        %v3418 = vmax.f32 %v3362, 0.0
        %v3419 = vmax.f32 %v3363, 0.0
        %v3420 = vmax.f32 %v3364, 0.0
        %v3421 = vmax.f32 %v3365, 0.0
        %v3422 = vmax.f32 %v3366, 0.0
        %v3423 = vmax.f32 %v3367, 0.0
        %v3424 = vmax.f32 %v3368, 0.0
        %v3425 = vmax.f32 %v3369, 0.0
        %v3426 = vmax.f32 %v3370, 0.0
        %v3427 = vmax.f32 %v3371, 0.0
        %v3428 = vmax.f32 %v3372, 0.0
        %v3429 = vmax.f32 %v3373, 0.0
        %v3430 = vmax.f32 %v3374, 0.0
        %v3431 = vmax.f32 %v3375, 0.0
        %v3432 = vmax.f32 %v3376, 0.0
        %v3433 = vmax.f32 %v3377, 0.0
        %v3434 = vmax.f32 %v3378, 0.0
        %v3435 = vmax.f32 %v3379, 0.0
        %v3436 = vmax.f32 %v3380, 0.0
        %v3437 = vmax.f32 %v3381, 0.0
        %v3438 = vmax.f32 %v3382, 0.0
        %v3439 = vmax.f32 %v3383, 0.0
        %v3440 = vmax.f32 %v3384, 0.0
        %v3441 = vmax.f32 %v3385, 0.0
        %v3442 = vmax.f32 %v3386, 0.0
        %v3443 = vmax.f32 %v3387, 0.0
        %v3444 = vmax.f32 %v3388, 0.0
        %v3445 = vmax.f32 %v3389, 0.0
        %v3446 = vmax.f32 %v3390, 0.0
        %v3447 = vmax.f32 %v3391, 0.0
        %v3448 = vmax.f32 %v3392, 0.0
        %v3449 = vmax.f32 %v3393, 0.0
        %v3450 = vmax.f32 %v3394, 0.0
        %v3451 = vmax.f32 %v3395, 0.0
        %v3452 = vmax.f32 %v3396, 0.0
        %v3453 = vmax.f32 %v3397, 0.0
        %v3454 = vmax.f32 %v3398, 0.0
        %v3455 = vmax.f32 %v3399, 0.0
        %v3456 = vmax.f32 %v3400, 0.0
        %v3457 = vld [vmem:[%s9] sm:$0xf]
        %v3458 = vld [vmem:[%s9 + $0x4] sm:$0xf]
        %v3459 = vld [vmem:[%s9 + $0x8] sm:$0xf]
        %v3460 = vld [vmem:[%s9 + $0xc] sm:$0xf]
        %v3461 = vld [vmem:[%s9 + $0x10] sm:$0xf]
        %v3462 = vld [vmem:[%s9 + $0x14] sm:$0xf]
        %v3463 = vld [vmem:[%s9 + $0x18] sm:$0xf]
        %v3464 = vld [vmem:[%s9 + $0x1c] sm:$0xf]
        %v3465 = vld [vmem:[%s9 + $0x20] sm:$0xf]
        %v3466 = vld [vmem:[%s9 + $0x24] sm:$0xf]
        %v3467 = vld [vmem:[%s9 + $0x28] sm:$0x1]
        %v3468 = vld [vmem:[%s9 + $0x2c] sm:$0xf]
        %v3469 = vld [vmem:[%s9 + $0x30] sm:$0xf]
        %v3470 = vld [vmem:[%s9 + $0x34] sm:$0xf]
        %v3471 = vld [vmem:[%s9 + $0x38] sm:$0xf]
        %v3472 = vld [vmem:[%s9 + $0x3c] sm:$0xf]
        %v3473 = vld [vmem:[%s9 + $0x40] sm:$0xf]
        %v3474 = vld [vmem:[%s9 + $0x44] sm:$0xf]
        %v3475 = vld [vmem:[%s9 + $0x48] sm:$0xf]
        %v3476 = vld [vmem:[%s9 + $0x4c] sm:$0xf]
        %v3477 = vld [vmem:[%s9 + $0x50] sm:$0xf]
        %v3478 = vld [vmem:[%s9 + $0x54] sm:$0x1]
        %v3479 = vld [vmem:[%s9 + $0x58] sm:$0xf]
        %v3480 = vld [vmem:[%s9 + $0x5c] sm:$0xf]
        %v3481 = vld [vmem:[%s9 + $0x60] sm:$0xf]
        %v3482 = vld [vmem:[%s9 + $0x64] sm:$0xf]
        %v3483 = vld [vmem:[%s9 + $0x68] sm:$0xf]
        %v3484 = vld [vmem:[%s9 + $0x6c] sm:$0xf]
        %v3485 = vld [vmem:[%s9 + $0x70] sm:$0xf]
        %v3486 = vld [vmem:[%s9 + $0x74] sm:$0xf]
        %v3487 = vld [vmem:[%s9 + $0x78] sm:$0xf]
        %v3488 = vld [vmem:[%s9 + $0x7c] sm:$0xf]
        %v3489 = vld [vmem:[%s9 + $0x80] sm:$0x1]
        %v3490 = vld [vmem:[%s9 + $0x84] sm:$0xf]
        %v3491 = vld [vmem:[%s9 + $0x88] sm:$0xf]
        %v3492 = vld [vmem:[%s9 + $0x8c] sm:$0xf]
        %v3493 = vld [vmem:[%s9 + $0x90] sm:$0xf]
        %v3494 = vld [vmem:[%s9 + $0x94] sm:$0xf]
        %v3495 = vld [vmem:[%s9 + $0x98] sm:$0xf]
        %v3496 = vld [vmem:[%s9 + $0x9c] sm:$0xf]
        %v3497 = vld [vmem:[%s9 + $0xa0] sm:$0xf]
        %v3498 = vld [vmem:[%s9 + $0xa4] sm:$0xf]
        %v3499 = vld [vmem:[%s9 + $0xa8] sm:$0xf]
        %v3500 = vld [vmem:[%s9 + $0xac] sm:$0x1]
        %v3501 = vld [vmem:[%s9 + $0xb0] sm:$0xf]
        %v3502 = vld [vmem:[%s9 + $0xb4] sm:$0xf]
        %v3503 = vld [vmem:[%s9 + $0xb8] sm:$0xf]
        %v3504 = vld [vmem:[%s9 + $0xbc] sm:$0xf]
        %v3505 = vld [vmem:[%s9 + $0xc0] sm:$0xf]
        %v3506 = vld [vmem:[%s9 + $0xc4] sm:$0xf]
        %v3507 = vld [vmem:[%s9 + $0xc8] sm:$0xf]
        %v3508 = vld [vmem:[%s9 + $0xcc] sm:$0xf]
        %v3509 = vld [vmem:[%s9 + $0xd0] sm:$0xf]
        %v3510 = vld [vmem:[%s9 + $0xd4] sm:$0xf]
        %v3511 = vld [vmem:[%s9 + $0xd8] sm:$0x1]
        %v3512 = vld [vmem:[%s9 + $0xdc] sm:$0xf]
        %v3513 = vld [vmem:[%s9 + $0xe0] sm:$0xf]
        %v3514 = vld [vmem:[%s9 + $0xe4] sm:$0xf]
        %v3515 = vld [vmem:[%s9 + $0xe8] sm:$0xf]
        %v3516 = vld [vmem:[%s9 + $0xec] sm:$0xf]
        %v3517 = vld [vmem:[%s9 + $0xf0] sm:$0xf]
        %v3518 = vld [vmem:[%s9 + $0xf4] sm:$0xf]
        %v3519 = vld [vmem:[%s9 + $0xf8] sm:$0xf]
        %v3520 = vld [vmem:[%s9 + $0xfc] sm:$0xf]
        %v3521 = vld [vmem:[%s9 + $0x100] sm:$0xf]
        %v3522 = vld [vmem:[%s9 + $0x104] sm:$0x1]
        %v3523 = vld [vmem:[%s9 + $0x108] sm:$0xf]
        %v3524 = vld [vmem:[%s9 + $0x10c] sm:$0xf]
        %v3525 = vld [vmem:[%s9 + $0x110] sm:$0xf]
        %v3526 = vld [vmem:[%s9 + $0x114] sm:$0xf]
        %v3527 = vld [vmem:[%s9 + $0x118] sm:$0xf]
        %v3528 = vld [vmem:[%s9 + $0x11c] sm:$0xf]
        %v3529 = vld [vmem:[%s9 + $0x120] sm:$0xf]
        %v3530 = vld [vmem:[%s9 + $0x124] sm:$0xf]
        %v3531 = vld [vmem:[%s9 + $0x128] sm:$0xf]
        %v3532 = vld [vmem:[%s9 + $0x12c] sm:$0xf]
        %v3533 = vld [vmem:[%s9 + $0x130] sm:$0x1]
        %v3534 = vld [vmem:[%s9 + $0x134] sm:$0xf]
        %v3535 = vld [vmem:[%s9 + $0x138] sm:$0xf]
        %v3536 = vld [vmem:[%s9 + $0x13c] sm:$0xf]
        %v3537 = vld [vmem:[%s9 + $0x140] sm:$0xf]
        %v3538 = vld [vmem:[%s9 + $0x144] sm:$0xf]
        %v3539 = vld [vmem:[%s9 + $0x148] sm:$0xf]
        %v3540 = vld [vmem:[%s9 + $0x14c] sm:$0xf]
        %v3541 = vld [vmem:[%s9 + $0x150] sm:$0xf]
        %v3542 = vld [vmem:[%s9 + $0x154] sm:$0xf]
        %v3543 = vld [vmem:[%s9 + $0x158] sm:$0xf]
        %v3544 = vld [vmem:[%s9 + $0x15c] sm:$0x1]
        %v3545 = vpack.c.bf16 %v3401, %v3401
        %v3546 = vpack.c.bf16 %v3402, %v3402
        %v3547 = vpack.c.bf16 %v3403, %v3403
        %v3548 = vpack.c.bf16 %v3404, %v3404
        %v3549 = vpack.c.bf16 %v3405, %v3405
        %v3550 = vpack.c.bf16 %v3406, %v3406
        %v3551 = vpack.c.bf16 %v3407, %v3407
        %v3552 = vpack.c.bf16 %v3408, %v3408
        %v3553 = vpack.c.bf16 %v3409, %v3409
        %v3554 = vpack.c.bf16 %v3410, %v3410
        %v3555 = vpack.c.bf16 %v3411, %v3411
        %v3556 = vpack.c.bf16 %v3412, %v3412
        %v3557 = vpack.c.bf16 %v3413, %v3413
        %v3558 = vpack.c.bf16 %v3414, %v3414
        %v3559 = vpack.c.bf16 %v3415, %v3415
        %v3560 = vpack.c.bf16 %v3416, %v3416
        %v3561 = vpack.c.bf16 %v3417, %v3417
        %v3562 = vpack.c.bf16 %v3418, %v3418
        %v3563 = vpack.c.bf16 %v3419, %v3419
        %v3564 = vpack.c.bf16 %v3420, %v3420
        %v3565 = vpack.c.bf16 %v3421, %v3421
        %v3566 = vpack.c.bf16 %v3422, %v3422
        %v3567 = vpack.c.bf16 %v3423, %v3423
        %v3568 = vpack.c.bf16 %v3424, %v3424
        %v3569 = vpack.c.bf16 %v3425, %v3425
        %v3570 = vpack.c.bf16 %v3426, %v3426
        %v3571 = vpack.c.bf16 %v3427, %v3427
        %v3572 = vpack.c.bf16 %v3428, %v3428
        %v3573 = vpack.c.bf16 %v3429, %v3429
        %v3574 = vpack.c.bf16 %v3430, %v3430
        %v3575 = vpack.c.bf16 %v3431, %v3431
        %v3576 = vpack.c.bf16 %v3432, %v3432
        %v3577 = vpack.c.bf16 %v3433, %v3433
        %v3578 = vpack.c.bf16 %v3434, %v3434
        %v3579 = vpack.c.bf16 %v3435, %v3435
        %v3580 = vpack.c.bf16 %v3436, %v3436
        %v3581 = vpack.c.bf16 %v3437, %v3437
        %v3582 = vpack.c.bf16 %v3438, %v3438
        %v3583 = vpack.c.bf16 %v3439, %v3439
        %v3584 = vpack.c.bf16 %v3440, %v3440
        %v3585 = vpack.c.bf16 %v3441, %v3441
        %v3586 = vpack.c.bf16 %v3442, %v3442
        %v3587 = vpack.c.bf16 %v3443, %v3443
        %v3588 = vpack.c.bf16 %v3444, %v3444
        %v3589 = vpack.c.bf16 %v3445, %v3445
        %v3590 = vpack.c.bf16 %v3446, %v3446
        %v3591 = vpack.c.bf16 %v3447, %v3447
        %v3592 = vpack.c.bf16 %v3448, %v3448
        %v3593 = vpack.c.bf16 %v3449, %v3449
        %v3594 = vpack.c.bf16 %v3450, %v3450
        %v3595 = vpack.c.bf16 %v3451, %v3451
        %v3596 = vpack.c.bf16 %v3452, %v3452
        %v3597 = vpack.c.bf16 %v3453, %v3453
        %v3598 = vpack.c.bf16 %v3454, %v3454
        %v3599 = vpack.c.bf16 %v3455, %v3455
        %v3600 = vpack.c.bf16 %v3456, %v3456
        %v3612 = vunpack.c.l.b16 %v3457
        %v3613 = vunpack.c.l.b16 %v3458
        %v3614 = vunpack.c.l.b16 %v3459
        %v3615 = vunpack.c.l.b16 %v3460
        %v3616 = vunpack.c.l.b16 %v3461
        %v3617 = vunpack.c.l.b16 %v3462
        %v3618 = vunpack.c.l.b16 %v3463
        %v3619 = vunpack.c.l.b16 %v3464
        %v3620 = vunpack.c.l.b16 %v3465
        %v3621 = vunpack.c.l.b16 %v3466
        %v3622 = vunpack.c.l.b16 %v3467
        %v3623 = vpack.c.b16 %v3613, %v3612
        %v3624 = vpack.c.b16 %v3615, %v3614
        %v3625 = vpack.c.b16 %v3617, %v3616
        %v3626 = vpack.c.b16 %v3619, %v3618
        %v3627 = vpack.c.b16 %v3621, %v3620
        %v3628 = vpack.c.b16 %v3622, %v3622
        %v3636 = vunpack.c.l.b16 %v3545
        %v3637 = vunpack.c.l.b16 %v3546
        %v3638 = vunpack.c.l.b16 %v3547
        %v3639 = vunpack.c.l.b16 %v3548
        %v3640 = vunpack.c.l.b16 %v3549
        %v3641 = vunpack.c.l.b16 %v3550
        %v3642 = vunpack.c.l.b16 %v3551
        %v3643 = vpack.c.b16 %v3637, %v3636
        %v3644 = vpack.c.b16 %v3639, %v3638
        %v3645 = vpack.c.b16 %v3641, %v3640
        %v3646 = vpack.c.b16 %v3642, %v3642
        %vm3650 = vcmask 457728
        %v3652 = vsel %vm3650, %v3623, 0
        %v3655 = vsel %vm3650, %v3624, 0
        %v3658 = vsel %vm3650, %v3625, 0
        %v3661 = vsel %vm3650, %v3626, 0
        %v3664 = vsel %vm3650, %v3627, 0
        %v3667 = vsel %vm3650, %v3628, 0
        %vm3669 = vcmask 1043456
        %v3671 = vsel %vm3669, %v3646, 0
        %3673 = vmatpush.bf16.msra.mxu0 0
        %3674 = vmatpush.bf16.msra.mxu0 0
        %3675 = vmatpush.bf16.msra.mxu0 0
        %3676 = vmatpush.bf16.msra.mxu0 0
        %3677 = vmatpush.bf16.msra.mxu0 %v3671
        %3678 = vmatpush.bf16.msra.mxu0 %v3645
        %3679 = vmatpush.bf16.msra.mxu0 %v3644
        %3680 = vmatpush.bf16.msra.mxu0 %v3643
        %3681 = vmatmul.bf16.gmra.mxu0 %v3652
        %v3682 = vpop.f32.mrf.mxu0
        %v3683 = vadd.f32 0.0, %v3682
        %v3684 = vpop.f32.mrf.mxu0
        %v3685 = vadd.f32 0.0, %v3684
        %3686 = vmatmul.bf16.gmra.mxu0 %v3655
        %v3687 = vpop.f32.mrf.mxu0
        %v3688 = vadd.f32 0.0, %v3687
        %v3689 = vpop.f32.mrf.mxu0
        %v3690 = vadd.f32 0.0, %v3689
        %3691 = vmatmul.bf16.gmra.mxu0 %v3658
        %v3692 = vpop.f32.mrf.mxu0
        %v3693 = vadd.f32 0.0, %v3692
        %v3694 = vpop.f32.mrf.mxu0
        %v3695 = vadd.f32 0.0, %v3694
        %3696 = vmatmul.bf16.gmra.mxu0 %v3661
        %v3697 = vpop.f32.mrf.mxu0
        %v3698 = vadd.f32 0.0, %v3697
        %v3699 = vpop.f32.mrf.mxu0
        %v3700 = vadd.f32 0.0, %v3699
        %3701 = vmatmul.bf16.gmra.mxu0 %v3664
        %v3702 = vpop.f32.mrf.mxu0
        %v3703 = vadd.f32 0.0, %v3702
        %v3704 = vpop.f32.mrf.mxu0
        %v3705 = vadd.f32 0.0, %v3704
        %3706 = vmatmul.bf16.gmra.mxu0 %v3667
        %v3707 = vpop.f32.mrf.mxu0
        %v3708 = vadd.f32 0.0, %v3707
        %v3709 = vpop.f32.mrf.mxu0
        %3710 = vdwg.mxu0
        %v3722 = vunpack.c.l.b16 %v3468
        %v3723 = vunpack.c.l.b16 %v3469
        %v3724 = vunpack.c.l.b16 %v3470
        %v3725 = vunpack.c.l.b16 %v3471
        %v3726 = vunpack.c.l.b16 %v3472
        %v3727 = vunpack.c.l.b16 %v3473
        %v3728 = vunpack.c.l.b16 %v3474
        %v3729 = vunpack.c.l.b16 %v3475
        %v3730 = vunpack.c.l.b16 %v3476
        %v3731 = vunpack.c.l.b16 %v3477
        %v3732 = vunpack.c.l.b16 %v3478
        %v3733 = vpack.c.b16 %v3723, %v3722
        %v3734 = vpack.c.b16 %v3725, %v3724
        %v3735 = vpack.c.b16 %v3727, %v3726
        %v3736 = vpack.c.b16 %v3729, %v3728
        %v3737 = vpack.c.b16 %v3731, %v3730
        %v3738 = vpack.c.b16 %v3732, %v3732
        %v3746 = vunpack.c.l.b16 %v3552
        %v3747 = vunpack.c.l.b16 %v3553
        %v3748 = vunpack.c.l.b16 %v3554
        %v3749 = vunpack.c.l.b16 %v3555
        %v3750 = vunpack.c.l.b16 %v3556
        %v3751 = vunpack.c.l.b16 %v3557
        %v3752 = vunpack.c.l.b16 %v3558
        %v3753 = vpack.c.b16 %v3747, %v3746
        %v3754 = vpack.c.b16 %v3749, %v3748
        %v3755 = vpack.c.b16 %v3751, %v3750
        %v3756 = vpack.c.b16 %v3752, %v3752
        %v3761 = vsel %vm3650, %v3733, 0
        %v3764 = vsel %vm3650, %v3734, 0
        %v3767 = vsel %vm3650, %v3735, 0
        %v3770 = vsel %vm3650, %v3736, 0
        %v3773 = vsel %vm3650, %v3737, 0
        %v3776 = vsel %vm3650, %v3738, 0
        %v3779 = vsel %vm3669, %v3756, 0
        %3781 = vmatpush.bf16.msra.mxu0 0
        %3782 = vmatpush.bf16.msra.mxu0 0
        %3783 = vmatpush.bf16.msra.mxu0 0
        %3784 = vmatpush.bf16.msra.mxu0 0
        %3785 = vmatpush.bf16.msra.mxu0 %v3779
        %3786 = vmatpush.bf16.msra.mxu0 %v3755
        %3787 = vmatpush.bf16.msra.mxu0 %v3754
        %3788 = vmatpush.bf16.msra.mxu0 %v3753
        %3789 = vmatmul.bf16.gmra.mxu0 %v3761
        %v3790 = vpop.f32.mrf.mxu0
        %v3791 = vadd.f32 0.0, %v3790
        %v3792 = vpop.f32.mrf.mxu0
        %v3793 = vadd.f32 0.0, %v3792
        %3794 = vmatmul.bf16.gmra.mxu0 %v3764
        %v3795 = vpop.f32.mrf.mxu0
        %v3796 = vadd.f32 0.0, %v3795
        %v3797 = vpop.f32.mrf.mxu0
        %v3798 = vadd.f32 0.0, %v3797
        %3799 = vmatmul.bf16.gmra.mxu0 %v3767
        %v3800 = vpop.f32.mrf.mxu0
        %v3801 = vadd.f32 0.0, %v3800
        %v3802 = vpop.f32.mrf.mxu0
        %v3803 = vadd.f32 0.0, %v3802
        %3804 = vmatmul.bf16.gmra.mxu0 %v3770
        %v3805 = vpop.f32.mrf.mxu0
        %v3806 = vadd.f32 0.0, %v3805
        %v3807 = vpop.f32.mrf.mxu0
        %v3808 = vadd.f32 0.0, %v3807
        %3809 = vmatmul.bf16.gmra.mxu0 %v3773
        %v3810 = vpop.f32.mrf.mxu0
        %v3811 = vadd.f32 0.0, %v3810
        %v3812 = vpop.f32.mrf.mxu0
        %v3813 = vadd.f32 0.0, %v3812
        %3814 = vmatmul.bf16.gmra.mxu0 %v3776
        %v3815 = vpop.f32.mrf.mxu0
        %v3816 = vadd.f32 0.0, %v3815
        %v3817 = vpop.f32.mrf.mxu0
        %3818 = vdwg.mxu0
        %v3830 = vunpack.c.l.b16 %v3479
        %v3831 = vunpack.c.l.b16 %v3480
        %v3832 = vunpack.c.l.b16 %v3481
        %v3833 = vunpack.c.l.b16 %v3482
        %v3834 = vunpack.c.l.b16 %v3483
        %v3835 = vunpack.c.l.b16 %v3484
        %v3836 = vunpack.c.l.b16 %v3485
        %v3837 = vunpack.c.l.b16 %v3486
        %v3838 = vunpack.c.l.b16 %v3487
        %v3839 = vunpack.c.l.b16 %v3488
        %v3840 = vunpack.c.l.b16 %v3489
        %v3841 = vpack.c.b16 %v3831, %v3830
        %v3842 = vpack.c.b16 %v3833, %v3832
        %v3843 = vpack.c.b16 %v3835, %v3834
        %v3844 = vpack.c.b16 %v3837, %v3836
        %v3845 = vpack.c.b16 %v3839, %v3838
        %v3846 = vpack.c.b16 %v3840, %v3840
        %v3854 = vunpack.c.l.b16 %v3559
        %v3855 = vunpack.c.l.b16 %v3560
        %v3856 = vunpack.c.l.b16 %v3561
        %v3857 = vunpack.c.l.b16 %v3562
        %v3858 = vunpack.c.l.b16 %v3563
        %v3859 = vunpack.c.l.b16 %v3564
        %v3860 = vunpack.c.l.b16 %v3565
        %v3861 = vpack.c.b16 %v3855, %v3854
        %v3862 = vpack.c.b16 %v3857, %v3856
        %v3863 = vpack.c.b16 %v3859, %v3858
        %v3864 = vpack.c.b16 %v3860, %v3860
        %v3869 = vsel %vm3650, %v3841, 0
        %v3872 = vsel %vm3650, %v3842, 0
        %v3875 = vsel %vm3650, %v3843, 0
        %v3878 = vsel %vm3650, %v3844, 0
        %v3881 = vsel %vm3650, %v3845, 0
        %v3884 = vsel %vm3650, %v3846, 0
        %v3887 = vsel %vm3669, %v3864, 0
        %3889 = vmatpush.bf16.msra.mxu0 0
        %3890 = vmatpush.bf16.msra.mxu0 0
        %3891 = vmatpush.bf16.msra.mxu0 0
        %3892 = vmatpush.bf16.msra.mxu0 0
        %3893 = vmatpush.bf16.msra.mxu0 %v3887
        %3894 = vmatpush.bf16.msra.mxu0 %v3863
        %3895 = vmatpush.bf16.msra.mxu0 %v3862
        %3896 = vmatpush.bf16.msra.mxu0 %v3861
        %3897 = vmatmul.bf16.gmra.mxu0 %v3869
        %v3898 = vpop.f32.mrf.mxu0
        %v3899 = vadd.f32 0.0, %v3898
        %v3900 = vpop.f32.mrf.mxu0
        %v3901 = vadd.f32 0.0, %v3900
        %3902 = vmatmul.bf16.gmra.mxu0 %v3872
        %v3903 = vpop.f32.mrf.mxu0
        %v3904 = vadd.f32 0.0, %v3903
        %v3905 = vpop.f32.mrf.mxu0
        %v3906 = vadd.f32 0.0, %v3905
        %3907 = vmatmul.bf16.gmra.mxu0 %v3875
        %v3908 = vpop.f32.mrf.mxu0
        %v3909 = vadd.f32 0.0, %v3908
        %v3910 = vpop.f32.mrf.mxu0
        %v3911 = vadd.f32 0.0, %v3910
        %3912 = vmatmul.bf16.gmra.mxu0 %v3878
        %v3913 = vpop.f32.mrf.mxu0
        %v3914 = vadd.f32 0.0, %v3913
        %v3915 = vpop.f32.mrf.mxu0
        %v3916 = vadd.f32 0.0, %v3915
        %3917 = vmatmul.bf16.gmra.mxu0 %v3881
        %v3918 = vpop.f32.mrf.mxu0
        %v3919 = vadd.f32 0.0, %v3918
        %v3920 = vpop.f32.mrf.mxu0
        %v3921 = vadd.f32 0.0, %v3920
        %3922 = vmatmul.bf16.gmra.mxu0 %v3884
        %v3923 = vpop.f32.mrf.mxu0
        %v3924 = vadd.f32 0.0, %v3923
        %v3925 = vpop.f32.mrf.mxu0
        %3926 = vdwg.mxu0
        %v3938 = vunpack.c.l.b16 %v3490
        %v3939 = vunpack.c.l.b16 %v3491
        %v3940 = vunpack.c.l.b16 %v3492
        %v3941 = vunpack.c.l.b16 %v3493
        %v3942 = vunpack.c.l.b16 %v3494
        %v3943 = vunpack.c.l.b16 %v3495
        %v3944 = vunpack.c.l.b16 %v3496
        %v3945 = vunpack.c.l.b16 %v3497
        %v3946 = vunpack.c.l.b16 %v3498
        %v3947 = vunpack.c.l.b16 %v3499
        %v3948 = vunpack.c.l.b16 %v3500
        %v3949 = vpack.c.b16 %v3939, %v3938
        %v3950 = vpack.c.b16 %v3941, %v3940
        %v3951 = vpack.c.b16 %v3943, %v3942
        %v3952 = vpack.c.b16 %v3945, %v3944
        %v3953 = vpack.c.b16 %v3947, %v3946
        %v3954 = vpack.c.b16 %v3948, %v3948
        %v3962 = vunpack.c.l.b16 %v3566
        %v3963 = vunpack.c.l.b16 %v3567
        %v3964 = vunpack.c.l.b16 %v3568
        %v3965 = vunpack.c.l.b16 %v3569
        %v3966 = vunpack.c.l.b16 %v3570
        %v3967 = vunpack.c.l.b16 %v3571
        %v3968 = vunpack.c.l.b16 %v3572
        %v3969 = vpack.c.b16 %v3963, %v3962
        %v3970 = vpack.c.b16 %v3965, %v3964
        %v3971 = vpack.c.b16 %v3967, %v3966
        %v3972 = vpack.c.b16 %v3968, %v3968
        %v3977 = vsel %vm3650, %v3949, 0
        %v3980 = vsel %vm3650, %v3950, 0
        %v3983 = vsel %vm3650, %v3951, 0
        %v3986 = vsel %vm3650, %v3952, 0
        %v3989 = vsel %vm3650, %v3953, 0
        %v3992 = vsel %vm3650, %v3954, 0
        %v3995 = vsel %vm3669, %v3972, 0
        %3997 = vmatpush.bf16.msra.mxu0 0
        %3998 = vmatpush.bf16.msra.mxu0 0
        %3999 = vmatpush.bf16.msra.mxu0 0
        %4000 = vmatpush.bf16.msra.mxu0 0
        %4001 = vmatpush.bf16.msra.mxu0 %v3995
        %4002 = vmatpush.bf16.msra.mxu0 %v3971
        %4003 = vmatpush.bf16.msra.mxu0 %v3970
        %4004 = vmatpush.bf16.msra.mxu0 %v3969
        %4005 = vmatmul.bf16.gmra.mxu0 %v3977
        %v4006 = vpop.f32.mrf.mxu0
        %v4007 = vadd.f32 0.0, %v4006
        %v4008 = vpop.f32.mrf.mxu0
        %v4009 = vadd.f32 0.0, %v4008
        %4010 = vmatmul.bf16.gmra.mxu0 %v3980
        %v4011 = vpop.f32.mrf.mxu0
        %v4012 = vadd.f32 0.0, %v4011
        %v4013 = vpop.f32.mrf.mxu0
        %v4014 = vadd.f32 0.0, %v4013
        %4015 = vmatmul.bf16.gmra.mxu0 %v3983
        %v4016 = vpop.f32.mrf.mxu0
        %v4017 = vadd.f32 0.0, %v4016
        %v4018 = vpop.f32.mrf.mxu0
        %v4019 = vadd.f32 0.0, %v4018
        %4020 = vmatmul.bf16.gmra.mxu0 %v3986
        %v4021 = vpop.f32.mrf.mxu0
        %v4022 = vadd.f32 0.0, %v4021
        %v4023 = vpop.f32.mrf.mxu0
        %v4024 = vadd.f32 0.0, %v4023
        %4025 = vmatmul.bf16.gmra.mxu0 %v3989
        %v4026 = vpop.f32.mrf.mxu0
        %v4027 = vadd.f32 0.0, %v4026
        %v4028 = vpop.f32.mrf.mxu0
        %v4029 = vadd.f32 0.0, %v4028
        %4030 = vmatmul.bf16.gmra.mxu0 %v3992
        %v4031 = vpop.f32.mrf.mxu0
        %v4032 = vadd.f32 0.0, %v4031
        %v4033 = vpop.f32.mrf.mxu0
        %4034 = vdwg.mxu0
        %v4046 = vunpack.c.l.b16 %v3501
        %v4047 = vunpack.c.l.b16 %v3502
        %v4048 = vunpack.c.l.b16 %v3503
        %v4049 = vunpack.c.l.b16 %v3504
        %v4050 = vunpack.c.l.b16 %v3505
        %v4051 = vunpack.c.l.b16 %v3506
        %v4052 = vunpack.c.l.b16 %v3507
        %v4053 = vunpack.c.l.b16 %v3508
        %v4054 = vunpack.c.l.b16 %v3509
        %v4055 = vunpack.c.l.b16 %v3510
        %v4056 = vunpack.c.l.b16 %v3511
        %v4057 = vpack.c.b16 %v4047, %v4046
        %v4058 = vpack.c.b16 %v4049, %v4048
        %v4059 = vpack.c.b16 %v4051, %v4050
        %v4060 = vpack.c.b16 %v4053, %v4052
        %v4061 = vpack.c.b16 %v4055, %v4054
        %v4062 = vpack.c.b16 %v4056, %v4056
        %v4070 = vunpack.c.l.b16 %v3573
        %v4071 = vunpack.c.l.b16 %v3574
        %v4072 = vunpack.c.l.b16 %v3575
        %v4073 = vunpack.c.l.b16 %v3576
        %v4074 = vunpack.c.l.b16 %v3577
        %v4075 = vunpack.c.l.b16 %v3578
        %v4076 = vunpack.c.l.b16 %v3579
        %v4077 = vpack.c.b16 %v4071, %v4070
        %v4078 = vpack.c.b16 %v4073, %v4072
        %v4079 = vpack.c.b16 %v4075, %v4074
        %v4080 = vpack.c.b16 %v4076, %v4076
        %v4085 = vsel %vm3650, %v4057, 0
        %v4088 = vsel %vm3650, %v4058, 0
        %v4091 = vsel %vm3650, %v4059, 0
        %v4094 = vsel %vm3650, %v4060, 0
        %v4097 = vsel %vm3650, %v4061, 0
        %v4100 = vsel %vm3650, %v4062, 0
        %v4103 = vsel %vm3669, %v4080, 0
        %4105 = vmatpush.bf16.msra.mxu0 0
        %4106 = vmatpush.bf16.msra.mxu0 0
        %4107 = vmatpush.bf16.msra.mxu0 0
        %4108 = vmatpush.bf16.msra.mxu0 0
        %4109 = vmatpush.bf16.msra.mxu0 %v4103
        %4110 = vmatpush.bf16.msra.mxu0 %v4079
        %4111 = vmatpush.bf16.msra.mxu0 %v4078
        %4112 = vmatpush.bf16.msra.mxu0 %v4077
        %4113 = vmatmul.bf16.gmra.mxu0 %v4085
        %v4114 = vpop.f32.mrf.mxu0
        %v4115 = vadd.f32 0.0, %v4114
        %v4116 = vpop.f32.mrf.mxu0
        %v4117 = vadd.f32 0.0, %v4116
        %4118 = vmatmul.bf16.gmra.mxu0 %v4088
        %v4119 = vpop.f32.mrf.mxu0
        %v4120 = vadd.f32 0.0, %v4119
        %v4121 = vpop.f32.mrf.mxu0
        %v4122 = vadd.f32 0.0, %v4121
        %4123 = vmatmul.bf16.gmra.mxu0 %v4091
        %v4124 = vpop.f32.mrf.mxu0
        %v4125 = vadd.f32 0.0, %v4124
        %v4126 = vpop.f32.mrf.mxu0
        %v4127 = vadd.f32 0.0, %v4126
        %4128 = vmatmul.bf16.gmra.mxu0 %v4094
        %v4129 = vpop.f32.mrf.mxu0
        %v4130 = vadd.f32 0.0, %v4129
        %v4131 = vpop.f32.mrf.mxu0
        %v4132 = vadd.f32 0.0, %v4131
        %4133 = vmatmul.bf16.gmra.mxu0 %v4097
        %v4134 = vpop.f32.mrf.mxu0
        %v4135 = vadd.f32 0.0, %v4134
        %v4136 = vpop.f32.mrf.mxu0
        %v4137 = vadd.f32 0.0, %v4136
        %4138 = vmatmul.bf16.gmra.mxu0 %v4100
        %v4139 = vpop.f32.mrf.mxu0
        %v4140 = vadd.f32 0.0, %v4139
        %v4141 = vpop.f32.mrf.mxu0
        %4142 = vdwg.mxu0
        %v4154 = vunpack.c.l.b16 %v3512
        %v4155 = vunpack.c.l.b16 %v3513
        %v4156 = vunpack.c.l.b16 %v3514
        %v4157 = vunpack.c.l.b16 %v3515
        %v4158 = vunpack.c.l.b16 %v3516
        %v4159 = vunpack.c.l.b16 %v3517
        %v4160 = vunpack.c.l.b16 %v3518
        %v4161 = vunpack.c.l.b16 %v3519
        %v4162 = vunpack.c.l.b16 %v3520
        %v4163 = vunpack.c.l.b16 %v3521
        %v4164 = vunpack.c.l.b16 %v3522
        %v4165 = vpack.c.b16 %v4155, %v4154
        %v4166 = vpack.c.b16 %v4157, %v4156
        %v4167 = vpack.c.b16 %v4159, %v4158
        %v4168 = vpack.c.b16 %v4161, %v4160
        %v4169 = vpack.c.b16 %v4163, %v4162
        %v4170 = vpack.c.b16 %v4164, %v4164
        %v4178 = vunpack.c.l.b16 %v3580
        %v4179 = vunpack.c.l.b16 %v3581
        %v4180 = vunpack.c.l.b16 %v3582
        %v4181 = vunpack.c.l.b16 %v3583
        %v4182 = vunpack.c.l.b16 %v3584
        %v4183 = vunpack.c.l.b16 %v3585
        %v4184 = vunpack.c.l.b16 %v3586
        %v4185 = vpack.c.b16 %v4179, %v4178
        %v4186 = vpack.c.b16 %v4181, %v4180
        %v4187 = vpack.c.b16 %v4183, %v4182
        %v4188 = vpack.c.b16 %v4184, %v4184
        %v4193 = vsel %vm3650, %v4165, 0
        %v4196 = vsel %vm3650, %v4166, 0
        %v4199 = vsel %vm3650, %v4167, 0
        %v4202 = vsel %vm3650, %v4168, 0
        %v4205 = vsel %vm3650, %v4169, 0
        %v4208 = vsel %vm3650, %v4170, 0
        %v4211 = vsel %vm3669, %v4188, 0
        %4213 = vmatpush.bf16.msra.mxu0 0
        %4214 = vmatpush.bf16.msra.mxu0 0
        %4215 = vmatpush.bf16.msra.mxu0 0
        %4216 = vmatpush.bf16.msra.mxu0 0
        %4217 = vmatpush.bf16.msra.mxu0 %v4211
        %4218 = vmatpush.bf16.msra.mxu0 %v4187
        %4219 = vmatpush.bf16.msra.mxu0 %v4186
        %4220 = vmatpush.bf16.msra.mxu0 %v4185
        %4221 = vmatmul.bf16.gmra.mxu0 %v4193
        %v4222 = vpop.f32.mrf.mxu0
        %v4223 = vadd.f32 0.0, %v4222
        %v4224 = vpop.f32.mrf.mxu0
        %v4225 = vadd.f32 0.0, %v4224
        %4226 = vmatmul.bf16.gmra.mxu0 %v4196
        %v4227 = vpop.f32.mrf.mxu0
        %v4228 = vadd.f32 0.0, %v4227
        %v4229 = vpop.f32.mrf.mxu0
        %v4230 = vadd.f32 0.0, %v4229
        %4231 = vmatmul.bf16.gmra.mxu0 %v4199
        %v4232 = vpop.f32.mrf.mxu0
        %v4233 = vadd.f32 0.0, %v4232
        %v4234 = vpop.f32.mrf.mxu0
        %v4235 = vadd.f32 0.0, %v4234
        %4236 = vmatmul.bf16.gmra.mxu0 %v4202
        %v4237 = vpop.f32.mrf.mxu0
        %v4238 = vadd.f32 0.0, %v4237
        %v4239 = vpop.f32.mrf.mxu0
        %v4240 = vadd.f32 0.0, %v4239
        %4241 = vmatmul.bf16.gmra.mxu0 %v4205
        %v4242 = vpop.f32.mrf.mxu0
        %v4243 = vadd.f32 0.0, %v4242
        %v4244 = vpop.f32.mrf.mxu0
        %v4245 = vadd.f32 0.0, %v4244
        %4246 = vmatmul.bf16.gmra.mxu0 %v4208
        %v4247 = vpop.f32.mrf.mxu0
        %v4248 = vadd.f32 0.0, %v4247
        %v4249 = vpop.f32.mrf.mxu0
        %4250 = vdwg.mxu0
        %v4262 = vunpack.c.l.b16 %v3523
        %v4263 = vunpack.c.l.b16 %v3524
        %v4264 = vunpack.c.l.b16 %v3525
        %v4265 = vunpack.c.l.b16 %v3526
        %v4266 = vunpack.c.l.b16 %v3527
        %v4267 = vunpack.c.l.b16 %v3528
        %v4268 = vunpack.c.l.b16 %v3529
        %v4269 = vunpack.c.l.b16 %v3530
        %v4270 = vunpack.c.l.b16 %v3531
        %v4271 = vunpack.c.l.b16 %v3532
        %v4272 = vunpack.c.l.b16 %v3533
        %v4273 = vpack.c.b16 %v4263, %v4262
        %v4274 = vpack.c.b16 %v4265, %v4264
        %v4275 = vpack.c.b16 %v4267, %v4266
        %v4276 = vpack.c.b16 %v4269, %v4268
        %v4277 = vpack.c.b16 %v4271, %v4270
        %v4278 = vpack.c.b16 %v4272, %v4272
        %v4286 = vunpack.c.l.b16 %v3587
        %v4287 = vunpack.c.l.b16 %v3588
        %v4288 = vunpack.c.l.b16 %v3589
        %v4289 = vunpack.c.l.b16 %v3590
        %v4290 = vunpack.c.l.b16 %v3591
        %v4291 = vunpack.c.l.b16 %v3592
        %v4292 = vunpack.c.l.b16 %v3593
        %v4293 = vpack.c.b16 %v4287, %v4286
        %v4294 = vpack.c.b16 %v4289, %v4288
        %v4295 = vpack.c.b16 %v4291, %v4290
        %v4296 = vpack.c.b16 %v4292, %v4292
        %v4301 = vsel %vm3650, %v4273, 0
        %v4304 = vsel %vm3650, %v4274, 0
        %v4307 = vsel %vm3650, %v4275, 0
        %v4310 = vsel %vm3650, %v4276, 0
        %v4313 = vsel %vm3650, %v4277, 0
        %v4316 = vsel %vm3650, %v4278, 0
        %v4319 = vsel %vm3669, %v4296, 0
        %4321 = vmatpush.bf16.msra.mxu0 0
        %4322 = vmatpush.bf16.msra.mxu0 0
        %4323 = vmatpush.bf16.msra.mxu0 0
        %4324 = vmatpush.bf16.msra.mxu0 0
        %4325 = vmatpush.bf16.msra.mxu0 %v4319
        %4326 = vmatpush.bf16.msra.mxu0 %v4295
        %4327 = vmatpush.bf16.msra.mxu0 %v4294
        %4328 = vmatpush.bf16.msra.mxu0 %v4293
        %4329 = vmatmul.bf16.gmra.mxu0 %v4301
        %v4330 = vpop.f32.mrf.mxu0
        %v4331 = vadd.f32 0.0, %v4330
        %v4332 = vpop.f32.mrf.mxu0
        %v4333 = vadd.f32 0.0, %v4332
        %4334 = vmatmul.bf16.gmra.mxu0 %v4304
        %v4335 = vpop.f32.mrf.mxu0
        %v4336 = vadd.f32 0.0, %v4335
        %v4337 = vpop.f32.mrf.mxu0
        %v4338 = vadd.f32 0.0, %v4337
        %4339 = vmatmul.bf16.gmra.mxu0 %v4307
        %v4340 = vpop.f32.mrf.mxu0
        %v4341 = vadd.f32 0.0, %v4340
        %v4342 = vpop.f32.mrf.mxu0
        %v4343 = vadd.f32 0.0, %v4342
        %4344 = vmatmul.bf16.gmra.mxu0 %v4310
        %v4345 = vpop.f32.mrf.mxu0
        %v4346 = vadd.f32 0.0, %v4345
        %v4347 = vpop.f32.mrf.mxu0
        %v4348 = vadd.f32 0.0, %v4347
        %4349 = vmatmul.bf16.gmra.mxu0 %v4313
        %v4350 = vpop.f32.mrf.mxu0
        %v4351 = vadd.f32 0.0, %v4350
        %v4352 = vpop.f32.mrf.mxu0
        %v4353 = vadd.f32 0.0, %v4352
        %4354 = vmatmul.bf16.gmra.mxu0 %v4316
        %v4355 = vpop.f32.mrf.mxu0
        %v4356 = vadd.f32 0.0, %v4355
        %v4357 = vpop.f32.mrf.mxu0
        %4358 = vdwg.mxu0
        %v4370 = vunpack.c.l.b16 %v3534
        %v4371 = vunpack.c.l.b16 %v3535
        %v4372 = vunpack.c.l.b16 %v3536
        %v4373 = vunpack.c.l.b16 %v3537
        %v4374 = vunpack.c.l.b16 %v3538
        %v4375 = vunpack.c.l.b16 %v3539
        %v4376 = vunpack.c.l.b16 %v3540
        %v4377 = vunpack.c.l.b16 %v3541
        %v4378 = vunpack.c.l.b16 %v3542
        %v4379 = vunpack.c.l.b16 %v3543
        %v4380 = vunpack.c.l.b16 %v3544
        %v4381 = vpack.c.b16 %v4371, %v4370
        %v4382 = vpack.c.b16 %v4373, %v4372
        %v4383 = vpack.c.b16 %v4375, %v4374
        %v4384 = vpack.c.b16 %v4377, %v4376
        %v4385 = vpack.c.b16 %v4379, %v4378
        %v4386 = vpack.c.b16 %v4380, %v4380
        %v4394 = vunpack.c.l.b16 %v3594
        %v4395 = vunpack.c.l.b16 %v3595
        %v4396 = vunpack.c.l.b16 %v3596
        %v4397 = vunpack.c.l.b16 %v3597
        %v4398 = vunpack.c.l.b16 %v3598
        %v4399 = vunpack.c.l.b16 %v3599
        %v4400 = vunpack.c.l.b16 %v3600
        %v4401 = vpack.c.b16 %v4395, %v4394
        %v4402 = vpack.c.b16 %v4397, %v4396
        %v4403 = vpack.c.b16 %v4399, %v4398
        %v4404 = vpack.c.b16 %v4400, %v4400
        %v4409 = vsel %vm3650, %v4381, 0
        %v4412 = vsel %vm3650, %v4382, 0
        %v4415 = vsel %vm3650, %v4383, 0
        %v4418 = vsel %vm3650, %v4384, 0
        %v4421 = vsel %vm3650, %v4385, 0
        %v4424 = vsel %vm3650, %v4386, 0
        %v4427 = vsel %vm3669, %v4404, 0
        %4429 = vmatpush.bf16.msra.mxu0 0
        %4430 = vmatpush.bf16.msra.mxu0 0
        %4431 = vmatpush.bf16.msra.mxu0 0
        %4432 = vmatpush.bf16.msra.mxu0 0
        %4433 = vmatpush.bf16.msra.mxu0 %v4427
        %4434 = vmatpush.bf16.msra.mxu0 %v4403
        %4435 = vmatpush.bf16.msra.mxu0 %v4402
        %4436 = vmatpush.bf16.msra.mxu0 %v4401
        %4437 = vmatmul.bf16.gmra.mxu0 %v4409
        %v4438 = vpop.f32.mrf.mxu0
        %v4439 = vadd.f32 0.0, %v4438
        %v4440 = vpop.f32.mrf.mxu0
        %v4441 = vadd.f32 0.0, %v4440
        %4442 = vmatmul.bf16.gmra.mxu0 %v4412
        %v4443 = vpop.f32.mrf.mxu0
        %v4444 = vadd.f32 0.0, %v4443
        %v4445 = vpop.f32.mrf.mxu0
        %v4446 = vadd.f32 0.0, %v4445
        %4447 = vmatmul.bf16.gmra.mxu0 %v4415
        %v4448 = vpop.f32.mrf.mxu0
        %v4449 = vadd.f32 0.0, %v4448
        %v4450 = vpop.f32.mrf.mxu0
        %v4451 = vadd.f32 0.0, %v4450
        %4452 = vmatmul.bf16.gmra.mxu0 %v4418
        %v4453 = vpop.f32.mrf.mxu0
        %v4454 = vadd.f32 0.0, %v4453
        %v4455 = vpop.f32.mrf.mxu0
        %v4456 = vadd.f32 0.0, %v4455
        %4457 = vmatmul.bf16.gmra.mxu0 %v4421
        %v4458 = vpop.f32.mrf.mxu0
        %v4459 = vadd.f32 0.0, %v4458
        %v4460 = vpop.f32.mrf.mxu0
        %v4461 = vadd.f32 0.0, %v4460
        %4462 = vmatmul.bf16.gmra.mxu0 %v4424
        %v4463 = vpop.f32.mrf.mxu0
        %v4464 = vadd.f32 0.0, %v4463
        %v4465 = vpop.f32.mrf.mxu0
        %4466 = vdwg.mxu0
        %v4467 = vld [vmem:[#allocation9] sm:$0xf]
        %v4468 = vld [vmem:[#allocation9 + $0x4] sm:$0xf]
        %v4469 = vld [vmem:[#allocation9 + $0x8] sm:$0xf]
        %v4470 = vld [vmem:[#allocation9 + $0xc] sm:$0xf]
        %v4471 = vld [vmem:[#allocation9 + $0x10] sm:$0xf]
        %v4472 = vld [vmem:[#allocation9 + $0x14] sm:$0xf]
        %v4473 = vld [vmem:[#allocation9 + $0x18] sm:$0xf]
        %v4474 = vld [vmem:[#allocation9 + $0x1c] sm:$0xf]
        %v4475 = vld [vmem:[#allocation9 + $0x20] sm:$0xf]
        %v4476 = vld [vmem:[#allocation9 + $0x24] sm:$0xf]
        %v4477 = vld [vmem:[#allocation9 + $0x28] sm:$0xf]
        %v4478 = vld [vmem:[#allocation9 + $0x2c] sm:$0xf]
        %v4479 = vld [vmem:[#allocation9 + $0x30] sm:$0xf]
        %v4480 = vld [vmem:[#allocation9 + $0x34] sm:$0xf]
        %v4481 = vld [vmem:[#allocation9 + $0x38] sm:$0xf]
        %v4482 = vld [vmem:[#allocation9 + $0x3c] sm:$0xf]
        %v4483 = vld [vmem:[#allocation9 + $0x40] sm:$0xf]
        %v4484 = vld [vmem:[#allocation9 + $0x44] sm:$0xf]
        %v4485 = vld [vmem:[#allocation9 + $0x48] sm:$0xf]
        %v4486 = vld [vmem:[#allocation9 + $0x4c] sm:$0xf]
        %v4487 = vld [vmem:[#allocation9 + $0x50] sm:$0xf]
        %v4488 = vld [vmem:[#allocation9 + $0x54] sm:$0xf]
        %v4489 = vld [vmem:[#allocation9 + $0x58] sm:$0xf]
        %v4490 = vld [vmem:[#allocation9 + $0x5c] sm:$0xf]
        %v4491 = vld [vmem:[#allocation9 + $0x60] sm:$0xf]
        %v4492 = vld [vmem:[#allocation9 + $0x64] sm:$0xf]
        %v4493 = vld [vmem:[#allocation9 + $0x68] sm:$0xf]
        %v4494 = vld [vmem:[#allocation9 + $0x6c] sm:$0xf]
        %v4495 = vld [vmem:[#allocation9 + $0x70] sm:$0xf]
        %v4496 = vld [vmem:[#allocation9 + $0x74] sm:$0xf]
        %v4497 = vld [vmem:[#allocation9 + $0x78] sm:$0xf]
        %v4498 = vld [vmem:[#allocation9 + $0x7c] sm:$0xf]
        %v4499 = vld [vmem:[#allocation9 + $0x80] sm:$0xf]
        %v4500 = vld [vmem:[#allocation9 + $0x84] sm:$0xf]
        %v4501 = vld [vmem:[#allocation9 + $0x88] sm:$0xf]
        %v4502 = vld [vmem:[#allocation9 + $0x8c] sm:$0xf]
        %v4503 = vld [vmem:[#allocation9 + $0x90] sm:$0xf]
        %v4504 = vld [vmem:[#allocation9 + $0x94] sm:$0xf]
        %v4505 = vld [vmem:[#allocation9 + $0x98] sm:$0xf]
        %v4506 = vld [vmem:[#allocation9 + $0x9c] sm:$0xf]
        %v4507 = vld [vmem:[#allocation9 + $0xa0] sm:$0xf]
        %v4508 = vld [vmem:[#allocation9 + $0xa4] sm:$0xf]
        %v4509 = vld [vmem:[#allocation9 + $0xa8] sm:$0xf]
        %v4510 = vld [vmem:[#allocation9 + $0xac] sm:$0xf]
        %v4511 = vld [vmem:[#allocation9 + $0xb0] sm:$0xf]
        %v4512 = vld [vmem:[#allocation9 + $0xb4] sm:$0xf]
        %v4513 = vld [vmem:[#allocation9 + $0xb8] sm:$0xf]
        %v4514 = vld [vmem:[#allocation9 + $0xbc] sm:$0xf]
        %v4515 = vld [vmem:[#allocation9 + $0xc0] sm:$0xf]
        %v4516 = vld [vmem:[#allocation9 + $0xc4] sm:$0xf]
        %v4517 = vld [vmem:[#allocation9 + $0xc8] sm:$0xf]
        %v4518 = vld [vmem:[#allocation9 + $0xcc] sm:$0xf]
        %v4519 = vld [vmem:[#allocation9 + $0xd0] sm:$0xf]
        %v4520 = vld [vmem:[#allocation9 + $0xd4] sm:$0xf]
        %v4521 = vld [vmem:[#allocation9 + $0xd8] sm:$0xf]
        %v4522 = vld [vmem:[#allocation9 + $0xdc] sm:$0xf]
        %v4523 = vld [vmem:[#allocation9 + $0xe0] sm:$0xf]
        %v4524 = vld [vmem:[#allocation9 + $0xe4] sm:$0xf]
        %v4525 = vld [vmem:[#allocation9 + $0xe8] sm:$0xf]
        %v4526 = vld [vmem:[#allocation9 + $0xec] sm:$0xf]
        %v4527 = vld [vmem:[#allocation9 + $0xf0] sm:$0xf]
        %v4528 = vld [vmem:[#allocation9 + $0xf4] sm:$0xf]
        %v4529 = vld [vmem:[#allocation9 + $0xf8] sm:$0xf]
        %v4530 = vld [vmem:[#allocation9 + $0xfc] sm:$0xf]
        %v4531 = vld [vmem:[#allocation9 + $0x100] sm:$0xf]
        %v4532 = vld [vmem:[#allocation9 + $0x104] sm:$0xf]
        %v4533 = vld [vmem:[#allocation9 + $0x108] sm:$0xf]
        %v4534 = vld [vmem:[#allocation9 + $0x10c] sm:$0xf]
        %v4535 = vld [vmem:[#allocation9 + $0x110] sm:$0xf]
        %v4536 = vld [vmem:[#allocation9 + $0x114] sm:$0xf]
        %v4537 = vld [vmem:[#allocation9 + $0x118] sm:$0xf]
        %v4538 = vld [vmem:[#allocation9 + $0x11c] sm:$0xf]
        %v4555 = vrot.slane %v3683, 1
        %v4556 = vrot.slane %v3683, 2
        %v4557 = vrot.slane %v3683, 3
        %v4558 = vrot.slane %v3683, 4
        %v4559 = vrot.slane %v3683, 5
        %v4560 = vrot.slane %v3683, 6
        %v4561 = vrot.slane %v3683, 7
        %v4562 = vrot.slane %v3791, 1
        %v4563 = vrot.slane %v3791, 2
        %v4564 = vrot.slane %v3791, 3
        %v4565 = vrot.slane %v3791, 4
        %v4566 = vrot.slane %v3791, 5
        %v4567 = vrot.slane %v3791, 6
        %v4568 = vrot.slane %v3791, 7
        %v4569 = vrot.slane %v3899, 1
        %v4570 = vrot.slane %v3899, 2
        %v4571 = vrot.slane %v3899, 3
        %v4572 = vrot.slane %v3899, 4
        %v4573 = vrot.slane %v3899, 5
        %v4574 = vrot.slane %v3899, 6
        %v4575 = vrot.slane %v3899, 7
        %v4576 = vrot.slane %v4007, 1
        %v4577 = vrot.slane %v4007, 2
        %v4578 = vrot.slane %v4007, 3
        %v4579 = vrot.slane %v4007, 4
        %v4580 = vrot.slane %v4007, 5
        %v4581 = vrot.slane %v4007, 6
        %v4582 = vrot.slane %v4007, 7
        %v4583 = vrot.slane %v4115, 1
        %v4584 = vrot.slane %v4115, 2
        %v4585 = vrot.slane %v4115, 3
        %v4586 = vrot.slane %v4115, 4
        %v4587 = vrot.slane %v4115, 5
        %v4588 = vrot.slane %v4115, 6
        %v4589 = vrot.slane %v4115, 7
        %v4590 = vrot.slane %v4223, 1
        %v4591 = vrot.slane %v4223, 2
        %v4592 = vrot.slane %v4223, 3
        %v4593 = vrot.slane %v4223, 4
        %v4594 = vrot.slane %v4223, 5
        %v4595 = vrot.slane %v4223, 6
        %v4596 = vrot.slane %v4223, 7
        %v4597 = vrot.slane %v4331, 1
        %v4598 = vrot.slane %v4331, 2
        %v4599 = vrot.slane %v4331, 3
        %v4600 = vrot.slane %v4331, 4
        %v4601 = vrot.slane %v4331, 5
        %v4602 = vrot.slane %v4331, 6
        %v4603 = vrot.slane %v4331, 7
        %v4604 = vrot.slane %v4439, 1
        %v4605 = vrot.slane %v4439, 2
        %v4606 = vrot.slane %v4439, 3
        %v4607 = vrot.slane %v4439, 4
        %v4608 = vrot.slane %v4439, 5
        %v4609 = vrot.slane %v4439, 6
        %v4610 = vrot.slane %v4439, 7
        %4611 = vst [vmem:[#allocation1] ss:$9 sm:$0xff] %v3683
        %s4612 = scalar_lea.vmem [#allocation1], 1
        %4613 = vst [vmem:[%s4612] ss:$9 sm:$0xff] %v4555
        %s4614 = scalar_lea.vmem [#allocation1], 2
        %4615 = vst [vmem:[%s4614] ss:$9 sm:$0xff] %v4556
        %s4616 = scalar_lea.vmem [#allocation1], 3
        %4617 = vst [vmem:[%s4616] ss:$9 sm:$0xff] %v4557
        %s4618 = scalar_lea.vmem [#allocation1], 4
        %4619 = vst [vmem:[%s4618] ss:$9 sm:$0xff] %v4558
        %s4620 = scalar_lea.vmem [#allocation1], 5
        %4621 = vst [vmem:[%s4620] ss:$9 sm:$0xff] %v4559
        %s4622 = scalar_lea.vmem [#allocation1], 6
        %4623 = vst [vmem:[%s4622] ss:$9 sm:$0xff] %v4560
        %s4624 = scalar_lea.vmem [#allocation1], 7
        %4625 = vst [vmem:[%s4624] ss:$9 sm:$0xff] %v4561
        %v4626 = vld [vmem:[#allocation1] sm:$0xff]
        %4627 = vst [vmem:[#allocation1] ss:$9 sm:$0xff] %v3685
        %4628 = vst [vmem:[%s4612] ss:$9 sm:$0xff] %v3791
        %4629 = vst [vmem:[%s4614] ss:$9 sm:$0xff] %v4562
        %4630 = vst [vmem:[%s4616] ss:$9 sm:$0xff] %v4563
        %4631 = vst [vmem:[%s4618] ss:$9 sm:$0xff] %v4564
        %4632 = vst [vmem:[%s4620] ss:$9 sm:$0xff] %v4565
        %4633 = vst [vmem:[%s4622] ss:$9 sm:$0xff] %v4566
        %4634 = vst [vmem:[%s4624] ss:$9 sm:$0xff] %v4567
        %v4635 = vld [vmem:[#allocation1] sm:$0xff]
        %4636 = vst [vmem:[#allocation1] ss:$9 sm:$0xff] %v4568
        %4637 = vst [vmem:[%s4612] ss:$9 sm:$0xff] %v3793
        %4638 = vst [vmem:[%s4614] ss:$9 sm:$0xff] %v3899
        %4639 = vst [vmem:[%s4616] ss:$9 sm:$0xff] %v4569
        %4640 = vst [vmem:[%s4618] ss:$9 sm:$0xff] %v4570
        %4641 = vst [vmem:[%s4620] ss:$9 sm:$0xff] %v4571
        %4642 = vst [vmem:[%s4622] ss:$9 sm:$0xff] %v4572
        %4643 = vst [vmem:[%s4624] ss:$9 sm:$0xff] %v4573
        %v4644 = vld [vmem:[#allocation1] sm:$0xff]
        %4645 = vst [vmem:[#allocation1] ss:$9 sm:$0xff] %v4574
        %4646 = vst [vmem:[%s4612] ss:$9 sm:$0xff] %v4575
        %4647 = vst [vmem:[%s4614] ss:$9 sm:$0xff] %v3901
        %4648 = vst [vmem:[%s4616] ss:$9 sm:$0xff] %v4007
        %4649 = vst [vmem:[%s4618] ss:$9 sm:$0xff] %v4576
        %4650 = vst [vmem:[%s4620] ss:$9 sm:$0xff] %v4577
        %4651 = vst [vmem:[%s4622] ss:$9 sm:$0xff] %v4578
        %4652 = vst [vmem:[%s4624] ss:$9 sm:$0xff] %v4579
        %v4653 = vld [vmem:[#allocation1] sm:$0xff]
        %4654 = vst [vmem:[#allocation1] ss:$9 sm:$0xff] %v4580
        %4655 = vst [vmem:[%s4612] ss:$9 sm:$0xff] %v4581
        %4656 = vst [vmem:[%s4614] ss:$9 sm:$0xff] %v4582
        %4657 = vst [vmem:[%s4616] ss:$9 sm:$0xff] %v4009
        %4658 = vst [vmem:[%s4618] ss:$9 sm:$0xff] %v4115
        %4659 = vst [vmem:[%s4620] ss:$9 sm:$0xff] %v4583
        %4660 = vst [vmem:[%s4622] ss:$9 sm:$0xff] %v4584
        %4661 = vst [vmem:[%s4624] ss:$9 sm:$0xff] %v4585
        %v4662 = vld [vmem:[#allocation1] sm:$0xff]
        %4663 = vst [vmem:[#allocation1] ss:$9 sm:$0xff] %v4586
        %4664 = vst [vmem:[%s4612] ss:$9 sm:$0xff] %v4587
        %4665 = vst [vmem:[%s4614] ss:$9 sm:$0xff] %v4588
        %4666 = vst [vmem:[%s4616] ss:$9 sm:$0xff] %v4589
        %4667 = vst [vmem:[%s4618] ss:$9 sm:$0xff] %v4117
        %4668 = vst [vmem:[%s4620] ss:$9 sm:$0xff] %v4223
        %4669 = vst [vmem:[%s4622] ss:$9 sm:$0xff] %v4590
        %4670 = vst [vmem:[%s4624] ss:$9 sm:$0xff] %v4591
        %v4671 = vld [vmem:[#allocation1] sm:$0xff]
        %4672 = vst [vmem:[#allocation1] ss:$9 sm:$0xff] %v4592
        %4673 = vst [vmem:[%s4612] ss:$9 sm:$0xff] %v4593
        %4674 = vst [vmem:[%s4614] ss:$9 sm:$0xff] %v4594
        %4675 = vst [vmem:[%s4616] ss:$9 sm:$0xff] %v4595
        %4676 = vst [vmem:[%s4618] ss:$9 sm:$0xff] %v4596
        %4677 = vst [vmem:[%s4620] ss:$9 sm:$0xff] %v4225
        %4678 = vst [vmem:[%s4622] ss:$9 sm:$0xff] %v4331
        %4679 = vst [vmem:[%s4624] ss:$9 sm:$0xff] %v4597
        %v4680 = vld [vmem:[#allocation1] sm:$0xff]
        %4681 = vst [vmem:[#allocation1] ss:$9 sm:$0xff] %v4598
        %4682 = vst [vmem:[%s4612] ss:$9 sm:$0xff] %v4599
        %4683 = vst [vmem:[%s4614] ss:$9 sm:$0xff] %v4600
        %4684 = vst [vmem:[%s4616] ss:$9 sm:$0xff] %v4601
        %4685 = vst [vmem:[%s4618] ss:$9 sm:$0xff] %v4602
        %4686 = vst [vmem:[%s4620] ss:$9 sm:$0xff] %v4603
        %4687 = vst [vmem:[%s4622] ss:$9 sm:$0xff] %v4333
        %4688 = vst [vmem:[%s4624] ss:$9 sm:$0xff] %v4439
        %v4689 = vld [vmem:[#allocation1] sm:$0xff]
        %4690 = vst [vmem:[#allocation1] ss:$9 sm:$0xff] %v4604
        %4691 = vst [vmem:[%s4612] ss:$9 sm:$0xff] %v4605
        %4692 = vst [vmem:[%s4614] ss:$9 sm:$0xff] %v4606
        %4693 = vst [vmem:[%s4616] ss:$9 sm:$0xff] %v4607
        %4694 = vst [vmem:[%s4618] ss:$9 sm:$0xff] %v4608
        %4695 = vst [vmem:[%s4620] ss:$9 sm:$0xff] %v4609
        %4696 = vst [vmem:[%s4622] ss:$9 sm:$0xff] %v4610
        %4697 = vst [vmem:[%s4624] ss:$9 sm:$0xff] %v4441
        %v4698 = vld [vmem:[#allocation1] sm:$0xff]
        %v4708 = vpack.c.bf16 %v4635, %v4626
        %v4709 = vpack.c.bf16 %v4653, %v4644
        %v4710 = vpack.c.bf16 %v4671, %v4662
        %v4711 = vpack.c.bf16 %v4689, %v4680
        %v4712 = vpack.c.bf16 %v4698, %v4698
        %4721 = vst [vmem:[#allocation1] sm:$0xff] %v3685
        %s4722 = scalar_lea.vmem [#allocation1], 1
        %v4723 = vld [vmem:[%s4722] ss:$9 sm:$0xff]
        %s4724 = scalar_lea.vmem [#allocation1], 2
        %v4725 = vld [vmem:[%s4724] ss:$9 sm:$0xff]
        %s4726 = scalar_lea.vmem [#allocation1], 3
        %v4727 = vld [vmem:[%s4726] ss:$9 sm:$0xff]
        %s4728 = scalar_lea.vmem [#allocation1], 4
        %v4729 = vld [vmem:[%s4728] ss:$9 sm:$0xff]
        %s4730 = scalar_lea.vmem [#allocation1], 5
        %v4731 = vld [vmem:[%s4730] ss:$9 sm:$0xff]
        %s4732 = scalar_lea.vmem [#allocation1], 6
        %v4733 = vld [vmem:[%s4732] ss:$9 sm:$0xff]
        %s4734 = scalar_lea.vmem [#allocation1], 7
        %v4735 = vld [vmem:[%s4734] ss:$9 sm:$0xff]
        %4736 = vst [vmem:[#allocation1] sm:$0xff] %v3688
        %v4737 = vld [vmem:[#allocation1] ss:$9 sm:$0xff]
        %v4738 = vld [vmem:[%s4722] ss:$9 sm:$0xff]
        %4739 = vst [vmem:[#allocation1] sm:$0xff] %v3793
        %v4740 = vld [vmem:[%s4722] ss:$9 sm:$0xff]
        %v4741 = vld [vmem:[%s4724] ss:$9 sm:$0xff]
        %v4742 = vld [vmem:[%s4726] ss:$9 sm:$0xff]
        %v4743 = vld [vmem:[%s4728] ss:$9 sm:$0xff]
        %v4744 = vld [vmem:[%s4730] ss:$9 sm:$0xff]
        %v4745 = vld [vmem:[%s4732] ss:$9 sm:$0xff]
        %v4746 = vld [vmem:[%s4734] ss:$9 sm:$0xff]
        %4747 = vst [vmem:[#allocation1] sm:$0xff] %v3796
        %v4748 = vld [vmem:[#allocation1] ss:$9 sm:$0xff]
        %v4749 = vld [vmem:[%s4722] ss:$9 sm:$0xff]
        %4750 = vst [vmem:[#allocation1] sm:$0xff] %v3901
        %v4751 = vld [vmem:[%s4722] ss:$9 sm:$0xff]
        %v4752 = vld [vmem:[%s4724] ss:$9 sm:$0xff]
        %v4753 = vld [vmem:[%s4726] ss:$9 sm:$0xff]
        %v4754 = vld [vmem:[%s4728] ss:$9 sm:$0xff]
        %v4755 = vld [vmem:[%s4730] ss:$9 sm:$0xff]
        %v4756 = vld [vmem:[%s4732] ss:$9 sm:$0xff]
        %v4757 = vld [vmem:[%s4734] ss:$9 sm:$0xff]
        %4758 = vst [vmem:[#allocation1] sm:$0xff] %v3904
        %v4759 = vld [vmem:[#allocation1] ss:$9 sm:$0xff]
        %v4760 = vld [vmem:[%s4722] ss:$9 sm:$0xff]
        %4761 = vst [vmem:[#allocation1] sm:$0xff] %v4009
        %v4762 = vld [vmem:[%s4722] ss:$9 sm:$0xff]
        %v4763 = vld [vmem:[%s4724] ss:$9 sm:$0xff]
        %v4764 = vld [vmem:[%s4726] ss:$9 sm:$0xff]
        %v4765 = vld [vmem:[%s4728] ss:$9 sm:$0xff]
        %v4766 = vld [vmem:[%s4730] ss:$9 sm:$0xff]
        %v4767 = vld [vmem:[%s4732] ss:$9 sm:$0xff]
        %v4768 = vld [vmem:[%s4734] ss:$9 sm:$0xff]
        %4769 = vst [vmem:[#allocation1] sm:$0xff] %v4012
        %v4770 = vld [vmem:[#allocation1] ss:$9 sm:$0xff]
        %v4771 = vld [vmem:[%s4722] ss:$9 sm:$0xff]
        %4772 = vst [vmem:[#allocation1] sm:$0xff] %v4117
        %v4773 = vld [vmem:[%s4722] ss:$9 sm:$0xff]
        %v4774 = vld [vmem:[%s4724] ss:$9 sm:$0xff]
        %v4775 = vld [vmem:[%s4726] ss:$9 sm:$0xff]
        %v4776 = vld [vmem:[%s4728] ss:$9 sm:$0xff]
        %v4777 = vld [vmem:[%s4730] ss:$9 sm:$0xff]
        %v4778 = vld [vmem:[%s4732] ss:$9 sm:$0xff]
        %v4779 = vld [vmem:[%s4734] ss:$9 sm:$0xff]
        %4780 = vst [vmem:[#allocation1] sm:$0xff] %v4120
        %v4781 = vld [vmem:[#allocation1] ss:$9 sm:$0xff]
        %v4782 = vld [vmem:[%s4722] ss:$9 sm:$0xff]
        %4783 = vst [vmem:[#allocation1] sm:$0xff] %v4225
        %v4784 = vld [vmem:[%s4722] ss:$9 sm:$0xff]
        %v4785 = vld [vmem:[%s4724] ss:$9 sm:$0xff]
        %v4786 = vld [vmem:[%s4726] ss:$9 sm:$0xff]
        %v4787 = vld [vmem:[%s4728] ss:$9 sm:$0xff]
        %v4788 = vld [vmem:[%s4730] ss:$9 sm:$0xff]
        %v4789 = vld [vmem:[%s4732] ss:$9 sm:$0xff]
        %v4790 = vld [vmem:[%s4734] ss:$9 sm:$0xff]
        %4791 = vst [vmem:[#allocation1] sm:$0xff] %v4228
        %v4792 = vld [vmem:[#allocation1] ss:$9 sm:$0xff]
        %v4793 = vld [vmem:[%s4722] ss:$9 sm:$0xff]
        %4794 = vst [vmem:[#allocation1] sm:$0xff] %v4333
        %v4795 = vld [vmem:[%s4722] ss:$9 sm:$0xff]
        %v4796 = vld [vmem:[%s4724] ss:$9 sm:$0xff]
        %v4797 = vld [vmem:[%s4726] ss:$9 sm:$0xff]
        %v4798 = vld [vmem:[%s4728] ss:$9 sm:$0xff]
        %v4799 = vld [vmem:[%s4730] ss:$9 sm:$0xff]
        %v4800 = vld [vmem:[%s4732] ss:$9 sm:$0xff]
        %v4801 = vld [vmem:[%s4734] ss:$9 sm:$0xff]
        %4802 = vst [vmem:[#allocation1] sm:$0xff] %v4336
        %v4803 = vld [vmem:[#allocation1] ss:$9 sm:$0xff]
        %v4804 = vld [vmem:[%s4722] ss:$9 sm:$0xff]
        %4805 = vst [vmem:[#allocation1] sm:$0xff] %v4441
        %v4806 = vld [vmem:[%s4722] ss:$9 sm:$0xff]
        %v4807 = vld [vmem:[%s4724] ss:$9 sm:$0xff]
        %v4808 = vld [vmem:[%s4726] ss:$9 sm:$0xff]
        %v4809 = vld [vmem:[%s4728] ss:$9 sm:$0xff]
        %v4810 = vld [vmem:[%s4730] ss:$9 sm:$0xff]
        %v4811 = vld [vmem:[%s4732] ss:$9 sm:$0xff]
        %v4812 = vld [vmem:[%s4734] ss:$9 sm:$0xff]
        %4813 = vst [vmem:[#allocation1] sm:$0xff] %v4444
        %v4814 = vld [vmem:[#allocation1] ss:$9 sm:$0xff]
        %v4815 = vld [vmem:[%s4722] ss:$9 sm:$0xff]
        %4816 = vst [vmem:[#allocation1] ss:$9 sm:$0xff] %v4723
        %s4817 = scalar_lea.vmem [#allocation1], 1
        %4818 = vst [vmem:[%s4817] ss:$9 sm:$0xff] %v4725
        %s4819 = scalar_lea.vmem [#allocation1], 2
        %4820 = vst [vmem:[%s4819] ss:$9 sm:$0xff] %v4727
        %s4821 = scalar_lea.vmem [#allocation1], 3
        %4822 = vst [vmem:[%s4821] ss:$9 sm:$0xff] %v4729
        %s4823 = scalar_lea.vmem [#allocation1], 4
        %4824 = vst [vmem:[%s4823] ss:$9 sm:$0xff] %v4731
        %s4825 = scalar_lea.vmem [#allocation1], 5
        %4826 = vst [vmem:[%s4825] ss:$9 sm:$0xff] %v4733
        %s4827 = scalar_lea.vmem [#allocation1], 6
        %4828 = vst [vmem:[%s4827] ss:$9 sm:$0xff] %v4735
        %s4829 = scalar_lea.vmem [#allocation1], 7
        %4830 = vst [vmem:[%s4829] ss:$9 sm:$0xff] %v4737
        %v4831 = vld [vmem:[#allocation1] sm:$0xff]
        %4832 = vst [vmem:[#allocation1] ss:$9 sm:$0xff] %v4738
        %4833 = vst [vmem:[%s4817] ss:$9 sm:$0xff] %v4740
        %4834 = vst [vmem:[%s4819] ss:$9 sm:$0xff] %v4741
        %4835 = vst [vmem:[%s4821] ss:$9 sm:$0xff] %v4742
        %4836 = vst [vmem:[%s4823] ss:$9 sm:$0xff] %v4743
        %4837 = vst [vmem:[%s4825] ss:$9 sm:$0xff] %v4744
        %4838 = vst [vmem:[%s4827] ss:$9 sm:$0xff] %v4745
        %4839 = vst [vmem:[%s4829] ss:$9 sm:$0xff] %v4746
        %v4840 = vld [vmem:[#allocation1] sm:$0xff]
        %4841 = vst [vmem:[#allocation1] ss:$9 sm:$0xff] %v4748
        %4842 = vst [vmem:[%s4817] ss:$9 sm:$0xff] %v4749
        %4843 = vst [vmem:[%s4819] ss:$9 sm:$0xff] %v4751
        %4844 = vst [vmem:[%s4821] ss:$9 sm:$0xff] %v4752
        %4845 = vst [vmem:[%s4823] ss:$9 sm:$0xff] %v4753
        %4846 = vst [vmem:[%s4825] ss:$9 sm:$0xff] %v4754
        %4847 = vst [vmem:[%s4827] ss:$9 sm:$0xff] %v4755
        %4848 = vst [vmem:[%s4829] ss:$9 sm:$0xff] %v4756
        %v4849 = vld [vmem:[#allocation1] sm:$0xff]
        %4850 = vst [vmem:[#allocation1] ss:$9 sm:$0xff] %v4757
        %4851 = vst [vmem:[%s4817] ss:$9 sm:$0xff] %v4759
        %4852 = vst [vmem:[%s4819] ss:$9 sm:$0xff] %v4760
        %4853 = vst [vmem:[%s4821] ss:$9 sm:$0xff] %v4762
        %4854 = vst [vmem:[%s4823] ss:$9 sm:$0xff] %v4763
        %4855 = vst [vmem:[%s4825] ss:$9 sm:$0xff] %v4764
        %4856 = vst [vmem:[%s4827] ss:$9 sm:$0xff] %v4765
        %4857 = vst [vmem:[%s4829] ss:$9 sm:$0xff] %v4766
        %v4858 = vld [vmem:[#allocation1] sm:$0xff]
        %4859 = vst [vmem:[#allocation1] ss:$9 sm:$0xff] %v4767
        %4860 = vst [vmem:[%s4817] ss:$9 sm:$0xff] %v4768
        %4861 = vst [vmem:[%s4819] ss:$9 sm:$0xff] %v4770
        %4862 = vst [vmem:[%s4821] ss:$9 sm:$0xff] %v4771
        %4863 = vst [vmem:[%s4823] ss:$9 sm:$0xff] %v4773
        %4864 = vst [vmem:[%s4825] ss:$9 sm:$0xff] %v4774
        %4865 = vst [vmem:[%s4827] ss:$9 sm:$0xff] %v4775
        %4866 = vst [vmem:[%s4829] ss:$9 sm:$0xff] %v4776
        %v4867 = vld [vmem:[#allocation1] sm:$0xff]
        %4868 = vst [vmem:[#allocation1] ss:$9 sm:$0xff] %v4777
        %4869 = vst [vmem:[%s4817] ss:$9 sm:$0xff] %v4778
        %4870 = vst [vmem:[%s4819] ss:$9 sm:$0xff] %v4779
        %4871 = vst [vmem:[%s4821] ss:$9 sm:$0xff] %v4781
        %4872 = vst [vmem:[%s4823] ss:$9 sm:$0xff] %v4782
        %4873 = vst [vmem:[%s4825] ss:$9 sm:$0xff] %v4784
        %4874 = vst [vmem:[%s4827] ss:$9 sm:$0xff] %v4785
        %4875 = vst [vmem:[%s4829] ss:$9 sm:$0xff] %v4786
        %v4876 = vld [vmem:[#allocation1] sm:$0xff]
        %4877 = vst [vmem:[#allocation1] ss:$9 sm:$0xff] %v4787
        %4878 = vst [vmem:[%s4817] ss:$9 sm:$0xff] %v4788
        %4879 = vst [vmem:[%s4819] ss:$9 sm:$0xff] %v4789
        %4880 = vst [vmem:[%s4821] ss:$9 sm:$0xff] %v4790
        %4881 = vst [vmem:[%s4823] ss:$9 sm:$0xff] %v4792
        %4882 = vst [vmem:[%s4825] ss:$9 sm:$0xff] %v4793
        %4883 = vst [vmem:[%s4827] ss:$9 sm:$0xff] %v4795
        %4884 = vst [vmem:[%s4829] ss:$9 sm:$0xff] %v4796
        %v4885 = vld [vmem:[#allocation1] sm:$0xff]
        %4886 = vst [vmem:[#allocation1] ss:$9 sm:$0xff] %v4797
        %4887 = vst [vmem:[%s4817] ss:$9 sm:$0xff] %v4798
        %4888 = vst [vmem:[%s4819] ss:$9 sm:$0xff] %v4799
        %4889 = vst [vmem:[%s4821] ss:$9 sm:$0xff] %v4800
        %4890 = vst [vmem:[%s4823] ss:$9 sm:$0xff] %v4801
        %4891 = vst [vmem:[%s4825] ss:$9 sm:$0xff] %v4803
        %4892 = vst [vmem:[%s4827] ss:$9 sm:$0xff] %v4804
        %4893 = vst [vmem:[%s4829] ss:$9 sm:$0xff] %v4806
        %v4894 = vld [vmem:[#allocation1] sm:$0xff]
        %4895 = vst [vmem:[#allocation1] ss:$9 sm:$0xff] %v4807
        %4896 = vst [vmem:[%s4817] ss:$9 sm:$0xff] %v4808
        %4897 = vst [vmem:[%s4819] ss:$9 sm:$0xff] %v4809
        %4898 = vst [vmem:[%s4821] ss:$9 sm:$0xff] %v4810
        %4899 = vst [vmem:[%s4823] ss:$9 sm:$0xff] %v4811
        %4900 = vst [vmem:[%s4825] ss:$9 sm:$0xff] %v4812
        %4901 = vst [vmem:[%s4827] ss:$9 sm:$0xff] %v4814
        %4902 = vst [vmem:[%s4829] ss:$9 sm:$0xff] %v4815
        %v4903 = vld [vmem:[#allocation1] sm:$0xff]
        %v4913 = vpack.c.bf16 %v4840, %v4831
        %v4914 = vpack.c.bf16 %v4858, %v4849
        %v4915 = vpack.c.bf16 %v4876, %v4867
        %v4916 = vpack.c.bf16 %v4894, %v4885
        %v4917 = vpack.c.bf16 %v4903, %v4903
        %v4926 = vunpack.c.l.b16 %v4475
        %v4927 = vunpack.c.l.b16 %v4476
        %v4928 = vunpack.c.l.b16 %v4477
        %v4929 = vunpack.c.l.b16 %v4478
        %v4930 = vunpack.c.l.b16 %v4479
        %v4931 = vunpack.c.l.b16 %v4480
        %v4932 = vunpack.c.l.b16 %v4481
        %v4933 = vunpack.c.l.b16 %v4482
        %v4934 = vpack.c.b16 %v4927, %v4926
        %v4935 = vpack.c.b16 %v4929, %v4928
        %v4936 = vpack.c.b16 %v4931, %v4930
        %v4937 = vpack.c.b16 %v4933, %v4932
        %vm4942 = vcmask 523264
        %v4944 = vsel %vm4942, %v4913, 0
        %v4947 = vsel %vm4942, %v4914, 0
        %v4950 = vsel %vm4942, %v4915, 0
        %v4953 = vsel %vm4942, %v4916, 0
        %v4956 = vsel %vm4942, %v4917, 0
        %4958 = vmatpush.bf16.msra.mxu0 0
        %4959 = vmatpush.bf16.msra.mxu0 0
        %4960 = vmatpush.bf16.msra.mxu0 0
        %4961 = vmatpush.bf16.msra.mxu0 0
        %4962 = vmatpush.bf16.msra.mxu0 %v4937
        %4963 = vmatpush.bf16.msra.mxu0 %v4936
        %4964 = vmatpush.bf16.msra.mxu0 %v4935
        %4965 = vmatpush.bf16.msra.mxu0 %v4934
        %4966 = vmatmul.bf16.gmra.mxu0 %v4944
        %v4967 = vpop.f32.mrf.mxu0
        %v4968 = vadd.f32 0.0, %v4967
        %v4969 = vpop.f32.mrf.mxu0
        %v4970 = vadd.f32 0.0, %v4969
        %4971 = vmatmul.bf16.gmra.mxu0 %v4947
        %v4972 = vpop.f32.mrf.mxu0
        %v4973 = vadd.f32 0.0, %v4972
        %v4974 = vpop.f32.mrf.mxu0
        %v4975 = vadd.f32 0.0, %v4974
        %4976 = vmatmul.bf16.gmra.mxu0 %v4950
        %v4977 = vpop.f32.mrf.mxu0
        %v4978 = vadd.f32 0.0, %v4977
        %v4979 = vpop.f32.mrf.mxu0
        %v4980 = vadd.f32 0.0, %v4979
        %4981 = vmatmul.bf16.gmra.mxu0 %v4953
        %v4982 = vpop.f32.mrf.mxu0
        %v4983 = vadd.f32 0.0, %v4982
        %v4984 = vpop.f32.mrf.mxu0
        %v4985 = vadd.f32 0.0, %v4984
        %4986 = vmatmul.bf16.gmra.mxu0 %v4956
        %v4987 = vpop.f32.mrf.mxu0
        %v4988 = vadd.f32 0.0, %v4987
        %v4989 = vpop.f32.mrf.mxu0
        %4990 = vdwg.mxu0
        %v4999 = vunpack.c.l.b16 %v4467
        %v5000 = vunpack.c.l.b16 %v4468
        %v5001 = vunpack.c.l.b16 %v4469
        %v5002 = vunpack.c.l.b16 %v4470
        %v5003 = vunpack.c.l.b16 %v4471
        %v5004 = vunpack.c.l.b16 %v4472
        %v5005 = vunpack.c.l.b16 %v4473
        %v5006 = vunpack.c.l.b16 %v4474
        %v5007 = vpack.c.b16 %v5000, %v4999
        %v5008 = vpack.c.b16 %v5002, %v5001
        %v5009 = vpack.c.b16 %v5004, %v5003
        %v5010 = vpack.c.b16 %v5006, %v5005
        %v5016 = vsel %vm4942, %v4708, 0
        %v5019 = vsel %vm4942, %v4709, 0
        %v5022 = vsel %vm4942, %v4710, 0
        %v5025 = vsel %vm4942, %v4711, 0
        %v5028 = vsel %vm4942, %v4712, 0
        %5030 = vmatpush.bf16.msra.mxu0 0
        %5031 = vmatpush.bf16.msra.mxu0 0
        %5032 = vmatpush.bf16.msra.mxu0 0
        %5033 = vmatpush.bf16.msra.mxu0 0
        %5034 = vmatpush.bf16.msra.mxu0 %v5010
        %5035 = vmatpush.bf16.msra.mxu0 %v5009
        %5036 = vmatpush.bf16.msra.mxu0 %v5008
        %5037 = vmatpush.bf16.msra.mxu0 %v5007
        %5038 = vmatmul.bf16.gmra.mxu0 %v5016
        %v5039 = vpop.f32.mrf.mxu0
        %v5040 = vadd.f32 %v4968, %v5039
        %v5041 = vpop.f32.mrf.mxu0
        %v5042 = vadd.f32 %v4970, %v5041
        %5043 = vmatmul.bf16.gmra.mxu0 %v5019
        %v5044 = vpop.f32.mrf.mxu0
        %v5045 = vadd.f32 %v4973, %v5044
        %v5046 = vpop.f32.mrf.mxu0
        %v5047 = vadd.f32 %v4975, %v5046
        %5048 = vmatmul.bf16.gmra.mxu0 %v5022
        %v5049 = vpop.f32.mrf.mxu0
        %v5050 = vadd.f32 %v4978, %v5049
        %v5051 = vpop.f32.mrf.mxu0
        %v5052 = vadd.f32 %v4980, %v5051
        %5053 = vmatmul.bf16.gmra.mxu0 %v5025
        %v5054 = vpop.f32.mrf.mxu0
        %v5055 = vadd.f32 %v4983, %v5054
        %v5056 = vpop.f32.mrf.mxu0
        %v5057 = vadd.f32 %v4985, %v5056
        %5058 = vmatmul.bf16.gmra.mxu0 %v5028
        %v5059 = vpop.f32.mrf.mxu0
        %v5060 = vadd.f32 %v4988, %v5059
        %v5061 = vpop.f32.mrf.mxu0
        %5062 = vdwg.mxu0
        %5071 = vst [vmem:[#allocation1] sm:$0xff] %v3688
        %s5072 = scalar_lea.vmem [#allocation1], 2
        %v5073 = vld [vmem:[%s5072] ss:$9 sm:$0xff]
        %s5074 = scalar_lea.vmem [#allocation1], 3
        %v5075 = vld [vmem:[%s5074] ss:$9 sm:$0xff]
        %s5076 = scalar_lea.vmem [#allocation1], 4
        %v5077 = vld [vmem:[%s5076] ss:$9 sm:$0xff]
        %s5078 = scalar_lea.vmem [#allocation1], 5
        %v5079 = vld [vmem:[%s5078] ss:$9 sm:$0xff]
        %s5080 = scalar_lea.vmem [#allocation1], 6
        %v5081 = vld [vmem:[%s5080] ss:$9 sm:$0xff]
        %s5082 = scalar_lea.vmem [#allocation1], 7
        %v5083 = vld [vmem:[%s5082] ss:$9 sm:$0xff]
        %5084 = vst [vmem:[#allocation1] sm:$0xff] %v3690
        %v5085 = vld [vmem:[#allocation1] ss:$9 sm:$0xff]
        %s5086 = scalar_lea.vmem [#allocation1], 1
        %v5087 = vld [vmem:[%s5086] ss:$9 sm:$0xff]
        %v5088 = vld [vmem:[%s5072] ss:$9 sm:$0xff]
        %5089 = vst [vmem:[#allocation1] sm:$0xff] %v3796
        %v5090 = vld [vmem:[%s5072] ss:$9 sm:$0xff]
        %v5091 = vld [vmem:[%s5074] ss:$9 sm:$0xff]
        %v5092 = vld [vmem:[%s5076] ss:$9 sm:$0xff]
        %v5093 = vld [vmem:[%s5078] ss:$9 sm:$0xff]
        %v5094 = vld [vmem:[%s5080] ss:$9 sm:$0xff]
        %v5095 = vld [vmem:[%s5082] ss:$9 sm:$0xff]
        %5096 = vst [vmem:[#allocation1] sm:$0xff] %v3798
        %v5097 = vld [vmem:[#allocation1] ss:$9 sm:$0xff]
        %v5098 = vld [vmem:[%s5086] ss:$9 sm:$0xff]
        %v5099 = vld [vmem:[%s5072] ss:$9 sm:$0xff]
        %5100 = vst [vmem:[#allocation1] sm:$0xff] %v3904
        %v5101 = vld [vmem:[%s5072] ss:$9 sm:$0xff]
        %v5102 = vld [vmem:[%s5074] ss:$9 sm:$0xff]
        %v5103 = vld [vmem:[%s5076] ss:$9 sm:$0xff]
        %v5104 = vld [vmem:[%s5078] ss:$9 sm:$0xff]
        %v5105 = vld [vmem:[%s5080] ss:$9 sm:$0xff]
        %v5106 = vld [vmem:[%s5082] ss:$9 sm:$0xff]
        %5107 = vst [vmem:[#allocation1] sm:$0xff] %v3906
        %v5108 = vld [vmem:[#allocation1] ss:$9 sm:$0xff]
        %v5109 = vld [vmem:[%s5086] ss:$9 sm:$0xff]
        %v5110 = vld [vmem:[%s5072] ss:$9 sm:$0xff]
        %5111 = vst [vmem:[#allocation1] sm:$0xff] %v4012
        %v5112 = vld [vmem:[%s5072] ss:$9 sm:$0xff]
        %v5113 = vld [vmem:[%s5074] ss:$9 sm:$0xff]
        %v5114 = vld [vmem:[%s5076] ss:$9 sm:$0xff]
        %v5115 = vld [vmem:[%s5078] ss:$9 sm:$0xff]
        %v5116 = vld [vmem:[%s5080] ss:$9 sm:$0xff]
        %v5117 = vld [vmem:[%s5082] ss:$9 sm:$0xff]
        %5118 = vst [vmem:[#allocation1] sm:$0xff] %v4014
        %v5119 = vld [vmem:[#allocation1] ss:$9 sm:$0xff]
        %v5120 = vld [vmem:[%s5086] ss:$9 sm:$0xff]
        %v5121 = vld [vmem:[%s5072] ss:$9 sm:$0xff]
        %5122 = vst [vmem:[#allocation1] sm:$0xff] %v4120
        %v5123 = vld [vmem:[%s5072] ss:$9 sm:$0xff]
        %v5124 = vld [vmem:[%s5074] ss:$9 sm:$0xff]
        %v5125 = vld [vmem:[%s5076] ss:$9 sm:$0xff]
        %v5126 = vld [vmem:[%s5078] ss:$9 sm:$0xff]
        %v5127 = vld [vmem:[%s5080] ss:$9 sm:$0xff]
        %v5128 = vld [vmem:[%s5082] ss:$9 sm:$0xff]
        %5129 = vst [vmem:[#allocation1] sm:$0xff] %v4122
        %v5130 = vld [vmem:[#allocation1] ss:$9 sm:$0xff]
        %v5131 = vld [vmem:[%s5086] ss:$9 sm:$0xff]
        %v5132 = vld [vmem:[%s5072] ss:$9 sm:$0xff]
        %5133 = vst [vmem:[#allocation1] sm:$0xff] %v4228
        %v5134 = vld [vmem:[%s5072] ss:$9 sm:$0xff]
        %v5135 = vld [vmem:[%s5074] ss:$9 sm:$0xff]
        %v5136 = vld [vmem:[%s5076] ss:$9 sm:$0xff]
        %v5137 = vld [vmem:[%s5078] ss:$9 sm:$0xff]
        %v5138 = vld [vmem:[%s5080] ss:$9 sm:$0xff]
        %v5139 = vld [vmem:[%s5082] ss:$9 sm:$0xff]
        %5140 = vst [vmem:[#allocation1] sm:$0xff] %v4230
        %v5141 = vld [vmem:[#allocation1] ss:$9 sm:$0xff]
        %v5142 = vld [vmem:[%s5086] ss:$9 sm:$0xff]
        %v5143 = vld [vmem:[%s5072] ss:$9 sm:$0xff]
        %5144 = vst [vmem:[#allocation1] sm:$0xff] %v4336
        %v5145 = vld [vmem:[%s5072] ss:$9 sm:$0xff]
        %v5146 = vld [vmem:[%s5074] ss:$9 sm:$0xff]
        %v5147 = vld [vmem:[%s5076] ss:$9 sm:$0xff]
        %v5148 = vld [vmem:[%s5078] ss:$9 sm:$0xff]
        %v5149 = vld [vmem:[%s5080] ss:$9 sm:$0xff]
        %v5150 = vld [vmem:[%s5082] ss:$9 sm:$0xff]
        %5151 = vst [vmem:[#allocation1] sm:$0xff] %v4338
        %v5152 = vld [vmem:[#allocation1] ss:$9 sm:$0xff]
        %v5153 = vld [vmem:[%s5086] ss:$9 sm:$0xff]
        %v5154 = vld [vmem:[%s5072] ss:$9 sm:$0xff]
        %5155 = vst [vmem:[#allocation1] sm:$0xff] %v4444
        %v5156 = vld [vmem:[%s5072] ss:$9 sm:$0xff]
        %v5157 = vld [vmem:[%s5074] ss:$9 sm:$0xff]
        %v5158 = vld [vmem:[%s5076] ss:$9 sm:$0xff]
        %v5159 = vld [vmem:[%s5078] ss:$9 sm:$0xff]
        %v5160 = vld [vmem:[%s5080] ss:$9 sm:$0xff]
        %v5161 = vld [vmem:[%s5082] ss:$9 sm:$0xff]
        %5162 = vst [vmem:[#allocation1] sm:$0xff] %v4446
        %v5163 = vld [vmem:[#allocation1] ss:$9 sm:$0xff]
        %v5164 = vld [vmem:[%s5086] ss:$9 sm:$0xff]
        %v5165 = vld [vmem:[%s5072] ss:$9 sm:$0xff]
        %5166 = vst [vmem:[#allocation1] ss:$9 sm:$0xff] %v5073
        %s5167 = scalar_lea.vmem [#allocation1], 1
        %5168 = vst [vmem:[%s5167] ss:$9 sm:$0xff] %v5075
        %s5169 = scalar_lea.vmem [#allocation1], 2
        %5170 = vst [vmem:[%s5169] ss:$9 sm:$0xff] %v5077
        %s5171 = scalar_lea.vmem [#allocation1], 3
        %5172 = vst [vmem:[%s5171] ss:$9 sm:$0xff] %v5079
        %s5173 = scalar_lea.vmem [#allocation1], 4
        %5174 = vst [vmem:[%s5173] ss:$9 sm:$0xff] %v5081
        %s5175 = scalar_lea.vmem [#allocation1], 5
        %5176 = vst [vmem:[%s5175] ss:$9 sm:$0xff] %v5083
        %s5177 = scalar_lea.vmem [#allocation1], 6
        %5178 = vst [vmem:[%s5177] ss:$9 sm:$0xff] %v5085
        %s5179 = scalar_lea.vmem [#allocation1], 7
        %5180 = vst [vmem:[%s5179] ss:$9 sm:$0xff] %v5087
        %v5181 = vld [vmem:[#allocation1] sm:$0xff]
        %5182 = vst [vmem:[#allocation1] ss:$9 sm:$0xff] %v5088
        %5183 = vst [vmem:[%s5167] ss:$9 sm:$0xff] %v5090
        %5184 = vst [vmem:[%s5169] ss:$9 sm:$0xff] %v5091
        %5185 = vst [vmem:[%s5171] ss:$9 sm:$0xff] %v5092
        %5186 = vst [vmem:[%s5173] ss:$9 sm:$0xff] %v5093
        %5187 = vst [vmem:[%s5175] ss:$9 sm:$0xff] %v5094
        %5188 = vst [vmem:[%s5177] ss:$9 sm:$0xff] %v5095
        %5189 = vst [vmem:[%s5179] ss:$9 sm:$0xff] %v5097
        %v5190 = vld [vmem:[#allocation1] sm:$0xff]
        %5191 = vst [vmem:[#allocation1] ss:$9 sm:$0xff] %v5098
        %5192 = vst [vmem:[%s5167] ss:$9 sm:$0xff] %v5099
        %5193 = vst [vmem:[%s5169] ss:$9 sm:$0xff] %v5101
        %5194 = vst [vmem:[%s5171] ss:$9 sm:$0xff] %v5102
        %5195 = vst [vmem:[%s5173] ss:$9 sm:$0xff] %v5103
        %5196 = vst [vmem:[%s5175] ss:$9 sm:$0xff] %v5104
        %5197 = vst [vmem:[%s5177] ss:$9 sm:$0xff] %v5105
        %5198 = vst [vmem:[%s5179] ss:$9 sm:$0xff] %v5106
        %v5199 = vld [vmem:[#allocation1] sm:$0xff]
        %5200 = vst [vmem:[#allocation1] ss:$9 sm:$0xff] %v5108
        %5201 = vst [vmem:[%s5167] ss:$9 sm:$0xff] %v5109
        %5202 = vst [vmem:[%s5169] ss:$9 sm:$0xff] %v5110
        %5203 = vst [vmem:[%s5171] ss:$9 sm:$0xff] %v5112
        %5204 = vst [vmem:[%s5173] ss:$9 sm:$0xff] %v5113
        %5205 = vst [vmem:[%s5175] ss:$9 sm:$0xff] %v5114
        %5206 = vst [vmem:[%s5177] ss:$9 sm:$0xff] %v5115
        %5207 = vst [vmem:[%s5179] ss:$9 sm:$0xff] %v5116
        %v5208 = vld [vmem:[#allocation1] sm:$0xff]
        %5209 = vst [vmem:[#allocation1] ss:$9 sm:$0xff] %v5117
        %5210 = vst [vmem:[%s5167] ss:$9 sm:$0xff] %v5119
        %5211 = vst [vmem:[%s5169] ss:$9 sm:$0xff] %v5120
        %5212 = vst [vmem:[%s5171] ss:$9 sm:$0xff] %v5121
        %5213 = vst [vmem:[%s5173] ss:$9 sm:$0xff] %v5123
        %5214 = vst [vmem:[%s5175] ss:$9 sm:$0xff] %v5124
        %5215 = vst [vmem:[%s5177] ss:$9 sm:$0xff] %v5125
        %5216 = vst [vmem:[%s5179] ss:$9 sm:$0xff] %v5126
        %v5217 = vld [vmem:[#allocation1] sm:$0xff]
        %5218 = vst [vmem:[#allocation1] ss:$9 sm:$0xff] %v5127
        %5219 = vst [vmem:[%s5167] ss:$9 sm:$0xff] %v5128
        %5220 = vst [vmem:[%s5169] ss:$9 sm:$0xff] %v5130
        %5221 = vst [vmem:[%s5171] ss:$9 sm:$0xff] %v5131
        %5222 = vst [vmem:[%s5173] ss:$9 sm:$0xff] %v5132
        %5223 = vst [vmem:[%s5175] ss:$9 sm:$0xff] %v5134
        %5224 = vst [vmem:[%s5177] ss:$9 sm:$0xff] %v5135
        %5225 = vst [vmem:[%s5179] ss:$9 sm:$0xff] %v5136
        %v5226 = vld [vmem:[#allocation1] sm:$0xff]
        %5227 = vst [vmem:[#allocation1] ss:$9 sm:$0xff] %v5137
        %5228 = vst [vmem:[%s5167] ss:$9 sm:$0xff] %v5138
        %5229 = vst [vmem:[%s5169] ss:$9 sm:$0xff] %v5139
        %5230 = vst [vmem:[%s5171] ss:$9 sm:$0xff] %v5141
        %5231 = vst [vmem:[%s5173] ss:$9 sm:$0xff] %v5142
        %5232 = vst [vmem:[%s5175] ss:$9 sm:$0xff] %v5143
        %5233 = vst [vmem:[%s5177] ss:$9 sm:$0xff] %v5145
        %5234 = vst [vmem:[%s5179] ss:$9 sm:$0xff] %v5146
        %v5235 = vld [vmem:[#allocation1] sm:$0xff]
        %5236 = vst [vmem:[#allocation1] ss:$9 sm:$0xff] %v5147
        %5237 = vst [vmem:[%s5167] ss:$9 sm:$0xff] %v5148
        %5238 = vst [vmem:[%s5169] ss:$9 sm:$0xff] %v5149
        %5239 = vst [vmem:[%s5171] ss:$9 sm:$0xff] %v5150
        %5240 = vst [vmem:[%s5173] ss:$9 sm:$0xff] %v5152
        %5241 = vst [vmem:[%s5175] ss:$9 sm:$0xff] %v5153
        %5242 = vst [vmem:[%s5177] ss:$9 sm:$0xff] %v5154
        %5243 = vst [vmem:[%s5179] ss:$9 sm:$0xff] %v5156
        %v5244 = vld [vmem:[#allocation1] sm:$0xff]
        %5245 = vst [vmem:[#allocation1] ss:$9 sm:$0xff] %v5157
        %5246 = vst [vmem:[%s5167] ss:$9 sm:$0xff] %v5158
        %5247 = vst [vmem:[%s5169] ss:$9 sm:$0xff] %v5159
        %5248 = vst [vmem:[%s5171] ss:$9 sm:$0xff] %v5160
        %5249 = vst [vmem:[%s5173] ss:$9 sm:$0xff] %v5161
        %5250 = vst [vmem:[%s5175] ss:$9 sm:$0xff] %v5163
        %5251 = vst [vmem:[%s5177] ss:$9 sm:$0xff] %v5164
        %5252 = vst [vmem:[%s5179] ss:$9 sm:$0xff] %v5165
        %v5253 = vld [vmem:[#allocation1] sm:$0xff]
        %v5263 = vpack.c.bf16 %v5190, %v5181
        %v5264 = vpack.c.bf16 %v5208, %v5199
        %v5265 = vpack.c.bf16 %v5226, %v5217
        %v5266 = vpack.c.bf16 %v5244, %v5235
        %v5267 = vpack.c.bf16 %v5253, %v5253
        %v5276 = vunpack.c.l.b16 %v4483
        %v5277 = vunpack.c.l.b16 %v4484
        %v5278 = vunpack.c.l.b16 %v4485
        %v5279 = vunpack.c.l.b16 %v4486
        %v5280 = vunpack.c.l.b16 %v4487
        %v5281 = vunpack.c.l.b16 %v4488
        %v5282 = vunpack.c.l.b16 %v4489
        %v5283 = vunpack.c.l.b16 %v4490
        %v5284 = vpack.c.b16 %v5277, %v5276
        %v5285 = vpack.c.b16 %v5279, %v5278
        %v5286 = vpack.c.b16 %v5281, %v5280
        %v5287 = vpack.c.b16 %v5283, %v5282
        %v5293 = vsel %vm4942, %v5263, 0
        %v5296 = vsel %vm4942, %v5264, 0
        %v5299 = vsel %vm4942, %v5265, 0
        %v5302 = vsel %vm4942, %v5266, 0
        %v5305 = vsel %vm4942, %v5267, 0
        %5307 = vmatpush.bf16.msra.mxu0 0
        %5308 = vmatpush.bf16.msra.mxu0 0
        %5309 = vmatpush.bf16.msra.mxu0 0
        %5310 = vmatpush.bf16.msra.mxu0 0
        %5311 = vmatpush.bf16.msra.mxu0 %v5287
        %5312 = vmatpush.bf16.msra.mxu0 %v5286
        %5313 = vmatpush.bf16.msra.mxu0 %v5285
        %5314 = vmatpush.bf16.msra.mxu0 %v5284
        %5315 = vmatmul.bf16.gmra.mxu0 %v5293
        %v5316 = vpop.f32.mrf.mxu0
        %v5317 = vadd.f32 0.0, %v5316
        %v5318 = vpop.f32.mrf.mxu0
        %v5319 = vadd.f32 0.0, %v5318
        %5320 = vmatmul.bf16.gmra.mxu0 %v5296
        %v5321 = vpop.f32.mrf.mxu0
        %v5322 = vadd.f32 0.0, %v5321
        %v5323 = vpop.f32.mrf.mxu0
        %v5324 = vadd.f32 0.0, %v5323
        %5325 = vmatmul.bf16.gmra.mxu0 %v5299
        %v5326 = vpop.f32.mrf.mxu0
        %v5327 = vadd.f32 0.0, %v5326
        %v5328 = vpop.f32.mrf.mxu0
        %v5329 = vadd.f32 0.0, %v5328
        %5330 = vmatmul.bf16.gmra.mxu0 %v5302
        %v5331 = vpop.f32.mrf.mxu0
        %v5332 = vadd.f32 0.0, %v5331
        %v5333 = vpop.f32.mrf.mxu0
        %v5334 = vadd.f32 0.0, %v5333
        %5335 = vmatmul.bf16.gmra.mxu0 %v5305
        %v5336 = vpop.f32.mrf.mxu0
        %v5337 = vadd.f32 0.0, %v5336
        %v5338 = vpop.f32.mrf.mxu0
        %5339 = vdwg.mxu0
        %v5340 = vadd.f32 %v5040, %v5317
        %v5341 = vadd.f32 %v5042, %v5319
        %v5342 = vadd.f32 %v5045, %v5322
        %v5343 = vadd.f32 %v5047, %v5324
        %v5344 = vadd.f32 %v5050, %v5327
        %v5345 = vadd.f32 %v5052, %v5329
        %v5346 = vadd.f32 %v5055, %v5332
        %v5347 = vadd.f32 %v5057, %v5334
        %v5348 = vadd.f32 %v5060, %v5337
        %5357 = vst [vmem:[#allocation1] sm:$0xff] %v3690
        %s5358 = scalar_lea.vmem [#allocation1], 3
        %v5359 = vld [vmem:[%s5358] ss:$9 sm:$0xff]
        %s5360 = scalar_lea.vmem [#allocation1], 4
        %v5361 = vld [vmem:[%s5360] ss:$9 sm:$0xff]
        %s5362 = scalar_lea.vmem [#allocation1], 5
        %v5363 = vld [vmem:[%s5362] ss:$9 sm:$0xff]
        %s5364 = scalar_lea.vmem [#allocation1], 6
        %v5365 = vld [vmem:[%s5364] ss:$9 sm:$0xff]
        %s5366 = scalar_lea.vmem [#allocation1], 7
        %v5367 = vld [vmem:[%s5366] ss:$9 sm:$0xff]
        %5368 = vst [vmem:[#allocation1] sm:$0xff] %v3693
        %v5369 = vld [vmem:[#allocation1] ss:$9 sm:$0xff]
        %s5370 = scalar_lea.vmem [#allocation1], 1
        %v5371 = vld [vmem:[%s5370] ss:$9 sm:$0xff]
        %s5372 = scalar_lea.vmem [#allocation1], 2
        %v5373 = vld [vmem:[%s5372] ss:$9 sm:$0xff]
        %v5374 = vld [vmem:[%s5358] ss:$9 sm:$0xff]
        %5375 = vst [vmem:[#allocation1] sm:$0xff] %v3798
        %v5376 = vld [vmem:[%s5358] ss:$9 sm:$0xff]
        %v5377 = vld [vmem:[%s5360] ss:$9 sm:$0xff]
        %v5378 = vld [vmem:[%s5362] ss:$9 sm:$0xff]
        %v5379 = vld [vmem:[%s5364] ss:$9 sm:$0xff]
        %v5380 = vld [vmem:[%s5366] ss:$9 sm:$0xff]
        %5381 = vst [vmem:[#allocation1] sm:$0xff] %v3801
        %v5382 = vld [vmem:[#allocation1] ss:$9 sm:$0xff]
        %v5383 = vld [vmem:[%s5370] ss:$9 sm:$0xff]
        %v5384 = vld [vmem:[%s5372] ss:$9 sm:$0xff]
        %v5385 = vld [vmem:[%s5358] ss:$9 sm:$0xff]
        %5386 = vst [vmem:[#allocation1] sm:$0xff] %v3906
        %v5387 = vld [vmem:[%s5358] ss:$9 sm:$0xff]
        %v5388 = vld [vmem:[%s5360] ss:$9 sm:$0xff]
        %v5389 = vld [vmem:[%s5362] ss:$9 sm:$0xff]
        %v5390 = vld [vmem:[%s5364] ss:$9 sm:$0xff]
        %v5391 = vld [vmem:[%s5366] ss:$9 sm:$0xff]
        %5392 = vst [vmem:[#allocation1] sm:$0xff] %v3909
        %v5393 = vld [vmem:[#allocation1] ss:$9 sm:$0xff]
        %v5394 = vld [vmem:[%s5370] ss:$9 sm:$0xff]
        %v5395 = vld [vmem:[%s5372] ss:$9 sm:$0xff]
        %v5396 = vld [vmem:[%s5358] ss:$9 sm:$0xff]
        %5397 = vst [vmem:[#allocation1] sm:$0xff] %v4014
        %v5398 = vld [vmem:[%s5358] ss:$9 sm:$0xff]
        %v5399 = vld [vmem:[%s5360] ss:$9 sm:$0xff]
        %v5400 = vld [vmem:[%s5362] ss:$9 sm:$0xff]
        %v5401 = vld [vmem:[%s5364] ss:$9 sm:$0xff]
        %v5402 = vld [vmem:[%s5366] ss:$9 sm:$0xff]
        %5403 = vst [vmem:[#allocation1] sm:$0xff] %v4017
        %v5404 = vld [vmem:[#allocation1] ss:$9 sm:$0xff]
        %v5405 = vld [vmem:[%s5370] ss:$9 sm:$0xff]
        %v5406 = vld [vmem:[%s5372] ss:$9 sm:$0xff]
        %v5407 = vld [vmem:[%s5358] ss:$9 sm:$0xff]
        %5408 = vst [vmem:[#allocation1] sm:$0xff] %v4122
        %v5409 = vld [vmem:[%s5358] ss:$9 sm:$0xff]
        %v5410 = vld [vmem:[%s5360] ss:$9 sm:$0xff]
        %v5411 = vld [vmem:[%s5362] ss:$9 sm:$0xff]
        %v5412 = vld [vmem:[%s5364] ss:$9 sm:$0xff]
        %v5413 = vld [vmem:[%s5366] ss:$9 sm:$0xff]
        %5414 = vst [vmem:[#allocation1] sm:$0xff] %v4125
        %v5415 = vld [vmem:[#allocation1] ss:$9 sm:$0xff]
        %v5416 = vld [vmem:[%s5370] ss:$9 sm:$0xff]
        %v5417 = vld [vmem:[%s5372] ss:$9 sm:$0xff]
        %v5418 = vld [vmem:[%s5358] ss:$9 sm:$0xff]
        %5419 = vst [vmem:[#allocation1] sm:$0xff] %v4230
        %v5420 = vld [vmem:[%s5358] ss:$9 sm:$0xff]
        %v5421 = vld [vmem:[%s5360] ss:$9 sm:$0xff]
        %v5422 = vld [vmem:[%s5362] ss:$9 sm:$0xff]
        %v5423 = vld [vmem:[%s5364] ss:$9 sm:$0xff]
        %v5424 = vld [vmem:[%s5366] ss:$9 sm:$0xff]
        %5425 = vst [vmem:[#allocation1] sm:$0xff] %v4233
        %v5426 = vld [vmem:[#allocation1] ss:$9 sm:$0xff]
        %v5427 = vld [vmem:[%s5370] ss:$9 sm:$0xff]
        %v5428 = vld [vmem:[%s5372] ss:$9 sm:$0xff]
        %v5429 = vld [vmem:[%s5358] ss:$9 sm:$0xff]
        %5430 = vst [vmem:[#allocation1] sm:$0xff] %v4338
        %v5431 = vld [vmem:[%s5358] ss:$9 sm:$0xff]
        %v5432 = vld [vmem:[%s5360] ss:$9 sm:$0xff]
        %v5433 = vld [vmem:[%s5362] ss:$9 sm:$0xff]
        %v5434 = vld [vmem:[%s5364] ss:$9 sm:$0xff]
        %v5435 = vld [vmem:[%s5366] ss:$9 sm:$0xff]
        %5436 = vst [vmem:[#allocation1] sm:$0xff] %v4341
        %v5437 = vld [vmem:[#allocation1] ss:$9 sm:$0xff]
        %v5438 = vld [vmem:[%s5370] ss:$9 sm:$0xff]
        %v5439 = vld [vmem:[%s5372] ss:$9 sm:$0xff]
        %v5440 = vld [vmem:[%s5358] ss:$9 sm:$0xff]
        %5441 = vst [vmem:[#allocation1] sm:$0xff] %v4446
        %v5442 = vld [vmem:[%s5358] ss:$9 sm:$0xff]
        %v5443 = vld [vmem:[%s5360] ss:$9 sm:$0xff]
        %v5444 = vld [vmem:[%s5362] ss:$9 sm:$0xff]
        %v5445 = vld [vmem:[%s5364] ss:$9 sm:$0xff]
        %v5446 = vld [vmem:[%s5366] ss:$9 sm:$0xff]
        %5447 = vst [vmem:[#allocation1] sm:$0xff] %v4449
        %v5448 = vld [vmem:[#allocation1] ss:$9 sm:$0xff]
        %v5449 = vld [vmem:[%s5370] ss:$9 sm:$0xff]
        %v5450 = vld [vmem:[%s5372] ss:$9 sm:$0xff]
        %v5451 = vld [vmem:[%s5358] ss:$9 sm:$0xff]
        %5452 = vst [vmem:[#allocation1] ss:$9 sm:$0xff] %v5359
        %s5453 = scalar_lea.vmem [#allocation1], 1
        %5454 = vst [vmem:[%s5453] ss:$9 sm:$0xff] %v5361
        %s5455 = scalar_lea.vmem [#allocation1], 2
        %5456 = vst [vmem:[%s5455] ss:$9 sm:$0xff] %v5363
        %s5457 = scalar_lea.vmem [#allocation1], 3
        %5458 = vst [vmem:[%s5457] ss:$9 sm:$0xff] %v5365
        %s5459 = scalar_lea.vmem [#allocation1], 4
        %5460 = vst [vmem:[%s5459] ss:$9 sm:$0xff] %v5367
        %s5461 = scalar_lea.vmem [#allocation1], 5
        %5462 = vst [vmem:[%s5461] ss:$9 sm:$0xff] %v5369
        %s5463 = scalar_lea.vmem [#allocation1], 6
        %5464 = vst [vmem:[%s5463] ss:$9 sm:$0xff] %v5371
        %s5465 = scalar_lea.vmem [#allocation1], 7
        %5466 = vst [vmem:[%s5465] ss:$9 sm:$0xff] %v5373
        %v5467 = vld [vmem:[#allocation1] sm:$0xff]
        %5468 = vst [vmem:[#allocation1] ss:$9 sm:$0xff] %v5374
        %5469 = vst [vmem:[%s5453] ss:$9 sm:$0xff] %v5376
        %5470 = vst [vmem:[%s5455] ss:$9 sm:$0xff] %v5377
        %5471 = vst [vmem:[%s5457] ss:$9 sm:$0xff] %v5378
        %5472 = vst [vmem:[%s5459] ss:$9 sm:$0xff] %v5379
        %5473 = vst [vmem:[%s5461] ss:$9 sm:$0xff] %v5380
        %5474 = vst [vmem:[%s5463] ss:$9 sm:$0xff] %v5382
        %5475 = vst [vmem:[%s5465] ss:$9 sm:$0xff] %v5383
        %v5476 = vld [vmem:[#allocation1] sm:$0xff]
        %5477 = vst [vmem:[#allocation1] ss:$9 sm:$0xff] %v5384
        %5478 = vst [vmem:[%s5453] ss:$9 sm:$0xff] %v5385
        %5479 = vst [vmem:[%s5455] ss:$9 sm:$0xff] %v5387
        %5480 = vst [vmem:[%s5457] ss:$9 sm:$0xff] %v5388
        %5481 = vst [vmem:[%s5459] ss:$9 sm:$0xff] %v5389
        %5482 = vst [vmem:[%s5461] ss:$9 sm:$0xff] %v5390
        %5483 = vst [vmem:[%s5463] ss:$9 sm:$0xff] %v5391
        %5484 = vst [vmem:[%s5465] ss:$9 sm:$0xff] %v5393
        %v5485 = vld [vmem:[#allocation1] sm:$0xff]
        %5486 = vst [vmem:[#allocation1] ss:$9 sm:$0xff] %v5394
        %5487 = vst [vmem:[%s5453] ss:$9 sm:$0xff] %v5395
        %5488 = vst [vmem:[%s5455] ss:$9 sm:$0xff] %v5396
        %5489 = vst [vmem:[%s5457] ss:$9 sm:$0xff] %v5398
        %5490 = vst [vmem:[%s5459] ss:$9 sm:$0xff] %v5399
        %5491 = vst [vmem:[%s5461] ss:$9 sm:$0xff] %v5400
        %5492 = vst [vmem:[%s5463] ss:$9 sm:$0xff] %v5401
        %5493 = vst [vmem:[%s5465] ss:$9 sm:$0xff] %v5402
        %v5494 = vld [vmem:[#allocation1] sm:$0xff]
        %5495 = vst [vmem:[#allocation1] ss:$9 sm:$0xff] %v5404
        %5496 = vst [vmem:[%s5453] ss:$9 sm:$0xff] %v5405
        %5497 = vst [vmem:[%s5455] ss:$9 sm:$0xff] %v5406
        %5498 = vst [vmem:[%s5457] ss:$9 sm:$0xff] %v5407
        %5499 = vst [vmem:[%s5459] ss:$9 sm:$0xff] %v5409
        %5500 = vst [vmem:[%s5461] ss:$9 sm:$0xff] %v5410
        %5501 = vst [vmem:[%s5463] ss:$9 sm:$0xff] %v5411
        %5502 = vst [vmem:[%s5465] ss:$9 sm:$0xff] %v5412
        %v5503 = vld [vmem:[#allocation1] sm:$0xff]
        %5504 = vst [vmem:[#allocation1] ss:$9 sm:$0xff] %v5413
        %5505 = vst [vmem:[%s5453] ss:$9 sm:$0xff] %v5415
        %5506 = vst [vmem:[%s5455] ss:$9 sm:$0xff] %v5416
        %5507 = vst [vmem:[%s5457] ss:$9 sm:$0xff] %v5417
        %5508 = vst [vmem:[%s5459] ss:$9 sm:$0xff] %v5418
        %5509 = vst [vmem:[%s5461] ss:$9 sm:$0xff] %v5420
        %5510 = vst [vmem:[%s5463] ss:$9 sm:$0xff] %v5421
        %5511 = vst [vmem:[%s5465] ss:$9 sm:$0xff] %v5422
        %v5512 = vld [vmem:[#allocation1] sm:$0xff]
        %5513 = vst [vmem:[#allocation1] ss:$9 sm:$0xff] %v5423
        %5514 = vst [vmem:[%s5453] ss:$9 sm:$0xff] %v5424
        %5515 = vst [vmem:[%s5455] ss:$9 sm:$0xff] %v5426
        %5516 = vst [vmem:[%s5457] ss:$9 sm:$0xff] %v5427
        %5517 = vst [vmem:[%s5459] ss:$9 sm:$0xff] %v5428
        %5518 = vst [vmem:[%s5461] ss:$9 sm:$0xff] %v5429
        %5519 = vst [vmem:[%s5463] ss:$9 sm:$0xff] %v5431
        %5520 = vst [vmem:[%s5465] ss:$9 sm:$0xff] %v5432
        %v5521 = vld [vmem:[#allocation1] sm:$0xff]
        %5522 = vst [vmem:[#allocation1] ss:$9 sm:$0xff] %v5433
        %5523 = vst [vmem:[%s5453] ss:$9 sm:$0xff] %v5434
        %5524 = vst [vmem:[%s5455] ss:$9 sm:$0xff] %v5435
        %5525 = vst [vmem:[%s5457] ss:$9 sm:$0xff] %v5437
        %5526 = vst [vmem:[%s5459] ss:$9 sm:$0xff] %v5438
        %5527 = vst [vmem:[%s5461] ss:$9 sm:$0xff] %v5439
        %5528 = vst [vmem:[%s5463] ss:$9 sm:$0xff] %v5440
        %5529 = vst [vmem:[%s5465] ss:$9 sm:$0xff] %v5442
        %v5530 = vld [vmem:[#allocation1] sm:$0xff]
        %5531 = vst [vmem:[#allocation1] ss:$9 sm:$0xff] %v5443
        %5532 = vst [vmem:[%s5453] ss:$9 sm:$0xff] %v5444
        %5533 = vst [vmem:[%s5455] ss:$9 sm:$0xff] %v5445
        %5534 = vst [vmem:[%s5457] ss:$9 sm:$0xff] %v5446
        %5535 = vst [vmem:[%s5459] ss:$9 sm:$0xff] %v5448
        %5536 = vst [vmem:[%s5461] ss:$9 sm:$0xff] %v5449
        %5537 = vst [vmem:[%s5463] ss:$9 sm:$0xff] %v5450
        %5538 = vst [vmem:[%s5465] ss:$9 sm:$0xff] %v5451
        %v5539 = vld [vmem:[#allocation1] sm:$0xff]
        %v5549 = vpack.c.bf16 %v5476, %v5467
        %v5550 = vpack.c.bf16 %v5494, %v5485
        %v5551 = vpack.c.bf16 %v5512, %v5503
        %v5552 = vpack.c.bf16 %v5530, %v5521
        %v5553 = vpack.c.bf16 %v5539, %v5539
        %v5562 = vunpack.c.l.b16 %v4491
        %v5563 = vunpack.c.l.b16 %v4492
        %v5564 = vunpack.c.l.b16 %v4493
        %v5565 = vunpack.c.l.b16 %v4494
        %v5566 = vunpack.c.l.b16 %v4495
        %v5567 = vunpack.c.l.b16 %v4496
        %v5568 = vunpack.c.l.b16 %v4497
        %v5569 = vunpack.c.l.b16 %v4498
        %v5570 = vpack.c.b16 %v5563, %v5562
        %v5571 = vpack.c.b16 %v5565, %v5564
        %v5572 = vpack.c.b16 %v5567, %v5566
        %v5573 = vpack.c.b16 %v5569, %v5568
        %v5579 = vsel %vm4942, %v5549, 0
        %v5582 = vsel %vm4942, %v5550, 0
        %v5585 = vsel %vm4942, %v5551, 0
        %v5588 = vsel %vm4942, %v5552, 0
        %v5591 = vsel %vm4942, %v5553, 0
        %5593 = vmatpush.bf16.msra.mxu0 0
        %5594 = vmatpush.bf16.msra.mxu0 0
        %5595 = vmatpush.bf16.msra.mxu0 0
        %5596 = vmatpush.bf16.msra.mxu0 0
        %5597 = vmatpush.bf16.msra.mxu0 %v5573
        %5598 = vmatpush.bf16.msra.mxu0 %v5572
        %5599 = vmatpush.bf16.msra.mxu0 %v5571
        %5600 = vmatpush.bf16.msra.mxu0 %v5570
        %5601 = vmatmul.bf16.gmra.mxu0 %v5579
        %v5602 = vpop.f32.mrf.mxu0
        %v5603 = vadd.f32 0.0, %v5602
        %v5604 = vpop.f32.mrf.mxu0
        %v5605 = vadd.f32 0.0, %v5604
        %5606 = vmatmul.bf16.gmra.mxu0 %v5582
        %v5607 = vpop.f32.mrf.mxu0
        %v5608 = vadd.f32 0.0, %v5607
        %v5609 = vpop.f32.mrf.mxu0
        %v5610 = vadd.f32 0.0, %v5609
        %5611 = vmatmul.bf16.gmra.mxu0 %v5585
        %v5612 = vpop.f32.mrf.mxu0
        %v5613 = vadd.f32 0.0, %v5612
        %v5614 = vpop.f32.mrf.mxu0
        %v5615 = vadd.f32 0.0, %v5614
        %5616 = vmatmul.bf16.gmra.mxu0 %v5588
        %v5617 = vpop.f32.mrf.mxu0
        %v5618 = vadd.f32 0.0, %v5617
        %v5619 = vpop.f32.mrf.mxu0
        %v5620 = vadd.f32 0.0, %v5619
        %5621 = vmatmul.bf16.gmra.mxu0 %v5591
        %v5622 = vpop.f32.mrf.mxu0
        %v5623 = vadd.f32 0.0, %v5622
        %v5624 = vpop.f32.mrf.mxu0
        %5625 = vdwg.mxu0
        %v5626 = vadd.f32 %v5340, %v5603
        %v5627 = vadd.f32 %v5341, %v5605
        %v5628 = vadd.f32 %v5342, %v5608
        %v5629 = vadd.f32 %v5343, %v5610
        %v5630 = vadd.f32 %v5344, %v5613
        %v5631 = vadd.f32 %v5345, %v5615
        %v5632 = vadd.f32 %v5346, %v5618
        %v5633 = vadd.f32 %v5347, %v5620
        %v5634 = vadd.f32 %v5348, %v5623
        %5643 = vst [vmem:[#allocation1] sm:$0xff] %v3693
        %s5644 = scalar_lea.vmem [#allocation1], 4
        %v5645 = vld [vmem:[%s5644] ss:$9 sm:$0xff]
        %s5646 = scalar_lea.vmem [#allocation1], 5
        %v5647 = vld [vmem:[%s5646] ss:$9 sm:$0xff]
        %s5648 = scalar_lea.vmem [#allocation1], 6
        %v5649 = vld [vmem:[%s5648] ss:$9 sm:$0xff]
        %s5650 = scalar_lea.vmem [#allocation1], 7
        %v5651 = vld [vmem:[%s5650] ss:$9 sm:$0xff]
        %5652 = vst [vmem:[#allocation1] sm:$0xff] %v3695
        %v5653 = vld [vmem:[#allocation1] ss:$9 sm:$0xff]
        %s5654 = scalar_lea.vmem [#allocation1], 1
        %v5655 = vld [vmem:[%s5654] ss:$9 sm:$0xff]
        %s5656 = scalar_lea.vmem [#allocation1], 2
        %v5657 = vld [vmem:[%s5656] ss:$9 sm:$0xff]
        %s5658 = scalar_lea.vmem [#allocation1], 3
        %v5659 = vld [vmem:[%s5658] ss:$9 sm:$0xff]
        %v5660 = vld [vmem:[%s5644] ss:$9 sm:$0xff]
        %5661 = vst [vmem:[#allocation1] sm:$0xff] %v3801
        %v5662 = vld [vmem:[%s5644] ss:$9 sm:$0xff]
        %v5663 = vld [vmem:[%s5646] ss:$9 sm:$0xff]
        %v5664 = vld [vmem:[%s5648] ss:$9 sm:$0xff]
        %v5665 = vld [vmem:[%s5650] ss:$9 sm:$0xff]
        %5666 = vst [vmem:[#allocation1] sm:$0xff] %v3803
        %v5667 = vld [vmem:[#allocation1] ss:$9 sm:$0xff]
        %v5668 = vld [vmem:[%s5654] ss:$9 sm:$0xff]
        %v5669 = vld [vmem:[%s5656] ss:$9 sm:$0xff]
        %v5670 = vld [vmem:[%s5658] ss:$9 sm:$0xff]
        %v5671 = vld [vmem:[%s5644] ss:$9 sm:$0xff]
        %5672 = vst [vmem:[#allocation1] sm:$0xff] %v3909
        %v5673 = vld [vmem:[%s5644] ss:$9 sm:$0xff]
        %v5674 = vld [vmem:[%s5646] ss:$9 sm:$0xff]
        %v5675 = vld [vmem:[%s5648] ss:$9 sm:$0xff]
        %v5676 = vld [vmem:[%s5650] ss:$9 sm:$0xff]
        %5677 = vst [vmem:[#allocation1] sm:$0xff] %v3911
        %v5678 = vld [vmem:[#allocation1] ss:$9 sm:$0xff]
        %v5679 = vld [vmem:[%s5654] ss:$9 sm:$0xff]
        %v5680 = vld [vmem:[%s5656] ss:$9 sm:$0xff]
        %v5681 = vld [vmem:[%s5658] ss:$9 sm:$0xff]
        %v5682 = vld [vmem:[%s5644] ss:$9 sm:$0xff]
        %5683 = vst [vmem:[#allocation1] sm:$0xff] %v4017
        %v5684 = vld [vmem:[%s5644] ss:$9 sm:$0xff]
        %v5685 = vld [vmem:[%s5646] ss:$9 sm:$0xff]
        %v5686 = vld [vmem:[%s5648] ss:$9 sm:$0xff]
        %v5687 = vld [vmem:[%s5650] ss:$9 sm:$0xff]
        %5688 = vst [vmem:[#allocation1] sm:$0xff] %v4019
        %v5689 = vld [vmem:[#allocation1] ss:$9 sm:$0xff]
        %v5690 = vld [vmem:[%s5654] ss:$9 sm:$0xff]
        %v5691 = vld [vmem:[%s5656] ss:$9 sm:$0xff]
        %v5692 = vld [vmem:[%s5658] ss:$9 sm:$0xff]
        %v5693 = vld [vmem:[%s5644] ss:$9 sm:$0xff]
        %5694 = vst [vmem:[#allocation1] sm:$0xff] %v4125
        %v5695 = vld [vmem:[%s5644] ss:$9 sm:$0xff]
        %v5696 = vld [vmem:[%s5646] ss:$9 sm:$0xff]
        %v5697 = vld [vmem:[%s5648] ss:$9 sm:$0xff]
        %v5698 = vld [vmem:[%s5650] ss:$9 sm:$0xff]
        %5699 = vst [vmem:[#allocation1] sm:$0xff] %v4127
        %v5700 = vld [vmem:[#allocation1] ss:$9 sm:$0xff]
        %v5701 = vld [vmem:[%s5654] ss:$9 sm:$0xff]
        %v5702 = vld [vmem:[%s5656] ss:$9 sm:$0xff]
        %v5703 = vld [vmem:[%s5658] ss:$9 sm:$0xff]
        %v5704 = vld [vmem:[%s5644] ss:$9 sm:$0xff]
        %5705 = vst [vmem:[#allocation1] sm:$0xff] %v4233
        %v5706 = vld [vmem:[%s5644] ss:$9 sm:$0xff]
        %v5707 = vld [vmem:[%s5646] ss:$9 sm:$0xff]
        %v5708 = vld [vmem:[%s5648] ss:$9 sm:$0xff]
        %v5709 = vld [vmem:[%s5650] ss:$9 sm:$0xff]
        %5710 = vst [vmem:[#allocation1] sm:$0xff] %v4235
        %v5711 = vld [vmem:[#allocation1] ss:$9 sm:$0xff]
        %v5712 = vld [vmem:[%s5654] ss:$9 sm:$0xff]
        %v5713 = vld [vmem:[%s5656] ss:$9 sm:$0xff]
        %v5714 = vld [vmem:[%s5658] ss:$9 sm:$0xff]
        %v5715 = vld [vmem:[%s5644] ss:$9 sm:$0xff]
        %5716 = vst [vmem:[#allocation1] sm:$0xff] %v4341
        %v5717 = vld [vmem:[%s5644] ss:$9 sm:$0xff]
        %v5718 = vld [vmem:[%s5646] ss:$9 sm:$0xff]
        %v5719 = vld [vmem:[%s5648] ss:$9 sm:$0xff]
        %v5720 = vld [vmem:[%s5650] ss:$9 sm:$0xff]
        %5721 = vst [vmem:[#allocation1] sm:$0xff] %v4343
        %v5722 = vld [vmem:[#allocation1] ss:$9 sm:$0xff]
        %v5723 = vld [vmem:[%s5654] ss:$9 sm:$0xff]
        %v5724 = vld [vmem:[%s5656] ss:$9 sm:$0xff]
        %v5725 = vld [vmem:[%s5658] ss:$9 sm:$0xff]
        %v5726 = vld [vmem:[%s5644] ss:$9 sm:$0xff]
        %5727 = vst [vmem:[#allocation1] sm:$0xff] %v4449
        %v5728 = vld [vmem:[%s5644] ss:$9 sm:$0xff]
        %v5729 = vld [vmem:[%s5646] ss:$9 sm:$0xff]
        %v5730 = vld [vmem:[%s5648] ss:$9 sm:$0xff]
        %v5731 = vld [vmem:[%s5650] ss:$9 sm:$0xff]
        %5732 = vst [vmem:[#allocation1] sm:$0xff] %v4451
        %v5733 = vld [vmem:[#allocation1] ss:$9 sm:$0xff]
        %v5734 = vld [vmem:[%s5654] ss:$9 sm:$0xff]
        %v5735 = vld [vmem:[%s5656] ss:$9 sm:$0xff]
        %v5736 = vld [vmem:[%s5658] ss:$9 sm:$0xff]
        %v5737 = vld [vmem:[%s5644] ss:$9 sm:$0xff]
        %5738 = vst [vmem:[#allocation1] ss:$9 sm:$0xff] %v5645
        %s5739 = scalar_lea.vmem [#allocation1], 1
        %5740 = vst [vmem:[%s5739] ss:$9 sm:$0xff] %v5647
        %s5741 = scalar_lea.vmem [#allocation1], 2
        %5742 = vst [vmem:[%s5741] ss:$9 sm:$0xff] %v5649
        %s5743 = scalar_lea.vmem [#allocation1], 3
        %5744 = vst [vmem:[%s5743] ss:$9 sm:$0xff] %v5651
        %s5745 = scalar_lea.vmem [#allocation1], 4
        %5746 = vst [vmem:[%s5745] ss:$9 sm:$0xff] %v5653
        %s5747 = scalar_lea.vmem [#allocation1], 5
        %5748 = vst [vmem:[%s5747] ss:$9 sm:$0xff] %v5655
        %s5749 = scalar_lea.vmem [#allocation1], 6
        %5750 = vst [vmem:[%s5749] ss:$9 sm:$0xff] %v5657
        %s5751 = scalar_lea.vmem [#allocation1], 7
        %5752 = vst [vmem:[%s5751] ss:$9 sm:$0xff] %v5659
        %v5753 = vld [vmem:[#allocation1] sm:$0xff]
        %5754 = vst [vmem:[#allocation1] ss:$9 sm:$0xff] %v5660
        %5755 = vst [vmem:[%s5739] ss:$9 sm:$0xff] %v5662
        %5756 = vst [vmem:[%s5741] ss:$9 sm:$0xff] %v5663
        %5757 = vst [vmem:[%s5743] ss:$9 sm:$0xff] %v5664
        %5758 = vst [vmem:[%s5745] ss:$9 sm:$0xff] %v5665
        %5759 = vst [vmem:[%s5747] ss:$9 sm:$0xff] %v5667
        %5760 = vst [vmem:[%s5749] ss:$9 sm:$0xff] %v5668
        %5761 = vst [vmem:[%s5751] ss:$9 sm:$0xff] %v5669
        %v5762 = vld [vmem:[#allocation1] sm:$0xff]
        %5763 = vst [vmem:[#allocation1] ss:$9 sm:$0xff] %v5670
        %5764 = vst [vmem:[%s5739] ss:$9 sm:$0xff] %v5671
        %5765 = vst [vmem:[%s5741] ss:$9 sm:$0xff] %v5673
        %5766 = vst [vmem:[%s5743] ss:$9 sm:$0xff] %v5674
        %5767 = vst [vmem:[%s5745] ss:$9 sm:$0xff] %v5675
        %5768 = vst [vmem:[%s5747] ss:$9 sm:$0xff] %v5676
        %5769 = vst [vmem:[%s5749] ss:$9 sm:$0xff] %v5678
        %5770 = vst [vmem:[%s5751] ss:$9 sm:$0xff] %v5679
        %v5771 = vld [vmem:[#allocation1] sm:$0xff]
        %5772 = vst [vmem:[#allocation1] ss:$9 sm:$0xff] %v5680
        %5773 = vst [vmem:[%s5739] ss:$9 sm:$0xff] %v5681
        %5774 = vst [vmem:[%s5741] ss:$9 sm:$0xff] %v5682
        %5775 = vst [vmem:[%s5743] ss:$9 sm:$0xff] %v5684
        %5776 = vst [vmem:[%s5745] ss:$9 sm:$0xff] %v5685
        %5777 = vst [vmem:[%s5747] ss:$9 sm:$0xff] %v5686
        %5778 = vst [vmem:[%s5749] ss:$9 sm:$0xff] %v5687
        %5779 = vst [vmem:[%s5751] ss:$9 sm:$0xff] %v5689
        %v5780 = vld [vmem:[#allocation1] sm:$0xff]
        %5781 = vst [vmem:[#allocation1] ss:$9 sm:$0xff] %v5690
        %5782 = vst [vmem:[%s5739] ss:$9 sm:$0xff] %v5691
        %5783 = vst [vmem:[%s5741] ss:$9 sm:$0xff] %v5692
        %5784 = vst [vmem:[%s5743] ss:$9 sm:$0xff] %v5693
        %5785 = vst [vmem:[%s5745] ss:$9 sm:$0xff] %v5695
        %5786 = vst [vmem:[%s5747] ss:$9 sm:$0xff] %v5696
        %5787 = vst [vmem:[%s5749] ss:$9 sm:$0xff] %v5697
        %5788 = vst [vmem:[%s5751] ss:$9 sm:$0xff] %v5698
        %v5789 = vld [vmem:[#allocation1] sm:$0xff]
        %5790 = vst [vmem:[#allocation1] ss:$9 sm:$0xff] %v5700
        %5791 = vst [vmem:[%s5739] ss:$9 sm:$0xff] %v5701
        %5792 = vst [vmem:[%s5741] ss:$9 sm:$0xff] %v5702
        %5793 = vst [vmem:[%s5743] ss:$9 sm:$0xff] %v5703
        %5794 = vst [vmem:[%s5745] ss:$9 sm:$0xff] %v5704
        %5795 = vst [vmem:[%s5747] ss:$9 sm:$0xff] %v5706
        %5796 = vst [vmem:[%s5749] ss:$9 sm:$0xff] %v5707
        %5797 = vst [vmem:[%s5751] ss:$9 sm:$0xff] %v5708
        %v5798 = vld [vmem:[#allocation1] sm:$0xff]
        %5799 = vst [vmem:[#allocation1] ss:$9 sm:$0xff] %v5709
        %5800 = vst [vmem:[%s5739] ss:$9 sm:$0xff] %v5711
        %5801 = vst [vmem:[%s5741] ss:$9 sm:$0xff] %v5712
        %5802 = vst [vmem:[%s5743] ss:$9 sm:$0xff] %v5713
        %5803 = vst [vmem:[%s5745] ss:$9 sm:$0xff] %v5714
        %5804 = vst [vmem:[%s5747] ss:$9 sm:$0xff] %v5715
        %5805 = vst [vmem:[%s5749] ss:$9 sm:$0xff] %v5717
        %5806 = vst [vmem:[%s5751] ss:$9 sm:$0xff] %v5718
        %v5807 = vld [vmem:[#allocation1] sm:$0xff]
        %5808 = vst [vmem:[#allocation1] ss:$9 sm:$0xff] %v5719
        %5809 = vst [vmem:[%s5739] ss:$9 sm:$0xff] %v5720
        %5810 = vst [vmem:[%s5741] ss:$9 sm:$0xff] %v5722
        %5811 = vst [vmem:[%s5743] ss:$9 sm:$0xff] %v5723
        %5812 = vst [vmem:[%s5745] ss:$9 sm:$0xff] %v5724
        %5813 = vst [vmem:[%s5747] ss:$9 sm:$0xff] %v5725
        %5814 = vst [vmem:[%s5749] ss:$9 sm:$0xff] %v5726
        %5815 = vst [vmem:[%s5751] ss:$9 sm:$0xff] %v5728
        %v5816 = vld [vmem:[#allocation1] sm:$0xff]
        %5817 = vst [vmem:[#allocation1] ss:$9 sm:$0xff] %v5729
        %5818 = vst [vmem:[%s5739] ss:$9 sm:$0xff] %v5730
        %5819 = vst [vmem:[%s5741] ss:$9 sm:$0xff] %v5731
        %5820 = vst [vmem:[%s5743] ss:$9 sm:$0xff] %v5733
        %5821 = vst [vmem:[%s5745] ss:$9 sm:$0xff] %v5734
        %5822 = vst [vmem:[%s5747] ss:$9 sm:$0xff] %v5735
        %5823 = vst [vmem:[%s5749] ss:$9 sm:$0xff] %v5736
        %5824 = vst [vmem:[%s5751] ss:$9 sm:$0xff] %v5737
        %v5825 = vld [vmem:[#allocation1] sm:$0xff]
        %v5835 = vpack.c.bf16 %v5762, %v5753
        %v5836 = vpack.c.bf16 %v5780, %v5771
        %v5837 = vpack.c.bf16 %v5798, %v5789
        %v5838 = vpack.c.bf16 %v5816, %v5807
        %v5839 = vpack.c.bf16 %v5825, %v5825
        %v5848 = vunpack.c.l.b16 %v4499
        %v5849 = vunpack.c.l.b16 %v4500
        %v5850 = vunpack.c.l.b16 %v4501
        %v5851 = vunpack.c.l.b16 %v4502
        %v5852 = vunpack.c.l.b16 %v4503
        %v5853 = vunpack.c.l.b16 %v4504
        %v5854 = vunpack.c.l.b16 %v4505
        %v5855 = vunpack.c.l.b16 %v4506
        %v5856 = vpack.c.b16 %v5849, %v5848
        %v5857 = vpack.c.b16 %v5851, %v5850
        %v5858 = vpack.c.b16 %v5853, %v5852
        %v5859 = vpack.c.b16 %v5855, %v5854
        %v5865 = vsel %vm4942, %v5835, 0
        %v5868 = vsel %vm4942, %v5836, 0
        %v5871 = vsel %vm4942, %v5837, 0
        %v5874 = vsel %vm4942, %v5838, 0
        %v5877 = vsel %vm4942, %v5839, 0
        %5879 = vmatpush.bf16.msra.mxu0 0
        %5880 = vmatpush.bf16.msra.mxu0 0
        %5881 = vmatpush.bf16.msra.mxu0 0
        %5882 = vmatpush.bf16.msra.mxu0 0
        %5883 = vmatpush.bf16.msra.mxu0 %v5859
        %5884 = vmatpush.bf16.msra.mxu0 %v5858
        %5885 = vmatpush.bf16.msra.mxu0 %v5857
        %5886 = vmatpush.bf16.msra.mxu0 %v5856
        %5887 = vmatmul.bf16.gmra.mxu0 %v5865
        %v5888 = vpop.f32.mrf.mxu0
        %v5889 = vadd.f32 0.0, %v5888
        %v5890 = vpop.f32.mrf.mxu0
        %v5891 = vadd.f32 0.0, %v5890
        %5892 = vmatmul.bf16.gmra.mxu0 %v5868
        %v5893 = vpop.f32.mrf.mxu0
        %v5894 = vadd.f32 0.0, %v5893
        %v5895 = vpop.f32.mrf.mxu0
        %v5896 = vadd.f32 0.0, %v5895
        %5897 = vmatmul.bf16.gmra.mxu0 %v5871
        %v5898 = vpop.f32.mrf.mxu0
        %v5899 = vadd.f32 0.0, %v5898
        %v5900 = vpop.f32.mrf.mxu0
        %v5901 = vadd.f32 0.0, %v5900
        %5902 = vmatmul.bf16.gmra.mxu0 %v5874
        %v5903 = vpop.f32.mrf.mxu0
        %v5904 = vadd.f32 0.0, %v5903
        %v5905 = vpop.f32.mrf.mxu0
        %v5906 = vadd.f32 0.0, %v5905
        %5907 = vmatmul.bf16.gmra.mxu0 %v5877
        %v5908 = vpop.f32.mrf.mxu0
        %v5909 = vadd.f32 0.0, %v5908
        %v5910 = vpop.f32.mrf.mxu0
        %5911 = vdwg.mxu0
        %v5912 = vadd.f32 %v5626, %v5889
        %v5913 = vadd.f32 %v5627, %v5891
        %v5914 = vadd.f32 %v5628, %v5894
        %v5915 = vadd.f32 %v5629, %v5896
        %v5916 = vadd.f32 %v5630, %v5899
        %v5917 = vadd.f32 %v5631, %v5901
        %v5918 = vadd.f32 %v5632, %v5904
        %v5919 = vadd.f32 %v5633, %v5906
        %v5920 = vadd.f32 %v5634, %v5909
        %5929 = vst [vmem:[#allocation1] sm:$0xff] %v3695
        %s5930 = scalar_lea.vmem [#allocation1], 5
        %v5931 = vld [vmem:[%s5930] ss:$9 sm:$0xff]
        %s5932 = scalar_lea.vmem [#allocation1], 6
        %v5933 = vld [vmem:[%s5932] ss:$9 sm:$0xff]
        %s5934 = scalar_lea.vmem [#allocation1], 7
        %v5935 = vld [vmem:[%s5934] ss:$9 sm:$0xff]
        %5936 = vst [vmem:[#allocation1] sm:$0xff] %v3698
        %v5937 = vld [vmem:[#allocation1] ss:$9 sm:$0xff]
        %s5938 = scalar_lea.vmem [#allocation1], 1
        %v5939 = vld [vmem:[%s5938] ss:$9 sm:$0xff]
        %s5940 = scalar_lea.vmem [#allocation1], 2
        %v5941 = vld [vmem:[%s5940] ss:$9 sm:$0xff]
        %s5942 = scalar_lea.vmem [#allocation1], 3
        %v5943 = vld [vmem:[%s5942] ss:$9 sm:$0xff]
        %s5944 = scalar_lea.vmem [#allocation1], 4
        %v5945 = vld [vmem:[%s5944] ss:$9 sm:$0xff]
        %v5946 = vld [vmem:[%s5930] ss:$9 sm:$0xff]
        %5947 = vst [vmem:[#allocation1] sm:$0xff] %v3803
        %v5948 = vld [vmem:[%s5930] ss:$9 sm:$0xff]
        %v5949 = vld [vmem:[%s5932] ss:$9 sm:$0xff]
        %v5950 = vld [vmem:[%s5934] ss:$9 sm:$0xff]
        %5951 = vst [vmem:[#allocation1] sm:$0xff] %v3806
        %v5952 = vld [vmem:[#allocation1] ss:$9 sm:$0xff]
        %v5953 = vld [vmem:[%s5938] ss:$9 sm:$0xff]
        %v5954 = vld [vmem:[%s5940] ss:$9 sm:$0xff]
        %v5955 = vld [vmem:[%s5942] ss:$9 sm:$0xff]
        %v5956 = vld [vmem:[%s5944] ss:$9 sm:$0xff]
        %v5957 = vld [vmem:[%s5930] ss:$9 sm:$0xff]
        %5958 = vst [vmem:[#allocation1] sm:$0xff] %v3911
        %v5959 = vld [vmem:[%s5930] ss:$9 sm:$0xff]
        %v5960 = vld [vmem:[%s5932] ss:$9 sm:$0xff]
        %v5961 = vld [vmem:[%s5934] ss:$9 sm:$0xff]
        %5962 = vst [vmem:[#allocation1] sm:$0xff] %v3914
        %v5963 = vld [vmem:[#allocation1] ss:$9 sm:$0xff]
        %v5964 = vld [vmem:[%s5938] ss:$9 sm:$0xff]
        %v5965 = vld [vmem:[%s5940] ss:$9 sm:$0xff]
        %v5966 = vld [vmem:[%s5942] ss:$9 sm:$0xff]
        %v5967 = vld [vmem:[%s5944] ss:$9 sm:$0xff]
        %v5968 = vld [vmem:[%s5930] ss:$9 sm:$0xff]
        %5969 = vst [vmem:[#allocation1] sm:$0xff] %v4019
        %v5970 = vld [vmem:[%s5930] ss:$9 sm:$0xff]
        %v5971 = vld [vmem:[%s5932] ss:$9 sm:$0xff]
        %v5972 = vld [vmem:[%s5934] ss:$9 sm:$0xff]
        %5973 = vst [vmem:[#allocation1] sm:$0xff] %v4022
        %v5974 = vld [vmem:[#allocation1] ss:$9 sm:$0xff]
        %v5975 = vld [vmem:[%s5938] ss:$9 sm:$0xff]
        %v5976 = vld [vmem:[%s5940] ss:$9 sm:$0xff]
        %v5977 = vld [vmem:[%s5942] ss:$9 sm:$0xff]
        %v5978 = vld [vmem:[%s5944] ss:$9 sm:$0xff]
        %v5979 = vld [vmem:[%s5930] ss:$9 sm:$0xff]
        %5980 = vst [vmem:[#allocation1] sm:$0xff] %v4127
        %v5981 = vld [vmem:[%s5930] ss:$9 sm:$0xff]
        %v5982 = vld [vmem:[%s5932] ss:$9 sm:$0xff]
        %v5983 = vld [vmem:[%s5934] ss:$9 sm:$0xff]
        %5984 = vst [vmem:[#allocation1] sm:$0xff] %v4130
        %v5985 = vld [vmem:[#allocation1] ss:$9 sm:$0xff]
        %v5986 = vld [vmem:[%s5938] ss:$9 sm:$0xff]
        %v5987 = vld [vmem:[%s5940] ss:$9 sm:$0xff]
        %v5988 = vld [vmem:[%s5942] ss:$9 sm:$0xff]
        %v5989 = vld [vmem:[%s5944] ss:$9 sm:$0xff]
        %v5990 = vld [vmem:[%s5930] ss:$9 sm:$0xff]
        %5991 = vst [vmem:[#allocation1] sm:$0xff] %v4235
        %v5992 = vld [vmem:[%s5930] ss:$9 sm:$0xff]
        %v5993 = vld [vmem:[%s5932] ss:$9 sm:$0xff]
        %v5994 = vld [vmem:[%s5934] ss:$9 sm:$0xff]
        %5995 = vst [vmem:[#allocation1] sm:$0xff] %v4238
        %v5996 = vld [vmem:[#allocation1] ss:$9 sm:$0xff]
        %v5997 = vld [vmem:[%s5938] ss:$9 sm:$0xff]
        %v5998 = vld [vmem:[%s5940] ss:$9 sm:$0xff]
        %v5999 = vld [vmem:[%s5942] ss:$9 sm:$0xff]
        %v6000 = vld [vmem:[%s5944] ss:$9 sm:$0xff]
        %v6001 = vld [vmem:[%s5930] ss:$9 sm:$0xff]
        %6002 = vst [vmem:[#allocation1] sm:$0xff] %v4343
        %v6003 = vld [vmem:[%s5930] ss:$9 sm:$0xff]
        %v6004 = vld [vmem:[%s5932] ss:$9 sm:$0xff]
        %v6005 = vld [vmem:[%s5934] ss:$9 sm:$0xff]
        %6006 = vst [vmem:[#allocation1] sm:$0xff] %v4346
        %v6007 = vld [vmem:[#allocation1] ss:$9 sm:$0xff]
        %v6008 = vld [vmem:[%s5938] ss:$9 sm:$0xff]
        %v6009 = vld [vmem:[%s5940] ss:$9 sm:$0xff]
        %v6010 = vld [vmem:[%s5942] ss:$9 sm:$0xff]
        %v6011 = vld [vmem:[%s5944] ss:$9 sm:$0xff]
        %v6012 = vld [vmem:[%s5930] ss:$9 sm:$0xff]
        %6013 = vst [vmem:[#allocation1] sm:$0xff] %v4451
        %v6014 = vld [vmem:[%s5930] ss:$9 sm:$0xff]
        %v6015 = vld [vmem:[%s5932] ss:$9 sm:$0xff]
        %v6016 = vld [vmem:[%s5934] ss:$9 sm:$0xff]
        %6017 = vst [vmem:[#allocation1] sm:$0xff] %v4454
        %v6018 = vld [vmem:[#allocation1] ss:$9 sm:$0xff]
        %v6019 = vld [vmem:[%s5938] ss:$9 sm:$0xff]
        %v6020 = vld [vmem:[%s5940] ss:$9 sm:$0xff]
        %v6021 = vld [vmem:[%s5942] ss:$9 sm:$0xff]
        %v6022 = vld [vmem:[%s5944] ss:$9 sm:$0xff]
        %v6023 = vld [vmem:[%s5930] ss:$9 sm:$0xff]
        %6024 = vst [vmem:[#allocation1] ss:$9 sm:$0xff] %v5931
        %s6025 = scalar_lea.vmem [#allocation1], 1
        %6026 = vst [vmem:[%s6025] ss:$9 sm:$0xff] %v5933
        %s6027 = scalar_lea.vmem [#allocation1], 2
        %6028 = vst [vmem:[%s6027] ss:$9 sm:$0xff] %v5935
        %s6029 = scalar_lea.vmem [#allocation1], 3
        %6030 = vst [vmem:[%s6029] ss:$9 sm:$0xff] %v5937
        %s6031 = scalar_lea.vmem [#allocation1], 4
        %6032 = vst [vmem:[%s6031] ss:$9 sm:$0xff] %v5939
        %s6033 = scalar_lea.vmem [#allocation1], 5
        %6034 = vst [vmem:[%s6033] ss:$9 sm:$0xff] %v5941
        %s6035 = scalar_lea.vmem [#allocation1], 6
        %6036 = vst [vmem:[%s6035] ss:$9 sm:$0xff] %v5943
        %s6037 = scalar_lea.vmem [#allocation1], 7
        %6038 = vst [vmem:[%s6037] ss:$9 sm:$0xff] %v5945
        %v6039 = vld [vmem:[#allocation1] sm:$0xff]
        %6040 = vst [vmem:[#allocation1] ss:$9 sm:$0xff] %v5946
        %6041 = vst [vmem:[%s6025] ss:$9 sm:$0xff] %v5948
        %6042 = vst [vmem:[%s6027] ss:$9 sm:$0xff] %v5949
        %6043 = vst [vmem:[%s6029] ss:$9 sm:$0xff] %v5950
        %6044 = vst [vmem:[%s6031] ss:$9 sm:$0xff] %v5952
        %6045 = vst [vmem:[%s6033] ss:$9 sm:$0xff] %v5953
        %6046 = vst [vmem:[%s6035] ss:$9 sm:$0xff] %v5954
        %6047 = vst [vmem:[%s6037] ss:$9 sm:$0xff] %v5955
        %v6048 = vld [vmem:[#allocation1] sm:$0xff]
        %6049 = vst [vmem:[#allocation1] ss:$9 sm:$0xff] %v5956
        %6050 = vst [vmem:[%s6025] ss:$9 sm:$0xff] %v5957
        %6051 = vst [vmem:[%s6027] ss:$9 sm:$0xff] %v5959
        %6052 = vst [vmem:[%s6029] ss:$9 sm:$0xff] %v5960
        %6053 = vst [vmem:[%s6031] ss:$9 sm:$0xff] %v5961
        %6054 = vst [vmem:[%s6033] ss:$9 sm:$0xff] %v5963
        %6055 = vst [vmem:[%s6035] ss:$9 sm:$0xff] %v5964
        %6056 = vst [vmem:[%s6037] ss:$9 sm:$0xff] %v5965
        %v6057 = vld [vmem:[#allocation1] sm:$0xff]
        %6058 = vst [vmem:[#allocation1] ss:$9 sm:$0xff] %v5966
        %6059 = vst [vmem:[%s6025] ss:$9 sm:$0xff] %v5967
        %6060 = vst [vmem:[%s6027] ss:$9 sm:$0xff] %v5968
        %6061 = vst [vmem:[%s6029] ss:$9 sm:$0xff] %v5970
        %6062 = vst [vmem:[%s6031] ss:$9 sm:$0xff] %v5971
        %6063 = vst [vmem:[%s6033] ss:$9 sm:$0xff] %v5972
        %6064 = vst [vmem:[%s6035] ss:$9 sm:$0xff] %v5974
        %6065 = vst [vmem:[%s6037] ss:$9 sm:$0xff] %v5975
        %v6066 = vld [vmem:[#allocation1] sm:$0xff]
        %6067 = vst [vmem:[#allocation1] ss:$9 sm:$0xff] %v5976
        %6068 = vst [vmem:[%s6025] ss:$9 sm:$0xff] %v5977
        %6069 = vst [vmem:[%s6027] ss:$9 sm:$0xff] %v5978
        %6070 = vst [vmem:[%s6029] ss:$9 sm:$0xff] %v5979
        %6071 = vst [vmem:[%s6031] ss:$9 sm:$0xff] %v5981
        %6072 = vst [vmem:[%s6033] ss:$9 sm:$0xff] %v5982
        %6073 = vst [vmem:[%s6035] ss:$9 sm:$0xff] %v5983
        %6074 = vst [vmem:[%s6037] ss:$9 sm:$0xff] %v5985
        %v6075 = vld [vmem:[#allocation1] sm:$0xff]
        %6076 = vst [vmem:[#allocation1] ss:$9 sm:$0xff] %v5986
        %6077 = vst [vmem:[%s6025] ss:$9 sm:$0xff] %v5987
        %6078 = vst [vmem:[%s6027] ss:$9 sm:$0xff] %v5988
        %6079 = vst [vmem:[%s6029] ss:$9 sm:$0xff] %v5989
        %6080 = vst [vmem:[%s6031] ss:$9 sm:$0xff] %v5990
        %6081 = vst [vmem:[%s6033] ss:$9 sm:$0xff] %v5992
        %6082 = vst [vmem:[%s6035] ss:$9 sm:$0xff] %v5993
        %6083 = vst [vmem:[%s6037] ss:$9 sm:$0xff] %v5994
        %v6084 = vld [vmem:[#allocation1] sm:$0xff]
        %6085 = vst [vmem:[#allocation1] ss:$9 sm:$0xff] %v5996
        %6086 = vst [vmem:[%s6025] ss:$9 sm:$0xff] %v5997
        %6087 = vst [vmem:[%s6027] ss:$9 sm:$0xff] %v5998
        %6088 = vst [vmem:[%s6029] ss:$9 sm:$0xff] %v5999
        %6089 = vst [vmem:[%s6031] ss:$9 sm:$0xff] %v6000
        %6090 = vst [vmem:[%s6033] ss:$9 sm:$0xff] %v6001
        %6091 = vst [vmem:[%s6035] ss:$9 sm:$0xff] %v6003
        %6092 = vst [vmem:[%s6037] ss:$9 sm:$0xff] %v6004
        %v6093 = vld [vmem:[#allocation1] sm:$0xff]
        %6094 = vst [vmem:[#allocation1] ss:$9 sm:$0xff] %v6005
        %6095 = vst [vmem:[%s6025] ss:$9 sm:$0xff] %v6007
        %6096 = vst [vmem:[%s6027] ss:$9 sm:$0xff] %v6008
        %6097 = vst [vmem:[%s6029] ss:$9 sm:$0xff] %v6009
        %6098 = vst [vmem:[%s6031] ss:$9 sm:$0xff] %v6010
        %6099 = vst [vmem:[%s6033] ss:$9 sm:$0xff] %v6011
        %6100 = vst [vmem:[%s6035] ss:$9 sm:$0xff] %v6012
        %6101 = vst [vmem:[%s6037] ss:$9 sm:$0xff] %v6014
        %v6102 = vld [vmem:[#allocation1] sm:$0xff]
        %6103 = vst [vmem:[#allocation1] ss:$9 sm:$0xff] %v6015
        %6104 = vst [vmem:[%s6025] ss:$9 sm:$0xff] %v6016
        %6105 = vst [vmem:[%s6027] ss:$9 sm:$0xff] %v6018
        %6106 = vst [vmem:[%s6029] ss:$9 sm:$0xff] %v6019
        %6107 = vst [vmem:[%s6031] ss:$9 sm:$0xff] %v6020
        %6108 = vst [vmem:[%s6033] ss:$9 sm:$0xff] %v6021
        %6109 = vst [vmem:[%s6035] ss:$9 sm:$0xff] %v6022
        %6110 = vst [vmem:[%s6037] ss:$9 sm:$0xff] %v6023
        %v6111 = vld [vmem:[#allocation1] sm:$0xff]
        %v6121 = vpack.c.bf16 %v6048, %v6039
        %v6122 = vpack.c.bf16 %v6066, %v6057
        %v6123 = vpack.c.bf16 %v6084, %v6075
        %v6124 = vpack.c.bf16 %v6102, %v6093
        %v6125 = vpack.c.bf16 %v6111, %v6111
        %v6134 = vunpack.c.l.b16 %v4507
        %v6135 = vunpack.c.l.b16 %v4508
        %v6136 = vunpack.c.l.b16 %v4509
        %v6137 = vunpack.c.l.b16 %v4510
        %v6138 = vunpack.c.l.b16 %v4511
        %v6139 = vunpack.c.l.b16 %v4512
        %v6140 = vunpack.c.l.b16 %v4513
        %v6141 = vunpack.c.l.b16 %v4514
        %v6142 = vpack.c.b16 %v6135, %v6134
        %v6143 = vpack.c.b16 %v6137, %v6136
        %v6144 = vpack.c.b16 %v6139, %v6138
        %v6145 = vpack.c.b16 %v6141, %v6140
        %v6151 = vsel %vm4942, %v6121, 0
        %v6154 = vsel %vm4942, %v6122, 0
        %v6157 = vsel %vm4942, %v6123, 0
        %v6160 = vsel %vm4942, %v6124, 0
        %v6163 = vsel %vm4942, %v6125, 0
        %6165 = vmatpush.bf16.msra.mxu0 0
        %6166 = vmatpush.bf16.msra.mxu0 0
        %6167 = vmatpush.bf16.msra.mxu0 0
        %6168 = vmatpush.bf16.msra.mxu0 0
        %6169 = vmatpush.bf16.msra.mxu0 %v6145
        %6170 = vmatpush.bf16.msra.mxu0 %v6144
        %6171 = vmatpush.bf16.msra.mxu0 %v6143
        %6172 = vmatpush.bf16.msra.mxu0 %v6142
        %6173 = vmatmul.bf16.gmra.mxu0 %v6151
        %v6174 = vpop.f32.mrf.mxu0
        %v6175 = vadd.f32 0.0, %v6174
        %v6176 = vpop.f32.mrf.mxu0
        %v6177 = vadd.f32 0.0, %v6176
        %6178 = vmatmul.bf16.gmra.mxu0 %v6154
        %v6179 = vpop.f32.mrf.mxu0
        %v6180 = vadd.f32 0.0, %v6179
        %v6181 = vpop.f32.mrf.mxu0
        %v6182 = vadd.f32 0.0, %v6181
        %6183 = vmatmul.bf16.gmra.mxu0 %v6157
        %v6184 = vpop.f32.mrf.mxu0
        %v6185 = vadd.f32 0.0, %v6184
        %v6186 = vpop.f32.mrf.mxu0
        %v6187 = vadd.f32 0.0, %v6186
        %6188 = vmatmul.bf16.gmra.mxu0 %v6160
        %v6189 = vpop.f32.mrf.mxu0
        %v6190 = vadd.f32 0.0, %v6189
        %v6191 = vpop.f32.mrf.mxu0
        %v6192 = vadd.f32 0.0, %v6191
        %6193 = vmatmul.bf16.gmra.mxu0 %v6163
        %v6194 = vpop.f32.mrf.mxu0
        %v6195 = vadd.f32 0.0, %v6194
        %v6196 = vpop.f32.mrf.mxu0
        %6197 = vdwg.mxu0
        %v6198 = vadd.f32 %v5912, %v6175
        %v6199 = vadd.f32 %v5913, %v6177
        %v6200 = vadd.f32 %v5914, %v6180
        %v6201 = vadd.f32 %v5915, %v6182
        %v6202 = vadd.f32 %v5916, %v6185
        %v6203 = vadd.f32 %v5917, %v6187
        %v6204 = vadd.f32 %v5918, %v6190
        %v6205 = vadd.f32 %v5919, %v6192
        %v6206 = vadd.f32 %v5920, %v6195
        %6215 = vst [vmem:[#allocation1] sm:$0xff] %v3698
        %s6216 = scalar_lea.vmem [#allocation1], 6
        %v6217 = vld [vmem:[%s6216] ss:$9 sm:$0xff]
        %s6218 = scalar_lea.vmem [#allocation1], 7
        %v6219 = vld [vmem:[%s6218] ss:$9 sm:$0xff]
        %6220 = vst [vmem:[#allocation1] sm:$0xff] %v3700
        %v6221 = vld [vmem:[#allocation1] ss:$9 sm:$0xff]
        %s6222 = scalar_lea.vmem [#allocation1], 1
        %v6223 = vld [vmem:[%s6222] ss:$9 sm:$0xff]
        %s6224 = scalar_lea.vmem [#allocation1], 2
        %v6225 = vld [vmem:[%s6224] ss:$9 sm:$0xff]
        %s6226 = scalar_lea.vmem [#allocation1], 3
        %v6227 = vld [vmem:[%s6226] ss:$9 sm:$0xff]
        %s6228 = scalar_lea.vmem [#allocation1], 4
        %v6229 = vld [vmem:[%s6228] ss:$9 sm:$0xff]
        %s6230 = scalar_lea.vmem [#allocation1], 5
        %v6231 = vld [vmem:[%s6230] ss:$9 sm:$0xff]
        %v6232 = vld [vmem:[%s6216] ss:$9 sm:$0xff]
        %6233 = vst [vmem:[#allocation1] sm:$0xff] %v3806
        %v6234 = vld [vmem:[%s6216] ss:$9 sm:$0xff]
        %v6235 = vld [vmem:[%s6218] ss:$9 sm:$0xff]
        %6236 = vst [vmem:[#allocation1] sm:$0xff] %v3808
        %v6237 = vld [vmem:[#allocation1] ss:$9 sm:$0xff]
        %v6238 = vld [vmem:[%s6222] ss:$9 sm:$0xff]
        %v6239 = vld [vmem:[%s6224] ss:$9 sm:$0xff]
        %v6240 = vld [vmem:[%s6226] ss:$9 sm:$0xff]
        %v6241 = vld [vmem:[%s6228] ss:$9 sm:$0xff]
        %v6242 = vld [vmem:[%s6230] ss:$9 sm:$0xff]
        %v6243 = vld [vmem:[%s6216] ss:$9 sm:$0xff]
        %6244 = vst [vmem:[#allocation1] sm:$0xff] %v3914
        %v6245 = vld [vmem:[%s6216] ss:$9 sm:$0xff]
        %v6246 = vld [vmem:[%s6218] ss:$9 sm:$0xff]
        %6247 = vst [vmem:[#allocation1] sm:$0xff] %v3916
        %v6248 = vld [vmem:[#allocation1] ss:$9 sm:$0xff]
        %v6249 = vld [vmem:[%s6222] ss:$9 sm:$0xff]
        %v6250 = vld [vmem:[%s6224] ss:$9 sm:$0xff]
        %v6251 = vld [vmem:[%s6226] ss:$9 sm:$0xff]
        %v6252 = vld [vmem:[%s6228] ss:$9 sm:$0xff]
        %v6253 = vld [vmem:[%s6230] ss:$9 sm:$0xff]
        %v6254 = vld [vmem:[%s6216] ss:$9 sm:$0xff]
        %6255 = vst [vmem:[#allocation1] sm:$0xff] %v4022
        %v6256 = vld [vmem:[%s6216] ss:$9 sm:$0xff]
        %v6257 = vld [vmem:[%s6218] ss:$9 sm:$0xff]
        %6258 = vst [vmem:[#allocation1] sm:$0xff] %v4024
        %v6259 = vld [vmem:[#allocation1] ss:$9 sm:$0xff]
        %v6260 = vld [vmem:[%s6222] ss:$9 sm:$0xff]
        %v6261 = vld [vmem:[%s6224] ss:$9 sm:$0xff]
        %v6262 = vld [vmem:[%s6226] ss:$9 sm:$0xff]
        %v6263 = vld [vmem:[%s6228] ss:$9 sm:$0xff]
        %v6264 = vld [vmem:[%s6230] ss:$9 sm:$0xff]
        %v6265 = vld [vmem:[%s6216] ss:$9 sm:$0xff]
        %6266 = vst [vmem:[#allocation1] sm:$0xff] %v4130
        %v6267 = vld [vmem:[%s6216] ss:$9 sm:$0xff]
        %v6268 = vld [vmem:[%s6218] ss:$9 sm:$0xff]
        %6269 = vst [vmem:[#allocation1] sm:$0xff] %v4132
        %v6270 = vld [vmem:[#allocation1] ss:$9 sm:$0xff]
        %v6271 = vld [vmem:[%s6222] ss:$9 sm:$0xff]
        %v6272 = vld [vmem:[%s6224] ss:$9 sm:$0xff]
        %v6273 = vld [vmem:[%s6226] ss:$9 sm:$0xff]
        %v6274 = vld [vmem:[%s6228] ss:$9 sm:$0xff]
        %v6275 = vld [vmem:[%s6230] ss:$9 sm:$0xff]
        %v6276 = vld [vmem:[%s6216] ss:$9 sm:$0xff]
        %6277 = vst [vmem:[#allocation1] sm:$0xff] %v4238
        %v6278 = vld [vmem:[%s6216] ss:$9 sm:$0xff]
        %v6279 = vld [vmem:[%s6218] ss:$9 sm:$0xff]
        %6280 = vst [vmem:[#allocation1] sm:$0xff] %v4240
        %v6281 = vld [vmem:[#allocation1] ss:$9 sm:$0xff]
        %v6282 = vld [vmem:[%s6222] ss:$9 sm:$0xff]
        %v6283 = vld [vmem:[%s6224] ss:$9 sm:$0xff]
        %v6284 = vld [vmem:[%s6226] ss:$9 sm:$0xff]
        %v6285 = vld [vmem:[%s6228] ss:$9 sm:$0xff]
        %v6286 = vld [vmem:[%s6230] ss:$9 sm:$0xff]
        %v6287 = vld [vmem:[%s6216] ss:$9 sm:$0xff]
        %6288 = vst [vmem:[#allocation1] sm:$0xff] %v4346
        %v6289 = vld [vmem:[%s6216] ss:$9 sm:$0xff]
        %v6290 = vld [vmem:[%s6218] ss:$9 sm:$0xff]
        %6291 = vst [vmem:[#allocation1] sm:$0xff] %v4348
        %v6292 = vld [vmem:[#allocation1] ss:$9 sm:$0xff]
        %v6293 = vld [vmem:[%s6222] ss:$9 sm:$0xff]
        %v6294 = vld [vmem:[%s6224] ss:$9 sm:$0xff]
        %v6295 = vld [vmem:[%s6226] ss:$9 sm:$0xff]
        %v6296 = vld [vmem:[%s6228] ss:$9 sm:$0xff]
        %v6297 = vld [vmem:[%s6230] ss:$9 sm:$0xff]
        %v6298 = vld [vmem:[%s6216] ss:$9 sm:$0xff]
        %6299 = vst [vmem:[#allocation1] sm:$0xff] %v4454
        %v6300 = vld [vmem:[%s6216] ss:$9 sm:$0xff]
        %v6301 = vld [vmem:[%s6218] ss:$9 sm:$0xff]
        %6302 = vst [vmem:[#allocation1] sm:$0xff] %v4456
        %v6303 = vld [vmem:[#allocation1] ss:$9 sm:$0xff]
        %v6304 = vld [vmem:[%s6222] ss:$9 sm:$0xff]
        %v6305 = vld [vmem:[%s6224] ss:$9 sm:$0xff]
        %v6306 = vld [vmem:[%s6226] ss:$9 sm:$0xff]
        %v6307 = vld [vmem:[%s6228] ss:$9 sm:$0xff]
        %v6308 = vld [vmem:[%s6230] ss:$9 sm:$0xff]
        %v6309 = vld [vmem:[%s6216] ss:$9 sm:$0xff]
        %6310 = vst [vmem:[#allocation1] ss:$9 sm:$0xff] %v6217
        %s6311 = scalar_lea.vmem [#allocation1], 1
        %6312 = vst [vmem:[%s6311] ss:$9 sm:$0xff] %v6219
        %s6313 = scalar_lea.vmem [#allocation1], 2
        %6314 = vst [vmem:[%s6313] ss:$9 sm:$0xff] %v6221
        %s6315 = scalar_lea.vmem [#allocation1], 3
        %6316 = vst [vmem:[%s6315] ss:$9 sm:$0xff] %v6223
        %s6317 = scalar_lea.vmem [#allocation1], 4
        %6318 = vst [vmem:[%s6317] ss:$9 sm:$0xff] %v6225
        %s6319 = scalar_lea.vmem [#allocation1], 5
        %6320 = vst [vmem:[%s6319] ss:$9 sm:$0xff] %v6227
        %s6321 = scalar_lea.vmem [#allocation1], 6
        %6322 = vst [vmem:[%s6321] ss:$9 sm:$0xff] %v6229
        %s6323 = scalar_lea.vmem [#allocation1], 7
        %6324 = vst [vmem:[%s6323] ss:$9 sm:$0xff] %v6231
        %v6325 = vld [vmem:[#allocation1] sm:$0xff]
        %6326 = vst [vmem:[#allocation1] ss:$9 sm:$0xff] %v6232
        %6327 = vst [vmem:[%s6311] ss:$9 sm:$0xff] %v6234
        %6328 = vst [vmem:[%s6313] ss:$9 sm:$0xff] %v6235
        %6329 = vst [vmem:[%s6315] ss:$9 sm:$0xff] %v6237
        %6330 = vst [vmem:[%s6317] ss:$9 sm:$0xff] %v6238
        %6331 = vst [vmem:[%s6319] ss:$9 sm:$0xff] %v6239
        %6332 = vst [vmem:[%s6321] ss:$9 sm:$0xff] %v6240
        %6333 = vst [vmem:[%s6323] ss:$9 sm:$0xff] %v6241
        %v6334 = vld [vmem:[#allocation1] sm:$0xff]
        %6335 = vst [vmem:[#allocation1] ss:$9 sm:$0xff] %v6242
        %6336 = vst [vmem:[%s6311] ss:$9 sm:$0xff] %v6243
        %6337 = vst [vmem:[%s6313] ss:$9 sm:$0xff] %v6245
        %6338 = vst [vmem:[%s6315] ss:$9 sm:$0xff] %v6246
        %6339 = vst [vmem:[%s6317] ss:$9 sm:$0xff] %v6248
        %6340 = vst [vmem:[%s6319] ss:$9 sm:$0xff] %v6249
        %6341 = vst [vmem:[%s6321] ss:$9 sm:$0xff] %v6250
        %6342 = vst [vmem:[%s6323] ss:$9 sm:$0xff] %v6251
        %v6343 = vld [vmem:[#allocation1] sm:$0xff]
        %6344 = vst [vmem:[#allocation1] ss:$9 sm:$0xff] %v6252
        %6345 = vst [vmem:[%s6311] ss:$9 sm:$0xff] %v6253
        %6346 = vst [vmem:[%s6313] ss:$9 sm:$0xff] %v6254
        %6347 = vst [vmem:[%s6315] ss:$9 sm:$0xff] %v6256
        %6348 = vst [vmem:[%s6317] ss:$9 sm:$0xff] %v6257
        %6349 = vst [vmem:[%s6319] ss:$9 sm:$0xff] %v6259
        %6350 = vst [vmem:[%s6321] ss:$9 sm:$0xff] %v6260
        %6351 = vst [vmem:[%s6323] ss:$9 sm:$0xff] %v6261
        %v6352 = vld [vmem:[#allocation1] sm:$0xff]
        %6353 = vst [vmem:[#allocation1] ss:$9 sm:$0xff] %v6262
        %6354 = vst [vmem:[%s6311] ss:$9 sm:$0xff] %v6263
        %6355 = vst [vmem:[%s6313] ss:$9 sm:$0xff] %v6264
        %6356 = vst [vmem:[%s6315] ss:$9 sm:$0xff] %v6265
        %6357 = vst [vmem:[%s6317] ss:$9 sm:$0xff] %v6267
        %6358 = vst [vmem:[%s6319] ss:$9 sm:$0xff] %v6268
        %6359 = vst [vmem:[%s6321] ss:$9 sm:$0xff] %v6270
        %6360 = vst [vmem:[%s6323] ss:$9 sm:$0xff] %v6271
        %v6361 = vld [vmem:[#allocation1] sm:$0xff]
        %6362 = vst [vmem:[#allocation1] ss:$9 sm:$0xff] %v6272
        %6363 = vst [vmem:[%s6311] ss:$9 sm:$0xff] %v6273
        %6364 = vst [vmem:[%s6313] ss:$9 sm:$0xff] %v6274
        %6365 = vst [vmem:[%s6315] ss:$9 sm:$0xff] %v6275
        %6366 = vst [vmem:[%s6317] ss:$9 sm:$0xff] %v6276
        %6367 = vst [vmem:[%s6319] ss:$9 sm:$0xff] %v6278
        %6368 = vst [vmem:[%s6321] ss:$9 sm:$0xff] %v6279
        %6369 = vst [vmem:[%s6323] ss:$9 sm:$0xff] %v6281
        %v6370 = vld [vmem:[#allocation1] sm:$0xff]
        %6371 = vst [vmem:[#allocation1] ss:$9 sm:$0xff] %v6282
        %6372 = vst [vmem:[%s6311] ss:$9 sm:$0xff] %v6283
        %6373 = vst [vmem:[%s6313] ss:$9 sm:$0xff] %v6284
        %6374 = vst [vmem:[%s6315] ss:$9 sm:$0xff] %v6285
        %6375 = vst [vmem:[%s6317] ss:$9 sm:$0xff] %v6286
        %6376 = vst [vmem:[%s6319] ss:$9 sm:$0xff] %v6287
        %6377 = vst [vmem:[%s6321] ss:$9 sm:$0xff] %v6289
        %6378 = vst [vmem:[%s6323] ss:$9 sm:$0xff] %v6290
        %v6379 = vld [vmem:[#allocation1] sm:$0xff]
        %6380 = vst [vmem:[#allocation1] ss:$9 sm:$0xff] %v6292
        %6381 = vst [vmem:[%s6311] ss:$9 sm:$0xff] %v6293
        %6382 = vst [vmem:[%s6313] ss:$9 sm:$0xff] %v6294
        %6383 = vst [vmem:[%s6315] ss:$9 sm:$0xff] %v6295
        %6384 = vst [vmem:[%s6317] ss:$9 sm:$0xff] %v6296
        %6385 = vst [vmem:[%s6319] ss:$9 sm:$0xff] %v6297
        %6386 = vst [vmem:[%s6321] ss:$9 sm:$0xff] %v6298
        %6387 = vst [vmem:[%s6323] ss:$9 sm:$0xff] %v6300
        %v6388 = vld [vmem:[#allocation1] sm:$0xff]
        %6389 = vst [vmem:[#allocation1] ss:$9 sm:$0xff] %v6301
        %6390 = vst [vmem:[%s6311] ss:$9 sm:$0xff] %v6303
        %6391 = vst [vmem:[%s6313] ss:$9 sm:$0xff] %v6304
        %6392 = vst [vmem:[%s6315] ss:$9 sm:$0xff] %v6305
        %6393 = vst [vmem:[%s6317] ss:$9 sm:$0xff] %v6306
        %6394 = vst [vmem:[%s6319] ss:$9 sm:$0xff] %v6307
        %6395 = vst [vmem:[%s6321] ss:$9 sm:$0xff] %v6308
        %6396 = vst [vmem:[%s6323] ss:$9 sm:$0xff] %v6309
        %v6397 = vld [vmem:[#allocation1] sm:$0xff]
        %v6407 = vpack.c.bf16 %v6334, %v6325
        %v6408 = vpack.c.bf16 %v6352, %v6343
        %v6409 = vpack.c.bf16 %v6370, %v6361
        %v6410 = vpack.c.bf16 %v6388, %v6379
        %v6411 = vpack.c.bf16 %v6397, %v6397
        %v6420 = vunpack.c.l.b16 %v4515
        %v6421 = vunpack.c.l.b16 %v4516
        %v6422 = vunpack.c.l.b16 %v4517
        %v6423 = vunpack.c.l.b16 %v4518
        %v6424 = vunpack.c.l.b16 %v4519
        %v6425 = vunpack.c.l.b16 %v4520
        %v6426 = vunpack.c.l.b16 %v4521
        %v6427 = vunpack.c.l.b16 %v4522
        %v6428 = vpack.c.b16 %v6421, %v6420
        %v6429 = vpack.c.b16 %v6423, %v6422
        %v6430 = vpack.c.b16 %v6425, %v6424
        %v6431 = vpack.c.b16 %v6427, %v6426
        %v6437 = vsel %vm4942, %v6407, 0
        %v6440 = vsel %vm4942, %v6408, 0
        %v6443 = vsel %vm4942, %v6409, 0
        %v6446 = vsel %vm4942, %v6410, 0
        %v6449 = vsel %vm4942, %v6411, 0
        %6451 = vmatpush.bf16.msra.mxu0 0
        %6452 = vmatpush.bf16.msra.mxu0 0
        %6453 = vmatpush.bf16.msra.mxu0 0
        %6454 = vmatpush.bf16.msra.mxu0 0
        %6455 = vmatpush.bf16.msra.mxu0 %v6431
        %6456 = vmatpush.bf16.msra.mxu0 %v6430
        %6457 = vmatpush.bf16.msra.mxu0 %v6429
        %6458 = vmatpush.bf16.msra.mxu0 %v6428
        %6459 = vmatmul.bf16.gmra.mxu0 %v6437
        %v6460 = vpop.f32.mrf.mxu0
        %v6461 = vadd.f32 0.0, %v6460
        %v6462 = vpop.f32.mrf.mxu0
        %v6463 = vadd.f32 0.0, %v6462
        %6464 = vmatmul.bf16.gmra.mxu0 %v6440
        %v6465 = vpop.f32.mrf.mxu0
        %v6466 = vadd.f32 0.0, %v6465
        %v6467 = vpop.f32.mrf.mxu0
        %v6468 = vadd.f32 0.0, %v6467
        %6469 = vmatmul.bf16.gmra.mxu0 %v6443
        %v6470 = vpop.f32.mrf.mxu0
        %v6471 = vadd.f32 0.0, %v6470
        %v6472 = vpop.f32.mrf.mxu0
        %v6473 = vadd.f32 0.0, %v6472
        %6474 = vmatmul.bf16.gmra.mxu0 %v6446
        %v6475 = vpop.f32.mrf.mxu0
        %v6476 = vadd.f32 0.0, %v6475
        %v6477 = vpop.f32.mrf.mxu0
        %v6478 = vadd.f32 0.0, %v6477
        %6479 = vmatmul.bf16.gmra.mxu0 %v6449
        %v6480 = vpop.f32.mrf.mxu0
        %v6481 = vadd.f32 0.0, %v6480
        %v6482 = vpop.f32.mrf.mxu0
        %6483 = vdwg.mxu0
        %v6484 = vadd.f32 %v6198, %v6461
        %v6485 = vadd.f32 %v6199, %v6463
        %v6486 = vadd.f32 %v6200, %v6466
        %v6487 = vadd.f32 %v6201, %v6468
        %v6488 = vadd.f32 %v6202, %v6471
        %v6489 = vadd.f32 %v6203, %v6473
        %v6490 = vadd.f32 %v6204, %v6476
        %v6491 = vadd.f32 %v6205, %v6478
        %v6492 = vadd.f32 %v6206, %v6481
        %6501 = vst [vmem:[#allocation1] sm:$0xff] %v3700
        %s6502 = scalar_lea.vmem [#allocation1], 7
        %v6503 = vld [vmem:[%s6502] ss:$9 sm:$0xff]
        %6504 = vst [vmem:[#allocation1] sm:$0xff] %v3703
        %v6505 = vld [vmem:[#allocation1] ss:$9 sm:$0xff]
        %s6506 = scalar_lea.vmem [#allocation1], 1
        %v6507 = vld [vmem:[%s6506] ss:$9 sm:$0xff]
        %s6508 = scalar_lea.vmem [#allocation1], 2
        %v6509 = vld [vmem:[%s6508] ss:$9 sm:$0xff]
        %s6510 = scalar_lea.vmem [#allocation1], 3
        %v6511 = vld [vmem:[%s6510] ss:$9 sm:$0xff]
        %s6512 = scalar_lea.vmem [#allocation1], 4
        %v6513 = vld [vmem:[%s6512] ss:$9 sm:$0xff]
        %s6514 = scalar_lea.vmem [#allocation1], 5
        %v6515 = vld [vmem:[%s6514] ss:$9 sm:$0xff]
        %s6516 = scalar_lea.vmem [#allocation1], 6
        %v6517 = vld [vmem:[%s6516] ss:$9 sm:$0xff]
        %v6518 = vld [vmem:[%s6502] ss:$9 sm:$0xff]
        %6519 = vst [vmem:[#allocation1] sm:$0xff] %v3808
        %v6520 = vld [vmem:[%s6502] ss:$9 sm:$0xff]
        %6521 = vst [vmem:[#allocation1] sm:$0xff] %v3811
        %v6522 = vld [vmem:[#allocation1] ss:$9 sm:$0xff]
        %v6523 = vld [vmem:[%s6506] ss:$9 sm:$0xff]
        %v6524 = vld [vmem:[%s6508] ss:$9 sm:$0xff]
        %v6525 = vld [vmem:[%s6510] ss:$9 sm:$0xff]
        %v6526 = vld [vmem:[%s6512] ss:$9 sm:$0xff]
        %v6527 = vld [vmem:[%s6514] ss:$9 sm:$0xff]
        %v6528 = vld [vmem:[%s6516] ss:$9 sm:$0xff]
        %v6529 = vld [vmem:[%s6502] ss:$9 sm:$0xff]
        %6530 = vst [vmem:[#allocation1] sm:$0xff] %v3916
        %v6531 = vld [vmem:[%s6502] ss:$9 sm:$0xff]
        %6532 = vst [vmem:[#allocation1] sm:$0xff] %v3919
        %v6533 = vld [vmem:[#allocation1] ss:$9 sm:$0xff]
        %v6534 = vld [vmem:[%s6506] ss:$9 sm:$0xff]
        %v6535 = vld [vmem:[%s6508] ss:$9 sm:$0xff]
        %v6536 = vld [vmem:[%s6510] ss:$9 sm:$0xff]
        %v6537 = vld [vmem:[%s6512] ss:$9 sm:$0xff]
        %v6538 = vld [vmem:[%s6514] ss:$9 sm:$0xff]
        %v6539 = vld [vmem:[%s6516] ss:$9 sm:$0xff]
        %v6540 = vld [vmem:[%s6502] ss:$9 sm:$0xff]
        %6541 = vst [vmem:[#allocation1] sm:$0xff] %v4024
        %v6542 = vld [vmem:[%s6502] ss:$9 sm:$0xff]
        %6543 = vst [vmem:[#allocation1] sm:$0xff] %v4027
        %v6544 = vld [vmem:[#allocation1] ss:$9 sm:$0xff]
        %v6545 = vld [vmem:[%s6506] ss:$9 sm:$0xff]
        %v6546 = vld [vmem:[%s6508] ss:$9 sm:$0xff]
        %v6547 = vld [vmem:[%s6510] ss:$9 sm:$0xff]
        %v6548 = vld [vmem:[%s6512] ss:$9 sm:$0xff]
        %v6549 = vld [vmem:[%s6514] ss:$9 sm:$0xff]
        %v6550 = vld [vmem:[%s6516] ss:$9 sm:$0xff]
        %v6551 = vld [vmem:[%s6502] ss:$9 sm:$0xff]
        %6552 = vst [vmem:[#allocation1] sm:$0xff] %v4132
        %v6553 = vld [vmem:[%s6502] ss:$9 sm:$0xff]
        %6554 = vst [vmem:[#allocation1] sm:$0xff] %v4135
        %v6555 = vld [vmem:[#allocation1] ss:$9 sm:$0xff]
        %v6556 = vld [vmem:[%s6506] ss:$9 sm:$0xff]
        %v6557 = vld [vmem:[%s6508] ss:$9 sm:$0xff]
        %v6558 = vld [vmem:[%s6510] ss:$9 sm:$0xff]
        %v6559 = vld [vmem:[%s6512] ss:$9 sm:$0xff]
        %v6560 = vld [vmem:[%s6514] ss:$9 sm:$0xff]
        %v6561 = vld [vmem:[%s6516] ss:$9 sm:$0xff]
        %v6562 = vld [vmem:[%s6502] ss:$9 sm:$0xff]
        %6563 = vst [vmem:[#allocation1] sm:$0xff] %v4240
        %v6564 = vld [vmem:[%s6502] ss:$9 sm:$0xff]
        %6565 = vst [vmem:[#allocation1] sm:$0xff] %v4243
        %v6566 = vld [vmem:[#allocation1] ss:$9 sm:$0xff]
        %v6567 = vld [vmem:[%s6506] ss:$9 sm:$0xff]
        %v6568 = vld [vmem:[%s6508] ss:$9 sm:$0xff]
        %v6569 = vld [vmem:[%s6510] ss:$9 sm:$0xff]
        %v6570 = vld [vmem:[%s6512] ss:$9 sm:$0xff]
        %v6571 = vld [vmem:[%s6514] ss:$9 sm:$0xff]
        %v6572 = vld [vmem:[%s6516] ss:$9 sm:$0xff]
        %v6573 = vld [vmem:[%s6502] ss:$9 sm:$0xff]
        %6574 = vst [vmem:[#allocation1] sm:$0xff] %v4348
        %v6575 = vld [vmem:[%s6502] ss:$9 sm:$0xff]
        %6576 = vst [vmem:[#allocation1] sm:$0xff] %v4351
        %v6577 = vld [vmem:[#allocation1] ss:$9 sm:$0xff]
        %v6578 = vld [vmem:[%s6506] ss:$9 sm:$0xff]
        %v6579 = vld [vmem:[%s6508] ss:$9 sm:$0xff]
        %v6580 = vld [vmem:[%s6510] ss:$9 sm:$0xff]
        %v6581 = vld [vmem:[%s6512] ss:$9 sm:$0xff]
        %v6582 = vld [vmem:[%s6514] ss:$9 sm:$0xff]
        %v6583 = vld [vmem:[%s6516] ss:$9 sm:$0xff]
        %v6584 = vld [vmem:[%s6502] ss:$9 sm:$0xff]
        %6585 = vst [vmem:[#allocation1] sm:$0xff] %v4456
        %v6586 = vld [vmem:[%s6502] ss:$9 sm:$0xff]
        %6587 = vst [vmem:[#allocation1] sm:$0xff] %v4459
        %v6588 = vld [vmem:[#allocation1] ss:$9 sm:$0xff]
        %v6589 = vld [vmem:[%s6506] ss:$9 sm:$0xff]
        %v6590 = vld [vmem:[%s6508] ss:$9 sm:$0xff]
        %v6591 = vld [vmem:[%s6510] ss:$9 sm:$0xff]
        %v6592 = vld [vmem:[%s6512] ss:$9 sm:$0xff]
        %v6593 = vld [vmem:[%s6514] ss:$9 sm:$0xff]
        %v6594 = vld [vmem:[%s6516] ss:$9 sm:$0xff]
        %v6595 = vld [vmem:[%s6502] ss:$9 sm:$0xff]
        %6596 = vst [vmem:[#allocation1] ss:$9 sm:$0xff] %v6503
        %s6597 = scalar_lea.vmem [#allocation1], 1
        %6598 = vst [vmem:[%s6597] ss:$9 sm:$0xff] %v6505
        %s6599 = scalar_lea.vmem [#allocation1], 2
        %6600 = vst [vmem:[%s6599] ss:$9 sm:$0xff] %v6507
        %s6601 = scalar_lea.vmem [#allocation1], 3
        %6602 = vst [vmem:[%s6601] ss:$9 sm:$0xff] %v6509
        %s6603 = scalar_lea.vmem [#allocation1], 4
        %6604 = vst [vmem:[%s6603] ss:$9 sm:$0xff] %v6511
        %s6605 = scalar_lea.vmem [#allocation1], 5
        %6606 = vst [vmem:[%s6605] ss:$9 sm:$0xff] %v6513
        %s6607 = scalar_lea.vmem [#allocation1], 6
        %6608 = vst [vmem:[%s6607] ss:$9 sm:$0xff] %v6515
        %s6609 = scalar_lea.vmem [#allocation1], 7
        %6610 = vst [vmem:[%s6609] ss:$9 sm:$0xff] %v6517
        %v6611 = vld [vmem:[#allocation1] sm:$0xff]
        %6612 = vst [vmem:[#allocation1] ss:$9 sm:$0xff] %v6518
        %6613 = vst [vmem:[%s6597] ss:$9 sm:$0xff] %v6520
        %6614 = vst [vmem:[%s6599] ss:$9 sm:$0xff] %v6522
        %6615 = vst [vmem:[%s6601] ss:$9 sm:$0xff] %v6523
        %6616 = vst [vmem:[%s6603] ss:$9 sm:$0xff] %v6524
        %6617 = vst [vmem:[%s6605] ss:$9 sm:$0xff] %v6525
        %6618 = vst [vmem:[%s6607] ss:$9 sm:$0xff] %v6526
        %6619 = vst [vmem:[%s6609] ss:$9 sm:$0xff] %v6527
        %v6620 = vld [vmem:[#allocation1] sm:$0xff]
        %6621 = vst [vmem:[#allocation1] ss:$9 sm:$0xff] %v6528
        %6622 = vst [vmem:[%s6597] ss:$9 sm:$0xff] %v6529
        %6623 = vst [vmem:[%s6599] ss:$9 sm:$0xff] %v6531
        %6624 = vst [vmem:[%s6601] ss:$9 sm:$0xff] %v6533
        %6625 = vst [vmem:[%s6603] ss:$9 sm:$0xff] %v6534
        %6626 = vst [vmem:[%s6605] ss:$9 sm:$0xff] %v6535
        %6627 = vst [vmem:[%s6607] ss:$9 sm:$0xff] %v6536
        %6628 = vst [vmem:[%s6609] ss:$9 sm:$0xff] %v6537
        %v6629 = vld [vmem:[#allocation1] sm:$0xff]
        %6630 = vst [vmem:[#allocation1] ss:$9 sm:$0xff] %v6538
        %6631 = vst [vmem:[%s6597] ss:$9 sm:$0xff] %v6539
        %6632 = vst [vmem:[%s6599] ss:$9 sm:$0xff] %v6540
        %6633 = vst [vmem:[%s6601] ss:$9 sm:$0xff] %v6542
        %6634 = vst [vmem:[%s6603] ss:$9 sm:$0xff] %v6544
        %6635 = vst [vmem:[%s6605] ss:$9 sm:$0xff] %v6545
        %6636 = vst [vmem:[%s6607] ss:$9 sm:$0xff] %v6546
        %6637 = vst [vmem:[%s6609] ss:$9 sm:$0xff] %v6547
        %v6638 = vld [vmem:[#allocation1] sm:$0xff]
        %6639 = vst [vmem:[#allocation1] ss:$9 sm:$0xff] %v6548
        %6640 = vst [vmem:[%s6597] ss:$9 sm:$0xff] %v6549
        %6641 = vst [vmem:[%s6599] ss:$9 sm:$0xff] %v6550
        %6642 = vst [vmem:[%s6601] ss:$9 sm:$0xff] %v6551
        %6643 = vst [vmem:[%s6603] ss:$9 sm:$0xff] %v6553
        %6644 = vst [vmem:[%s6605] ss:$9 sm:$0xff] %v6555
        %6645 = vst [vmem:[%s6607] ss:$9 sm:$0xff] %v6556
        %6646 = vst [vmem:[%s6609] ss:$9 sm:$0xff] %v6557
        %v6647 = vld [vmem:[#allocation1] sm:$0xff]
        %6648 = vst [vmem:[#allocation1] ss:$9 sm:$0xff] %v6558
        %6649 = vst [vmem:[%s6597] ss:$9 sm:$0xff] %v6559
        %6650 = vst [vmem:[%s6599] ss:$9 sm:$0xff] %v6560
        %6651 = vst [vmem:[%s6601] ss:$9 sm:$0xff] %v6561
        %6652 = vst [vmem:[%s6603] ss:$9 sm:$0xff] %v6562
        %6653 = vst [vmem:[%s6605] ss:$9 sm:$0xff] %v6564
        %6654 = vst [vmem:[%s6607] ss:$9 sm:$0xff] %v6566
        %6655 = vst [vmem:[%s6609] ss:$9 sm:$0xff] %v6567
        %v6656 = vld [vmem:[#allocation1] sm:$0xff]
        %6657 = vst [vmem:[#allocation1] ss:$9 sm:$0xff] %v6568
        %6658 = vst [vmem:[%s6597] ss:$9 sm:$0xff] %v6569
        %6659 = vst [vmem:[%s6599] ss:$9 sm:$0xff] %v6570
        %6660 = vst [vmem:[%s6601] ss:$9 sm:$0xff] %v6571
        %6661 = vst [vmem:[%s6603] ss:$9 sm:$0xff] %v6572
        %6662 = vst [vmem:[%s6605] ss:$9 sm:$0xff] %v6573
        %6663 = vst [vmem:[%s6607] ss:$9 sm:$0xff] %v6575
        %6664 = vst [vmem:[%s6609] ss:$9 sm:$0xff] %v6577
        %v6665 = vld [vmem:[#allocation1] sm:$0xff]
        %6666 = vst [vmem:[#allocation1] ss:$9 sm:$0xff] %v6578
        %6667 = vst [vmem:[%s6597] ss:$9 sm:$0xff] %v6579
        %6668 = vst [vmem:[%s6599] ss:$9 sm:$0xff] %v6580
        %6669 = vst [vmem:[%s6601] ss:$9 sm:$0xff] %v6581
        %6670 = vst [vmem:[%s6603] ss:$9 sm:$0xff] %v6582
        %6671 = vst [vmem:[%s6605] ss:$9 sm:$0xff] %v6583
        %6672 = vst [vmem:[%s6607] ss:$9 sm:$0xff] %v6584
        %6673 = vst [vmem:[%s6609] ss:$9 sm:$0xff] %v6586
        %v6674 = vld [vmem:[#allocation1] sm:$0xff]
        %6675 = vst [vmem:[#allocation1] ss:$9 sm:$0xff] %v6588
        %6676 = vst [vmem:[%s6597] ss:$9 sm:$0xff] %v6589
        %6677 = vst [vmem:[%s6599] ss:$9 sm:$0xff] %v6590
        %6678 = vst [vmem:[%s6601] ss:$9 sm:$0xff] %v6591
        %6679 = vst [vmem:[%s6603] ss:$9 sm:$0xff] %v6592
        %6680 = vst [vmem:[%s6605] ss:$9 sm:$0xff] %v6593
        %6681 = vst [vmem:[%s6607] ss:$9 sm:$0xff] %v6594
        %6682 = vst [vmem:[%s6609] ss:$9 sm:$0xff] %v6595
        %v6683 = vld [vmem:[#allocation1] sm:$0xff]
        %v6693 = vpack.c.bf16 %v6620, %v6611
        %v6694 = vpack.c.bf16 %v6638, %v6629
        %v6695 = vpack.c.bf16 %v6656, %v6647
        %v6696 = vpack.c.bf16 %v6674, %v6665
        %v6697 = vpack.c.bf16 %v6683, %v6683
        %v6706 = vunpack.c.l.b16 %v4523
        %v6707 = vunpack.c.l.b16 %v4524
        %v6708 = vunpack.c.l.b16 %v4525
        %v6709 = vunpack.c.l.b16 %v4526
        %v6710 = vunpack.c.l.b16 %v4527
        %v6711 = vunpack.c.l.b16 %v4528
        %v6712 = vunpack.c.l.b16 %v4529
        %v6713 = vunpack.c.l.b16 %v4530
        %v6714 = vpack.c.b16 %v6707, %v6706
        %v6715 = vpack.c.b16 %v6709, %v6708
        %v6716 = vpack.c.b16 %v6711, %v6710
        %v6717 = vpack.c.b16 %v6713, %v6712
        %v6723 = vsel %vm4942, %v6693, 0
        %v6726 = vsel %vm4942, %v6694, 0
        %v6729 = vsel %vm4942, %v6695, 0
        %v6732 = vsel %vm4942, %v6696, 0
        %v6735 = vsel %vm4942, %v6697, 0
        %6737 = vmatpush.bf16.msra.mxu0 0
        %6738 = vmatpush.bf16.msra.mxu0 0
        %6739 = vmatpush.bf16.msra.mxu0 0
        %6740 = vmatpush.bf16.msra.mxu0 0
        %6741 = vmatpush.bf16.msra.mxu0 %v6717
        %6742 = vmatpush.bf16.msra.mxu0 %v6716
        %6743 = vmatpush.bf16.msra.mxu0 %v6715
        %6744 = vmatpush.bf16.msra.mxu0 %v6714
        %6745 = vmatmul.bf16.gmra.mxu0 %v6723
        %v6746 = vpop.f32.mrf.mxu0
        %v6747 = vadd.f32 0.0, %v6746
        %v6748 = vpop.f32.mrf.mxu0
        %v6749 = vadd.f32 0.0, %v6748
        %6750 = vmatmul.bf16.gmra.mxu0 %v6726
        %v6751 = vpop.f32.mrf.mxu0
        %v6752 = vadd.f32 0.0, %v6751
        %v6753 = vpop.f32.mrf.mxu0
        %v6754 = vadd.f32 0.0, %v6753
        %6755 = vmatmul.bf16.gmra.mxu0 %v6729
        %v6756 = vpop.f32.mrf.mxu0
        %v6757 = vadd.f32 0.0, %v6756
        %v6758 = vpop.f32.mrf.mxu0
        %v6759 = vadd.f32 0.0, %v6758
        %6760 = vmatmul.bf16.gmra.mxu0 %v6732
        %v6761 = vpop.f32.mrf.mxu0
        %v6762 = vadd.f32 0.0, %v6761
        %v6763 = vpop.f32.mrf.mxu0
        %v6764 = vadd.f32 0.0, %v6763
        %6765 = vmatmul.bf16.gmra.mxu0 %v6735
        %v6766 = vpop.f32.mrf.mxu0
        %v6767 = vadd.f32 0.0, %v6766
        %v6768 = vpop.f32.mrf.mxu0
        %6769 = vdwg.mxu0
        %v6770 = vadd.f32 %v6484, %v6747
        %v6771 = vadd.f32 %v6485, %v6749
        %v6772 = vadd.f32 %v6486, %v6752
        %v6773 = vadd.f32 %v6487, %v6754
        %v6774 = vadd.f32 %v6488, %v6757
        %v6775 = vadd.f32 %v6489, %v6759
        %v6776 = vadd.f32 %v6490, %v6762
        %v6777 = vadd.f32 %v6491, %v6764
        %v6778 = vadd.f32 %v6492, %v6767
        %v6795 = vrot.slane %v3705, 1
        %v6796 = vrot.slane %v3705, 2
        %v6797 = vrot.slane %v3705, 3
        %v6798 = vrot.slane %v3705, 4
        %v6799 = vrot.slane %v3705, 5
        %v6800 = vrot.slane %v3705, 6
        %v6801 = vrot.slane %v3705, 7
        %v6802 = vrot.slane %v3813, 1
        %v6803 = vrot.slane %v3813, 2
        %v6804 = vrot.slane %v3813, 3
        %v6805 = vrot.slane %v3813, 4
        %v6806 = vrot.slane %v3813, 5
        %v6807 = vrot.slane %v3813, 6
        %v6808 = vrot.slane %v3813, 7
        %v6809 = vrot.slane %v3921, 1
        %v6810 = vrot.slane %v3921, 2
        %v6811 = vrot.slane %v3921, 3
        %v6812 = vrot.slane %v3921, 4
        %v6813 = vrot.slane %v3921, 5
        %v6814 = vrot.slane %v3921, 6
        %v6815 = vrot.slane %v3921, 7
        %v6816 = vrot.slane %v4029, 1
        %v6817 = vrot.slane %v4029, 2
        %v6818 = vrot.slane %v4029, 3
        %v6819 = vrot.slane %v4029, 4
        %v6820 = vrot.slane %v4029, 5
        %v6821 = vrot.slane %v4029, 6
        %v6822 = vrot.slane %v4029, 7
        %v6823 = vrot.slane %v4137, 1
        %v6824 = vrot.slane %v4137, 2
        %v6825 = vrot.slane %v4137, 3
        %v6826 = vrot.slane %v4137, 4
        %v6827 = vrot.slane %v4137, 5
        %v6828 = vrot.slane %v4137, 6
        %v6829 = vrot.slane %v4137, 7
        %v6830 = vrot.slane %v4245, 1
        %v6831 = vrot.slane %v4245, 2
        %v6832 = vrot.slane %v4245, 3
        %v6833 = vrot.slane %v4245, 4
        %v6834 = vrot.slane %v4245, 5
        %v6835 = vrot.slane %v4245, 6
        %v6836 = vrot.slane %v4245, 7
        %v6837 = vrot.slane %v4353, 1
        %v6838 = vrot.slane %v4353, 2
        %v6839 = vrot.slane %v4353, 3
        %v6840 = vrot.slane %v4353, 4
        %v6841 = vrot.slane %v4353, 5
        %v6842 = vrot.slane %v4353, 6
        %v6843 = vrot.slane %v4353, 7
        %v6844 = vrot.slane %v4461, 1
        %v6845 = vrot.slane %v4461, 2
        %v6846 = vrot.slane %v4461, 3
        %v6847 = vrot.slane %v4461, 4
        %v6848 = vrot.slane %v4461, 5
        %v6849 = vrot.slane %v4461, 6
        %v6850 = vrot.slane %v4461, 7
        %6851 = vst [vmem:[#allocation1] ss:$9 sm:$0xff] %v3705
        %s6852 = scalar_lea.vmem [#allocation1], 1
        %6853 = vst [vmem:[%s6852] ss:$9 sm:$0xff] %v6795
        %s6854 = scalar_lea.vmem [#allocation1], 2
        %6855 = vst [vmem:[%s6854] ss:$9 sm:$0xff] %v6796
        %s6856 = scalar_lea.vmem [#allocation1], 3
        %6857 = vst [vmem:[%s6856] ss:$9 sm:$0xff] %v6797
        %s6858 = scalar_lea.vmem [#allocation1], 4
        %6859 = vst [vmem:[%s6858] ss:$9 sm:$0xff] %v6798
        %s6860 = scalar_lea.vmem [#allocation1], 5
        %6861 = vst [vmem:[%s6860] ss:$9 sm:$0xff] %v6799
        %s6862 = scalar_lea.vmem [#allocation1], 6
        %6863 = vst [vmem:[%s6862] ss:$9 sm:$0xff] %v6800
        %s6864 = scalar_lea.vmem [#allocation1], 7
        %6865 = vst [vmem:[%s6864] ss:$9 sm:$0xff] %v6801
        %v6866 = vld [vmem:[#allocation1] sm:$0xff]
        %6867 = vst [vmem:[#allocation1] ss:$9 sm:$0xff] %v3708
        %6868 = vst [vmem:[%s6852] ss:$9 sm:$0xff] %v3813
        %6869 = vst [vmem:[%s6854] ss:$9 sm:$0xff] %v6802
        %6870 = vst [vmem:[%s6856] ss:$9 sm:$0xff] %v6803
        %6871 = vst [vmem:[%s6858] ss:$9 sm:$0xff] %v6804
        %6872 = vst [vmem:[%s6860] ss:$9 sm:$0xff] %v6805
        %6873 = vst [vmem:[%s6862] ss:$9 sm:$0xff] %v6806
        %6874 = vst [vmem:[%s6864] ss:$9 sm:$0xff] %v6807
        %v6875 = vld [vmem:[#allocation1] sm:$0xff]
        %6876 = vst [vmem:[#allocation1] ss:$9 sm:$0xff] %v6808
        %6877 = vst [vmem:[%s6852] ss:$9 sm:$0xff] %v3816
        %6878 = vst [vmem:[%s6854] ss:$9 sm:$0xff] %v3921
        %6879 = vst [vmem:[%s6856] ss:$9 sm:$0xff] %v6809
        %6880 = vst [vmem:[%s6858] ss:$9 sm:$0xff] %v6810
        %6881 = vst [vmem:[%s6860] ss:$9 sm:$0xff] %v6811
        %6882 = vst [vmem:[%s6862] ss:$9 sm:$0xff] %v6812
        %6883 = vst [vmem:[%s6864] ss:$9 sm:$0xff] %v6813
        %v6884 = vld [vmem:[#allocation1] sm:$0xff]
        %6885 = vst [vmem:[#allocation1] ss:$9 sm:$0xff] %v6814
        %6886 = vst [vmem:[%s6852] ss:$9 sm:$0xff] %v6815
        %6887 = vst [vmem:[%s6854] ss:$9 sm:$0xff] %v3924
        %6888 = vst [vmem:[%s6856] ss:$9 sm:$0xff] %v4029
        %6889 = vst [vmem:[%s6858] ss:$9 sm:$0xff] %v6816
        %6890 = vst [vmem:[%s6860] ss:$9 sm:$0xff] %v6817
        %6891 = vst [vmem:[%s6862] ss:$9 sm:$0xff] %v6818
        %6892 = vst [vmem:[%s6864] ss:$9 sm:$0xff] %v6819
        %v6893 = vld [vmem:[#allocation1] sm:$0xff]
        %6894 = vst [vmem:[#allocation1] ss:$9 sm:$0xff] %v6820
        %6895 = vst [vmem:[%s6852] ss:$9 sm:$0xff] %v6821
        %6896 = vst [vmem:[%s6854] ss:$9 sm:$0xff] %v6822
        %6897 = vst [vmem:[%s6856] ss:$9 sm:$0xff] %v4032
        %6898 = vst [vmem:[%s6858] ss:$9 sm:$0xff] %v4137
        %6899 = vst [vmem:[%s6860] ss:$9 sm:$0xff] %v6823
        %6900 = vst [vmem:[%s6862] ss:$9 sm:$0xff] %v6824
        %6901 = vst [vmem:[%s6864] ss:$9 sm:$0xff] %v6825
        %v6902 = vld [vmem:[#allocation1] sm:$0xff]
        %6903 = vst [vmem:[#allocation1] ss:$9 sm:$0xff] %v6826
        %6904 = vst [vmem:[%s6852] ss:$9 sm:$0xff] %v6827
        %6905 = vst [vmem:[%s6854] ss:$9 sm:$0xff] %v6828
        %6906 = vst [vmem:[%s6856] ss:$9 sm:$0xff] %v6829
        %6907 = vst [vmem:[%s6858] ss:$9 sm:$0xff] %v4140
        %6908 = vst [vmem:[%s6860] ss:$9 sm:$0xff] %v4245
        %6909 = vst [vmem:[%s6862] ss:$9 sm:$0xff] %v6830
        %6910 = vst [vmem:[%s6864] ss:$9 sm:$0xff] %v6831
        %v6911 = vld [vmem:[#allocation1] sm:$0xff]
        %6912 = vst [vmem:[#allocation1] ss:$9 sm:$0xff] %v6832
        %6913 = vst [vmem:[%s6852] ss:$9 sm:$0xff] %v6833
        %6914 = vst [vmem:[%s6854] ss:$9 sm:$0xff] %v6834
        %6915 = vst [vmem:[%s6856] ss:$9 sm:$0xff] %v6835
        %6916 = vst [vmem:[%s6858] ss:$9 sm:$0xff] %v6836
        %6917 = vst [vmem:[%s6860] ss:$9 sm:$0xff] %v4248
        %6918 = vst [vmem:[%s6862] ss:$9 sm:$0xff] %v4353
        %6919 = vst [vmem:[%s6864] ss:$9 sm:$0xff] %v6837
        %v6920 = vld [vmem:[#allocation1] sm:$0xff]
        %6921 = vst [vmem:[#allocation1] ss:$9 sm:$0xff] %v6838
        %6922 = vst [vmem:[%s6852] ss:$9 sm:$0xff] %v6839
        %6923 = vst [vmem:[%s6854] ss:$9 sm:$0xff] %v6840
        %6924 = vst [vmem:[%s6856] ss:$9 sm:$0xff] %v6841
        %6925 = vst [vmem:[%s6858] ss:$9 sm:$0xff] %v6842
        %6926 = vst [vmem:[%s6860] ss:$9 sm:$0xff] %v6843
        %6927 = vst [vmem:[%s6862] ss:$9 sm:$0xff] %v4356
        %6928 = vst [vmem:[%s6864] ss:$9 sm:$0xff] %v4461
        %v6929 = vld [vmem:[#allocation1] sm:$0xff]
        %6930 = vst [vmem:[#allocation1] ss:$9 sm:$0xff] %v6844
        %6931 = vst [vmem:[%s6852] ss:$9 sm:$0xff] %v6845
        %6932 = vst [vmem:[%s6854] ss:$9 sm:$0xff] %v6846
        %6933 = vst [vmem:[%s6856] ss:$9 sm:$0xff] %v6847
        %6934 = vst [vmem:[%s6858] ss:$9 sm:$0xff] %v6848
        %6935 = vst [vmem:[%s6860] ss:$9 sm:$0xff] %v6849
        %6936 = vst [vmem:[%s6862] ss:$9 sm:$0xff] %v6850
        %6937 = vst [vmem:[%s6864] ss:$9 sm:$0xff] %v4464
        %v6938 = vld [vmem:[#allocation1] sm:$0xff]
        %v6948 = vpack.c.bf16 %v6875, %v6866
        %v6949 = vpack.c.bf16 %v6893, %v6884
        %v6950 = vpack.c.bf16 %v6911, %v6902
        %v6951 = vpack.c.bf16 %v6929, %v6920
        %v6952 = vpack.c.bf16 %v6938, %v6938
        %v6961 = vunpack.c.l.b16 %v4531
        %v6962 = vunpack.c.l.b16 %v4532
        %v6963 = vunpack.c.l.b16 %v4533
        %v6964 = vunpack.c.l.b16 %v4534
        %v6965 = vunpack.c.l.b16 %v4535
        %v6966 = vunpack.c.l.b16 %v4536
        %v6967 = vunpack.c.l.b16 %v4537
        %v6968 = vunpack.c.l.b16 %v4538
        %v6969 = vpack.c.b16 %v6962, %v6961
        %v6970 = vpack.c.b16 %v6964, %v6963
        %v6971 = vpack.c.b16 %v6966, %v6965
        %v6972 = vpack.c.b16 %v6968, %v6967
        %v6978 = vsel %vm4942, %v6948, 0
        %v6981 = vsel %vm4942, %v6949, 0
        %v6984 = vsel %vm4942, %v6950, 0
        %v6987 = vsel %vm4942, %v6951, 0
        %v6990 = vsel %vm4942, %v6952, 0
        %6992 = vmatpush.bf16.msra.mxu0 0
        %6993 = vmatpush.bf16.msra.mxu0 0
        %6994 = vmatpush.bf16.msra.mxu0 0
        %6995 = vmatpush.bf16.msra.mxu0 0
        %6996 = vmatpush.bf16.msra.mxu0 %v6972
        %6997 = vmatpush.bf16.msra.mxu0 %v6971
        %6998 = vmatpush.bf16.msra.mxu0 %v6970
        %6999 = vmatpush.bf16.msra.mxu0 %v6969
        %7000 = vmatmul.bf16.gmra.mxu0 %v6978
        %v7001 = vpop.f32.mrf.mxu0
        %v7002 = vadd.f32 0.0, %v7001
        %v7003 = vpop.f32.mrf.mxu0
        %v7004 = vadd.f32 0.0, %v7003
        %7005 = vmatmul.bf16.gmra.mxu0 %v6981
        %v7006 = vpop.f32.mrf.mxu0
        %v7007 = vadd.f32 0.0, %v7006
        %v7008 = vpop.f32.mrf.mxu0
        %v7009 = vadd.f32 0.0, %v7008
        %7010 = vmatmul.bf16.gmra.mxu0 %v6984
        %v7011 = vpop.f32.mrf.mxu0
        %v7012 = vadd.f32 0.0, %v7011
        %v7013 = vpop.f32.mrf.mxu0
        %v7014 = vadd.f32 0.0, %v7013
        %7015 = vmatmul.bf16.gmra.mxu0 %v6987
        %v7016 = vpop.f32.mrf.mxu0
        %v7017 = vadd.f32 0.0, %v7016
        %v7018 = vpop.f32.mrf.mxu0
        %v7019 = vadd.f32 0.0, %v7018
        %7020 = vmatmul.bf16.gmra.mxu0 %v6990
        %v7021 = vpop.f32.mrf.mxu0
        %v7022 = vadd.f32 0.0, %v7021
        %v7023 = vpop.f32.mrf.mxu0
        %7024 = vdwg.mxu0
        %v7025 = vadd.f32 %v6770, %v7002
        %v7026 = vadd.f32 %v6771, %v7004
        %v7027 = vadd.f32 %v6772, %v7007
        %v7028 = vadd.f32 %v6773, %v7009
        %v7029 = vadd.f32 %v6774, %v7012
        %v7030 = vadd.f32 %v6775, %v7014
        %v7031 = vadd.f32 %v6776, %v7017
        %v7032 = vadd.f32 %v6777, %v7019
        %v7033 = vadd.f32 %v6778, %v7022
        %v7034 = vmax.f32 %v7025, 0.0
        %v7035 = vmax.f32 %v7026, 0.0
        %v7036 = vmax.f32 %v7027, 0.0
        %v7037 = vmax.f32 %v7028, 0.0
        %v7038 = vmax.f32 %v7029, 0.0
        %v7039 = vmax.f32 %v7030, 0.0
        %v7040 = vmax.f32 %v7031, 0.0
        %v7041 = vmax.f32 %v7032, 0.0
        %v7042 = vmax.f32 %v7033, 0.0
        %v7043 = vpack.c.bf16 %v7035, %v7034
        %v7044 = vpack.c.bf16 %v7037, %v7036
        %v7045 = vpack.c.bf16 %v7039, %v7038
        %v7046 = vpack.c.bf16 %v7041, %v7040
        %v7047 = vpack.c.bf16 %v7042, %v7042
        %v7048 = vld [vmem:[%s11] sm:$0xff]
        %v7049 = vld [vmem:[%s11 + $0x8] sm:$0xff]
        %v7050 = vld [vmem:[%s11 + $0x10] sm:$0xff]
        %v7051 = vld [vmem:[%s11 + $0x18] sm:$0xff]
        %v7052 = vld [vmem:[%s11 + $0x20] sm:$0xff]
        %v7053 = vld [vmem:[%s11 + $0x28] sm:$0xff]
        %v7054 = vld [vmem:[%s11 + $0x30] sm:$0xff]
        %v7055 = vld [vmem:[%s11 + $0x38] sm:$0xff]
        %v7064 = vunpack.c.l.b16 %v7048
        %v7065 = vunpack.c.h.b16 %v7048
        %v7066 = vunpack.c.l.b16 %v7049
        %v7067 = vunpack.c.h.b16 %v7049
        %v7068 = vunpack.c.l.b16 %v7050
        %v7069 = vunpack.c.h.b16 %v7050
        %v7070 = vunpack.c.l.b16 %v7051
        %v7071 = vunpack.c.h.b16 %v7051
        %v7072 = vunpack.c.l.b16 %v7052
        %v7073 = vunpack.c.h.b16 %v7052
        %v7074 = vunpack.c.l.b16 %v7053
        %v7075 = vunpack.c.h.b16 %v7053
        %v7076 = vunpack.c.l.b16 %v7054
        %v7077 = vunpack.c.h.b16 %v7054
        %v7078 = vunpack.c.l.b16 %v7055
        %v7079 = vunpack.c.h.b16 %v7055
        %v7080 = vpack.c.b16 %v7066, %v7064
        %v7081 = vpack.c.b16 %v7067, %v7065
        %v7082 = vpack.c.b16 %v7070, %v7068
        %v7083 = vpack.c.b16 %v7071, %v7069
        %v7084 = vpack.c.b16 %v7074, %v7072
        %v7085 = vpack.c.b16 %v7075, %v7073
        %v7086 = vpack.c.b16 %v7078, %v7076
        %v7087 = vpack.c.b16 %v7079, %v7077
        %v7097 = vsel %vm4942, %v7043, 0
        %v7100 = vsel %vm4942, %v7044, 0
        %v7103 = vsel %vm4942, %v7045, 0
        %v7106 = vsel %vm4942, %v7046, 0
        %v7109 = vsel %vm4942, %v7047, 0
        %7111 = vmatpush.bf16.msra.mxu0 0
        %7112 = vmatpush.bf16.msra.mxu0 0
        %7113 = vmatpush.bf16.msra.mxu0 0
        %7114 = vmatpush.bf16.msra.mxu0 0
        %7115 = vmatpush.bf16.msra.mxu0 %v7086
        %7116 = vmatpush.bf16.msra.mxu0 %v7084
        %7117 = vmatpush.bf16.msra.mxu0 %v7082
        %7118 = vmatpush.bf16.msra.mxu0 %v7080
        %7119 = vmatmul.bf16.gmra.mxu0 %v7097
        %v7120 = vpop.f32.mrf.mxu0
        %v7121 = vadd.f32 0.0, %v7120
        %v7122 = vpop.f32.mrf.mxu0
        %v7123 = vadd.f32 0.0, %v7122
        %7124 = vmatmul.bf16.gmra.mxu0 %v7100
        %v7125 = vpop.f32.mrf.mxu0
        %v7126 = vadd.f32 0.0, %v7125
        %v7127 = vpop.f32.mrf.mxu0
        %v7128 = vadd.f32 0.0, %v7127
        %7129 = vmatmul.bf16.gmra.mxu0 %v7103
        %v7130 = vpop.f32.mrf.mxu0
        %v7131 = vadd.f32 0.0, %v7130
        %v7132 = vpop.f32.mrf.mxu0
        %v7133 = vadd.f32 0.0, %v7132
        %7134 = vmatmul.bf16.gmra.mxu0 %v7106
        %v7135 = vpop.f32.mrf.mxu0
        %v7136 = vadd.f32 0.0, %v7135
        %v7137 = vpop.f32.mrf.mxu0
        %v7138 = vadd.f32 0.0, %v7137
        %7139 = vmatmul.bf16.gmra.mxu0 %v7109
        %v7140 = vpop.f32.mrf.mxu0
        %v7141 = vadd.f32 0.0, %v7140
        %v7142 = vpop.f32.mrf.mxu0
        %7143 = vdwg.mxu0
        %7144 = vmatpush.bf16.msra.mxu0 0
        %7145 = vmatpush.bf16.msra.mxu0 0
        %7146 = vmatpush.bf16.msra.mxu0 0
        %7147 = vmatpush.bf16.msra.mxu0 0
        %7148 = vmatpush.bf16.msra.mxu0 %v7087
        %7149 = vmatpush.bf16.msra.mxu0 %v7085
        %7150 = vmatpush.bf16.msra.mxu0 %v7083
        %7151 = vmatpush.bf16.msra.mxu0 %v7081
        %7152 = vmatmul.bf16.gmra.mxu0 %v7097
        %v7153 = vpop.f32.mrf.mxu0
        %v7154 = vadd.f32 0.0, %v7153
        %v7155 = vpop.f32.mrf.mxu0
        %v7156 = vadd.f32 0.0, %v7155
        %7157 = vmatmul.bf16.gmra.mxu0 %v7100
        %v7158 = vpop.f32.mrf.mxu0
        %v7159 = vadd.f32 0.0, %v7158
        %v7160 = vpop.f32.mrf.mxu0
        %v7161 = vadd.f32 0.0, %v7160
        %7162 = vmatmul.bf16.gmra.mxu0 %v7103
        %v7163 = vpop.f32.mrf.mxu0
        %v7164 = vadd.f32 0.0, %v7163
        %v7165 = vpop.f32.mrf.mxu0
        %v7166 = vadd.f32 0.0, %v7165
        %7167 = vmatmul.bf16.gmra.mxu0 %v7106
        %v7168 = vpop.f32.mrf.mxu0
        %v7169 = vadd.f32 0.0, %v7168
        %v7170 = vpop.f32.mrf.mxu0
        %v7171 = vadd.f32 0.0, %v7170
        %7172 = vmatmul.bf16.gmra.mxu0 %v7109
        %v7173 = vpop.f32.mrf.mxu0
        %v7174 = vadd.f32 0.0, %v7173
        %v7175 = vpop.f32.mrf.mxu0
        %7176 = vdwg.mxu0
        %v7177 = vmax.f32 %v7121, 0.0
        %v7178 = vmax.f32 %v7154, 0.0
        %v7179 = vmax.f32 %v7123, 0.0
        %v7180 = vmax.f32 %v7156, 0.0
        %v7181 = vmax.f32 %v7126, 0.0
        %v7182 = vmax.f32 %v7159, 0.0
        %v7183 = vmax.f32 %v7128, 0.0
        %v7184 = vmax.f32 %v7161, 0.0
        %v7185 = vmax.f32 %v7131, 0.0
        %v7186 = vmax.f32 %v7164, 0.0
        %v7187 = vmax.f32 %v7133, 0.0
        %v7188 = vmax.f32 %v7166, 0.0
        %v7189 = vmax.f32 %v7136, 0.0
        %v7190 = vmax.f32 %v7169, 0.0
        %v7191 = vmax.f32 %v7138, 0.0
        %v7192 = vmax.f32 %v7171, 0.0
        %v7193 = vmax.f32 %v7141, 0.0
        %v7194 = vmax.f32 %v7174, 0.0
        %v7213 = vrot.slane %v7178, 7
        %v7214 = vrot.slane %v7180, 7
        %v7215 = vrot.slane %v7182, 7
        %v7216 = vrot.slane %v7184, 7
        %v7217 = vrot.slane %v7186, 7
        %v7218 = vrot.slane %v7188, 7
        %v7219 = vrot.slane %v7190, 7
        %v7220 = vrot.slane %v7192, 7
        %v7221 = vrot.slane %v7194, 7
        %vm7222 = vcmask 1040384
        %v7223 = vsel %vm7222, %v7177, %v7213
        %v7224 = vsel %vm1017, %v7177, %v7213
        %v7225 = vrot.slane %v7224, 1
        %v7226 = vsel %vm1019, %v7177, %v7213
        %v7227 = vrot.slane %v7226, 2
        %v7228 = vsel %vm1021, %v7177, %v7213
        %v7229 = vrot.slane %v7228, 3
        %v7230 = vsel %vm1023, %v7177, %v7213
        %v7231 = vrot.slane %v7230, 4
        %v7232 = vsel %vm1025, %v7177, %v7213
        %v7233 = vrot.slane %v7232, 5
        %v7234 = vsel %vm1027, %v7177, %v7213
        %v7235 = vrot.slane %v7234, 6
        %vm7236 = vcmask 1046528
        %v7237 = vsel %vm7236, %v7213, %v7177
        %v7238 = vrot.slane %v7237, 7
        %v7239 = vsel %vm7222, %v7179, %v7214
        %v7240 = vsel %vm1017, %v7179, %v7214
        %v7241 = vrot.slane %v7240, 1
        %v7242 = vsel %vm1019, %v7179, %v7214
        %v7243 = vrot.slane %v7242, 2
        %v7244 = vsel %vm1021, %v7179, %v7214
        %v7245 = vrot.slane %v7244, 3
        %v7246 = vsel %vm1023, %v7179, %v7214
        %v7247 = vrot.slane %v7246, 4
        %v7248 = vsel %vm1025, %v7179, %v7214
        %v7249 = vrot.slane %v7248, 5
        %v7250 = vsel %vm1027, %v7179, %v7214
        %v7251 = vrot.slane %v7250, 6
        %v7252 = vsel %vm7236, %v7214, %v7179
        %v7253 = vrot.slane %v7252, 7
        %v7254 = vsel %vm7222, %v7181, %v7215
        %v7255 = vsel %vm1017, %v7181, %v7215
        %v7256 = vrot.slane %v7255, 1
        %v7257 = vsel %vm1019, %v7181, %v7215
        %v7258 = vrot.slane %v7257, 2
        %v7259 = vsel %vm1021, %v7181, %v7215
        %v7260 = vrot.slane %v7259, 3
        %v7261 = vsel %vm1023, %v7181, %v7215
        %v7262 = vrot.slane %v7261, 4
        %v7263 = vsel %vm1025, %v7181, %v7215
        %v7264 = vrot.slane %v7263, 5
        %v7265 = vsel %vm1027, %v7181, %v7215
        %v7266 = vrot.slane %v7265, 6
        %v7267 = vsel %vm7236, %v7215, %v7181
        %v7268 = vrot.slane %v7267, 7
        %v7269 = vsel %vm7222, %v7183, %v7216
        %v7270 = vsel %vm1017, %v7183, %v7216
        %v7271 = vrot.slane %v7270, 1
        %v7272 = vsel %vm1019, %v7183, %v7216
        %v7273 = vrot.slane %v7272, 2
        %v7274 = vsel %vm1021, %v7183, %v7216
        %v7275 = vrot.slane %v7274, 3
        %v7276 = vsel %vm1023, %v7183, %v7216
        %v7277 = vrot.slane %v7276, 4
        %v7278 = vsel %vm1025, %v7183, %v7216
        %v7279 = vrot.slane %v7278, 5
        %v7280 = vsel %vm1027, %v7183, %v7216
        %v7281 = vrot.slane %v7280, 6
        %v7282 = vsel %vm7236, %v7216, %v7183
        %v7283 = vrot.slane %v7282, 7
        %v7284 = vsel %vm7222, %v7185, %v7217
        %v7285 = vsel %vm1017, %v7185, %v7217
        %v7286 = vrot.slane %v7285, 1
        %v7287 = vsel %vm1019, %v7185, %v7217
        %v7288 = vrot.slane %v7287, 2
        %v7289 = vsel %vm1021, %v7185, %v7217
        %v7290 = vrot.slane %v7289, 3
        %v7291 = vsel %vm1023, %v7185, %v7217
        %v7292 = vrot.slane %v7291, 4
        %v7293 = vsel %vm1025, %v7185, %v7217
        %v7294 = vrot.slane %v7293, 5
        %v7295 = vsel %vm1027, %v7185, %v7217
        %v7296 = vrot.slane %v7295, 6
        %v7297 = vsel %vm7236, %v7217, %v7185
        %v7298 = vrot.slane %v7297, 7
        %v7299 = vsel %vm7222, %v7187, %v7218
        %v7300 = vsel %vm1017, %v7187, %v7218
        %v7301 = vrot.slane %v7300, 1
        %v7302 = vsel %vm1019, %v7187, %v7218
        %v7303 = vrot.slane %v7302, 2
        %v7304 = vsel %vm1021, %v7187, %v7218
        %v7305 = vrot.slane %v7304, 3
        %v7306 = vsel %vm1023, %v7187, %v7218
        %v7307 = vrot.slane %v7306, 4
        %v7308 = vsel %vm1025, %v7187, %v7218
        %v7309 = vrot.slane %v7308, 5
        %v7310 = vsel %vm1027, %v7187, %v7218
        %v7311 = vrot.slane %v7310, 6
        %v7312 = vsel %vm7236, %v7218, %v7187
        %v7313 = vrot.slane %v7312, 7
        %v7314 = vsel %vm7222, %v7189, %v7219
        %v7315 = vsel %vm1017, %v7189, %v7219
        %v7316 = vrot.slane %v7315, 1
        %v7317 = vsel %vm1019, %v7189, %v7219
        %v7318 = vrot.slane %v7317, 2
        %v7319 = vsel %vm1021, %v7189, %v7219
        %v7320 = vrot.slane %v7319, 3
        %v7321 = vsel %vm1023, %v7189, %v7219
        %v7322 = vrot.slane %v7321, 4
        %v7323 = vsel %vm1025, %v7189, %v7219
        %v7324 = vrot.slane %v7323, 5
        %v7325 = vsel %vm1027, %v7189, %v7219
        %v7326 = vrot.slane %v7325, 6
        %v7327 = vsel %vm7236, %v7219, %v7189
        %v7328 = vrot.slane %v7327, 7
        %v7329 = vsel %vm7222, %v7191, %v7220
        %v7330 = vsel %vm1017, %v7191, %v7220
        %v7331 = vrot.slane %v7330, 1
        %v7332 = vsel %vm1019, %v7191, %v7220
        %v7333 = vrot.slane %v7332, 2
        %v7334 = vsel %vm1021, %v7191, %v7220
        %v7335 = vrot.slane %v7334, 3
        %v7336 = vsel %vm1023, %v7191, %v7220
        %v7337 = vrot.slane %v7336, 4
        %v7338 = vsel %vm1025, %v7191, %v7220
        %v7339 = vrot.slane %v7338, 5
        %v7340 = vsel %vm1027, %v7191, %v7220
        %v7341 = vrot.slane %v7340, 6
        %v7342 = vsel %vm7236, %v7220, %v7191
        %v7343 = vrot.slane %v7342, 7
        %v7344 = vsel %vm7222, %v7193, %v7221
        %v7345 = vsel %vm1017, %v7193, %v7221
        %v7346 = vrot.slane %v7345, 1
        %v7347 = vsel %vm1019, %v7193, %v7221
        %v7348 = vrot.slane %v7347, 2
        %v7349 = vsel %vm1021, %v7193, %v7221
        %v7350 = vrot.slane %v7349, 3
        %v7351 = vsel %vm1023, %v7193, %v7221
        %v7352 = vrot.slane %v7351, 4
        %v7353 = vsel %vm1025, %v7193, %v7221
        %v7354 = vrot.slane %v7353, 5
        %v7355 = vsel %vm1027, %v7193, %v7221
        %v7356 = vrot.slane %v7355, 6
        %v7357 = vsel %vm7236, %v7221, %v7193
        %v7358 = vrot.slane %v7357, 7
        %7359 = vst [vmem:[#allocation1] ss:$9 sm:$0xff] %v7223
        %s7360 = scalar_lea.vmem [#allocation1], 1
        %7361 = vst [vmem:[%s7360] ss:$9 sm:$0xff] %v7225
        %s7362 = scalar_lea.vmem [#allocation1], 2
        %7363 = vst [vmem:[%s7362] ss:$9 sm:$0xff] %v7227
        %s7364 = scalar_lea.vmem [#allocation1], 3
        %7365 = vst [vmem:[%s7364] ss:$9 sm:$0xff] %v7229
        %s7366 = scalar_lea.vmem [#allocation1], 4
        %7367 = vst [vmem:[%s7366] ss:$9 sm:$0xff] %v7231
        %s7368 = scalar_lea.vmem [#allocation1], 5
        %7369 = vst [vmem:[%s7368] ss:$9 sm:$0xff] %v7233
        %s7370 = scalar_lea.vmem [#allocation1], 6
        %7371 = vst [vmem:[%s7370] ss:$9 sm:$0xff] %v7235
        %s7372 = scalar_lea.vmem [#allocation1], 7
        %7373 = vst [vmem:[%s7372] ss:$9 sm:$0xff] %v7238
        %v7374 = vld [vmem:[#allocation1] sm:$0xff]
        %v7375 = vld [vmem:[#allocation1 + $0x9] sm:$0xff]
        %7376 = vst [vmem:[#allocation1] ss:$9 sm:$0xff] %v7239
        %v7377 = vld [vmem:[#allocation1] sm:$0xff]
        %v7378 = vld [vmem:[#allocation1 + $0x9] sm:$0xff]
        %7379 = vst [vmem:[#allocation1] ss:$9 sm:$0xff] %v7241
        %7380 = vst [vmem:[%s7360] ss:$9 sm:$0xff] %v7243
        %7381 = vst [vmem:[%s7362] ss:$9 sm:$0xff] %v7245
        %7382 = vst [vmem:[%s7364] ss:$9 sm:$0xff] %v7247
        %7383 = vst [vmem:[%s7366] ss:$9 sm:$0xff] %v7249
        %7384 = vst [vmem:[%s7368] ss:$9 sm:$0xff] %v7251
        %7385 = vst [vmem:[%s7370] ss:$9 sm:$0xff] %v7253
        %7386 = vst [vmem:[%s7372] ss:$9 sm:$0xff] %v7254
        %v7387 = vld [vmem:[#allocation1] sm:$0xff]
        %v7388 = vld [vmem:[#allocation1 + $0x9] sm:$0xff]
        %7389 = vst [vmem:[#allocation1] ss:$9 sm:$0xff] %v7256
        %v7390 = vld [vmem:[#allocation1] sm:$0xff]
        %v7391 = vld [vmem:[#allocation1 + $0x9] sm:$0xff]
        %7392 = vst [vmem:[#allocation1] ss:$9 sm:$0xff] %v7258
        %7393 = vst [vmem:[%s7360] ss:$9 sm:$0xff] %v7260
        %7394 = vst [vmem:[%s7362] ss:$9 sm:$0xff] %v7262
        %7395 = vst [vmem:[%s7364] ss:$9 sm:$0xff] %v7264
        %7396 = vst [vmem:[%s7366] ss:$9 sm:$0xff] %v7266
        %7397 = vst [vmem:[%s7368] ss:$9 sm:$0xff] %v7268
        %7398 = vst [vmem:[%s7370] ss:$9 sm:$0xff] %v7269
        %7399 = vst [vmem:[%s7372] ss:$9 sm:$0xff] %v7271
        %v7400 = vld [vmem:[#allocation1] sm:$0xff]
        %v7401 = vld [vmem:[#allocation1 + $0x9] sm:$0xff]
        %7402 = vst [vmem:[#allocation1] ss:$9 sm:$0xff] %v7273
        %v7403 = vld [vmem:[#allocation1] sm:$0xff]
        %v7404 = vld [vmem:[#allocation1 + $0x9] sm:$0xff]
        %7405 = vst [vmem:[#allocation1] ss:$9 sm:$0xff] %v7275
        %7406 = vst [vmem:[%s7360] ss:$9 sm:$0xff] %v7277
        %7407 = vst [vmem:[%s7362] ss:$9 sm:$0xff] %v7279
        %7408 = vst [vmem:[%s7364] ss:$9 sm:$0xff] %v7281
        %7409 = vst [vmem:[%s7366] ss:$9 sm:$0xff] %v7283
        %7410 = vst [vmem:[%s7368] ss:$9 sm:$0xff] %v7284
        %7411 = vst [vmem:[%s7370] ss:$9 sm:$0xff] %v7286
        %7412 = vst [vmem:[%s7372] ss:$9 sm:$0xff] %v7288
        %v7413 = vld [vmem:[#allocation1] sm:$0xff]
        %v7414 = vld [vmem:[#allocation1 + $0x9] sm:$0xff]
        %7415 = vst [vmem:[#allocation1] ss:$9 sm:$0xff] %v7290
        %v7416 = vld [vmem:[#allocation1] sm:$0xff]
        %v7417 = vld [vmem:[#allocation1 + $0x9] sm:$0xff]
        %7418 = vst [vmem:[#allocation1] ss:$9 sm:$0xff] %v7292
        %7419 = vst [vmem:[%s7360] ss:$9 sm:$0xff] %v7294
        %7420 = vst [vmem:[%s7362] ss:$9 sm:$0xff] %v7296
        %7421 = vst [vmem:[%s7364] ss:$9 sm:$0xff] %v7298
        %7422 = vst [vmem:[%s7366] ss:$9 sm:$0xff] %v7299
        %7423 = vst [vmem:[%s7368] ss:$9 sm:$0xff] %v7301
        %7424 = vst [vmem:[%s7370] ss:$9 sm:$0xff] %v7303
        %7425 = vst [vmem:[%s7372] ss:$9 sm:$0xff] %v7305
        %v7426 = vld [vmem:[#allocation1] sm:$0xff]
        %v7427 = vld [vmem:[#allocation1 + $0x9] sm:$0xff]
        %7428 = vst [vmem:[#allocation1] ss:$9 sm:$0xff] %v7307
        %v7429 = vld [vmem:[#allocation1] sm:$0xff]
        %v7430 = vld [vmem:[#allocation1 + $0x9] sm:$0xff]
        %7431 = vst [vmem:[#allocation1] ss:$9 sm:$0xff] %v7309
        %7432 = vst [vmem:[%s7360] ss:$9 sm:$0xff] %v7311
        %7433 = vst [vmem:[%s7362] ss:$9 sm:$0xff] %v7313
        %7434 = vst [vmem:[%s7364] ss:$9 sm:$0xff] %v7314
        %7435 = vst [vmem:[%s7366] ss:$9 sm:$0xff] %v7316
        %7436 = vst [vmem:[%s7368] ss:$9 sm:$0xff] %v7318
        %7437 = vst [vmem:[%s7370] ss:$9 sm:$0xff] %v7320
        %7438 = vst [vmem:[%s7372] ss:$9 sm:$0xff] %v7322
        %v7439 = vld [vmem:[#allocation1] sm:$0xff]
        %v7440 = vld [vmem:[#allocation1 + $0x9] sm:$0xff]
        %7441 = vst [vmem:[#allocation1] ss:$9 sm:$0xff] %v7324
        %v7442 = vld [vmem:[#allocation1] sm:$0xff]
        %v7443 = vld [vmem:[#allocation1 + $0x9] sm:$0xff]
        %7444 = vst [vmem:[#allocation1] ss:$9 sm:$0xff] %v7326
        %7445 = vst [vmem:[%s7360] ss:$9 sm:$0xff] %v7328
        %7446 = vst [vmem:[%s7362] ss:$9 sm:$0xff] %v7329
        %7447 = vst [vmem:[%s7364] ss:$9 sm:$0xff] %v7331
        %7448 = vst [vmem:[%s7366] ss:$9 sm:$0xff] %v7333
        %7449 = vst [vmem:[%s7368] ss:$9 sm:$0xff] %v7335
        %7450 = vst [vmem:[%s7370] ss:$9 sm:$0xff] %v7337
        %7451 = vst [vmem:[%s7372] ss:$9 sm:$0xff] %v7339
        %v7452 = vld [vmem:[#allocation1] sm:$0xff]
        %v7453 = vld [vmem:[#allocation1 + $0x9] sm:$0xff]
        %7454 = vst [vmem:[#allocation1] ss:$9 sm:$0xff] %v7341
        %v7455 = vld [vmem:[#allocation1] sm:$0xff]
        %v7456 = vld [vmem:[#allocation1 + $0x9] sm:$0xff]
        %7457 = vst [vmem:[#allocation1] ss:$9 sm:$0xff] %v7343
        %7458 = vst [vmem:[%s7360] ss:$9 sm:$0xff] %v7344
        %7459 = vst [vmem:[%s7362] ss:$9 sm:$0xff] %v7346
        %7460 = vst [vmem:[%s7364] ss:$9 sm:$0xff] %v7348
        %7461 = vst [vmem:[%s7366] ss:$9 sm:$0xff] %v7350
        %7462 = vst [vmem:[%s7368] ss:$9 sm:$0xff] %v7352
        %7463 = vst [vmem:[%s7370] ss:$9 sm:$0xff] %v7354
        %7464 = vst [vmem:[%s7372] ss:$9 sm:$0xff] %v7356
        %v7465 = vld [vmem:[#allocation1] sm:$0xff]
        %v7466 = vld [vmem:[#allocation1 + $0x9] sm:$0xff]
        %7467 = vst [vmem:[#allocation1] ss:$9 sm:$0xff] %v7358
        %v7468 = vld [vmem:[#allocation1] sm:$0xff]
        %v7469 = vld [vmem:[#allocation1 + $0x9] sm:$0xff]
        %v7502 = vsel %vm7222, %v7377, 0.0
        %v7503 = vadd.f32 %v7374, %v7502
        %v7504 = vrot.slane %v7503, 4
        %v7505 = vadd.f32 %v7503, %v7504
        %v7506 = vrot.slane %v7505, 2
        %v7507 = vadd.f32 %v7505, %v7506
        %v7508 = vrot.slane %v7507, 1
        %v7509 = vadd.f32 %v7507, %v7508
        %v7510 = vsel %vm7222, %v7378, 0.0
        %v7511 = vadd.f32 %v7375, %v7510
        %v7512 = vrot.slane %v7511, 4
        %v7513 = vadd.f32 %v7511, %v7512
        %v7514 = vrot.slane %v7513, 2
        %v7515 = vadd.f32 %v7513, %v7514
        %v7516 = vrot.slane %v7515, 1
        %v7517 = vadd.f32 %v7515, %v7516
        %v7518 = vsel %vm7222, %v7390, 0.0
        %v7519 = vadd.f32 %v7387, %v7518
        %v7520 = vrot.slane %v7519, 4
        %v7521 = vadd.f32 %v7519, %v7520
        %v7522 = vrot.slane %v7521, 2
        %v7523 = vadd.f32 %v7521, %v7522
        %v7524 = vrot.slane %v7523, 1
        %v7525 = vadd.f32 %v7523, %v7524
        %v7526 = vsel %vm7222, %v7391, 0.0
        %v7527 = vadd.f32 %v7388, %v7526
        %v7528 = vrot.slane %v7527, 4
        %v7529 = vadd.f32 %v7527, %v7528
        %v7530 = vrot.slane %v7529, 2
        %v7531 = vadd.f32 %v7529, %v7530
        %v7532 = vrot.slane %v7531, 1
        %v7533 = vadd.f32 %v7531, %v7532
        %v7534 = vsel %vm7222, %v7403, 0.0
        %v7535 = vadd.f32 %v7400, %v7534
        %v7536 = vrot.slane %v7535, 4
        %v7537 = vadd.f32 %v7535, %v7536
        %v7538 = vrot.slane %v7537, 2
        %v7539 = vadd.f32 %v7537, %v7538
        %v7540 = vrot.slane %v7539, 1
        %v7541 = vadd.f32 %v7539, %v7540
        %v7542 = vsel %vm7222, %v7404, 0.0
        %v7543 = vadd.f32 %v7401, %v7542
        %v7544 = vrot.slane %v7543, 4
        %v7545 = vadd.f32 %v7543, %v7544
        %v7546 = vrot.slane %v7545, 2
        %v7547 = vadd.f32 %v7545, %v7546
        %v7548 = vrot.slane %v7547, 1
        %v7549 = vadd.f32 %v7547, %v7548
        %v7550 = vsel %vm7222, %v7416, 0.0
        %v7551 = vadd.f32 %v7413, %v7550
        %v7552 = vrot.slane %v7551, 4
        %v7553 = vadd.f32 %v7551, %v7552
        %v7554 = vrot.slane %v7553, 2
        %v7555 = vadd.f32 %v7553, %v7554
        %v7556 = vrot.slane %v7555, 1
        %v7557 = vadd.f32 %v7555, %v7556
        %v7558 = vsel %vm7222, %v7417, 0.0
        %v7559 = vadd.f32 %v7414, %v7558
        %v7560 = vrot.slane %v7559, 4
        %v7561 = vadd.f32 %v7559, %v7560
        %v7562 = vrot.slane %v7561, 2
        %v7563 = vadd.f32 %v7561, %v7562
        %v7564 = vrot.slane %v7563, 1
        %v7565 = vadd.f32 %v7563, %v7564
        %v7566 = vsel %vm7222, %v7429, 0.0
        %v7567 = vadd.f32 %v7426, %v7566
        %v7568 = vrot.slane %v7567, 4
        %v7569 = vadd.f32 %v7567, %v7568
        %v7570 = vrot.slane %v7569, 2
        %v7571 = vadd.f32 %v7569, %v7570
        %v7572 = vrot.slane %v7571, 1
        %v7573 = vadd.f32 %v7571, %v7572
        %v7574 = vsel %vm7222, %v7430, 0.0
        %v7575 = vadd.f32 %v7427, %v7574
        %v7576 = vrot.slane %v7575, 4
        %v7577 = vadd.f32 %v7575, %v7576
        %v7578 = vrot.slane %v7577, 2
        %v7579 = vadd.f32 %v7577, %v7578
        %v7580 = vrot.slane %v7579, 1
        %v7581 = vadd.f32 %v7579, %v7580
        %v7582 = vsel %vm7222, %v7442, 0.0
        %v7583 = vadd.f32 %v7439, %v7582
        %v7584 = vrot.slane %v7583, 4
        %v7585 = vadd.f32 %v7583, %v7584
        %v7586 = vrot.slane %v7585, 2
        %v7587 = vadd.f32 %v7585, %v7586
        %v7588 = vrot.slane %v7587, 1
        %v7589 = vadd.f32 %v7587, %v7588
        %v7590 = vsel %vm7222, %v7443, 0.0
        %v7591 = vadd.f32 %v7440, %v7590
        %v7592 = vrot.slane %v7591, 4
        %v7593 = vadd.f32 %v7591, %v7592
        %v7594 = vrot.slane %v7593, 2
        %v7595 = vadd.f32 %v7593, %v7594
        %v7596 = vrot.slane %v7595, 1
        %v7597 = vadd.f32 %v7595, %v7596
        %v7598 = vsel %vm7222, %v7455, 0.0
        %v7599 = vadd.f32 %v7452, %v7598
        %v7600 = vrot.slane %v7599, 4
        %v7601 = vadd.f32 %v7599, %v7600
        %v7602 = vrot.slane %v7601, 2
        %v7603 = vadd.f32 %v7601, %v7602
        %v7604 = vrot.slane %v7603, 1
        %v7605 = vadd.f32 %v7603, %v7604
        %v7606 = vsel %vm7222, %v7456, 0.0
        %v7607 = vadd.f32 %v7453, %v7606
        %v7608 = vrot.slane %v7607, 4
        %v7609 = vadd.f32 %v7607, %v7608
        %v7610 = vrot.slane %v7609, 2
        %v7611 = vadd.f32 %v7609, %v7610
        %v7612 = vrot.slane %v7611, 1
        %v7613 = vadd.f32 %v7611, %v7612
        %v7614 = vsel %vm7222, %v7468, 0.0
        %v7615 = vadd.f32 %v7465, %v7614
        %v7616 = vrot.slane %v7615, 4
        %v7617 = vadd.f32 %v7615, %v7616
        %v7618 = vrot.slane %v7617, 2
        %v7619 = vadd.f32 %v7617, %v7618
        %v7620 = vrot.slane %v7619, 1
        %v7621 = vadd.f32 %v7619, %v7620
        %v7622 = vsel %vm7222, %v7469, 0.0
        %v7623 = vadd.f32 %v7466, %v7622
        %v7624 = vrot.slane %v7623, 4
        %v7625 = vadd.f32 %v7623, %v7624
        %v7626 = vrot.slane %v7625, 2
        %v7627 = vadd.f32 %v7625, %v7626
        %v7628 = vrot.slane %v7627, 1
        %v7629 = vadd.f32 %v7627, %v7628
        %v7630 = vrcp.pop 9.0
        %v7631 = vmul.f32 9.0, %v7630
        %v7632 = vsub.f32 1.0, %v7631
        %v7633 = vmul.f32 %v7630, %v7632
        %v7634 = vadd.f32 %v7630, %v7633
        %vm7635 = vweird.f32 %v7630
        %v7636 = vsel %vm7635, %v7630, %v7634
        %v7637 = vmul.f32 %v7509, %v7636
        %v7638 = vmul.f32 %v7517, %v7636
        %v7639 = vmul.f32 %v7525, %v7636
        %v7640 = vmul.f32 %v7533, %v7636
        %v7641 = vmul.f32 %v7541, %v7636
        %v7642 = vmul.f32 %v7549, %v7636
        %v7643 = vmul.f32 %v7557, %v7636
        %v7644 = vmul.f32 %v7565, %v7636
        %v7645 = vmul.f32 %v7573, %v7636
        %v7646 = vmul.f32 %v7581, %v7636
        %v7647 = vmul.f32 %v7589, %v7636
        %v7648 = vmul.f32 %v7597, %v7636
        %v7649 = vmul.f32 %v7605, %v7636
        %v7650 = vmul.f32 %v7613, %v7636
        %v7651 = vmul.f32 %v7621, %v7636
        %v7652 = vmul.f32 %v7629, %v7636
        %v7669 = vsel %vm1017, %v7639, %v7637
        %v7670 = vsel %vm1019, %v7641, %v7669
        %v7671 = vsel %vm1021, %v7643, %v7670
        %v7672 = vsel %vm1023, %v7645, %v7671
        %v7673 = vsel %vm1025, %v7647, %v7672
        %v7674 = vsel %vm1027, %v7649, %v7673
        %v7675 = vsel %vm1029, %v7651, %v7674
        %v7676 = vsel %vm1017, %v7640, %v7638
        %v7677 = vsel %vm1019, %v7642, %v7676
        %v7678 = vsel %vm1021, %v7644, %v7677
        %v7679 = vsel %vm1023, %v7646, %v7678
        %v7680 = vsel %vm1025, %v7648, %v7679
        %v7681 = vsel %vm1027, %v7650, %v7680
        %v7682 = vsel %vm1029, %v7652, %v7681
        %v7701 = vsel %vm1017, %v2898, %v2896
        %v7702 = vsel %vm1019, %v2900, %v7701
        %v7703 = vsel %vm1021, %v2902, %v7702
        %v7704 = vsel %vm1023, %v2904, %v7703
        %v7705 = vsel %vm1025, %v2906, %v7704
        %v7706 = vsel %vm1027, %v2908, %v7705
        %v7707 = vsel %vm1029, %v2910, %v7706
        %v7708 = vsel %vm1017, %v2899, %v2897
        %v7709 = vsel %vm1019, %v2901, %v7708
        %v7710 = vsel %vm1021, %v2903, %v7709
        %v7711 = vsel %vm1023, %v2905, %v7710
        %v7712 = vsel %vm1025, %v2907, %v7711
        %v7713 = vsel %vm1027, %v2909, %v7712
        %v7714 = vsel %vm1029, %v2911, %v7713
        %v7717 = vld [vmem:[%s12] sm:$0xff]
        %v7718 = vld [vmem:[%s12 + $0x8] sm:$0xff]
        %v7719 = vld [vmem:[%s12 + $0x10] sm:$0xff]
        %v7720 = vld [vmem:[%s12 + $0x18] sm:$0xff]
        %v7721 = vld [vmem:[%s12 + $0x20] sm:$0xff]
        %v7722 = vld [vmem:[%s12 + $0x28] sm:$0xff]
        %v7723 = vld [vmem:[%s12 + $0x30] sm:$0xff]
        %v7724 = vld [vmem:[%s12 + $0x38] sm:$0xff]
        %v7725 = vld [vmem:[%s12 + $0x40] sm:$0xff]
        %v7726 = vld [vmem:[%s12 + $0x48] sm:$0xff]
        %v7727 = vld [vmem:[%s12 + $0x50] sm:$0xff]
        %v7728 = vld [vmem:[%s12 + $0x58] sm:$0xff]
        %v7729 = vld [vmem:[%s12 + $0x60] sm:$0xff]
        %v7730 = vld [vmem:[%s12 + $0x68] sm:$0xff]
        %v7731 = vld [vmem:[%s12 + $0x70] sm:$0xff]
        %v7732 = vld [vmem:[%s12 + $0x78] sm:$0xff]
        %v7733 = vld [vmem:[%s12 + $0x80] sm:$0xff]
        %v7734 = vld [vmem:[%s12 + $0x88] sm:$0xff]
        %v7735 = vld [vmem:[%s12 + $0x90] sm:$0xff]
        %v7736 = vld [vmem:[%s12 + $0x98] sm:$0xff]
        %v7737 = vld [vmem:[%s12 + $0xa0] sm:$0xff]
        %v7738 = vld [vmem:[%s12 + $0xa8] sm:$0xff]
        %v7739 = vld [vmem:[%s12 + $0xb0] sm:$0xff]
        %v7740 = vld [vmem:[%s12 + $0xb8] sm:$0xff]
        %v7741 = vld [vmem:[%s12 + $0xc0] sm:$0xff]
        %v7742 = vld [vmem:[%s12 + $0xc8] sm:$0xff]
        %v7743 = vld [vmem:[%s12 + $0xd0] sm:$0xff]
        %v7744 = vld [vmem:[%s12 + $0xd8] sm:$0xff]
        %v7745 = vld [vmem:[%s12 + $0xe0] sm:$0xff]
        %v7746 = vld [vmem:[%s12 + $0xe8] sm:$0xff]
        %v7747 = vld [vmem:[%s12 + $0xf0] sm:$0xff]
        %v7748 = vld [vmem:[%s12 + $0xf8] sm:$0xff]
        %v7749 = vld [vmem:[%s12 + $0x100] sm:$0xff]
        %v7750 = vld [vmem:[%s12 + $0x108] sm:$0xff]
        %v7751 = vld [vmem:[%s12 + $0x110] sm:$0xff]
        %v7752 = vld [vmem:[%s12 + $0x118] sm:$0xff]
        %v7753 = vld [vmem:[%s12 + $0x120] sm:$0xff]
        %v7754 = vld [vmem:[%s12 + $0x128] sm:$0xff]
        %v7755 = vld [vmem:[%s12 + $0x130] sm:$0xff]
        %v7756 = vld [vmem:[%s12 + $0x138] sm:$0xff]
        %v7757 = vld [vmem:[%s12 + $0x140] sm:$0xff]
        %v7758 = vld [vmem:[%s12 + $0x148] sm:$0xff]
        %v7759 = vld [vmem:[%s12 + $0x150] sm:$0xff]
        %v7760 = vld [vmem:[%s12 + $0x158] sm:$0xff]
        %v7761 = vld [vmem:[%s12 + $0x160] sm:$0xff]
        %v7762 = vld [vmem:[%s12 + $0x168] sm:$0xff]
        %v7763 = vld [vmem:[%s12 + $0x170] sm:$0xff]
        %v7764 = vld [vmem:[%s12 + $0x178] sm:$0xff]
        %v7765 = vld [vmem:[%s12 + $0x180] sm:$0xff]
        %v7766 = vld [vmem:[%s12 + $0x188] sm:$0xff]
        %v7767 = vld [vmem:[%s12 + $0x190] sm:$0xff]
        %v7768 = vld [vmem:[%s12 + $0x198] sm:$0xff]
        %v7769 = vld [vmem:[%s12 + $0x1a0] sm:$0xff]
        %v7770 = vld [vmem:[%s12 + $0x1a8] sm:$0xff]
        %v7771 = vld [vmem:[%s12 + $0x1b0] sm:$0xff]
        %v7772 = vld [vmem:[%s12 + $0x1b8] sm:$0xff]
        %v7773 = vld [vmem:[%s12 + $0x1c0] sm:$0xff]
        %v7774 = vld [vmem:[%s12 + $0x1c8] sm:$0xff]
        %v7775 = vld [vmem:[%s12 + $0x1d0] sm:$0xff]
        %v7776 = vld [vmem:[%s12 + $0x1d8] sm:$0xff]
        %v7777 = vld [vmem:[%s12 + $0x1e0] sm:$0xff]
        %v7778 = vld [vmem:[%s12 + $0x1e8] sm:$0xff]
        %v7779 = vld [vmem:[%s12 + $0x1f0] sm:$0xff]
        %v7780 = vld [vmem:[%s12 + $0x1f8] sm:$0xff]
        %v7781 = vld [vmem:[%s12 + $0x200] sm:$0xff]
        %v7782 = vld [vmem:[%s12 + $0x208] sm:$0xff]
        %v7783 = vld [vmem:[%s12 + $0x210] sm:$0xff]
        %v7784 = vld [vmem:[%s12 + $0x218] sm:$0xff]
        %v7785 = vld [vmem:[%s12 + $0x220] sm:$0xff]
        %v7786 = vld [vmem:[%s12 + $0x228] sm:$0xff]
        %v7787 = vld [vmem:[%s12 + $0x230] sm:$0xff]
        %v7788 = vld [vmem:[%s12 + $0x238] sm:$0xff]
        %v7789 = vld [vmem:[%s12 + $0x240] sm:$0xff]
        %v7790 = vld [vmem:[%s12 + $0x248] sm:$0xff]
        %v7791 = vld [vmem:[%s12 + $0x250] sm:$0xff]
        %v7792 = vld [vmem:[%s12 + $0x258] sm:$0xff]
        %v7793 = vld [vmem:[%s12 + $0x260] sm:$0xff]
        %v7794 = vld [vmem:[%s12 + $0x268] sm:$0xff]
        %v7795 = vld [vmem:[%s12 + $0x270] sm:$0xff]
        %v7796 = vld [vmem:[%s12 + $0x278] sm:$0xff]
        %v7797 = vld [vmem:[%s12 + $0x280] sm:$0xff]
        %v7798 = vld [vmem:[%s12 + $0x288] sm:$0xff]
        %v7799 = vld [vmem:[%s12 + $0x290] sm:$0xff]
        %v7800 = vld [vmem:[%s12 + $0x298] sm:$0xff]
        %v7801 = vld [vmem:[%s12 + $0x2a0] sm:$0xff]
        %v7802 = vld [vmem:[%s12 + $0x2a8] sm:$0xff]
        %v7803 = vld [vmem:[%s12 + $0x2b0] sm:$0xff]
        %v7804 = vld [vmem:[%s12 + $0x2b8] sm:$0xff]
        %v7805 = vld [vmem:[%s12 + $0x2c0] sm:$0xff]
        %v7806 = vld [vmem:[%s12 + $0x2c8] sm:$0xff]
        %v7807 = vld [vmem:[%s12 + $0x2d0] sm:$0xff]
        %v7808 = vld [vmem:[%s12 + $0x2d8] sm:$0xff]
        %v7809 = vld [vmem:[%s12 + $0x2e0] sm:$0xff]
        %v7810 = vld [vmem:[%s12 + $0x2e8] sm:$0xff]
        %v7811 = vld [vmem:[%s12 + $0x2f0] sm:$0xff]
        %v7812 = vld [vmem:[%s12 + $0x2f8] sm:$0xff]
        %v7813 = vld [vmem:[%s13] sm:$0x1]
        %v7815 = vperm.slane %v7813, 0
        %7817 = vmatpush.msra.mxu0 %v7732
        %7818 = vmatpush.msra.mxu0 %v7731
        %7819 = vmatpush.msra.mxu0 %v7730
        %7820 = vmatpush.msra.mxu0 %v7729
        %7821 = vmatpush.msra.mxu0 %v7728
        %7822 = vmatpush.msra.mxu0 %v7727
        %7823 = vmatpush.msra.mxu0 %v7726
        %7824 = vmatpush.msra.mxu0 %v7725
        %7825 = vmatpush.msra.mxu0 %v7724
        %7826 = vmatpush.msra.mxu0 %v7723
        %7827 = vmatpush.msra.mxu0 %v7722
        %7828 = vmatpush.msra.mxu0 %v7721
        %7829 = vmatpush.msra.mxu0 %v7720
        %7830 = vmatpush.msra.mxu0 %v7719
        %7831 = vmatpush.msra.mxu0 %v7718
        %7832 = vmatpush.msra.mxu0 %v7717
        %7833 = vmatmul.f32.gmra.mxu0 %v7675
        %v7834 = vpop.f32.mrf.mxu0
        %v7835 = vadd.f32 %v7815, %v7834
        %7836 = vdwg.mxu0
        %7837 = vmatpush.msra.mxu0 %v7748
        %7838 = vmatpush.msra.mxu0 %v7747
        %7839 = vmatpush.msra.mxu0 %v7746
        %7840 = vmatpush.msra.mxu0 %v7745
        %7841 = vmatpush.msra.mxu0 %v7744
        %7842 = vmatpush.msra.mxu0 %v7743
        %7843 = vmatpush.msra.mxu0 %v7742
        %7844 = vmatpush.msra.mxu0 %v7741
        %7845 = vmatpush.msra.mxu0 %v7740
        %7846 = vmatpush.msra.mxu0 %v7739
        %7847 = vmatpush.msra.mxu0 %v7738
        %7848 = vmatpush.msra.mxu0 %v7737
        %7849 = vmatpush.msra.mxu0 %v7736
        %7850 = vmatpush.msra.mxu0 %v7735
        %7851 = vmatpush.msra.mxu0 %v7734
        %7852 = vmatpush.msra.mxu0 %v7733
        %7853 = vmatmul.f32.gmra.mxu0 %v7682
        %v7854 = vpop.f32.mrf.mxu0
        %v7855 = vadd.f32 %v7835, %v7854
        %7856 = vdwg.mxu0
        %7857 = vmatpush.msra.mxu0 %v7764
        %7858 = vmatpush.msra.mxu0 %v7763
        %7859 = vmatpush.msra.mxu0 %v7762
        %7860 = vmatpush.msra.mxu0 %v7761
        %7861 = vmatpush.msra.mxu0 %v7760
        %7862 = vmatpush.msra.mxu0 %v7759
        %7863 = vmatpush.msra.mxu0 %v7758
        %7864 = vmatpush.msra.mxu0 %v7757
        %7865 = vmatpush.msra.mxu0 %v7756
        %7866 = vmatpush.msra.mxu0 %v7755
        %7867 = vmatpush.msra.mxu0 %v7754
        %7868 = vmatpush.msra.mxu0 %v7753
        %7869 = vmatpush.msra.mxu0 %v7752
        %7870 = vmatpush.msra.mxu0 %v7751
        %7871 = vmatpush.msra.mxu0 %v7750
        %7872 = vmatpush.msra.mxu0 %v7749
        %7873 = vmatmul.f32.gmra.mxu0 %v7707
        %v7874 = vpop.f32.mrf.mxu0
        %v7875 = vadd.f32 %v7855, %v7874
        %7876 = vdwg.mxu0
        %7877 = vmatpush.msra.mxu0 %v7780
        %7878 = vmatpush.msra.mxu0 %v7779
        %7879 = vmatpush.msra.mxu0 %v7778
        %7880 = vmatpush.msra.mxu0 %v7777
        %7881 = vmatpush.msra.mxu0 %v7776
        %7882 = vmatpush.msra.mxu0 %v7775
        %7883 = vmatpush.msra.mxu0 %v7774
        %7884 = vmatpush.msra.mxu0 %v7773
        %7885 = vmatpush.msra.mxu0 %v7772
        %7886 = vmatpush.msra.mxu0 %v7771
        %7887 = vmatpush.msra.mxu0 %v7770
        %7888 = vmatpush.msra.mxu0 %v7769
        %7889 = vmatpush.msra.mxu0 %v7768
        %7890 = vmatpush.msra.mxu0 %v7767
        %7891 = vmatpush.msra.mxu0 %v7766
        %7892 = vmatpush.msra.mxu0 %v7765
        %7893 = vmatmul.f32.gmra.mxu0 %v7714
        %v7894 = vpop.f32.mrf.mxu0
        %v7895 = vadd.f32 %v7875, %v7894
        %7896 = vdwg.mxu0
        %7897 = vmatpush.msra.mxu0 %v7796
        %7898 = vmatpush.msra.mxu0 %v7795
        %7899 = vmatpush.msra.mxu0 %v7794
        %7900 = vmatpush.msra.mxu0 %v7793
        %7901 = vmatpush.msra.mxu0 %v7792
        %7902 = vmatpush.msra.mxu0 %v7791
        %7903 = vmatpush.msra.mxu0 %v7790
        %7904 = vmatpush.msra.mxu0 %v7789
        %7905 = vmatpush.msra.mxu0 %v7788
        %7906 = vmatpush.msra.mxu0 %v7787
        %7907 = vmatpush.msra.mxu0 %v7786
        %7908 = vmatpush.msra.mxu0 %v7785
        %7909 = vmatpush.msra.mxu0 %v7784
        %7910 = vmatpush.msra.mxu0 %v7783
        %7911 = vmatpush.msra.mxu0 %v7782
        %7912 = vmatpush.msra.mxu0 %v7781
        %7913 = vmatmul.f32.gmra.mxu0 %v1508
        %v7914 = vpop.f32.mrf.mxu0
        %v7915 = vadd.f32 %v7895, %v7914
        %7916 = vdwg.mxu0
        %7917 = vmatpush.msra.mxu0 %v7812
        %7918 = vmatpush.msra.mxu0 %v7811
        %7919 = vmatpush.msra.mxu0 %v7810
        %7920 = vmatpush.msra.mxu0 %v7809
        %7921 = vmatpush.msra.mxu0 %v7808
        %7922 = vmatpush.msra.mxu0 %v7807
        %7923 = vmatpush.msra.mxu0 %v7806
        %7924 = vmatpush.msra.mxu0 %v7805
        %7925 = vmatpush.msra.mxu0 %v7804
        %7926 = vmatpush.msra.mxu0 %v7803
        %7927 = vmatpush.msra.mxu0 %v7802
        %7928 = vmatpush.msra.mxu0 %v7801
        %7929 = vmatpush.msra.mxu0 %v7800
        %7930 = vmatpush.msra.mxu0 %v7799
        %7931 = vmatpush.msra.mxu0 %v7798
        %7932 = vmatpush.msra.mxu0 %v7797
        %7933 = vmatmul.f32.gmra.mxu0 %v1509
        %v7934 = vpop.f32.mrf.mxu0
        %v7935 = vadd.f32 %v7915, %v7934
        %7936 = vdwg.mxu0
        %vm7937 = vcmask 15360
        %v7938 = vsel %vm7937, %v7935, -inf
        %7939 = vmax.xlane.f32.xlu0 %v7938
        %v7940 = vpop.xlane.xlu0 %7939
        %v7941 = vsub.f32 %v7935, %v7940
        %v7942 = vmul.f32 %v7941, 1.442695
        %v7943 = vpow.pop %v7942
        %v7944 = vsel %vm7937, %v7943, 0.0
        %7945 = vadd.xlane.f32.xlu0 %v7944
        %v7946 = vpop.xlane.xlu0 %7945
        %v7947 = vrcp.pop %v7946
        %v7948 = vmul.f32 %v7946, %v7947
        %v7949 = vsub.f32 1.0, %v7948
        %v7950 = vmul.f32 %v7947, %v7949
        %v7951 = vadd.f32 %v7947, %v7950
        %vm7952 = vweird.f32 %v7946
        %vm7953 = vweird.f32 %v7947
        %vm7954 = vmor %vm7952, %vm7953
        %v7955 = vsel %vm7954, %v7947, %v7951
        %v7956 = vand.u32 2147483647, %v7946
        %vm7957 = vcmp.eq.f32.partialorder %v7956, 8.507059e+37
        %v7958 = vand.u32 %v7946, 2147483648
        %v7959 = vor.u32 1.1754944e-38, %v7958
        %v7960 = vsel %vm7957, %v7959, %v7955
        %v7961 = vmul.f32 %v7943, %v7960
        %7962 = vst.msk [vmem:[%s553] sm:$0xff] %vm7937, %v7961
        %p7963 = scmp.lt.s32.totalorder %s28, 2
        %s7964 = scalar_select %p7963, %s28, 2
        %s7965 = smul.addr %s7964, 8
        %s7966 = scalar_lea.vmem %s14, %s7965
        // Predicated region
        $region97: #{tpu_custom_call.1} parent=75 // pred_check
          %p7967 = pneg %p345
        $region98: #{tpu_custom_call.1} parent=75 // pred_check_branch
          %7969 = sbr.rel (%p7967) target = $region100
        $region99: #{tpu_custom_call.1} parent=75 // pred_region
          _
        $region100: #{tpu_custom_call.1} parent=75 // pred_fallthru
          _
      $region76: #{tpu_custom_call.1} parent=5 // pred_fallthru
        _
      %p7970 = scmp.le.s32.totalorder 2, %s23
      // Predicated region
      $region101: #{tpu_custom_call.1} parent=5 // pred_check
        %p7971 = pneg %p7970
      $region102: #{tpu_custom_call.1} parent=5 // pred_check_branch
        %7973 = sbr.rel (%p7971) target = $region104
      $region103: #{tpu_custom_call.1} parent=5 // pred_region
        %s7974 = ssub.s32 %s23, 2
        // Predicated region
        $region105: #{tpu_custom_call.1} parent=103 // pred_check
          %p7975 = pneg %p351
        $region106: #{tpu_custom_call.1} parent=103 // pred_check_branch
          %7977 = sbr.rel (%p7975) target = $region108
        $region107: #{tpu_custom_call.1} parent=103 // pred_region
          %p7978 = scmp.lt.s32.totalorder %s29, 2
          %s7979 = scalar_select %p7978, %s29, 2
          %s7980 = smul.addr %s7979, 8
          %s7981 = scalar_lea.vmem %s14, %s7980
        $region108: #{tpu_custom_call.1} parent=103 // pred_fallthru
          _
      $region104: #{tpu_custom_call.1} parent=5 // pred_fallthru
        _
    $region6: #{tpu_custom_call.1} parent=1 // loop_footer
      %s27 = sadd.s32 1, %s23
    $region7: #{tpu_custom_call.1} parent=1 // loop_footer_branch
      %22 = sbr.rel target = $region3
    $region8: #{tpu_custom_call.1} parent=1 // loop_exit
      _
    %7982 = vsyncpa [#allocation3], 1
    %s7983 = scalar_lea.sflag [#allocation3], 1
    %7984 = vsyncpa %s7983, 1
    %7985 = vsyncpa [#allocation5], 1
    %7986 = vsyncpa [#allocation8], 1

</llo_original>
